<compile_context>
chip_gen: v6e
topology: v6e:2x2x1
jax: 0.10.0
libtpu: 0.0.40
codegen_flags: <defaults>
</compile_context>

<pallas_src>
import jax
import jax.numpy as jnp
from jax.experimental import pallas as pl
from jax.experimental.pallas import tpu as pltpu

LANE = 128


def _round_up(x, m):
    return ((x + m - 1) // m) * m


def mlp6_kernel(x_ref,
                w1, b1, w2, b2, w3, b3, w4, b4, w5, b5, w6, b6, w7, b7,
                o_ref):
    """One batch tile of the whole MLP stack. Weights are bf16 and VMEM-resident."""
    h = x_ref[...]                                      # bf16 activation tile
    # 6 hidden layers (unrolled at trace time): bf16 matmul inputs, f32 accumulation,
    # bias add + ReLU in f32 on the VPU.
    for w, b in ((w1, b1), (w2, b2), (w3, b3), (w4, b4), (w5, b5), (w6, b6)):
        h = jnp.dot(h.astype(jnp.bfloat16), w[...],
                    preferred_element_type=jnp.float32) + b[...]
        h = jnp.maximum(h, 0.0)
    # output layer (logits, lane-padded to 128; no softmax in forward)
    o_ref[...] = (jnp.dot(h.astype(jnp.bfloat16), w7[...],
                          preferred_element_type=jnp.float32)
                  + b7[...]).astype(o_ref.dtype)


def init_params(key, input_size, no_classes):
    """Deterministic PyTorch-style Linear init: U(-1/sqrt(fan_in), 1/sqrt(fan_in))."""
    dims = [input_size, 1024, 512, 512, 512, 256, 256, no_classes]
    params = []
    for i in range(7):
        key, kw, kb = jax.random.split(key, 3)
        bound = 1.0 / (dims[i] ** 0.5)
        w = jax.random.uniform(kw, (dims[i], dims[i + 1]), jnp.float32, -bound, bound)
        b = jax.random.uniform(kb, (dims[i + 1],), jnp.float32, -bound, bound)
        params.append((w, b))
    return params


def mlp6_forward(x, params, *, tm_max=256):
    """x: (B, C, H, W) or (B, F). Returns logits (B, no_classes), f32."""
    B = x.shape[0]
    # flatten (plain JAX glue) + bf16 cast: layer-1 matmul inputs are bf16 anyway,
    # so this halves the input HBM traffic with identical kernel numerics.
    x2 = x.reshape(B, -1).astype(jnp.bfloat16)
    F = x2.shape[1]
    no_classes = params[-1][1].shape[-1]
    out_pad = _round_up(no_classes, LANE)               # lane-dense output width

    # Batch tile: multiple of 8 sublanes, up to tm_max rows; pad B so tm divides it.
    B8 = _round_up(B, 8)
    tm = min(tm_max, B8)
    B_pad = _round_up(B8, tm)
    if B_pad != B:
        x2 = jnp.pad(x2, ((0, B_pad - B), (0, 0)))

    flat_args = [x2]
    in_specs = [pl.BlockSpec((tm, F), lambda i: (i, 0))]
    const_map = lambda i: (0, 0)                        # weights: DMA once, stay in VMEM
    n_layers = len(params)
    weight_bytes = 0
    flops = 0
    for li, (w, b) in enumerate(params):
        wv = w
        bv = b.reshape(1, -1)
        if li == n_layers - 1 and out_pad != no_classes:
            wv = jnp.pad(wv, ((0, 0), (0, out_pad - no_classes)))
            bv = jnp.pad(bv, ((0, 0), (0, out_pad - no_classes)))
        wv = wv.astype(jnp.bfloat16)                    # half the HBM weight bytes
        bv = bv.astype(jnp.float32)
        flat_args += [wv, bv]
        in_specs += [pl.BlockSpec(wv.shape, const_map),
                     pl.BlockSpec(bv.shape, const_map)]
        weight_bytes += wv.size * 2 + bv.size * 4
        flops += 2 * B_pad * wv.shape[0] * wv.shape[1]

    bytes_accessed = weight_bytes + x2.size * 2 + B_pad * out_pad * 4

    out = pl.pallas_call(
        mlp6_kernel,
        out_shape=jax.ShapeDtypeStruct((B_pad, out_pad), jnp.float32),
        grid=(B_pad // tm,),
        in_specs=in_specs,
        out_specs=pl.BlockSpec((tm, out_pad), lambda i: (i, 0)),
        compiler_params=pltpu.CompilerParams(
            dimension_semantics=("parallel",),
            vmem_limit_bytes=48 << 20),
        cost_estimate=pl.CostEstimate(flops=flops, transcendentals=0,
                                      bytes_accessed=bytes_accessed),
    )(*flat_args)
    return out[:B, :no_classes]


def mlp6_reference(x, params):
    """Pure-JAX reference with the same bf16 weight/activation-input quantization."""
    h = x.reshape(x.shape[0], -1).astype(jnp.float32)
    for i, (w, b) in enumerate(params):
        wq = w.astype(jnp.bfloat16).astype(jnp.float32)
        hq = h.astype(jnp.bfloat16).astype(jnp.float32)
        h = hq @ wq + b
        if i < len(params) - 1:
            h = jnp.maximum(h, 0.0)
    return h


if __name__ == "__main__":
    key = jax.random.PRNGKey(0)
    k_x, k_p = jax.random.split(key)

    # small, consistent shapes: batch=2, channels=4, spatial=16 -> input_size = 4*16*16 = 1024
    B, C, H, W = 2, 4, 16, 16
    input_size = C * H * W
    no_classes = 10

    x = jax.random.normal(k_x, (B, C, H, W), dtype=jnp.float32)
    params = init_params(k_p, input_size, no_classes)

    out = jax.block_until_ready(mlp6_forward(x, params))
    ref = mlp6_reference(x, params)

    assert out.shape == (B, no_classes)
    assert jnp.allclose(out, ref, atol=5e-3, rtol=5e-3), \
        float(jnp.max(jnp.abs(out - ref)))

    print("KERNEL_OK")
</pallas_src>

<mosaic_0001>
module attributes {stable_mosaic.version = 11 : i64} {
  func.func @mlp6_kernel(%arg0: i32, %arg1: memref<8x1024xbf16, #tpu.memory_space<vmem>>, %arg2: memref<1024x1024xbf16, #tpu.memory_space<vmem>>, %arg3: memref<1x1024xf32, #tpu.memory_space<vmem>>, %arg4: memref<1024x512xbf16, #tpu.memory_space<vmem>>, %arg5: memref<1x512xf32, #tpu.memory_space<vmem>>, %arg6: memref<512x512xbf16, #tpu.memory_space<vmem>>, %arg7: memref<1x512xf32, #tpu.memory_space<vmem>>, %arg8: memref<512x512xbf16, #tpu.memory_space<vmem>>, %arg9: memref<1x512xf32, #tpu.memory_space<vmem>>, %arg10: memref<512x256xbf16, #tpu.memory_space<vmem>>, %arg11: memref<1x256xf32, #tpu.memory_space<vmem>>, %arg12: memref<256x256xbf16, #tpu.memory_space<vmem>>, %arg13: memref<1x256xf32, #tpu.memory_space<vmem>>, %arg14: memref<256x128xbf16, #tpu.memory_space<vmem>>, %arg15: memref<1x128xf32, #tpu.memory_space<vmem>>, %arg16: memref<8x128xf32, #tpu.memory_space<vmem>>) attributes {dimension_semantics = [#tpu.dimension_semantics<parallel>], iteration_bounds = array<i64: 1>, scalar_prefetch = 0 : i64, scratch_operands = 0 : i64, tpu.core_type = #tpu.core_type<tc>, window_params = [{transform_indices = @transform_0, window_bounds = array<i64: 8, 1024>}, {pipeline_mode = #tpu.pipeline_mode<synchronous>, transform_indices = @transform_1, window_bounds = array<i64: 1024, 1024>}, {pipeline_mode = #tpu.pipeline_mode<synchronous>, transform_indices = @transform_2, window_bounds = array<i64: 1, 1024>}, {pipeline_mode = #tpu.pipeline_mode<synchronous>, transform_indices = @transform_3, window_bounds = array<i64: 1024, 512>}, {pipeline_mode = #tpu.pipeline_mode<synchronous>, transform_indices = @transform_4, window_bounds = array<i64: 1, 512>}, {pipeline_mode = #tpu.pipeline_mode<synchronous>, transform_indices = @transform_5, window_bounds = array<i64: 512, 512>}, {pipeline_mode = #tpu.pipeline_mode<synchronous>, transform_indices = @transform_6, window_bounds = array<i64: 1, 512>}, {pipeline_mode = #tpu.pipeline_mode<synchronous>, transform_indices = @transform_7, window_bounds = array<i64: 512, 512>}, {pipeline_mode = #tpu.pipeline_mode<synchronous>, transform_indices = @transform_8, window_bounds = array<i64: 1, 512>}, {pipeline_mode = #tpu.pipeline_mode<synchronous>, transform_indices = @transform_9, window_bounds = array<i64: 512, 256>}, {pipeline_mode = #tpu.pipeline_mode<synchronous>, transform_indices = @transform_10, window_bounds = array<i64: 1, 256>}, {pipeline_mode = #tpu.pipeline_mode<synchronous>, transform_indices = @transform_11, window_bounds = array<i64: 256, 256>}, {pipeline_mode = #tpu.pipeline_mode<synchronous>, transform_indices = @transform_12, window_bounds = array<i64: 1, 256>}, {pipeline_mode = #tpu.pipeline_mode<synchronous>, transform_indices = @transform_13, window_bounds = array<i64: 256, 128>}, {pipeline_mode = #tpu.pipeline_mode<synchronous>, transform_indices = @transform_14, window_bounds = array<i64: 1, 128>}, {transform_indices = @transform_15, window_bounds = array<i64: 8, 128>}]} {
    %c0 = arith.constant 0 : index
    %c0_0 = arith.constant 0 : index
    %0 = vector.load %arg1[%c0, %c0_0] : memref<8x1024xbf16, #tpu.memory_space<vmem>>, vector<8x1024xbf16>
    %c0_1 = arith.constant 0 : index
    %c0_2 = arith.constant 0 : index
    %1 = vector.load %arg2[%c0_1, %c0_2] : memref<1024x1024xbf16, #tpu.memory_space<vmem>>, vector<1024x1024xbf16>
    %cst = arith.constant dense<0.000000e+00> : vector<8x1024xf32>
    %2 = tpu.matmul %0, %1, %cst {dimension_numbers = #tpu.dot_dimension_numbers<[1], [0], [0], [1], [0, 0, 1, 1], [], []>} : vector<8x1024xbf16>, vector<1024x1024xbf16>, vector<8x1024xf32> -> vector<8x1024xf32>
    %c0_3 = arith.constant 0 : index
    %c0_4 = arith.constant 0 : index
    %3 = vector.load %arg3[%c0_3, %c0_4] : memref<1x1024xf32, #tpu.memory_space<vmem>>, vector<1x1024xf32>
    %4 = vector.broadcast %3 : vector<1x1024xf32> to vector<8x1024xf32>
    %5 = arith.addf %2, %4 : vector<8x1024xf32>
    %cst_5 = arith.constant 0.000000e+00 : f32
    %6 = vector.broadcast %cst_5 : f32 to vector<8x1024xf32>
    %7 = arith.maximumf %5, %6 : vector<8x1024xf32>
    %8 = arith.truncf %7 : vector<8x1024xf32> to vector<8x1024xbf16>
    %c0_6 = arith.constant 0 : index
    %c0_7 = arith.constant 0 : index
    %9 = vector.load %arg4[%c0_6, %c0_7] : memref<1024x512xbf16, #tpu.memory_space<vmem>>, vector<1024x512xbf16>
    %cst_8 = arith.constant dense<0.000000e+00> : vector<8x512xf32>
    %10 = tpu.matmul %8, %9, %cst_8 {dimension_numbers = #tpu.dot_dimension_numbers<[1], [0], [0], [1], [0, 0, 1, 1], [], []>} : vector<8x1024xbf16>, vector<1024x512xbf16>, vector<8x512xf32> -> vector<8x512xf32>
    %c0_9 = arith.constant 0 : index
    %c0_10 = arith.constant 0 : index
    %11 = vector.load %arg5[%c0_9, %c0_10] : memref<1x512xf32, #tpu.memory_space<vmem>>, vector<1x512xf32>
    %12 = vector.broadcast %11 : vector<1x512xf32> to vector<8x512xf32>
    %13 = arith.addf %10, %12 : vector<8x512xf32>
    %cst_11 = arith.constant 0.000000e+00 : f32
    %14 = vector.broadcast %cst_11 : f32 to vector<8x512xf32>
    %15 = arith.maximumf %13, %14 : vector<8x512xf32>
    %16 = arith.truncf %15 : vector<8x512xf32> to vector<8x512xbf16>
    %c0_12 = arith.constant 0 : index
    %c0_13 = arith.constant 0 : index
    %17 = vector.load %arg6[%c0_12, %c0_13] : memref<512x512xbf16, #tpu.memory_space<vmem>>, vector<512x512xbf16>
    %cst_14 = arith.constant dense<0.000000e+00> : vector<8x512xf32>
    %18 = tpu.matmul %16, %17, %cst_14 {dimension_numbers = #tpu.dot_dimension_numbers<[1], [0], [0], [1], [0, 0, 1, 1], [], []>} : vector<8x512xbf16>, vector<512x512xbf16>, vector<8x512xf32> -> vector<8x512xf32>
    %c0_15 = arith.constant 0 : index
    %c0_16 = arith.constant 0 : index
    %19 = vector.load %arg7[%c0_15, %c0_16] : memref<1x512xf32, #tpu.memory_space<vmem>>, vector<1x512xf32>
    %20 = vector.broadcast %19 : vector<1x512xf32> to vector<8x512xf32>
    %21 = arith.addf %18, %20 : vector<8x512xf32>
    %cst_17 = arith.constant 0.000000e+00 : f32
    %22 = vector.broadcast %cst_17 : f32 to vector<8x512xf32>
    %23 = arith.maximumf %21, %22 : vector<8x512xf32>
    %24 = arith.truncf %23 : vector<8x512xf32> to vector<8x512xbf16>
    %c0_18 = arith.constant 0 : index
    %c0_19 = arith.constant 0 : index
    %25 = vector.load %arg8[%c0_18, %c0_19] : memref<512x512xbf16, #tpu.memory_space<vmem>>, vector<512x512xbf16>
    %cst_20 = arith.constant dense<0.000000e+00> : vector<8x512xf32>
    %26 = tpu.matmul %24, %25, %cst_20 {dimension_numbers = #tpu.dot_dimension_numbers<[1], [0], [0], [1], [0, 0, 1, 1], [], []>} : vector<8x512xbf16>, vector<512x512xbf16>, vector<8x512xf32> -> vector<8x512xf32>
    %c0_21 = arith.constant 0 : index
    %c0_22 = arith.constant 0 : index
    %27 = vector.load %arg9[%c0_21, %c0_22] : memref<1x512xf32, #tpu.memory_space<vmem>>, vector<1x512xf32>
    %28 = vector.broadcast %27 : vector<1x512xf32> to vector<8x512xf32>
    %29 = arith.addf %26, %28 : vector<8x512xf32>
    %cst_23 = arith.constant 0.000000e+00 : f32
    %30 = vector.broadcast %cst_23 : f32 to vector<8x512xf32>
    %31 = arith.maximumf %29, %30 : vector<8x512xf32>
    %32 = arith.truncf %31 : vector<8x512xf32> to vector<8x512xbf16>
    %c0_24 = arith.constant 0 : index
    %c0_25 = arith.constant 0 : index
    %33 = vector.load %arg10[%c0_24, %c0_25] : memref<512x256xbf16, #tpu.memory_space<vmem>>, vector<512x256xbf16>
    %cst_26 = arith.constant dense<0.000000e+00> : vector<8x256xf32>
    %34 = tpu.matmul %32, %33, %cst_26 {dimension_numbers = #tpu.dot_dimension_numbers<[1], [0], [0], [1], [0, 0, 1, 1], [], []>} : vector<8x512xbf16>, vector<512x256xbf16>, vector<8x256xf32> -> vector<8x256xf32>
    %c0_27 = arith.constant 0 : index
    %c0_28 = arith.constant 0 : index
    %35 = vector.load %arg11[%c0_27, %c0_28] : memref<1x256xf32, #tpu.memory_space<vmem>>, vector<1x256xf32>
    %36 = vector.broadcast %35 : vector<1x256xf32> to vector<8x256xf32>
    %37 = arith.addf %34, %36 : vector<8x256xf32>
    %cst_29 = arith.constant 0.000000e+00 : f32
    %38 = vector.broadcast %cst_29 : f32 to vector<8x256xf32>
    %39 = arith.maximumf %37, %38 : vector<8x256xf32>
    %40 = arith.truncf %39 : vector<8x256xf32> to vector<8x256xbf16>
    %c0_30 = arith.constant 0 : index
    %c0_31 = arith.constant 0 : index
    %41 = vector.load %arg12[%c0_30, %c0_31] : memref<256x256xbf16, #tpu.memory_space<vmem>>, vector<256x256xbf16>
    %cst_32 = arith.constant dense<0.000000e+00> : vector<8x256xf32>
    %42 = tpu.matmul %40, %41, %cst_32 {dimension_numbers = #tpu.dot_dimension_numbers<[1], [0], [0], [1], [0, 0, 1, 1], [], []>} : vector<8x256xbf16>, vector<256x256xbf16>, vector<8x256xf32> -> vector<8x256xf32>
    %c0_33 = arith.constant 0 : index
    %c0_34 = arith.constant 0 : index
    %43 = vector.load %arg13[%c0_33, %c0_34] : memref<1x256xf32, #tpu.memory_space<vmem>>, vector<1x256xf32>
    %44 = vector.broadcast %43 : vector<1x256xf32> to vector<8x256xf32>
    %45 = arith.addf %42, %44 : vector<8x256xf32>
    %cst_35 = arith.constant 0.000000e+00 : f32
    %46 = vector.broadcast %cst_35 : f32 to vector<8x256xf32>
    %47 = arith.maximumf %45, %46 : vector<8x256xf32>
    %48 = arith.truncf %47 : vector<8x256xf32> to vector<8x256xbf16>
    %c0_36 = arith.constant 0 : index
    %c0_37 = arith.constant 0 : index
    %49 = vector.load %arg14[%c0_36, %c0_37] : memref<256x128xbf16, #tpu.memory_space<vmem>>, vector<256x128xbf16>
    %cst_38 = arith.constant dense<0.000000e+00> : vector<8x128xf32>
    %50 = tpu.matmul %48, %49, %cst_38 {dimension_numbers = #tpu.dot_dimension_numbers<[1], [0], [0], [1], [0, 0, 1, 1], [], []>} : vector<8x256xbf16>, vector<256x128xbf16>, vector<8x128xf32> -> vector<8x128xf32>
    %c0_39 = arith.constant 0 : index
    %c0_40 = arith.constant 0 : index
    %51 = vector.load %arg15[%c0_39, %c0_40] : memref<1x128xf32, #tpu.memory_space<vmem>>, vector<1x128xf32>
    %52 = vector.broadcast %51 : vector<1x128xf32> to vector<8x128xf32>
    %53 = arith.addf %50, %52 : vector<8x128xf32>
    %c0_41 = arith.constant 0 : index
    %c0_42 = arith.constant 0 : index
    %54 = vector.load %arg16[%c0_41, %c0_42] : memref<8x128xf32, #tpu.memory_space<vmem>>, vector<8x128xf32>
    tpu.vector_store %arg16[%c0_41, %c0_42], %53 {strides = array<i32>} : memref<8x128xf32, #tpu.memory_space<vmem>>, vector<8x128xf32>,
    return
  }
  func.func @transform_0(%arg0: i32) -> (i32, i32) {
    %c0_i32 = arith.constant 0 : i32
    %c0_i32_0 = arith.constant 0 : i32
    return %arg0, %c0_i32 : i32, i32
  }
  func.func @transform_1(%arg0: i32) -> (i32, i32) {
    %c0_i32 = arith.constant 0 : i32
    %c0_i32_0 = arith.constant 0 : i32
    %c0_i32_1 = arith.constant 0 : i32
    return %c0_i32, %c0_i32_0 : i32, i32
  }
  func.func @transform_2(%arg0: i32) -> (i32, i32) {
    %c0_i32 = arith.constant 0 : i32
    %c0_i32_0 = arith.constant 0 : i32
    %c0_i32_1 = arith.constant 0 : i32
    return %c0_i32, %c0_i32_0 : i32, i32
  }
  func.func @transform_3(%arg0: i32) -> (i32, i32) {
    %c0_i32 = arith.constant 0 : i32
    %c0_i32_0 = arith.constant 0 : i32
    %c0_i32_1 = arith.constant 0 : i32
    return %c0_i32, %c0_i32_0 : i32, i32
  }
  func.func @transform_4(%arg0: i32) -> (i32, i32) {
    %c0_i32 = arith.constant 0 : i32
    %c0_i32_0 = arith.constant 0 : i32
    %c0_i32_1 = arith.constant 0 : i32
    return %c0_i32, %c0_i32_0 : i32, i32
  }
  func.func @transform_5(%arg0: i32) -> (i32, i32) {
    %c0_i32 = arith.constant 0 : i32
    %c0_i32_0 = arith.constant 0 : i32
    %c0_i32_1 = arith.constant 0 : i32
    return %c0_i32, %c0_i32_0 : i32, i32
  }
  func.func @transform_6(%arg0: i32) -> (i32, i32) {
    %c0_i32 = arith.constant 0 : i32
    %c0_i32_0 = arith.constant 0 : i32
    %c0_i32_1 = arith.constant 0 : i32
    return %c0_i32, %c0_i32_0 : i32, i32
  }
  func.func @transform_7(%arg0: i32) -> (i32, i32) {
    %c0_i32 = arith.constant 0 : i32
    %c0_i32_0 = arith.constant 0 : i32
    %c0_i32_1 = arith.constant 0 : i32
    return %c0_i32, %c0_i32_0 : i32, i32
  }
  func.func @transform_8(%arg0: i32) -> (i32, i32) {
    %c0_i32 = arith.constant 0 : i32
    %c0_i32_0 = arith.constant 0 : i32
    %c0_i32_1 = arith.constant 0 : i32
    return %c0_i32, %c0_i32_0 : i32, i32
  }
  func.func @transform_9(%arg0: i32) -> (i32, i32) {
    %c0_i32 = arith.constant 0 : i32
    %c0_i32_0 = arith.constant 0 : i32
    %c0_i32_1 = arith.constant 0 : i32
    return %c0_i32, %c0_i32_0 : i32, i32
  }
  func.func @transform_10(%arg0: i32) -> (i32, i32) {
    %c0_i32 = arith.constant 0 : i32
    %c0_i32_0 = arith.constant 0 : i32
    %c0_i32_1 = arith.constant 0 : i32
    return %c0_i32, %c0_i32_0 : i32, i32
  }
  func.func @transform_11(%arg0: i32) -> (i32, i32) {
    %c0_i32 = arith.constant 0 : i32
    %c0_i32_0 = arith.constant 0 : i32
    %c0_i32_1 = arith.constant 0 : i32
    return %c0_i32, %c0_i32_0 : i32, i32
  }
  func.func @transform_12(%arg0: i32) -> (i32, i32) {
    %c0_i32 = arith.constant 0 : i32
    %c0_i32_0 = arith.constant 0 : i32
    %c0_i32_1 = arith.constant 0 : i32
    return %c0_i32, %c0_i32_0 : i32, i32
  }
  func.func @transform_13(%arg0: i32) -> (i32, i32) {
    %c0_i32 = arith.constant 0 : i32
    %c0_i32_0 = arith.constant 0 : i32
    %c0_i32_1 = arith.constant 0 : i32
    return %c0_i32, %c0_i32_0 : i32, i32
  }
  func.func @transform_14(%arg0: i32) -> (i32, i32) {
    %c0_i32 = arith.constant 0 : i32
    %c0_i32_0 = arith.constant 0 : i32
    %c0_i32_1 = arith.constant 0 : i32
    return %c0_i32, %c0_i32_0 : i32, i32
  }
  func.func @transform_15(%arg0: i32) -> (i32, i32) {
    %c0_i32 = arith.constant 0 : i32
    %c0_i32_0 = arith.constant 0 : i32
    return %arg0, %c0_i32 : i32, i32
  }
}

</mosaic_0001>

<llo_original>
// kernel: tpu_custom_call.1
$region0: #{tpu_custom_call.1}
  #allocation0 [shape = 'u32[]', space=smem, size = 0x4, offset = 0x4, fixed_abs, tag = 'smem constant byte address 0x4 - core index']
  #allocation1 [shape = 'u32[144,128]{1,0:T(1,128)}', space=vmem, size = 0x12000, scoped, tag = 'internal scratch']
  %s0 = inlined_call_operand.hbm [shape: bf16[8,1024], index: 0, kind: input, shape index: {}]
  %s1 = inlined_call_operand.hbm [shape: bf16[1024,1024], index: 1, kind: input, shape index: {}]
  %s2 = inlined_call_operand.hbm [shape: f32[1,1024], index: 2, kind: input, shape index: {}]
  %s3 = inlined_call_operand.hbm [shape: bf16[1024,512], index: 3, kind: input, shape index: {}]
  %s4 = inlined_call_operand.hbm [shape: f32[1,512], index: 4, kind: input, shape index: {}]
  %s5 = inlined_call_operand.hbm [shape: bf16[512,512], index: 5, kind: input, shape index: {}]
  %s6 = inlined_call_operand.hbm [shape: f32[1,512], index: 6, kind: input, shape index: {}]
  %s7 = inlined_call_operand.hbm [shape: bf16[512,512], index: 7, kind: input, shape index: {}]
  %s8 = inlined_call_operand.hbm [shape: f32[1,512], index: 8, kind: input, shape index: {}]
  %s9 = inlined_call_operand.hbm [shape: bf16[512,256], index: 9, kind: input, shape index: {}]
  %s10 = inlined_call_operand.hbm [shape: f32[1,256], index: 10, kind: input, shape index: {}]
  %s11 = inlined_call_operand.hbm [shape: bf16[256,256], index: 11, kind: input, shape index: {}]
  %s12 = inlined_call_operand.hbm [shape: f32[1,256], index: 12, kind: input, shape index: {}]
  %s13 = inlined_call_operand.hbm [shape: bf16[256,128], index: 13, kind: input, shape index: {}]
  %s14 = inlined_call_operand.hbm [shape: f32[1,128], index: 14, kind: input, shape index: {}]
  %s15 = inlined_call_operand.hbm [shape: f32[8,128], index: 15, kind: output, shape index: {}]
  %s16 = sld [smem:[#allocation0]]
  $region130: #{tpu_custom_call.1} parent=0
    _
  %s18 = ssub.s32 1, %s16
  %s19 = scalar_select 0, %s18, %s16
  $region1: #{tpu_custom_call.1} parent=0
    #allocation2 [shape = 'u8[16384]{0}', space=vmem, size = 0x4000, scoped, tag = 'input window, operand 0, single buffered']
    #allocation3 [shape = 's32[1]{0}', space=sflag, size = 0x4, scoped, tag = 'scoped memory for tpu_custom_call.1']
    #allocation4 [shape = 's32[1]{0}', space=sflag, size = 0x4, scoped, tag = 'scoped memory for tpu_custom_call.1']
    #allocation5 [shape = 'u8[2097152]{0}', space=vmem, size = 0x200000, scoped, tag = 'input window, operand 1, single buffered']
    #allocation6 [shape = 's32[1]{0}', space=sflag, size = 0x4, scoped, tag = 'scoped memory for tpu_custom_call.1']
    #allocation7 [shape = 'u8[4096]{0}', space=vmem, size = 0x1000, scoped, tag = 'input window, operand 2, single buffered']
    #allocation8 [shape = 'u8[1048576]{0}', space=vmem, size = 0x100000, scoped, tag = 'input window, operand 3, single buffered']
    #allocation9 [shape = 's32[1]{0}', space=sflag, size = 0x4, scoped, tag = 'scoped memory for tpu_custom_call.1']
    #allocation10 [shape = 'u8[2048]{0}', space=vmem, size = 0x800, scoped, tag = 'input window, operand 4, single buffered']
    #allocation11 [shape = 'u8[524288]{0}', space=vmem, size = 0x80000, scoped, tag = 'input window, operand 5, single buffered']
    #allocation12 [shape = 's32[1]{0}', space=sflag, size = 0x4, scoped, tag = 'scoped memory for tpu_custom_call.1']
    #allocation13 [shape = 'u8[2048]{0}', space=vmem, size = 0x800, scoped, tag = 'input window, operand 6, single buffered']
    #allocation14 [shape = 'u8[524288]{0}', space=vmem, size = 0x80000, scoped, tag = 'input window, operand 7, single buffered']
    #allocation15 [shape = 's32[1]{0}', space=sflag, size = 0x4, scoped, tag = 'scoped memory for tpu_custom_call.1']
    #allocation16 [shape = 'u8[2048]{0}', space=vmem, size = 0x800, scoped, tag = 'input window, operand 8, single buffered']
    #allocation17 [shape = 'u8[262144]{0}', space=vmem, size = 0x40000, scoped, tag = 'input window, operand 9, single buffered']
    #allocation18 [shape = 's32[1]{0}', space=sflag, size = 0x4, scoped, tag = 'scoped memory for tpu_custom_call.1']
    #allocation19 [shape = 'u8[1024]{0}', space=vmem, size = 0x400, scoped, tag = 'input window, operand 10, single buffered']
    #allocation20 [shape = 'u8[131072]{0}', space=vmem, size = 0x20000, scoped, tag = 'input window, operand 11, single buffered']
    #allocation21 [shape = 's32[1]{0}', space=sflag, size = 0x4, scoped, tag = 'scoped memory for tpu_custom_call.1']
    #allocation22 [shape = 'u8[1024]{0}', space=vmem, size = 0x400, scoped, tag = 'input window, operand 12, single buffered']
    #allocation23 [shape = 'u8[65536]{0}', space=vmem, size = 0x10000, scoped, tag = 'input window, operand 13, single buffered']
    #allocation24 [shape = 's32[1]{0}', space=sflag, size = 0x4, scoped, tag = 'scoped memory for tpu_custom_call.1']
    #allocation25 [shape = 'u8[512]{0}', space=vmem, size = 0x400, scoped, tag = 'input window, operand 14, single buffered']
    #allocation26 [shape = 'u8[4096]{0}', space=vmem, size = 0x1000, scoped, tag = 'output window, operand 0, single buffered']
    %20 = vsyncpa [#allocation3], 0
    %21 = vsyncpa [#allocation6], 0
    %22 = vsyncpa [#allocation9], 0
    %23 = vsyncpa [#allocation12], 0
    %24 = vsyncpa [#allocation15], 0
    %25 = vsyncpa [#allocation18], 0
    %26 = vsyncpa [#allocation21], 0
    %27 = vsyncpa [#allocation24], 0
    %28 = vsyncpa [#allocation4], 0
    // Predicated region
    $region2: #{tpu_custom_call.1} parent=1 // pred_check
      _
    $region3: #{tpu_custom_call.1} parent=1 // pred_check_branch
      %30 = sbr.rel (0) target = $region5
    $region4: #{tpu_custom_call.1} parent=1 // pred_region
      %s32 = ssub.s32 512, 512
      %33 = vsyncadd [#allocation3], %s32
      %s35 = sshll.u32 [#allocation2], 4
      %s36 = int_to_ptr.vmem [resolvable:$true] %s35
      %38 = dma.hbm_to_vmem [thread:$0]  %s0, 512, %s36, [#allocation3]
    $region5: #{tpu_custom_call.1} parent=1 // pred_fallthru
      _
    // Predicated region
    $region6: #{tpu_custom_call.1} parent=1 // pred_check
      _
    $region7: #{tpu_custom_call.1} parent=1 // pred_check_branch
      %40 = sbr.rel (0) target = $region9
    $region8: #{tpu_custom_call.1} parent=1 // pred_region
      %s42 = ssub.s32 65536, 65536
      %43 = vsyncadd [#allocation6], %s42
      %s44 = sshll.u32 [#allocation5], 4
      %s45 = int_to_ptr.vmem [resolvable:$true] %s44
      %50 = dma.hbm_to_vmem [thread:$0]  %s1, 65536, %s45, [#allocation6], 512, 512, 32
    $region9: #{tpu_custom_call.1} parent=1 // pred_fallthru
      _
    // Predicated region
    $region10: #{tpu_custom_call.1} parent=1 // pred_check
      _
    $region11: #{tpu_custom_call.1} parent=1 // pred_check_branch
      %52 = sbr.rel (0) target = $region13
    $region12: #{tpu_custom_call.1} parent=1 // pred_region
      %s54 = ssub.s32 128, 128
      %55 = vsyncadd [#allocation6], %s54
      %s57 = sshll.u32 [#allocation7], 4
      %s58 = int_to_ptr.vmem [resolvable:$true] %s57
      %60 = dma.hbm_to_vmem [thread:$0]  %s2, 128, %s58, [#allocation6]
    $region13: #{tpu_custom_call.1} parent=1 // pred_fallthru
      _
    // Predicated region
    $region14: #{tpu_custom_call.1} parent=1 // pred_check
      _
    $region15: #{tpu_custom_call.1} parent=1 // pred_check_branch
      %62 = sbr.rel (0) target = $region17
    $region16: #{tpu_custom_call.1} parent=1 // pred_region
      %s64 = ssub.s32 32768, 32768
      %65 = vsyncadd [#allocation9], %s64
      %s66 = sshll.u32 [#allocation8], 4
      %s67 = int_to_ptr.vmem [resolvable:$true] %s66
      %72 = dma.hbm_to_vmem [thread:$0]  %s3, 32768, %s67, [#allocation9], 256, 256, 16
    $region17: #{tpu_custom_call.1} parent=1 // pred_fallthru
      _
    // Predicated region
    $region18: #{tpu_custom_call.1} parent=1 // pred_check
      _
    $region19: #{tpu_custom_call.1} parent=1 // pred_check_branch
      %74 = sbr.rel (0) target = $region21
    $region20: #{tpu_custom_call.1} parent=1 // pred_region
      %s76 = ssub.s32 64, 64
      %77 = vsyncadd [#allocation9], %s76
      %s79 = sshll.u32 [#allocation10], 4
      %s80 = int_to_ptr.vmem [resolvable:$true] %s79
      %82 = dma.hbm_to_vmem [thread:$0]  %s4, 64, %s80, [#allocation9]
    $region21: #{tpu_custom_call.1} parent=1 // pred_fallthru
      _
    // Predicated region
    $region22: #{tpu_custom_call.1} parent=1 // pred_check
      _
    $region23: #{tpu_custom_call.1} parent=1 // pred_check_branch
      %84 = sbr.rel (0) target = $region25
    $region24: #{tpu_custom_call.1} parent=1 // pred_region
      %s86 = ssub.s32 16384, 16384
      %87 = vsyncadd [#allocation12], %s86
      %s88 = sshll.u32 [#allocation11], 4
      %s89 = int_to_ptr.vmem [resolvable:$true] %s88
      %94 = dma.hbm_to_vmem [thread:$0]  %s5, 16384, %s89, [#allocation12], 256, 256, 16
    $region25: #{tpu_custom_call.1} parent=1 // pred_fallthru
      _
    // Predicated region
    $region26: #{tpu_custom_call.1} parent=1 // pred_check
      _
    $region27: #{tpu_custom_call.1} parent=1 // pred_check_branch
      %96 = sbr.rel (0) target = $region29
    $region28: #{tpu_custom_call.1} parent=1 // pred_region
      %s98 = ssub.s32 64, 64
      %99 = vsyncadd [#allocation12], %s98
      %s101 = sshll.u32 [#allocation13], 4
      %s102 = int_to_ptr.vmem [resolvable:$true] %s101
      %104 = dma.hbm_to_vmem [thread:$0]  %s6, 64, %s102, [#allocation12]
    $region29: #{tpu_custom_call.1} parent=1 // pred_fallthru
      _
    // Predicated region
    $region30: #{tpu_custom_call.1} parent=1 // pred_check
      _
    $region31: #{tpu_custom_call.1} parent=1 // pred_check_branch
      %106 = sbr.rel (0) target = $region33
    $region32: #{tpu_custom_call.1} parent=1 // pred_region
      %s108 = ssub.s32 16384, 16384
      %109 = vsyncadd [#allocation15], %s108
      %s110 = sshll.u32 [#allocation14], 4
      %s111 = int_to_ptr.vmem [resolvable:$true] %s110
      %116 = dma.hbm_to_vmem [thread:$0]  %s7, 16384, %s111, [#allocation15], 256, 256, 16
    $region33: #{tpu_custom_call.1} parent=1 // pred_fallthru
      _
    // Predicated region
    $region34: #{tpu_custom_call.1} parent=1 // pred_check
      _
    $region35: #{tpu_custom_call.1} parent=1 // pred_check_branch
      %118 = sbr.rel (0) target = $region37
    $region36: #{tpu_custom_call.1} parent=1 // pred_region
      %s120 = ssub.s32 64, 64
      %121 = vsyncadd [#allocation15], %s120
      %s123 = sshll.u32 [#allocation16], 4
      %s124 = int_to_ptr.vmem [resolvable:$true] %s123
      %126 = dma.hbm_to_vmem [thread:$0]  %s8, 64, %s124, [#allocation15]
    $region37: #{tpu_custom_call.1} parent=1 // pred_fallthru
      _
    // Predicated region
    $region38: #{tpu_custom_call.1} parent=1 // pred_check
      _
    $region39: #{tpu_custom_call.1} parent=1 // pred_check_branch
      %128 = sbr.rel (0) target = $region41
    $region40: #{tpu_custom_call.1} parent=1 // pred_region
      %s130 = ssub.s32 8192, 8192
      %131 = vsyncadd [#allocation18], %s130
      %s132 = sshll.u32 [#allocation17], 4
      %s133 = int_to_ptr.vmem [resolvable:$true] %s132
      %138 = dma.hbm_to_vmem [thread:$0]  %s9, 8192, %s133, [#allocation18], 128, 128, 8
    $region41: #{tpu_custom_call.1} parent=1 // pred_fallthru
      _
    // Predicated region
    $region42: #{tpu_custom_call.1} parent=1 // pred_check
      _
    $region43: #{tpu_custom_call.1} parent=1 // pred_check_branch
      %140 = sbr.rel (0) target = $region45
    $region44: #{tpu_custom_call.1} parent=1 // pred_region
      %s142 = ssub.s32 32, 32
      %143 = vsyncadd [#allocation18], %s142
      %s145 = sshll.u32 [#allocation19], 4
      %s146 = int_to_ptr.vmem [resolvable:$true] %s145
      %148 = dma.hbm_to_vmem [thread:$0]  %s10, 32, %s146, [#allocation18]
    $region45: #{tpu_custom_call.1} parent=1 // pred_fallthru
      _
    // Predicated region
    $region46: #{tpu_custom_call.1} parent=1 // pred_check
      _
    $region47: #{tpu_custom_call.1} parent=1 // pred_check_branch
      %150 = sbr.rel (0) target = $region49
    $region48: #{tpu_custom_call.1} parent=1 // pred_region
      %s152 = ssub.s32 4096, 4096
      %153 = vsyncadd [#allocation21], %s152
      %s154 = sshll.u32 [#allocation20], 4
      %s155 = int_to_ptr.vmem [resolvable:$true] %s154
      %160 = dma.hbm_to_vmem [thread:$0]  %s11, 4096, %s155, [#allocation21], 128, 128, 8
    $region49: #{tpu_custom_call.1} parent=1 // pred_fallthru
      _
    // Predicated region
    $region50: #{tpu_custom_call.1} parent=1 // pred_check
      _
    $region51: #{tpu_custom_call.1} parent=1 // pred_check_branch
      %162 = sbr.rel (0) target = $region53
    $region52: #{tpu_custom_call.1} parent=1 // pred_region
      %s164 = ssub.s32 32, 32
      %165 = vsyncadd [#allocation21], %s164
      %s167 = sshll.u32 [#allocation22], 4
      %s168 = int_to_ptr.vmem [resolvable:$true] %s167
      %170 = dma.hbm_to_vmem [thread:$0]  %s12, 32, %s168, [#allocation21]
    $region53: #{tpu_custom_call.1} parent=1 // pred_fallthru
      _
    // Predicated region
    $region54: #{tpu_custom_call.1} parent=1 // pred_check
      _
    $region55: #{tpu_custom_call.1} parent=1 // pred_check_branch
      %172 = sbr.rel (0) target = $region57
    $region56: #{tpu_custom_call.1} parent=1 // pred_region
      %s174 = ssub.s32 2048, 2048
      %175 = vsyncadd [#allocation24], %s174
      %s176 = sshll.u32 [#allocation23], 4
      %s177 = int_to_ptr.vmem [resolvable:$true] %s176
      %182 = dma.hbm_to_vmem [thread:$0]  %s13, 2048, %s177, [#allocation24], 64, 64, 4
    $region57: #{tpu_custom_call.1} parent=1 // pred_fallthru
      _
    // Predicated region
    $region58: #{tpu_custom_call.1} parent=1 // pred_check
      _
    $region59: #{tpu_custom_call.1} parent=1 // pred_check_branch
      %184 = sbr.rel (0) target = $region61
    $region60: #{tpu_custom_call.1} parent=1 // pred_region
      %s186 = ssub.s32 16, 16
      %187 = vsyncadd [#allocation24], %s186
      %s189 = sshll.u32 [#allocation25], 4
      %s190 = int_to_ptr.vmem [resolvable:$true] %s189
      %192 = dma.hbm_to_vmem [thread:$0]  %s14, 16, %s190, [#allocation24]
    $region61: #{tpu_custom_call.1} parent=1 // pred_fallthru
      _
    // Predicated region
    $region62: #{tpu_custom_call.1} parent=1 // pred_check
      _
    $region63: #{tpu_custom_call.1} parent=1 // pred_check_branch
      %194 = sbr.rel (0) target = $region65
    $region64: #{tpu_custom_call.1} parent=1 // pred_region
      %195 = dma.done [#allocation3], 512
    $region65: #{tpu_custom_call.1} parent=1 // pred_fallthru
      _
    // Predicated region
    $region66: #{tpu_custom_call.1} parent=1 // pred_check
      _
    $region67: #{tpu_custom_call.1} parent=1 // pred_check_branch
      %197 = sbr.rel (0) target = $region69
    $region68: #{tpu_custom_call.1} parent=1 // pred_region
      %198 = dma.done [#allocation6], 65536
    $region69: #{tpu_custom_call.1} parent=1 // pred_fallthru
      _
    // Predicated region
    $region70: #{tpu_custom_call.1} parent=1 // pred_check
      _
    $region71: #{tpu_custom_call.1} parent=1 // pred_check_branch
      %200 = sbr.rel (0) target = $region73
    $region72: #{tpu_custom_call.1} parent=1 // pred_region
      %201 = dma.done [#allocation6], 128
    $region73: #{tpu_custom_call.1} parent=1 // pred_fallthru
      _
    // Predicated region
    $region74: #{tpu_custom_call.1} parent=1 // pred_check
      _
    $region75: #{tpu_custom_call.1} parent=1 // pred_check_branch
      %203 = sbr.rel (0) target = $region77
    $region76: #{tpu_custom_call.1} parent=1 // pred_region
      %204 = dma.done [#allocation9], 32768
    $region77: #{tpu_custom_call.1} parent=1 // pred_fallthru
      _
    // Predicated region
    $region78: #{tpu_custom_call.1} parent=1 // pred_check
      _
    $region79: #{tpu_custom_call.1} parent=1 // pred_check_branch
      %206 = sbr.rel (0) target = $region81
    $region80: #{tpu_custom_call.1} parent=1 // pred_region
      %207 = dma.done [#allocation9], 64
    $region81: #{tpu_custom_call.1} parent=1 // pred_fallthru
      _
    // Predicated region
    $region82: #{tpu_custom_call.1} parent=1 // pred_check
      _
    $region83: #{tpu_custom_call.1} parent=1 // pred_check_branch
      %209 = sbr.rel (0) target = $region85
    $region84: #{tpu_custom_call.1} parent=1 // pred_region
      %210 = dma.done [#allocation12], 16384
    $region85: #{tpu_custom_call.1} parent=1 // pred_fallthru
      _
    // Predicated region
    $region86: #{tpu_custom_call.1} parent=1 // pred_check
      _
    $region87: #{tpu_custom_call.1} parent=1 // pred_check_branch
      %212 = sbr.rel (0) target = $region89
    $region88: #{tpu_custom_call.1} parent=1 // pred_region
      %213 = dma.done [#allocation12], 64
    $region89: #{tpu_custom_call.1} parent=1 // pred_fallthru
      _
    // Predicated region
    $region90: #{tpu_custom_call.1} parent=1 // pred_check
      _
    $region91: #{tpu_custom_call.1} parent=1 // pred_check_branch
      %215 = sbr.rel (0) target = $region93
    $region92: #{tpu_custom_call.1} parent=1 // pred_region
      %216 = dma.done [#allocation15], 16384
    $region93: #{tpu_custom_call.1} parent=1 // pred_fallthru
      _
    // Predicated region
    $region94: #{tpu_custom_call.1} parent=1 // pred_check
      _
    $region95: #{tpu_custom_call.1} parent=1 // pred_check_branch
      %218 = sbr.rel (0) target = $region97
    $region96: #{tpu_custom_call.1} parent=1 // pred_region
      %219 = dma.done [#allocation15], 64
    $region97: #{tpu_custom_call.1} parent=1 // pred_fallthru
      _
    // Predicated region
    $region98: #{tpu_custom_call.1} parent=1 // pred_check
      _
    $region99: #{tpu_custom_call.1} parent=1 // pred_check_branch
      %221 = sbr.rel (0) target = $region101
    $region100: #{tpu_custom_call.1} parent=1 // pred_region
      %222 = dma.done [#allocation18], 8192
    $region101: #{tpu_custom_call.1} parent=1 // pred_fallthru
      _
    // Predicated region
    $region102: #{tpu_custom_call.1} parent=1 // pred_check
      _
    $region103: #{tpu_custom_call.1} parent=1 // pred_check_branch
      %224 = sbr.rel (0) target = $region105
    $region104: #{tpu_custom_call.1} parent=1 // pred_region
      %225 = dma.done [#allocation18], 32
    $region105: #{tpu_custom_call.1} parent=1 // pred_fallthru
      _
    // Predicated region
    $region106: #{tpu_custom_call.1} parent=1 // pred_check
      _
    $region107: #{tpu_custom_call.1} parent=1 // pred_check_branch
      %227 = sbr.rel (0) target = $region109
    $region108: #{tpu_custom_call.1} parent=1 // pred_region
      %228 = dma.done [#allocation21], 4096
    $region109: #{tpu_custom_call.1} parent=1 // pred_fallthru
      _
    // Predicated region
    $region110: #{tpu_custom_call.1} parent=1 // pred_check
      _
    $region111: #{tpu_custom_call.1} parent=1 // pred_check_branch
      %230 = sbr.rel (0) target = $region113
    $region112: #{tpu_custom_call.1} parent=1 // pred_region
      %231 = dma.done [#allocation21], 32
    $region113: #{tpu_custom_call.1} parent=1 // pred_fallthru
      _
    // Predicated region
    $region114: #{tpu_custom_call.1} parent=1 // pred_check
      _
    $region115: #{tpu_custom_call.1} parent=1 // pred_check_branch
      %233 = sbr.rel (0) target = $region117
    $region116: #{tpu_custom_call.1} parent=1 // pred_region
      %234 = dma.done [#allocation24], 2048
    $region117: #{tpu_custom_call.1} parent=1 // pred_fallthru
      _
    // Predicated region
    $region118: #{tpu_custom_call.1} parent=1 // pred_check
      _
    $region119: #{tpu_custom_call.1} parent=1 // pred_check_branch
      %236 = sbr.rel (0) target = $region121
    $region120: #{tpu_custom_call.1} parent=1 // pred_region
      %237 = dma.done [#allocation24], 16
    $region121: #{tpu_custom_call.1} parent=1 // pred_fallthru
      _
    %v239 = vld [vmem:[#allocation2] sm:$0xff]
    %v240 = vld [vmem:[#allocation2 + $0x8] sm:$0xff]
    %v241 = vld [vmem:[#allocation2 + $0x10] sm:$0xff]
    %v242 = vld [vmem:[#allocation2 + $0x18] sm:$0xff]
    %v243 = vld [vmem:[#allocation5] sm:$0xff]
    %v244 = vld [vmem:[#allocation5 + $0x8] sm:$0xff]
    %v245 = vld [vmem:[#allocation5 + $0x10] sm:$0xff]
    %v246 = vld [vmem:[#allocation5 + $0x18] sm:$0xff]
    %v247 = vld [vmem:[#allocation5 + $0x20] sm:$0xff]
    %v248 = vld [vmem:[#allocation5 + $0x28] sm:$0xff]
    %v249 = vld [vmem:[#allocation5 + $0x30] sm:$0xff]
    %v250 = vld [vmem:[#allocation5 + $0x38] sm:$0xff]
    %v251 = vld [vmem:[#allocation5 + $0x40] sm:$0xff]
    %v252 = vld [vmem:[#allocation5 + $0x48] sm:$0xff]
    %v253 = vld [vmem:[#allocation5 + $0x50] sm:$0xff]
    %v254 = vld [vmem:[#allocation5 + $0x58] sm:$0xff]
    %v255 = vld [vmem:[#allocation5 + $0x60] sm:$0xff]
    %v256 = vld [vmem:[#allocation5 + $0x68] sm:$0xff]
    %v257 = vld [vmem:[#allocation5 + $0x70] sm:$0xff]
    %v258 = vld [vmem:[#allocation5 + $0x78] sm:$0xff]
    %v259 = vld [vmem:[#allocation5 + $0x80] sm:$0xff]
    %v260 = vld [vmem:[#allocation5 + $0x88] sm:$0xff]
    %v261 = vld [vmem:[#allocation5 + $0x90] sm:$0xff]
    %v262 = vld [vmem:[#allocation5 + $0x98] sm:$0xff]
    %v263 = vld [vmem:[#allocation5 + $0xa0] sm:$0xff]
    %v264 = vld [vmem:[#allocation5 + $0xa8] sm:$0xff]
    %v265 = vld [vmem:[#allocation5 + $0xb0] sm:$0xff]
    %v266 = vld [vmem:[#allocation5 + $0xb8] sm:$0xff]
    %v267 = vld [vmem:[#allocation5 + $0xc0] sm:$0xff]
    %v268 = vld [vmem:[#allocation5 + $0xc8] sm:$0xff]
    %v269 = vld [vmem:[#allocation5 + $0xd0] sm:$0xff]
    %v270 = vld [vmem:[#allocation5 + $0xd8] sm:$0xff]
    %v271 = vld [vmem:[#allocation5 + $0xe0] sm:$0xff]
    %v272 = vld [vmem:[#allocation5 + $0xe8] sm:$0xff]
    %v273 = vld [vmem:[#allocation5 + $0xf0] sm:$0xff]
    %v274 = vld [vmem:[#allocation5 + $0xf8] sm:$0xff]
    %v275 = vld [vmem:[#allocation5 + $0x100] sm:$0xff]
    %v276 = vld [vmem:[#allocation5 + $0x108] sm:$0xff]
    %v277 = vld [vmem:[#allocation5 + $0x110] sm:$0xff]
    %v278 = vld [vmem:[#allocation5 + $0x118] sm:$0xff]
    %v279 = vld [vmem:[#allocation5 + $0x120] sm:$0xff]
    %v280 = vld [vmem:[#allocation5 + $0x128] sm:$0xff]
    %v281 = vld [vmem:[#allocation5 + $0x130] sm:$0xff]
    %v282 = vld [vmem:[#allocation5 + $0x138] sm:$0xff]
    %v283 = vld [vmem:[#allocation5 + $0x140] sm:$0xff]
    %v284 = vld [vmem:[#allocation5 + $0x148] sm:$0xff]
    %v285 = vld [vmem:[#allocation5 + $0x150] sm:$0xff]
    %v286 = vld [vmem:[#allocation5 + $0x158] sm:$0xff]
    %v287 = vld [vmem:[#allocation5 + $0x160] sm:$0xff]
    %v288 = vld [vmem:[#allocation5 + $0x168] sm:$0xff]
    %v289 = vld [vmem:[#allocation5 + $0x170] sm:$0xff]
    %v290 = vld [vmem:[#allocation5 + $0x178] sm:$0xff]
    %v291 = vld [vmem:[#allocation5 + $0x180] sm:$0xff]
    %v292 = vld [vmem:[#allocation5 + $0x188] sm:$0xff]
    %v293 = vld [vmem:[#allocation5 + $0x190] sm:$0xff]
    %v294 = vld [vmem:[#allocation5 + $0x198] sm:$0xff]
    %v295 = vld [vmem:[#allocation5 + $0x1a0] sm:$0xff]
    %v296 = vld [vmem:[#allocation5 + $0x1a8] sm:$0xff]
    %v297 = vld [vmem:[#allocation5 + $0x1b0] sm:$0xff]
    %v298 = vld [vmem:[#allocation5 + $0x1b8] sm:$0xff]
    %v299 = vld [vmem:[#allocation5 + $0x1c0] sm:$0xff]
    %v300 = vld [vmem:[#allocation5 + $0x1c8] sm:$0xff]
    %v301 = vld [vmem:[#allocation5 + $0x1d0] sm:$0xff]
    %v302 = vld [vmem:[#allocation5 + $0x1d8] sm:$0xff]
    %v303 = vld [vmem:[#allocation5 + $0x1e0] sm:$0xff]
    %v304 = vld [vmem:[#allocation5 + $0x1e8] sm:$0xff]
    %v305 = vld [vmem:[#allocation5 + $0x1f0] sm:$0xff]
    %v306 = vld [vmem:[#allocation5 + $0x1f8] sm:$0xff]
    %v307 = vld [vmem:[#allocation5 + $0x200] sm:$0xff]
    %v308 = vld [vmem:[#allocation5 + $0x208] sm:$0xff]
    %v309 = vld [vmem:[#allocation5 + $0x210] sm:$0xff]
    %v310 = vld [vmem:[#allocation5 + $0x218] sm:$0xff]
    %v311 = vld [vmem:[#allocation5 + $0x220] sm:$0xff]
    %v312 = vld [vmem:[#allocation5 + $0x228] sm:$0xff]
    %v313 = vld [vmem:[#allocation5 + $0x230] sm:$0xff]
    %v314 = vld [vmem:[#allocation5 + $0x238] sm:$0xff]
    %v315 = vld [vmem:[#allocation5 + $0x240] sm:$0xff]
    %v316 = vld [vmem:[#allocation5 + $0x248] sm:$0xff]
    %v317 = vld [vmem:[#allocation5 + $0x250] sm:$0xff]
    %v318 = vld [vmem:[#allocation5 + $0x258] sm:$0xff]
    %v319 = vld [vmem:[#allocation5 + $0x260] sm:$0xff]
    %v320 = vld [vmem:[#allocation5 + $0x268] sm:$0xff]
    %v321 = vld [vmem:[#allocation5 + $0x270] sm:$0xff]
    %v322 = vld [vmem:[#allocation5 + $0x278] sm:$0xff]
    %v323 = vld [vmem:[#allocation5 + $0x280] sm:$0xff]
    %v324 = vld [vmem:[#allocation5 + $0x288] sm:$0xff]
    %v325 = vld [vmem:[#allocation5 + $0x290] sm:$0xff]
    %v326 = vld [vmem:[#allocation5 + $0x298] sm:$0xff]
    %v327 = vld [vmem:[#allocation5 + $0x2a0] sm:$0xff]
    %v328 = vld [vmem:[#allocation5 + $0x2a8] sm:$0xff]
    %v329 = vld [vmem:[#allocation5 + $0x2b0] sm:$0xff]
    %v330 = vld [vmem:[#allocation5 + $0x2b8] sm:$0xff]
    %v331 = vld [vmem:[#allocation5 + $0x2c0] sm:$0xff]
    %v332 = vld [vmem:[#allocation5 + $0x2c8] sm:$0xff]
    %v333 = vld [vmem:[#allocation5 + $0x2d0] sm:$0xff]
    %v334 = vld [vmem:[#allocation5 + $0x2d8] sm:$0xff]
    %v335 = vld [vmem:[#allocation5 + $0x2e0] sm:$0xff]
    %v336 = vld [vmem:[#allocation5 + $0x2e8] sm:$0xff]
    %v337 = vld [vmem:[#allocation5 + $0x2f0] sm:$0xff]
    %v338 = vld [vmem:[#allocation5 + $0x2f8] sm:$0xff]
    %v339 = vld [vmem:[#allocation5 + $0x300] sm:$0xff]
    %v340 = vld [vmem:[#allocation5 + $0x308] sm:$0xff]
    %v341 = vld [vmem:[#allocation5 + $0x310] sm:$0xff]
    %v342 = vld [vmem:[#allocation5 + $0x318] sm:$0xff]
    %v343 = vld [vmem:[#allocation5 + $0x320] sm:$0xff]
    %v344 = vld [vmem:[#allocation5 + $0x328] sm:$0xff]
    %v345 = vld [vmem:[#allocation5 + $0x330] sm:$0xff]
    %v346 = vld [vmem:[#allocation5 + $0x338] sm:$0xff]
    %v347 = vld [vmem:[#allocation5 + $0x340] sm:$0xff]
    %v348 = vld [vmem:[#allocation5 + $0x348] sm:$0xff]
    %v349 = vld [vmem:[#allocation5 + $0x350] sm:$0xff]
    %v350 = vld [vmem:[#allocation5 + $0x358] sm:$0xff]
    %v351 = vld [vmem:[#allocation5 + $0x360] sm:$0xff]
    %v352 = vld [vmem:[#allocation5 + $0x368] sm:$0xff]
    %v353 = vld [vmem:[#allocation5 + $0x370] sm:$0xff]
    %v354 = vld [vmem:[#allocation5 + $0x378] sm:$0xff]
    %v355 = vld [vmem:[#allocation5 + $0x380] sm:$0xff]
    %v356 = vld [vmem:[#allocation5 + $0x388] sm:$0xff]
    %v357 = vld [vmem:[#allocation5 + $0x390] sm:$0xff]
    %v358 = vld [vmem:[#allocation5 + $0x398] sm:$0xff]
    %v359 = vld [vmem:[#allocation5 + $0x3a0] sm:$0xff]
    %v360 = vld [vmem:[#allocation5 + $0x3a8] sm:$0xff]
    %v361 = vld [vmem:[#allocation5 + $0x3b0] sm:$0xff]
    %v362 = vld [vmem:[#allocation5 + $0x3b8] sm:$0xff]
    %v363 = vld [vmem:[#allocation5 + $0x3c0] sm:$0xff]
    %v364 = vld [vmem:[#allocation5 + $0x3c8] sm:$0xff]
    %v365 = vld [vmem:[#allocation5 + $0x3d0] sm:$0xff]
    %v366 = vld [vmem:[#allocation5 + $0x3d8] sm:$0xff]
    %v367 = vld [vmem:[#allocation5 + $0x3e0] sm:$0xff]
    %v368 = vld [vmem:[#allocation5 + $0x3e8] sm:$0xff]
    %v369 = vld [vmem:[#allocation5 + $0x3f0] sm:$0xff]
    %v370 = vld [vmem:[#allocation5 + $0x3f8] sm:$0xff]
    %v371 = vld [vmem:[#allocation5 + $0x400] sm:$0xff]
    %v372 = vld [vmem:[#allocation5 + $0x408] sm:$0xff]
    %v373 = vld [vmem:[#allocation5 + $0x410] sm:$0xff]
    %v374 = vld [vmem:[#allocation5 + $0x418] sm:$0xff]
    %v375 = vld [vmem:[#allocation5 + $0x420] sm:$0xff]
    %v376 = vld [vmem:[#allocation5 + $0x428] sm:$0xff]
    %v377 = vld [vmem:[#allocation5 + $0x430] sm:$0xff]
    %v378 = vld [vmem:[#allocation5 + $0x438] sm:$0xff]
    %v379 = vld [vmem:[#allocation5 + $0x440] sm:$0xff]
    %v380 = vld [vmem:[#allocation5 + $0x448] sm:$0xff]
    %v381 = vld [vmem:[#allocation5 + $0x450] sm:$0xff]
    %v382 = vld [vmem:[#allocation5 + $0x458] sm:$0xff]
    %v383 = vld [vmem:[#allocation5 + $0x460] sm:$0xff]
    %v384 = vld [vmem:[#allocation5 + $0x468] sm:$0xff]
    %v385 = vld [vmem:[#allocation5 + $0x470] sm:$0xff]
    %v386 = vld [vmem:[#allocation5 + $0x478] sm:$0xff]
    %v387 = vld [vmem:[#allocation5 + $0x480] sm:$0xff]
    %v388 = vld [vmem:[#allocation5 + $0x488] sm:$0xff]
    %v389 = vld [vmem:[#allocation5 + $0x490] sm:$0xff]
    %v390 = vld [vmem:[#allocation5 + $0x498] sm:$0xff]
    %v391 = vld [vmem:[#allocation5 + $0x4a0] sm:$0xff]
    %v392 = vld [vmem:[#allocation5 + $0x4a8] sm:$0xff]
    %v393 = vld [vmem:[#allocation5 + $0x4b0] sm:$0xff]
    %v394 = vld [vmem:[#allocation5 + $0x4b8] sm:$0xff]
    %v395 = vld [vmem:[#allocation5 + $0x4c0] sm:$0xff]
    %v396 = vld [vmem:[#allocation5 + $0x4c8] sm:$0xff]
    %v397 = vld [vmem:[#allocation5 + $0x4d0] sm:$0xff]
    %v398 = vld [vmem:[#allocation5 + $0x4d8] sm:$0xff]
    %v399 = vld [vmem:[#allocation5 + $0x4e0] sm:$0xff]
    %v400 = vld [vmem:[#allocation5 + $0x4e8] sm:$0xff]
    %v401 = vld [vmem:[#allocation5 + $0x4f0] sm:$0xff]
    %v402 = vld [vmem:[#allocation5 + $0x4f8] sm:$0xff]
    %v403 = vld [vmem:[#allocation5 + $0x500] sm:$0xff]
    %v404 = vld [vmem:[#allocation5 + $0x508] sm:$0xff]
    %v405 = vld [vmem:[#allocation5 + $0x510] sm:$0xff]
    %v406 = vld [vmem:[#allocation5 + $0x518] sm:$0xff]
    %v407 = vld [vmem:[#allocation5 + $0x520] sm:$0xff]
    %v408 = vld [vmem:[#allocation5 + $0x528] sm:$0xff]
    %v409 = vld [vmem:[#allocation5 + $0x530] sm:$0xff]
    %v410 = vld [vmem:[#allocation5 + $0x538] sm:$0xff]
    %v411 = vld [vmem:[#allocation5 + $0x540] sm:$0xff]
    %v412 = vld [vmem:[#allocation5 + $0x548] sm:$0xff]
    %v413 = vld [vmem:[#allocation5 + $0x550] sm:$0xff]
    %v414 = vld [vmem:[#allocation5 + $0x558] sm:$0xff]
    %v415 = vld [vmem:[#allocation5 + $0x560] sm:$0xff]
    %v416 = vld [vmem:[#allocation5 + $0x568] sm:$0xff]
    %v417 = vld [vmem:[#allocation5 + $0x570] sm:$0xff]
    %v418 = vld [vmem:[#allocation5 + $0x578] sm:$0xff]
    %v419 = vld [vmem:[#allocation5 + $0x580] sm:$0xff]
    %v420 = vld [vmem:[#allocation5 + $0x588] sm:$0xff]
    %v421 = vld [vmem:[#allocation5 + $0x590] sm:$0xff]
    %v422 = vld [vmem:[#allocation5 + $0x598] sm:$0xff]
    %v423 = vld [vmem:[#allocation5 + $0x5a0] sm:$0xff]
    %v424 = vld [vmem:[#allocation5 + $0x5a8] sm:$0xff]
    %v425 = vld [vmem:[#allocation5 + $0x5b0] sm:$0xff]
    %v426 = vld [vmem:[#allocation5 + $0x5b8] sm:$0xff]
    %v427 = vld [vmem:[#allocation5 + $0x5c0] sm:$0xff]
    %v428 = vld [vmem:[#allocation5 + $0x5c8] sm:$0xff]
    %v429 = vld [vmem:[#allocation5 + $0x5d0] sm:$0xff]
    %v430 = vld [vmem:[#allocation5 + $0x5d8] sm:$0xff]
    %v431 = vld [vmem:[#allocation5 + $0x5e0] sm:$0xff]
    %v432 = vld [vmem:[#allocation5 + $0x5e8] sm:$0xff]
    %v433 = vld [vmem:[#allocation5 + $0x5f0] sm:$0xff]
    %v434 = vld [vmem:[#allocation5 + $0x5f8] sm:$0xff]
    %v435 = vld [vmem:[#allocation5 + $0x600] sm:$0xff]
    %v436 = vld [vmem:[#allocation5 + $0x608] sm:$0xff]
    %v437 = vld [vmem:[#allocation5 + $0x610] sm:$0xff]
    %v438 = vld [vmem:[#allocation5 + $0x618] sm:$0xff]
    %v439 = vld [vmem:[#allocation5 + $0x620] sm:$0xff]
    %v440 = vld [vmem:[#allocation5 + $0x628] sm:$0xff]
    %v441 = vld [vmem:[#allocation5 + $0x630] sm:$0xff]
    %v442 = vld [vmem:[#allocation5 + $0x638] sm:$0xff]
    %v443 = vld [vmem:[#allocation5 + $0x640] sm:$0xff]
    %v444 = vld [vmem:[#allocation5 + $0x648] sm:$0xff]
    %v445 = vld [vmem:[#allocation5 + $0x650] sm:$0xff]
    %v446 = vld [vmem:[#allocation5 + $0x658] sm:$0xff]
    %v447 = vld [vmem:[#allocation5 + $0x660] sm:$0xff]
    %v448 = vld [vmem:[#allocation5 + $0x668] sm:$0xff]
    %v449 = vld [vmem:[#allocation5 + $0x670] sm:$0xff]
    %v450 = vld [vmem:[#allocation5 + $0x678] sm:$0xff]
    %v451 = vld [vmem:[#allocation5 + $0x680] sm:$0xff]
    %v452 = vld [vmem:[#allocation5 + $0x688] sm:$0xff]
    %v453 = vld [vmem:[#allocation5 + $0x690] sm:$0xff]
    %v454 = vld [vmem:[#allocation5 + $0x698] sm:$0xff]
    %v455 = vld [vmem:[#allocation5 + $0x6a0] sm:$0xff]
    %v456 = vld [vmem:[#allocation5 + $0x6a8] sm:$0xff]
    %v457 = vld [vmem:[#allocation5 + $0x6b0] sm:$0xff]
    %v458 = vld [vmem:[#allocation5 + $0x6b8] sm:$0xff]
    %v459 = vld [vmem:[#allocation5 + $0x6c0] sm:$0xff]
    %v460 = vld [vmem:[#allocation5 + $0x6c8] sm:$0xff]
    %v461 = vld [vmem:[#allocation5 + $0x6d0] sm:$0xff]
    %v462 = vld [vmem:[#allocation5 + $0x6d8] sm:$0xff]
    %v463 = vld [vmem:[#allocation5 + $0x6e0] sm:$0xff]
    %v464 = vld [vmem:[#allocation5 + $0x6e8] sm:$0xff]
    %v465 = vld [vmem:[#allocation5 + $0x6f0] sm:$0xff]
    %v466 = vld [vmem:[#allocation5 + $0x6f8] sm:$0xff]
    %v467 = vld [vmem:[#allocation5 + $0x700] sm:$0xff]
    %v468 = vld [vmem:[#allocation5 + $0x708] sm:$0xff]
    %v469 = vld [vmem:[#allocation5 + $0x710] sm:$0xff]
    %v470 = vld [vmem:[#allocation5 + $0x718] sm:$0xff]
    %v471 = vld [vmem:[#allocation5 + $0x720] sm:$0xff]
    %v472 = vld [vmem:[#allocation5 + $0x728] sm:$0xff]
    %v473 = vld [vmem:[#allocation5 + $0x730] sm:$0xff]
    %v474 = vld [vmem:[#allocation5 + $0x738] sm:$0xff]
    %v475 = vld [vmem:[#allocation5 + $0x740] sm:$0xff]
    %v476 = vld [vmem:[#allocation5 + $0x748] sm:$0xff]
    %v477 = vld [vmem:[#allocation5 + $0x750] sm:$0xff]
    %v478 = vld [vmem:[#allocation5 + $0x758] sm:$0xff]
    %v479 = vld [vmem:[#allocation5 + $0x760] sm:$0xff]
    %v480 = vld [vmem:[#allocation5 + $0x768] sm:$0xff]
    %v481 = vld [vmem:[#allocation5 + $0x770] sm:$0xff]
    %v482 = vld [vmem:[#allocation5 + $0x778] sm:$0xff]
    %v483 = vld [vmem:[#allocation5 + $0x780] sm:$0xff]
    %v484 = vld [vmem:[#allocation5 + $0x788] sm:$0xff]
    %v485 = vld [vmem:[#allocation5 + $0x790] sm:$0xff]
    %v486 = vld [vmem:[#allocation5 + $0x798] sm:$0xff]
    %v487 = vld [vmem:[#allocation5 + $0x7a0] sm:$0xff]
    %v488 = vld [vmem:[#allocation5 + $0x7a8] sm:$0xff]
    %v489 = vld [vmem:[#allocation5 + $0x7b0] sm:$0xff]
    %v490 = vld [vmem:[#allocation5 + $0x7b8] sm:$0xff]
    %v491 = vld [vmem:[#allocation5 + $0x7c0] sm:$0xff]
    %v492 = vld [vmem:[#allocation5 + $0x7c8] sm:$0xff]
    %v493 = vld [vmem:[#allocation5 + $0x7d0] sm:$0xff]
    %v494 = vld [vmem:[#allocation5 + $0x7d8] sm:$0xff]
    %v495 = vld [vmem:[#allocation5 + $0x7e0] sm:$0xff]
    %v496 = vld [vmem:[#allocation5 + $0x7e8] sm:$0xff]
    %v497 = vld [vmem:[#allocation5 + $0x7f0] sm:$0xff]
    %v498 = vld [vmem:[#allocation5 + $0x7f8] sm:$0xff]
    %v499 = vld [vmem:[#allocation5 + $0x800] sm:$0xff]
    %v500 = vld [vmem:[#allocation5 + $0x808] sm:$0xff]
    %v501 = vld [vmem:[#allocation5 + $0x810] sm:$0xff]
    %v502 = vld [vmem:[#allocation5 + $0x818] sm:$0xff]
    %v503 = vld [vmem:[#allocation5 + $0x820] sm:$0xff]
    %v504 = vld [vmem:[#allocation5 + $0x828] sm:$0xff]
    %v505 = vld [vmem:[#allocation5 + $0x830] sm:$0xff]
    %v506 = vld [vmem:[#allocation5 + $0x838] sm:$0xff]
    %v507 = vld [vmem:[#allocation5 + $0x840] sm:$0xff]
    %v508 = vld [vmem:[#allocation5 + $0x848] sm:$0xff]
    %v509 = vld [vmem:[#allocation5 + $0x850] sm:$0xff]
    %v510 = vld [vmem:[#allocation5 + $0x858] sm:$0xff]
    %v511 = vld [vmem:[#allocation5 + $0x860] sm:$0xff]
    %v512 = vld [vmem:[#allocation5 + $0x868] sm:$0xff]
    %v513 = vld [vmem:[#allocation5 + $0x870] sm:$0xff]
    %v514 = vld [vmem:[#allocation5 + $0x878] sm:$0xff]
    %v515 = vld [vmem:[#allocation5 + $0x880] sm:$0xff]
    %v516 = vld [vmem:[#allocation5 + $0x888] sm:$0xff]
    %v517 = vld [vmem:[#allocation5 + $0x890] sm:$0xff]
    %v518 = vld [vmem:[#allocation5 + $0x898] sm:$0xff]
    %v519 = vld [vmem:[#allocation5 + $0x8a0] sm:$0xff]
    %v520 = vld [vmem:[#allocation5 + $0x8a8] sm:$0xff]
    %v521 = vld [vmem:[#allocation5 + $0x8b0] sm:$0xff]
    %v522 = vld [vmem:[#allocation5 + $0x8b8] sm:$0xff]
    %v523 = vld [vmem:[#allocation5 + $0x8c0] sm:$0xff]
    %v524 = vld [vmem:[#allocation5 + $0x8c8] sm:$0xff]
    %v525 = vld [vmem:[#allocation5 + $0x8d0] sm:$0xff]
    %v526 = vld [vmem:[#allocation5 + $0x8d8] sm:$0xff]
    %v527 = vld [vmem:[#allocation5 + $0x8e0] sm:$0xff]
    %v528 = vld [vmem:[#allocation5 + $0x8e8] sm:$0xff]
    %v529 = vld [vmem:[#allocation5 + $0x8f0] sm:$0xff]
    %v530 = vld [vmem:[#allocation5 + $0x8f8] sm:$0xff]
    %v531 = vld [vmem:[#allocation5 + $0x900] sm:$0xff]
    %v532 = vld [vmem:[#allocation5 + $0x908] sm:$0xff]
    %v533 = vld [vmem:[#allocation5 + $0x910] sm:$0xff]
    %v534 = vld [vmem:[#allocation5 + $0x918] sm:$0xff]
    %v535 = vld [vmem:[#allocation5 + $0x920] sm:$0xff]
    %v536 = vld [vmem:[#allocation5 + $0x928] sm:$0xff]
    %v537 = vld [vmem:[#allocation5 + $0x930] sm:$0xff]
    %v538 = vld [vmem:[#allocation5 + $0x938] sm:$0xff]
    %v539 = vld [vmem:[#allocation5 + $0x940] sm:$0xff]
    %v540 = vld [vmem:[#allocation5 + $0x948] sm:$0xff]
    %v541 = vld [vmem:[#allocation5 + $0x950] sm:$0xff]
    %v542 = vld [vmem:[#allocation5 + $0x958] sm:$0xff]
    %v543 = vld [vmem:[#allocation5 + $0x960] sm:$0xff]
    %v544 = vld [vmem:[#allocation5 + $0x968] sm:$0xff]
    %v545 = vld [vmem:[#allocation5 + $0x970] sm:$0xff]
    %v546 = vld [vmem:[#allocation5 + $0x978] sm:$0xff]
    %v547 = vld [vmem:[#allocation5 + $0x980] sm:$0xff]
    %v548 = vld [vmem:[#allocation5 + $0x988] sm:$0xff]
    %v549 = vld [vmem:[#allocation5 + $0x990] sm:$0xff]
    %v550 = vld [vmem:[#allocation5 + $0x998] sm:$0xff]
    %v551 = vld [vmem:[#allocation5 + $0x9a0] sm:$0xff]
    %v552 = vld [vmem:[#allocation5 + $0x9a8] sm:$0xff]
    %v553 = vld [vmem:[#allocation5 + $0x9b0] sm:$0xff]
    %v554 = vld [vmem:[#allocation5 + $0x9b8] sm:$0xff]
    %v555 = vld [vmem:[#allocation5 + $0x9c0] sm:$0xff]
    %v556 = vld [vmem:[#allocation5 + $0x9c8] sm:$0xff]
    %v557 = vld [vmem:[#allocation5 + $0x9d0] sm:$0xff]
    %v558 = vld [vmem:[#allocation5 + $0x9d8] sm:$0xff]
    %v559 = vld [vmem:[#allocation5 + $0x9e0] sm:$0xff]
    %v560 = vld [vmem:[#allocation5 + $0x9e8] sm:$0xff]
    %v561 = vld [vmem:[#allocation5 + $0x9f0] sm:$0xff]
    %v562 = vld [vmem:[#allocation5 + $0x9f8] sm:$0xff]
    %v563 = vld [vmem:[#allocation5 + $0xa00] sm:$0xff]
    %v564 = vld [vmem:[#allocation5 + $0xa08] sm:$0xff]
    %v565 = vld [vmem:[#allocation5 + $0xa10] sm:$0xff]
    %v566 = vld [vmem:[#allocation5 + $0xa18] sm:$0xff]
    %v567 = vld [vmem:[#allocation5 + $0xa20] sm:$0xff]
    %v568 = vld [vmem:[#allocation5 + $0xa28] sm:$0xff]
    %v569 = vld [vmem:[#allocation5 + $0xa30] sm:$0xff]
    %v570 = vld [vmem:[#allocation5 + $0xa38] sm:$0xff]
    %v571 = vld [vmem:[#allocation5 + $0xa40] sm:$0xff]
    %v572 = vld [vmem:[#allocation5 + $0xa48] sm:$0xff]
    %v573 = vld [vmem:[#allocation5 + $0xa50] sm:$0xff]
    %v574 = vld [vmem:[#allocation5 + $0xa58] sm:$0xff]
    %v575 = vld [vmem:[#allocation5 + $0xa60] sm:$0xff]
    %v576 = vld [vmem:[#allocation5 + $0xa68] sm:$0xff]
    %v577 = vld [vmem:[#allocation5 + $0xa70] sm:$0xff]
    %v578 = vld [vmem:[#allocation5 + $0xa78] sm:$0xff]
    %v579 = vld [vmem:[#allocation5 + $0xa80] sm:$0xff]
    %v580 = vld [vmem:[#allocation5 + $0xa88] sm:$0xff]
    %v581 = vld [vmem:[#allocation5 + $0xa90] sm:$0xff]
    %v582 = vld [vmem:[#allocation5 + $0xa98] sm:$0xff]
    %v583 = vld [vmem:[#allocation5 + $0xaa0] sm:$0xff]
    %v584 = vld [vmem:[#allocation5 + $0xaa8] sm:$0xff]
    %v585 = vld [vmem:[#allocation5 + $0xab0] sm:$0xff]
    %v586 = vld [vmem:[#allocation5 + $0xab8] sm:$0xff]
    %v587 = vld [vmem:[#allocation5 + $0xac0] sm:$0xff]
    %v588 = vld [vmem:[#allocation5 + $0xac8] sm:$0xff]
    %v589 = vld [vmem:[#allocation5 + $0xad0] sm:$0xff]
    %v590 = vld [vmem:[#allocation5 + $0xad8] sm:$0xff]
    %v591 = vld [vmem:[#allocation5 + $0xae0] sm:$0xff]
    %v592 = vld [vmem:[#allocation5 + $0xae8] sm:$0xff]
    %v593 = vld [vmem:[#allocation5 + $0xaf0] sm:$0xff]
    %v594 = vld [vmem:[#allocation5 + $0xaf8] sm:$0xff]
    %v595 = vld [vmem:[#allocation5 + $0xb00] sm:$0xff]
    %v596 = vld [vmem:[#allocation5 + $0xb08] sm:$0xff]
    %v597 = vld [vmem:[#allocation5 + $0xb10] sm:$0xff]
    %v598 = vld [vmem:[#allocation5 + $0xb18] sm:$0xff]
    %v599 = vld [vmem:[#allocation5 + $0xb20] sm:$0xff]
    %v600 = vld [vmem:[#allocation5 + $0xb28] sm:$0xff]
    %v601 = vld [vmem:[#allocation5 + $0xb30] sm:$0xff]
    %v602 = vld [vmem:[#allocation5 + $0xb38] sm:$0xff]
    %v603 = vld [vmem:[#allocation5 + $0xb40] sm:$0xff]
    %v604 = vld [vmem:[#allocation5 + $0xb48] sm:$0xff]
    %v605 = vld [vmem:[#allocation5 + $0xb50] sm:$0xff]
    %v606 = vld [vmem:[#allocation5 + $0xb58] sm:$0xff]
    %v607 = vld [vmem:[#allocation5 + $0xb60] sm:$0xff]
    %v608 = vld [vmem:[#allocation5 + $0xb68] sm:$0xff]
    %v609 = vld [vmem:[#allocation5 + $0xb70] sm:$0xff]
    %v610 = vld [vmem:[#allocation5 + $0xb78] sm:$0xff]
    %v611 = vld [vmem:[#allocation5 + $0xb80] sm:$0xff]
    %v612 = vld [vmem:[#allocation5 + $0xb88] sm:$0xff]
    %v613 = vld [vmem:[#allocation5 + $0xb90] sm:$0xff]
    %v614 = vld [vmem:[#allocation5 + $0xb98] sm:$0xff]
    %v615 = vld [vmem:[#allocation5 + $0xba0] sm:$0xff]
    %v616 = vld [vmem:[#allocation5 + $0xba8] sm:$0xff]
    %v617 = vld [vmem:[#allocation5 + $0xbb0] sm:$0xff]
    %v618 = vld [vmem:[#allocation5 + $0xbb8] sm:$0xff]
    %v619 = vld [vmem:[#allocation5 + $0xbc0] sm:$0xff]
    %v620 = vld [vmem:[#allocation5 + $0xbc8] sm:$0xff]
    %v621 = vld [vmem:[#allocation5 + $0xbd0] sm:$0xff]
    %v622 = vld [vmem:[#allocation5 + $0xbd8] sm:$0xff]
    %v623 = vld [vmem:[#allocation5 + $0xbe0] sm:$0xff]
    %v624 = vld [vmem:[#allocation5 + $0xbe8] sm:$0xff]
    %v625 = vld [vmem:[#allocation5 + $0xbf0] sm:$0xff]
    %v626 = vld [vmem:[#allocation5 + $0xbf8] sm:$0xff]
    %v627 = vld [vmem:[#allocation5 + $0xc00] sm:$0xff]
    %v628 = vld [vmem:[#allocation5 + $0xc08] sm:$0xff]
    %v629 = vld [vmem:[#allocation5 + $0xc10] sm:$0xff]
    %v630 = vld [vmem:[#allocation5 + $0xc18] sm:$0xff]
    %v631 = vld [vmem:[#allocation5 + $0xc20] sm:$0xff]
    %v632 = vld [vmem:[#allocation5 + $0xc28] sm:$0xff]
    %v633 = vld [vmem:[#allocation5 + $0xc30] sm:$0xff]
    %v634 = vld [vmem:[#allocation5 + $0xc38] sm:$0xff]
    %v635 = vld [vmem:[#allocation5 + $0xc40] sm:$0xff]
    %v636 = vld [vmem:[#allocation5 + $0xc48] sm:$0xff]
    %v637 = vld [vmem:[#allocation5 + $0xc50] sm:$0xff]
    %v638 = vld [vmem:[#allocation5 + $0xc58] sm:$0xff]
    %v639 = vld [vmem:[#allocation5 + $0xc60] sm:$0xff]
    %v640 = vld [vmem:[#allocation5 + $0xc68] sm:$0xff]
    %v641 = vld [vmem:[#allocation5 + $0xc70] sm:$0xff]
    %v642 = vld [vmem:[#allocation5 + $0xc78] sm:$0xff]
    %v643 = vld [vmem:[#allocation5 + $0xc80] sm:$0xff]
    %v644 = vld [vmem:[#allocation5 + $0xc88] sm:$0xff]
    %v645 = vld [vmem:[#allocation5 + $0xc90] sm:$0xff]
    %v646 = vld [vmem:[#allocation5 + $0xc98] sm:$0xff]
    %v647 = vld [vmem:[#allocation5 + $0xca0] sm:$0xff]
    %v648 = vld [vmem:[#allocation5 + $0xca8] sm:$0xff]
    %v649 = vld [vmem:[#allocation5 + $0xcb0] sm:$0xff]
    %v650 = vld [vmem:[#allocation5 + $0xcb8] sm:$0xff]
    %v651 = vld [vmem:[#allocation5 + $0xcc0] sm:$0xff]
    %v652 = vld [vmem:[#allocation5 + $0xcc8] sm:$0xff]
    %v653 = vld [vmem:[#allocation5 + $0xcd0] sm:$0xff]
    %v654 = vld [vmem:[#allocation5 + $0xcd8] sm:$0xff]
    %v655 = vld [vmem:[#allocation5 + $0xce0] sm:$0xff]
    %v656 = vld [vmem:[#allocation5 + $0xce8] sm:$0xff]
    %v657 = vld [vmem:[#allocation5 + $0xcf0] sm:$0xff]
    %v658 = vld [vmem:[#allocation5 + $0xcf8] sm:$0xff]
    %v659 = vld [vmem:[#allocation5 + $0xd00] sm:$0xff]
    %v660 = vld [vmem:[#allocation5 + $0xd08] sm:$0xff]
    %v661 = vld [vmem:[#allocation5 + $0xd10] sm:$0xff]
    %v662 = vld [vmem:[#allocation5 + $0xd18] sm:$0xff]
    %v663 = vld [vmem:[#allocation5 + $0xd20] sm:$0xff]
    %v664 = vld [vmem:[#allocation5 + $0xd28] sm:$0xff]
    %v665 = vld [vmem:[#allocation5 + $0xd30] sm:$0xff]
    %v666 = vld [vmem:[#allocation5 + $0xd38] sm:$0xff]
    %v667 = vld [vmem:[#allocation5 + $0xd40] sm:$0xff]
    %v668 = vld [vmem:[#allocation5 + $0xd48] sm:$0xff]
    %v669 = vld [vmem:[#allocation5 + $0xd50] sm:$0xff]
    %v670 = vld [vmem:[#allocation5 + $0xd58] sm:$0xff]
    %v671 = vld [vmem:[#allocation5 + $0xd60] sm:$0xff]
    %v672 = vld [vmem:[#allocation5 + $0xd68] sm:$0xff]
    %v673 = vld [vmem:[#allocation5 + $0xd70] sm:$0xff]
    %v674 = vld [vmem:[#allocation5 + $0xd78] sm:$0xff]
    %v675 = vld [vmem:[#allocation5 + $0xd80] sm:$0xff]
    %v676 = vld [vmem:[#allocation5 + $0xd88] sm:$0xff]
    %v677 = vld [vmem:[#allocation5 + $0xd90] sm:$0xff]
    %v678 = vld [vmem:[#allocation5 + $0xd98] sm:$0xff]
    %v679 = vld [vmem:[#allocation5 + $0xda0] sm:$0xff]
    %v680 = vld [vmem:[#allocation5 + $0xda8] sm:$0xff]
    %v681 = vld [vmem:[#allocation5 + $0xdb0] sm:$0xff]
    %v682 = vld [vmem:[#allocation5 + $0xdb8] sm:$0xff]
    %v683 = vld [vmem:[#allocation5 + $0xdc0] sm:$0xff]
    %v684 = vld [vmem:[#allocation5 + $0xdc8] sm:$0xff]
    %v685 = vld [vmem:[#allocation5 + $0xdd0] sm:$0xff]
    %v686 = vld [vmem:[#allocation5 + $0xdd8] sm:$0xff]
    %v687 = vld [vmem:[#allocation5 + $0xde0] sm:$0xff]
    %v688 = vld [vmem:[#allocation5 + $0xde8] sm:$0xff]
    %v689 = vld [vmem:[#allocation5 + $0xdf0] sm:$0xff]
    %v690 = vld [vmem:[#allocation5 + $0xdf8] sm:$0xff]
    %v691 = vld [vmem:[#allocation5 + $0xe00] sm:$0xff]
    %v692 = vld [vmem:[#allocation5 + $0xe08] sm:$0xff]
    %v693 = vld [vmem:[#allocation5 + $0xe10] sm:$0xff]
    %v694 = vld [vmem:[#allocation5 + $0xe18] sm:$0xff]
    %v695 = vld [vmem:[#allocation5 + $0xe20] sm:$0xff]
    %v696 = vld [vmem:[#allocation5 + $0xe28] sm:$0xff]
    %v697 = vld [vmem:[#allocation5 + $0xe30] sm:$0xff]
    %v698 = vld [vmem:[#allocation5 + $0xe38] sm:$0xff]
    %v699 = vld [vmem:[#allocation5 + $0xe40] sm:$0xff]
    %v700 = vld [vmem:[#allocation5 + $0xe48] sm:$0xff]
    %v701 = vld [vmem:[#allocation5 + $0xe50] sm:$0xff]
    %v702 = vld [vmem:[#allocation5 + $0xe58] sm:$0xff]
    %v703 = vld [vmem:[#allocation5 + $0xe60] sm:$0xff]
    %v704 = vld [vmem:[#allocation5 + $0xe68] sm:$0xff]
    %v705 = vld [vmem:[#allocation5 + $0xe70] sm:$0xff]
    %v706 = vld [vmem:[#allocation5 + $0xe78] sm:$0xff]
    %v707 = vld [vmem:[#allocation5 + $0xe80] sm:$0xff]
    %v708 = vld [vmem:[#allocation5 + $0xe88] sm:$0xff]
    %v709 = vld [vmem:[#allocation5 + $0xe90] sm:$0xff]
    %v710 = vld [vmem:[#allocation5 + $0xe98] sm:$0xff]
    %v711 = vld [vmem:[#allocation5 + $0xea0] sm:$0xff]
    %v712 = vld [vmem:[#allocation5 + $0xea8] sm:$0xff]
    %v713 = vld [vmem:[#allocation5 + $0xeb0] sm:$0xff]
    %v714 = vld [vmem:[#allocation5 + $0xeb8] sm:$0xff]
    %v715 = vld [vmem:[#allocation5 + $0xec0] sm:$0xff]
    %v716 = vld [vmem:[#allocation5 + $0xec8] sm:$0xff]
    %v717 = vld [vmem:[#allocation5 + $0xed0] sm:$0xff]
    %v718 = vld [vmem:[#allocation5 + $0xed8] sm:$0xff]
    %v719 = vld [vmem:[#allocation5 + $0xee0] sm:$0xff]
    %v720 = vld [vmem:[#allocation5 + $0xee8] sm:$0xff]
    %v721 = vld [vmem:[#allocation5 + $0xef0] sm:$0xff]
    %v722 = vld [vmem:[#allocation5 + $0xef8] sm:$0xff]
    %v723 = vld [vmem:[#allocation5 + $0xf00] sm:$0xff]
    %v724 = vld [vmem:[#allocation5 + $0xf08] sm:$0xff]
    %v725 = vld [vmem:[#allocation5 + $0xf10] sm:$0xff]
    %v726 = vld [vmem:[#allocation5 + $0xf18] sm:$0xff]
    %v727 = vld [vmem:[#allocation5 + $0xf20] sm:$0xff]
    %v728 = vld [vmem:[#allocation5 + $0xf28] sm:$0xff]
    %v729 = vld [vmem:[#allocation5 + $0xf30] sm:$0xff]
    %v730 = vld [vmem:[#allocation5 + $0xf38] sm:$0xff]
    %v731 = vld [vmem:[#allocation5 + $0xf40] sm:$0xff]
    %v732 = vld [vmem:[#allocation5 + $0xf48] sm:$0xff]
    %v733 = vld [vmem:[#allocation5 + $0xf50] sm:$0xff]
    %v734 = vld [vmem:[#allocation5 + $0xf58] sm:$0xff]
    %v735 = vld [vmem:[#allocation5 + $0xf60] sm:$0xff]
    %v736 = vld [vmem:[#allocation5 + $0xf68] sm:$0xff]
    %v737 = vld [vmem:[#allocation5 + $0xf70] sm:$0xff]
    %v738 = vld [vmem:[#allocation5 + $0xf78] sm:$0xff]
    %v739 = vld [vmem:[#allocation5 + $0xf80] sm:$0xff]
    %v740 = vld [vmem:[#allocation5 + $0xf88] sm:$0xff]
    %v741 = vld [vmem:[#allocation5 + $0xf90] sm:$0xff]
    %v742 = vld [vmem:[#allocation5 + $0xf98] sm:$0xff]
    %v743 = vld [vmem:[#allocation5 + $0xfa0] sm:$0xff]
    %v744 = vld [vmem:[#allocation5 + $0xfa8] sm:$0xff]
    %v745 = vld [vmem:[#allocation5 + $0xfb0] sm:$0xff]
    %v746 = vld [vmem:[#allocation5 + $0xfb8] sm:$0xff]
    %v747 = vld [vmem:[#allocation5 + $0xfc0] sm:$0xff]
    %v748 = vld [vmem:[#allocation5 + $0xfc8] sm:$0xff]
    %v749 = vld [vmem:[#allocation5 + $0xfd0] sm:$0xff]
    %v750 = vld [vmem:[#allocation5 + $0xfd8] sm:$0xff]
    %v751 = vld [vmem:[#allocation5 + $0xfe0] sm:$0xff]
    %v752 = vld [vmem:[#allocation5 + $0xfe8] sm:$0xff]
    %v753 = vld [vmem:[#allocation5 + $0xff0] sm:$0xff]
    %v754 = vld [vmem:[#allocation5 + $0xff8] sm:$0xff]
    %v755 = vld [vmem:[#allocation7] sm:$0xff]
    %v757 = vlaneseq
    %v758 = vshrl.u32 %v757, 7
    %v759 = vsub.s32 0, %v758
    %v760 = vrot.slane %v755, %v759
    %v761 = vlaneseq
    %v762 = vshrl.u32 %v761, 7
    %v763 = vsub.s32 1, %v762
    %v764 = vrot.slane %v755, %v763
    %v765 = vlaneseq
    %v766 = vshrl.u32 %v765, 7
    %v767 = vsub.s32 2, %v766
    %v768 = vrot.slane %v755, %v767
    %v769 = vlaneseq
    %v770 = vshrl.u32 %v769, 7
    %v771 = vsub.s32 3, %v770
    %v772 = vrot.slane %v755, %v771
    %v773 = vlaneseq
    %v774 = vshrl.u32 %v773, 7
    %v775 = vsub.s32 4, %v774
    %v776 = vrot.slane %v755, %v775
    %v777 = vlaneseq
    %v778 = vshrl.u32 %v777, 7
    %v779 = vsub.s32 5, %v778
    %v780 = vrot.slane %v755, %v779
    %v781 = vlaneseq
    %v782 = vshrl.u32 %v781, 7
    %v783 = vsub.s32 6, %v782
    %v784 = vrot.slane %v755, %v783
    %v785 = vlaneseq
    %v786 = vshrl.u32 %v785, 7
    %v787 = vsub.s32 7, %v786
    %v788 = vrot.slane %v755, %v787
    %v801 = vunpack.c.l.b16 %v239
    %v802 = vunpack.c.h.b16 %v239
    %v803 = vunpack.c.l.b16 %v240
    %v804 = vunpack.c.h.b16 %v240
    %v805 = vunpack.c.l.b16 %v241
    %v806 = vunpack.c.h.b16 %v241
    %v807 = vunpack.c.l.b16 %v242
    %v808 = vunpack.c.h.b16 %v242
    %v809 = vpack.c.b16 %v801, %v801
    %v810 = vpack.c.b16 %v802, %v802
    %v811 = vpack.c.b16 %v803, %v803
    %v812 = vpack.c.b16 %v804, %v804
    %v813 = vpack.c.b16 %v805, %v805
    %v814 = vpack.c.b16 %v806, %v806
    %v815 = vpack.c.b16 %v807, %v807
    %v816 = vpack.c.b16 %v808, %v808
    %v1337 = vunpack.c.l.b16 %v243
    %v1338 = vunpack.c.h.b16 %v243
    %v1339 = vunpack.c.l.b16 %v244
    %v1340 = vunpack.c.h.b16 %v244
    %v1341 = vunpack.c.l.b16 %v245
    %v1342 = vunpack.c.h.b16 %v245
    %v1343 = vunpack.c.l.b16 %v246
    %v1344 = vunpack.c.h.b16 %v246
    %v1345 = vunpack.c.l.b16 %v247
    %v1346 = vunpack.c.h.b16 %v247
    %v1347 = vunpack.c.l.b16 %v248
    %v1348 = vunpack.c.h.b16 %v248
    %v1349 = vunpack.c.l.b16 %v249
    %v1350 = vunpack.c.h.b16 %v249
    %v1351 = vunpack.c.l.b16 %v250
    %v1352 = vunpack.c.h.b16 %v250
    %v1353 = vunpack.c.l.b16 %v251
    %v1354 = vunpack.c.h.b16 %v251
    %v1355 = vunpack.c.l.b16 %v252
    %v1356 = vunpack.c.h.b16 %v252
    %v1357 = vunpack.c.l.b16 %v253
    %v1358 = vunpack.c.h.b16 %v253
    %v1359 = vunpack.c.l.b16 %v254
    %v1360 = vunpack.c.h.b16 %v254
    %v1361 = vunpack.c.l.b16 %v255
    %v1362 = vunpack.c.h.b16 %v255
    %v1363 = vunpack.c.l.b16 %v256
    %v1364 = vunpack.c.h.b16 %v256
    %v1365 = vunpack.c.l.b16 %v257
    %v1366 = vunpack.c.h.b16 %v257
    %v1367 = vunpack.c.l.b16 %v258
    %v1368 = vunpack.c.h.b16 %v258
    %v1369 = vunpack.c.l.b16 %v259
    %v1370 = vunpack.c.h.b16 %v259
    %v1371 = vunpack.c.l.b16 %v260
    %v1372 = vunpack.c.h.b16 %v260
    %v1373 = vunpack.c.l.b16 %v261
    %v1374 = vunpack.c.h.b16 %v261
    %v1375 = vunpack.c.l.b16 %v262
    %v1376 = vunpack.c.h.b16 %v262
    %v1377 = vunpack.c.l.b16 %v263
    %v1378 = vunpack.c.h.b16 %v263
    %v1379 = vunpack.c.l.b16 %v264
    %v1380 = vunpack.c.h.b16 %v264
    %v1381 = vunpack.c.l.b16 %v265
    %v1382 = vunpack.c.h.b16 %v265
    %v1383 = vunpack.c.l.b16 %v266
    %v1384 = vunpack.c.h.b16 %v266
    %v1385 = vunpack.c.l.b16 %v267
    %v1386 = vunpack.c.h.b16 %v267
    %v1387 = vunpack.c.l.b16 %v268
    %v1388 = vunpack.c.h.b16 %v268
    %v1389 = vunpack.c.l.b16 %v269
    %v1390 = vunpack.c.h.b16 %v269
    %v1391 = vunpack.c.l.b16 %v270
    %v1392 = vunpack.c.h.b16 %v270
    %v1393 = vunpack.c.l.b16 %v271
    %v1394 = vunpack.c.h.b16 %v271
    %v1395 = vunpack.c.l.b16 %v272
    %v1396 = vunpack.c.h.b16 %v272
    %v1397 = vunpack.c.l.b16 %v273
    %v1398 = vunpack.c.h.b16 %v273
    %v1399 = vunpack.c.l.b16 %v274
    %v1400 = vunpack.c.h.b16 %v274
    %v1401 = vunpack.c.l.b16 %v275
    %v1402 = vunpack.c.h.b16 %v275
    %v1403 = vunpack.c.l.b16 %v276
    %v1404 = vunpack.c.h.b16 %v276
    %v1405 = vunpack.c.l.b16 %v277
    %v1406 = vunpack.c.h.b16 %v277
    %v1407 = vunpack.c.l.b16 %v278
    %v1408 = vunpack.c.h.b16 %v278
    %v1409 = vunpack.c.l.b16 %v279
    %v1410 = vunpack.c.h.b16 %v279
    %v1411 = vunpack.c.l.b16 %v280
    %v1412 = vunpack.c.h.b16 %v280
    %v1413 = vunpack.c.l.b16 %v281
    %v1414 = vunpack.c.h.b16 %v281
    %v1415 = vunpack.c.l.b16 %v282
    %v1416 = vunpack.c.h.b16 %v282
    %v1417 = vunpack.c.l.b16 %v283
    %v1418 = vunpack.c.h.b16 %v283
    %v1419 = vunpack.c.l.b16 %v284
    %v1420 = vunpack.c.h.b16 %v284
    %v1421 = vunpack.c.l.b16 %v285
    %v1422 = vunpack.c.h.b16 %v285
    %v1423 = vunpack.c.l.b16 %v286
    %v1424 = vunpack.c.h.b16 %v286
    %v1425 = vunpack.c.l.b16 %v287
    %v1426 = vunpack.c.h.b16 %v287
    %v1427 = vunpack.c.l.b16 %v288
    %v1428 = vunpack.c.h.b16 %v288
    %v1429 = vunpack.c.l.b16 %v289
    %v1430 = vunpack.c.h.b16 %v289
    %v1431 = vunpack.c.l.b16 %v290
    %v1432 = vunpack.c.h.b16 %v290
    %v1433 = vunpack.c.l.b16 %v291
    %v1434 = vunpack.c.h.b16 %v291
    %v1435 = vunpack.c.l.b16 %v292
    %v1436 = vunpack.c.h.b16 %v292
    %v1437 = vunpack.c.l.b16 %v293
    %v1438 = vunpack.c.h.b16 %v293
    %v1439 = vunpack.c.l.b16 %v294
    %v1440 = vunpack.c.h.b16 %v294
    %v1441 = vunpack.c.l.b16 %v295
    %v1442 = vunpack.c.h.b16 %v295
    %v1443 = vunpack.c.l.b16 %v296
    %v1444 = vunpack.c.h.b16 %v296
    %v1445 = vunpack.c.l.b16 %v297
    %v1446 = vunpack.c.h.b16 %v297
    %v1447 = vunpack.c.l.b16 %v298
    %v1448 = vunpack.c.h.b16 %v298
    %v1449 = vunpack.c.l.b16 %v299
    %v1450 = vunpack.c.h.b16 %v299
    %v1451 = vunpack.c.l.b16 %v300
    %v1452 = vunpack.c.h.b16 %v300
    %v1453 = vunpack.c.l.b16 %v301
    %v1454 = vunpack.c.h.b16 %v301
    %v1455 = vunpack.c.l.b16 %v302
    %v1456 = vunpack.c.h.b16 %v302
    %v1457 = vunpack.c.l.b16 %v303
    %v1458 = vunpack.c.h.b16 %v303
    %v1459 = vunpack.c.l.b16 %v304
    %v1460 = vunpack.c.h.b16 %v304
    %v1461 = vunpack.c.l.b16 %v305
    %v1462 = vunpack.c.h.b16 %v305
    %v1463 = vunpack.c.l.b16 %v306
    %v1464 = vunpack.c.h.b16 %v306
    %v1465 = vunpack.c.l.b16 %v307
    %v1466 = vunpack.c.h.b16 %v307
    %v1467 = vunpack.c.l.b16 %v308
    %v1468 = vunpack.c.h.b16 %v308
    %v1469 = vunpack.c.l.b16 %v309
    %v1470 = vunpack.c.h.b16 %v309
    %v1471 = vunpack.c.l.b16 %v310
    %v1472 = vunpack.c.h.b16 %v310
    %v1473 = vunpack.c.l.b16 %v311
    %v1474 = vunpack.c.h.b16 %v311
    %v1475 = vunpack.c.l.b16 %v312
    %v1476 = vunpack.c.h.b16 %v312
    %v1477 = vunpack.c.l.b16 %v313
    %v1478 = vunpack.c.h.b16 %v313
    %v1479 = vunpack.c.l.b16 %v314
    %v1480 = vunpack.c.h.b16 %v314
    %v1481 = vunpack.c.l.b16 %v315
    %v1482 = vunpack.c.h.b16 %v315
    %v1483 = vunpack.c.l.b16 %v316
    %v1484 = vunpack.c.h.b16 %v316
    %v1485 = vunpack.c.l.b16 %v317
    %v1486 = vunpack.c.h.b16 %v317
    %v1487 = vunpack.c.l.b16 %v318
    %v1488 = vunpack.c.h.b16 %v318
    %v1489 = vunpack.c.l.b16 %v319
    %v1490 = vunpack.c.h.b16 %v319
    %v1491 = vunpack.c.l.b16 %v320
    %v1492 = vunpack.c.h.b16 %v320
    %v1493 = vunpack.c.l.b16 %v321
    %v1494 = vunpack.c.h.b16 %v321
    %v1495 = vunpack.c.l.b16 %v322
    %v1496 = vunpack.c.h.b16 %v322
    %v1497 = vunpack.c.l.b16 %v323
    %v1498 = vunpack.c.h.b16 %v323
    %v1499 = vunpack.c.l.b16 %v324
    %v1500 = vunpack.c.h.b16 %v324
    %v1501 = vunpack.c.l.b16 %v325
    %v1502 = vunpack.c.h.b16 %v325
    %v1503 = vunpack.c.l.b16 %v326
    %v1504 = vunpack.c.h.b16 %v326
    %v1505 = vunpack.c.l.b16 %v327
    %v1506 = vunpack.c.h.b16 %v327
    %v1507 = vunpack.c.l.b16 %v328
    %v1508 = vunpack.c.h.b16 %v328
    %v1509 = vunpack.c.l.b16 %v329
    %v1510 = vunpack.c.h.b16 %v329
    %v1511 = vunpack.c.l.b16 %v330
    %v1512 = vunpack.c.h.b16 %v330
    %v1513 = vunpack.c.l.b16 %v331
    %v1514 = vunpack.c.h.b16 %v331
    %v1515 = vunpack.c.l.b16 %v332
    %v1516 = vunpack.c.h.b16 %v332
    %v1517 = vunpack.c.l.b16 %v333
    %v1518 = vunpack.c.h.b16 %v333
    %v1519 = vunpack.c.l.b16 %v334
    %v1520 = vunpack.c.h.b16 %v334
    %v1521 = vunpack.c.l.b16 %v335
    %v1522 = vunpack.c.h.b16 %v335
    %v1523 = vunpack.c.l.b16 %v336
    %v1524 = vunpack.c.h.b16 %v336
    %v1525 = vunpack.c.l.b16 %v337
    %v1526 = vunpack.c.h.b16 %v337
    %v1527 = vunpack.c.l.b16 %v338
    %v1528 = vunpack.c.h.b16 %v338
    %v1529 = vunpack.c.l.b16 %v339
    %v1530 = vunpack.c.h.b16 %v339
    %v1531 = vunpack.c.l.b16 %v340
    %v1532 = vunpack.c.h.b16 %v340
    %v1533 = vunpack.c.l.b16 %v341
    %v1534 = vunpack.c.h.b16 %v341
    %v1535 = vunpack.c.l.b16 %v342
    %v1536 = vunpack.c.h.b16 %v342
    %v1537 = vunpack.c.l.b16 %v343
    %v1538 = vunpack.c.h.b16 %v343
    %v1539 = vunpack.c.l.b16 %v344
    %v1540 = vunpack.c.h.b16 %v344
    %v1541 = vunpack.c.l.b16 %v345
    %v1542 = vunpack.c.h.b16 %v345
    %v1543 = vunpack.c.l.b16 %v346
    %v1544 = vunpack.c.h.b16 %v346
    %v1545 = vunpack.c.l.b16 %v347
    %v1546 = vunpack.c.h.b16 %v347
    %v1547 = vunpack.c.l.b16 %v348
    %v1548 = vunpack.c.h.b16 %v348
    %v1549 = vunpack.c.l.b16 %v349
    %v1550 = vunpack.c.h.b16 %v349
    %v1551 = vunpack.c.l.b16 %v350
    %v1552 = vunpack.c.h.b16 %v350
    %v1553 = vunpack.c.l.b16 %v351
    %v1554 = vunpack.c.h.b16 %v351
    %v1555 = vunpack.c.l.b16 %v352
    %v1556 = vunpack.c.h.b16 %v352
    %v1557 = vunpack.c.l.b16 %v353
    %v1558 = vunpack.c.h.b16 %v353
    %v1559 = vunpack.c.l.b16 %v354
    %v1560 = vunpack.c.h.b16 %v354
    %v1561 = vunpack.c.l.b16 %v355
    %v1562 = vunpack.c.h.b16 %v355
    %v1563 = vunpack.c.l.b16 %v356
    %v1564 = vunpack.c.h.b16 %v356
    %v1565 = vunpack.c.l.b16 %v357
    %v1566 = vunpack.c.h.b16 %v357
    %v1567 = vunpack.c.l.b16 %v358
    %v1568 = vunpack.c.h.b16 %v358
    %v1569 = vunpack.c.l.b16 %v359
    %v1570 = vunpack.c.h.b16 %v359
    %v1571 = vunpack.c.l.b16 %v360
    %v1572 = vunpack.c.h.b16 %v360
    %v1573 = vunpack.c.l.b16 %v361
    %v1574 = vunpack.c.h.b16 %v361
    %v1575 = vunpack.c.l.b16 %v362
    %v1576 = vunpack.c.h.b16 %v362
    %v1577 = vunpack.c.l.b16 %v363
    %v1578 = vunpack.c.h.b16 %v363
    %v1579 = vunpack.c.l.b16 %v364
    %v1580 = vunpack.c.h.b16 %v364
    %v1581 = vunpack.c.l.b16 %v365
    %v1582 = vunpack.c.h.b16 %v365
    %v1583 = vunpack.c.l.b16 %v366
    %v1584 = vunpack.c.h.b16 %v366
    %v1585 = vunpack.c.l.b16 %v367
    %v1586 = vunpack.c.h.b16 %v367
    %v1587 = vunpack.c.l.b16 %v368
    %v1588 = vunpack.c.h.b16 %v368
    %v1589 = vunpack.c.l.b16 %v369
    %v1590 = vunpack.c.h.b16 %v369
    %v1591 = vunpack.c.l.b16 %v370
    %v1592 = vunpack.c.h.b16 %v370
    %v1593 = vunpack.c.l.b16 %v371
    %v1594 = vunpack.c.h.b16 %v371
    %v1595 = vunpack.c.l.b16 %v372
    %v1596 = vunpack.c.h.b16 %v372
    %v1597 = vunpack.c.l.b16 %v373
    %v1598 = vunpack.c.h.b16 %v373
    %v1599 = vunpack.c.l.b16 %v374
    %v1600 = vunpack.c.h.b16 %v374
    %v1601 = vunpack.c.l.b16 %v375
    %v1602 = vunpack.c.h.b16 %v375
    %v1603 = vunpack.c.l.b16 %v376
    %v1604 = vunpack.c.h.b16 %v376
    %v1605 = vunpack.c.l.b16 %v377
    %v1606 = vunpack.c.h.b16 %v377
    %v1607 = vunpack.c.l.b16 %v378
    %v1608 = vunpack.c.h.b16 %v378
    %v1609 = vunpack.c.l.b16 %v379
    %v1610 = vunpack.c.h.b16 %v379
    %v1611 = vunpack.c.l.b16 %v380
    %v1612 = vunpack.c.h.b16 %v380
    %v1613 = vunpack.c.l.b16 %v381
    %v1614 = vunpack.c.h.b16 %v381
    %v1615 = vunpack.c.l.b16 %v382
    %v1616 = vunpack.c.h.b16 %v382
    %v1617 = vunpack.c.l.b16 %v383
    %v1618 = vunpack.c.h.b16 %v383
    %v1619 = vunpack.c.l.b16 %v384
    %v1620 = vunpack.c.h.b16 %v384
    %v1621 = vunpack.c.l.b16 %v385
    %v1622 = vunpack.c.h.b16 %v385
    %v1623 = vunpack.c.l.b16 %v386
    %v1624 = vunpack.c.h.b16 %v386
    %v1625 = vunpack.c.l.b16 %v387
    %v1626 = vunpack.c.h.b16 %v387
    %v1627 = vunpack.c.l.b16 %v388
    %v1628 = vunpack.c.h.b16 %v388
    %v1629 = vunpack.c.l.b16 %v389
    %v1630 = vunpack.c.h.b16 %v389
    %v1631 = vunpack.c.l.b16 %v390
    %v1632 = vunpack.c.h.b16 %v390
    %v1633 = vunpack.c.l.b16 %v391
    %v1634 = vunpack.c.h.b16 %v391
    %v1635 = vunpack.c.l.b16 %v392
    %v1636 = vunpack.c.h.b16 %v392
    %v1637 = vunpack.c.l.b16 %v393
    %v1638 = vunpack.c.h.b16 %v393
    %v1639 = vunpack.c.l.b16 %v394
    %v1640 = vunpack.c.h.b16 %v394
    %v1641 = vunpack.c.l.b16 %v395
    %v1642 = vunpack.c.h.b16 %v395
    %v1643 = vunpack.c.l.b16 %v396
    %v1644 = vunpack.c.h.b16 %v396
    %v1645 = vunpack.c.l.b16 %v397
    %v1646 = vunpack.c.h.b16 %v397
    %v1647 = vunpack.c.l.b16 %v398
    %v1648 = vunpack.c.h.b16 %v398
    %v1649 = vunpack.c.l.b16 %v399
    %v1650 = vunpack.c.h.b16 %v399
    %v1651 = vunpack.c.l.b16 %v400
    %v1652 = vunpack.c.h.b16 %v400
    %v1653 = vunpack.c.l.b16 %v401
    %v1654 = vunpack.c.h.b16 %v401
    %v1655 = vunpack.c.l.b16 %v402
    %v1656 = vunpack.c.h.b16 %v402
    %v1657 = vunpack.c.l.b16 %v403
    %v1658 = vunpack.c.h.b16 %v403
    %v1659 = vunpack.c.l.b16 %v404
    %v1660 = vunpack.c.h.b16 %v404
    %v1661 = vunpack.c.l.b16 %v405
    %v1662 = vunpack.c.h.b16 %v405
    %v1663 = vunpack.c.l.b16 %v406
    %v1664 = vunpack.c.h.b16 %v406
    %v1665 = vunpack.c.l.b16 %v407
    %v1666 = vunpack.c.h.b16 %v407
    %v1667 = vunpack.c.l.b16 %v408
    %v1668 = vunpack.c.h.b16 %v408
    %v1669 = vunpack.c.l.b16 %v409
    %v1670 = vunpack.c.h.b16 %v409
    %v1671 = vunpack.c.l.b16 %v410
    %v1672 = vunpack.c.h.b16 %v410
    %v1673 = vunpack.c.l.b16 %v411
    %v1674 = vunpack.c.h.b16 %v411
    %v1675 = vunpack.c.l.b16 %v412
    %v1676 = vunpack.c.h.b16 %v412
    %v1677 = vunpack.c.l.b16 %v413
    %v1678 = vunpack.c.h.b16 %v413
    %v1679 = vunpack.c.l.b16 %v414
    %v1680 = vunpack.c.h.b16 %v414
    %v1681 = vunpack.c.l.b16 %v415
    %v1682 = vunpack.c.h.b16 %v415
    %v1683 = vunpack.c.l.b16 %v416
    %v1684 = vunpack.c.h.b16 %v416
    %v1685 = vunpack.c.l.b16 %v417
    %v1686 = vunpack.c.h.b16 %v417
    %v1687 = vunpack.c.l.b16 %v418
    %v1688 = vunpack.c.h.b16 %v418
    %v1689 = vunpack.c.l.b16 %v419
    %v1690 = vunpack.c.h.b16 %v419
    %v1691 = vunpack.c.l.b16 %v420
    %v1692 = vunpack.c.h.b16 %v420
    %v1693 = vunpack.c.l.b16 %v421
    %v1694 = vunpack.c.h.b16 %v421
    %v1695 = vunpack.c.l.b16 %v422
    %v1696 = vunpack.c.h.b16 %v422
    %v1697 = vunpack.c.l.b16 %v423
    %v1698 = vunpack.c.h.b16 %v423
    %v1699 = vunpack.c.l.b16 %v424
    %v1700 = vunpack.c.h.b16 %v424
    %v1701 = vunpack.c.l.b16 %v425
    %v1702 = vunpack.c.h.b16 %v425
    %v1703 = vunpack.c.l.b16 %v426
    %v1704 = vunpack.c.h.b16 %v426
    %v1705 = vunpack.c.l.b16 %v427
    %v1706 = vunpack.c.h.b16 %v427
    %v1707 = vunpack.c.l.b16 %v428
    %v1708 = vunpack.c.h.b16 %v428
    %v1709 = vunpack.c.l.b16 %v429
    %v1710 = vunpack.c.h.b16 %v429
    %v1711 = vunpack.c.l.b16 %v430
    %v1712 = vunpack.c.h.b16 %v430
    %v1713 = vunpack.c.l.b16 %v431
    %v1714 = vunpack.c.h.b16 %v431
    %v1715 = vunpack.c.l.b16 %v432
    %v1716 = vunpack.c.h.b16 %v432
    %v1717 = vunpack.c.l.b16 %v433
    %v1718 = vunpack.c.h.b16 %v433
    %v1719 = vunpack.c.l.b16 %v434
    %v1720 = vunpack.c.h.b16 %v434
    %v1721 = vunpack.c.l.b16 %v435
    %v1722 = vunpack.c.h.b16 %v435
    %v1723 = vunpack.c.l.b16 %v436
    %v1724 = vunpack.c.h.b16 %v436
    %v1725 = vunpack.c.l.b16 %v437
    %v1726 = vunpack.c.h.b16 %v437
    %v1727 = vunpack.c.l.b16 %v438
    %v1728 = vunpack.c.h.b16 %v438
    %v1729 = vunpack.c.l.b16 %v439
    %v1730 = vunpack.c.h.b16 %v439
    %v1731 = vunpack.c.l.b16 %v440
    %v1732 = vunpack.c.h.b16 %v440
    %v1733 = vunpack.c.l.b16 %v441
    %v1734 = vunpack.c.h.b16 %v441
    %v1735 = vunpack.c.l.b16 %v442
    %v1736 = vunpack.c.h.b16 %v442
    %v1737 = vunpack.c.l.b16 %v443
    %v1738 = vunpack.c.h.b16 %v443
    %v1739 = vunpack.c.l.b16 %v444
    %v1740 = vunpack.c.h.b16 %v444
    %v1741 = vunpack.c.l.b16 %v445
    %v1742 = vunpack.c.h.b16 %v445
    %v1743 = vunpack.c.l.b16 %v446
    %v1744 = vunpack.c.h.b16 %v446
    %v1745 = vunpack.c.l.b16 %v447
    %v1746 = vunpack.c.h.b16 %v447
    %v1747 = vunpack.c.l.b16 %v448
    %v1748 = vunpack.c.h.b16 %v448
    %v1749 = vunpack.c.l.b16 %v449
    %v1750 = vunpack.c.h.b16 %v449
    %v1751 = vunpack.c.l.b16 %v450
    %v1752 = vunpack.c.h.b16 %v450
    %v1753 = vunpack.c.l.b16 %v451
    %v1754 = vunpack.c.h.b16 %v451
    %v1755 = vunpack.c.l.b16 %v452
    %v1756 = vunpack.c.h.b16 %v452
    %v1757 = vunpack.c.l.b16 %v453
    %v1758 = vunpack.c.h.b16 %v453
    %v1759 = vunpack.c.l.b16 %v454
    %v1760 = vunpack.c.h.b16 %v454
    %v1761 = vunpack.c.l.b16 %v455
    %v1762 = vunpack.c.h.b16 %v455
    %v1763 = vunpack.c.l.b16 %v456
    %v1764 = vunpack.c.h.b16 %v456
    %v1765 = vunpack.c.l.b16 %v457
    %v1766 = vunpack.c.h.b16 %v457
    %v1767 = vunpack.c.l.b16 %v458
    %v1768 = vunpack.c.h.b16 %v458
    %v1769 = vunpack.c.l.b16 %v459
    %v1770 = vunpack.c.h.b16 %v459
    %v1771 = vunpack.c.l.b16 %v460
    %v1772 = vunpack.c.h.b16 %v460
    %v1773 = vunpack.c.l.b16 %v461
    %v1774 = vunpack.c.h.b16 %v461
    %v1775 = vunpack.c.l.b16 %v462
    %v1776 = vunpack.c.h.b16 %v462
    %v1777 = vunpack.c.l.b16 %v463
    %v1778 = vunpack.c.h.b16 %v463
    %v1779 = vunpack.c.l.b16 %v464
    %v1780 = vunpack.c.h.b16 %v464
    %v1781 = vunpack.c.l.b16 %v465
    %v1782 = vunpack.c.h.b16 %v465
    %v1783 = vunpack.c.l.b16 %v466
    %v1784 = vunpack.c.h.b16 %v466
    %v1785 = vunpack.c.l.b16 %v467
    %v1786 = vunpack.c.h.b16 %v467
    %v1787 = vunpack.c.l.b16 %v468
    %v1788 = vunpack.c.h.b16 %v468
    %v1789 = vunpack.c.l.b16 %v469
    %v1790 = vunpack.c.h.b16 %v469
    %v1791 = vunpack.c.l.b16 %v470
    %v1792 = vunpack.c.h.b16 %v470
    %v1793 = vunpack.c.l.b16 %v471
    %v1794 = vunpack.c.h.b16 %v471
    %v1795 = vunpack.c.l.b16 %v472
    %v1796 = vunpack.c.h.b16 %v472
    %v1797 = vunpack.c.l.b16 %v473
    %v1798 = vunpack.c.h.b16 %v473
    %v1799 = vunpack.c.l.b16 %v474
    %v1800 = vunpack.c.h.b16 %v474
    %v1801 = vunpack.c.l.b16 %v475
    %v1802 = vunpack.c.h.b16 %v475
    %v1803 = vunpack.c.l.b16 %v476
    %v1804 = vunpack.c.h.b16 %v476
    %v1805 = vunpack.c.l.b16 %v477
    %v1806 = vunpack.c.h.b16 %v477
    %v1807 = vunpack.c.l.b16 %v478
    %v1808 = vunpack.c.h.b16 %v478
    %v1809 = vunpack.c.l.b16 %v479
    %v1810 = vunpack.c.h.b16 %v479
    %v1811 = vunpack.c.l.b16 %v480
    %v1812 = vunpack.c.h.b16 %v480
    %v1813 = vunpack.c.l.b16 %v481
    %v1814 = vunpack.c.h.b16 %v481
    %v1815 = vunpack.c.l.b16 %v482
    %v1816 = vunpack.c.h.b16 %v482
    %v1817 = vunpack.c.l.b16 %v483
    %v1818 = vunpack.c.h.b16 %v483
    %v1819 = vunpack.c.l.b16 %v484
    %v1820 = vunpack.c.h.b16 %v484
    %v1821 = vunpack.c.l.b16 %v485
    %v1822 = vunpack.c.h.b16 %v485
    %v1823 = vunpack.c.l.b16 %v486
    %v1824 = vunpack.c.h.b16 %v486
    %v1825 = vunpack.c.l.b16 %v487
    %v1826 = vunpack.c.h.b16 %v487
    %v1827 = vunpack.c.l.b16 %v488
    %v1828 = vunpack.c.h.b16 %v488
    %v1829 = vunpack.c.l.b16 %v489
    %v1830 = vunpack.c.h.b16 %v489
    %v1831 = vunpack.c.l.b16 %v490
    %v1832 = vunpack.c.h.b16 %v490
    %v1833 = vunpack.c.l.b16 %v491
    %v1834 = vunpack.c.h.b16 %v491
    %v1835 = vunpack.c.l.b16 %v492
    %v1836 = vunpack.c.h.b16 %v492
    %v1837 = vunpack.c.l.b16 %v493
    %v1838 = vunpack.c.h.b16 %v493
    %v1839 = vunpack.c.l.b16 %v494
    %v1840 = vunpack.c.h.b16 %v494
    %v1841 = vunpack.c.l.b16 %v495
    %v1842 = vunpack.c.h.b16 %v495
    %v1843 = vunpack.c.l.b16 %v496
    %v1844 = vunpack.c.h.b16 %v496
    %v1845 = vunpack.c.l.b16 %v497
    %v1846 = vunpack.c.h.b16 %v497
    %v1847 = vunpack.c.l.b16 %v498
    %v1848 = vunpack.c.h.b16 %v498
    %v1849 = vunpack.c.l.b16 %v499
    %v1850 = vunpack.c.h.b16 %v499
    %v1851 = vunpack.c.l.b16 %v500
    %v1852 = vunpack.c.h.b16 %v500
    %v1853 = vunpack.c.l.b16 %v501
    %v1854 = vunpack.c.h.b16 %v501
    %v1855 = vunpack.c.l.b16 %v502
    %v1856 = vunpack.c.h.b16 %v502
    %v1857 = vunpack.c.l.b16 %v503
    %v1858 = vunpack.c.h.b16 %v503
    %v1859 = vunpack.c.l.b16 %v504
    %v1860 = vunpack.c.h.b16 %v504
    %v1861 = vunpack.c.l.b16 %v505
    %v1862 = vunpack.c.h.b16 %v505
    %v1863 = vunpack.c.l.b16 %v506
    %v1864 = vunpack.c.h.b16 %v506
    %v1865 = vunpack.c.l.b16 %v507
    %v1866 = vunpack.c.h.b16 %v507
    %v1867 = vunpack.c.l.b16 %v508
    %v1868 = vunpack.c.h.b16 %v508
    %v1869 = vunpack.c.l.b16 %v509
    %v1870 = vunpack.c.h.b16 %v509
    %v1871 = vunpack.c.l.b16 %v510
    %v1872 = vunpack.c.h.b16 %v510
    %v1873 = vunpack.c.l.b16 %v511
    %v1874 = vunpack.c.h.b16 %v511
    %v1875 = vunpack.c.l.b16 %v512
    %v1876 = vunpack.c.h.b16 %v512
    %v1877 = vunpack.c.l.b16 %v513
    %v1878 = vunpack.c.h.b16 %v513
    %v1879 = vunpack.c.l.b16 %v514
    %v1880 = vunpack.c.h.b16 %v514
    %v1881 = vunpack.c.l.b16 %v515
    %v1882 = vunpack.c.h.b16 %v515
    %v1883 = vunpack.c.l.b16 %v516
    %v1884 = vunpack.c.h.b16 %v516
    %v1885 = vunpack.c.l.b16 %v517
    %v1886 = vunpack.c.h.b16 %v517
    %v1887 = vunpack.c.l.b16 %v518
    %v1888 = vunpack.c.h.b16 %v518
    %v1889 = vunpack.c.l.b16 %v519
    %v1890 = vunpack.c.h.b16 %v519
    %v1891 = vunpack.c.l.b16 %v520
    %v1892 = vunpack.c.h.b16 %v520
    %v1893 = vunpack.c.l.b16 %v521
    %v1894 = vunpack.c.h.b16 %v521
    %v1895 = vunpack.c.l.b16 %v522
    %v1896 = vunpack.c.h.b16 %v522
    %v1897 = vunpack.c.l.b16 %v523
    %v1898 = vunpack.c.h.b16 %v523
    %v1899 = vunpack.c.l.b16 %v524
    %v1900 = vunpack.c.h.b16 %v524
    %v1901 = vunpack.c.l.b16 %v525
    %v1902 = vunpack.c.h.b16 %v525
    %v1903 = vunpack.c.l.b16 %v526
    %v1904 = vunpack.c.h.b16 %v526
    %v1905 = vunpack.c.l.b16 %v527
    %v1906 = vunpack.c.h.b16 %v527
    %v1907 = vunpack.c.l.b16 %v528
    %v1908 = vunpack.c.h.b16 %v528
    %v1909 = vunpack.c.l.b16 %v529
    %v1910 = vunpack.c.h.b16 %v529
    %v1911 = vunpack.c.l.b16 %v530
    %v1912 = vunpack.c.h.b16 %v530
    %v1913 = vunpack.c.l.b16 %v531
    %v1914 = vunpack.c.h.b16 %v531
    %v1915 = vunpack.c.l.b16 %v532
    %v1916 = vunpack.c.h.b16 %v532
    %v1917 = vunpack.c.l.b16 %v533
    %v1918 = vunpack.c.h.b16 %v533
    %v1919 = vunpack.c.l.b16 %v534
    %v1920 = vunpack.c.h.b16 %v534
    %v1921 = vunpack.c.l.b16 %v535
    %v1922 = vunpack.c.h.b16 %v535
    %v1923 = vunpack.c.l.b16 %v536
    %v1924 = vunpack.c.h.b16 %v536
    %v1925 = vunpack.c.l.b16 %v537
    %v1926 = vunpack.c.h.b16 %v537
    %v1927 = vunpack.c.l.b16 %v538
    %v1928 = vunpack.c.h.b16 %v538
    %v1929 = vunpack.c.l.b16 %v539
    %v1930 = vunpack.c.h.b16 %v539
    %v1931 = vunpack.c.l.b16 %v540
    %v1932 = vunpack.c.h.b16 %v540
    %v1933 = vunpack.c.l.b16 %v541
    %v1934 = vunpack.c.h.b16 %v541
    %v1935 = vunpack.c.l.b16 %v542
    %v1936 = vunpack.c.h.b16 %v542
    %v1937 = vunpack.c.l.b16 %v543
    %v1938 = vunpack.c.h.b16 %v543
    %v1939 = vunpack.c.l.b16 %v544
    %v1940 = vunpack.c.h.b16 %v544
    %v1941 = vunpack.c.l.b16 %v545
    %v1942 = vunpack.c.h.b16 %v545
    %v1943 = vunpack.c.l.b16 %v546
    %v1944 = vunpack.c.h.b16 %v546
    %v1945 = vunpack.c.l.b16 %v547
    %v1946 = vunpack.c.h.b16 %v547
    %v1947 = vunpack.c.l.b16 %v548
    %v1948 = vunpack.c.h.b16 %v548
    %v1949 = vunpack.c.l.b16 %v549
    %v1950 = vunpack.c.h.b16 %v549
    %v1951 = vunpack.c.l.b16 %v550
    %v1952 = vunpack.c.h.b16 %v550
    %v1953 = vunpack.c.l.b16 %v551
    %v1954 = vunpack.c.h.b16 %v551
    %v1955 = vunpack.c.l.b16 %v552
    %v1956 = vunpack.c.h.b16 %v552
    %v1957 = vunpack.c.l.b16 %v553
    %v1958 = vunpack.c.h.b16 %v553
    %v1959 = vunpack.c.l.b16 %v554
    %v1960 = vunpack.c.h.b16 %v554
    %v1961 = vunpack.c.l.b16 %v555
    %v1962 = vunpack.c.h.b16 %v555
    %v1963 = vunpack.c.l.b16 %v556
    %v1964 = vunpack.c.h.b16 %v556
    %v1965 = vunpack.c.l.b16 %v557
    %v1966 = vunpack.c.h.b16 %v557
    %v1967 = vunpack.c.l.b16 %v558
    %v1968 = vunpack.c.h.b16 %v558
    %v1969 = vunpack.c.l.b16 %v559
    %v1970 = vunpack.c.h.b16 %v559
    %v1971 = vunpack.c.l.b16 %v560
    %v1972 = vunpack.c.h.b16 %v560
    %v1973 = vunpack.c.l.b16 %v561
    %v1974 = vunpack.c.h.b16 %v561
    %v1975 = vunpack.c.l.b16 %v562
    %v1976 = vunpack.c.h.b16 %v562
    %v1977 = vunpack.c.l.b16 %v563
    %v1978 = vunpack.c.h.b16 %v563
    %v1979 = vunpack.c.l.b16 %v564
    %v1980 = vunpack.c.h.b16 %v564
    %v1981 = vunpack.c.l.b16 %v565
    %v1982 = vunpack.c.h.b16 %v565
    %v1983 = vunpack.c.l.b16 %v566
    %v1984 = vunpack.c.h.b16 %v566
    %v1985 = vunpack.c.l.b16 %v567
    %v1986 = vunpack.c.h.b16 %v567
    %v1987 = vunpack.c.l.b16 %v568
    %v1988 = vunpack.c.h.b16 %v568
    %v1989 = vunpack.c.l.b16 %v569
    %v1990 = vunpack.c.h.b16 %v569
    %v1991 = vunpack.c.l.b16 %v570
    %v1992 = vunpack.c.h.b16 %v570
    %v1993 = vunpack.c.l.b16 %v571
    %v1994 = vunpack.c.h.b16 %v571
    %v1995 = vunpack.c.l.b16 %v572
    %v1996 = vunpack.c.h.b16 %v572
    %v1997 = vunpack.c.l.b16 %v573
    %v1998 = vunpack.c.h.b16 %v573
    %v1999 = vunpack.c.l.b16 %v574
    %v2000 = vunpack.c.h.b16 %v574
    %v2001 = vunpack.c.l.b16 %v575
    %v2002 = vunpack.c.h.b16 %v575
    %v2003 = vunpack.c.l.b16 %v576
    %v2004 = vunpack.c.h.b16 %v576
    %v2005 = vunpack.c.l.b16 %v577
    %v2006 = vunpack.c.h.b16 %v577
    %v2007 = vunpack.c.l.b16 %v578
    %v2008 = vunpack.c.h.b16 %v578
    %v2009 = vunpack.c.l.b16 %v579
    %v2010 = vunpack.c.h.b16 %v579
    %v2011 = vunpack.c.l.b16 %v580
    %v2012 = vunpack.c.h.b16 %v580
    %v2013 = vunpack.c.l.b16 %v581
    %v2014 = vunpack.c.h.b16 %v581
    %v2015 = vunpack.c.l.b16 %v582
    %v2016 = vunpack.c.h.b16 %v582
    %v2017 = vunpack.c.l.b16 %v583
    %v2018 = vunpack.c.h.b16 %v583
    %v2019 = vunpack.c.l.b16 %v584
    %v2020 = vunpack.c.h.b16 %v584
    %v2021 = vunpack.c.l.b16 %v585
    %v2022 = vunpack.c.h.b16 %v585
    %v2023 = vunpack.c.l.b16 %v586
    %v2024 = vunpack.c.h.b16 %v586
    %v2025 = vunpack.c.l.b16 %v587
    %v2026 = vunpack.c.h.b16 %v587
    %v2027 = vunpack.c.l.b16 %v588
    %v2028 = vunpack.c.h.b16 %v588
    %v2029 = vunpack.c.l.b16 %v589
    %v2030 = vunpack.c.h.b16 %v589
    %v2031 = vunpack.c.l.b16 %v590
    %v2032 = vunpack.c.h.b16 %v590
    %v2033 = vunpack.c.l.b16 %v591
    %v2034 = vunpack.c.h.b16 %v591
    %v2035 = vunpack.c.l.b16 %v592
    %v2036 = vunpack.c.h.b16 %v592
    %v2037 = vunpack.c.l.b16 %v593
    %v2038 = vunpack.c.h.b16 %v593
    %v2039 = vunpack.c.l.b16 %v594
    %v2040 = vunpack.c.h.b16 %v594
    %v2041 = vunpack.c.l.b16 %v595
    %v2042 = vunpack.c.h.b16 %v595
    %v2043 = vunpack.c.l.b16 %v596
    %v2044 = vunpack.c.h.b16 %v596
    %v2045 = vunpack.c.l.b16 %v597
    %v2046 = vunpack.c.h.b16 %v597
    %v2047 = vunpack.c.l.b16 %v598
    %v2048 = vunpack.c.h.b16 %v598
    %v2049 = vunpack.c.l.b16 %v599
    %v2050 = vunpack.c.h.b16 %v599
    %v2051 = vunpack.c.l.b16 %v600
    %v2052 = vunpack.c.h.b16 %v600
    %v2053 = vunpack.c.l.b16 %v601
    %v2054 = vunpack.c.h.b16 %v601
    %v2055 = vunpack.c.l.b16 %v602
    %v2056 = vunpack.c.h.b16 %v602
    %v2057 = vunpack.c.l.b16 %v603
    %v2058 = vunpack.c.h.b16 %v603
    %v2059 = vunpack.c.l.b16 %v604
    %v2060 = vunpack.c.h.b16 %v604
    %v2061 = vunpack.c.l.b16 %v605
    %v2062 = vunpack.c.h.b16 %v605
    %v2063 = vunpack.c.l.b16 %v606
    %v2064 = vunpack.c.h.b16 %v606
    %v2065 = vunpack.c.l.b16 %v607
    %v2066 = vunpack.c.h.b16 %v607
    %v2067 = vunpack.c.l.b16 %v608
    %v2068 = vunpack.c.h.b16 %v608
    %v2069 = vunpack.c.l.b16 %v609
    %v2070 = vunpack.c.h.b16 %v609
    %v2071 = vunpack.c.l.b16 %v610
    %v2072 = vunpack.c.h.b16 %v610
    %v2073 = vunpack.c.l.b16 %v611
    %v2074 = vunpack.c.h.b16 %v611
    %v2075 = vunpack.c.l.b16 %v612
    %v2076 = vunpack.c.h.b16 %v612
    %v2077 = vunpack.c.l.b16 %v613
    %v2078 = vunpack.c.h.b16 %v613
    %v2079 = vunpack.c.l.b16 %v614
    %v2080 = vunpack.c.h.b16 %v614
    %v2081 = vunpack.c.l.b16 %v615
    %v2082 = vunpack.c.h.b16 %v615
    %v2083 = vunpack.c.l.b16 %v616
    %v2084 = vunpack.c.h.b16 %v616
    %v2085 = vunpack.c.l.b16 %v617
    %v2086 = vunpack.c.h.b16 %v617
    %v2087 = vunpack.c.l.b16 %v618
    %v2088 = vunpack.c.h.b16 %v618
    %v2089 = vunpack.c.l.b16 %v619
    %v2090 = vunpack.c.h.b16 %v619
    %v2091 = vunpack.c.l.b16 %v620
    %v2092 = vunpack.c.h.b16 %v620
    %v2093 = vunpack.c.l.b16 %v621
    %v2094 = vunpack.c.h.b16 %v621
    %v2095 = vunpack.c.l.b16 %v622
    %v2096 = vunpack.c.h.b16 %v622
    %v2097 = vunpack.c.l.b16 %v623
    %v2098 = vunpack.c.h.b16 %v623
    %v2099 = vunpack.c.l.b16 %v624
    %v2100 = vunpack.c.h.b16 %v624
    %v2101 = vunpack.c.l.b16 %v625
    %v2102 = vunpack.c.h.b16 %v625
    %v2103 = vunpack.c.l.b16 %v626
    %v2104 = vunpack.c.h.b16 %v626
    %v2105 = vunpack.c.l.b16 %v627
    %v2106 = vunpack.c.h.b16 %v627
    %v2107 = vunpack.c.l.b16 %v628
    %v2108 = vunpack.c.h.b16 %v628
    %v2109 = vunpack.c.l.b16 %v629
    %v2110 = vunpack.c.h.b16 %v629
    %v2111 = vunpack.c.l.b16 %v630
    %v2112 = vunpack.c.h.b16 %v630
    %v2113 = vunpack.c.l.b16 %v631
    %v2114 = vunpack.c.h.b16 %v631
    %v2115 = vunpack.c.l.b16 %v632
    %v2116 = vunpack.c.h.b16 %v632
    %v2117 = vunpack.c.l.b16 %v633
    %v2118 = vunpack.c.h.b16 %v633
    %v2119 = vunpack.c.l.b16 %v634
    %v2120 = vunpack.c.h.b16 %v634
    %v2121 = vunpack.c.l.b16 %v635
    %v2122 = vunpack.c.h.b16 %v635
    %v2123 = vunpack.c.l.b16 %v636
    %v2124 = vunpack.c.h.b16 %v636
    %v2125 = vunpack.c.l.b16 %v637
    %v2126 = vunpack.c.h.b16 %v637
    %v2127 = vunpack.c.l.b16 %v638
    %v2128 = vunpack.c.h.b16 %v638
    %v2129 = vunpack.c.l.b16 %v639
    %v2130 = vunpack.c.h.b16 %v639
    %v2131 = vunpack.c.l.b16 %v640
    %v2132 = vunpack.c.h.b16 %v640
    %v2133 = vunpack.c.l.b16 %v641
    %v2134 = vunpack.c.h.b16 %v641
    %v2135 = vunpack.c.l.b16 %v642
    %v2136 = vunpack.c.h.b16 %v642
    %v2137 = vunpack.c.l.b16 %v643
    %v2138 = vunpack.c.h.b16 %v643
    %v2139 = vunpack.c.l.b16 %v644
    %v2140 = vunpack.c.h.b16 %v644
    %v2141 = vunpack.c.l.b16 %v645
    %v2142 = vunpack.c.h.b16 %v645
    %v2143 = vunpack.c.l.b16 %v646
    %v2144 = vunpack.c.h.b16 %v646
    %v2145 = vunpack.c.l.b16 %v647
    %v2146 = vunpack.c.h.b16 %v647
    %v2147 = vunpack.c.l.b16 %v648
    %v2148 = vunpack.c.h.b16 %v648
    %v2149 = vunpack.c.l.b16 %v649
    %v2150 = vunpack.c.h.b16 %v649
    %v2151 = vunpack.c.l.b16 %v650
    %v2152 = vunpack.c.h.b16 %v650
    %v2153 = vunpack.c.l.b16 %v651
    %v2154 = vunpack.c.h.b16 %v651
    %v2155 = vunpack.c.l.b16 %v652
    %v2156 = vunpack.c.h.b16 %v652
    %v2157 = vunpack.c.l.b16 %v653
    %v2158 = vunpack.c.h.b16 %v653
    %v2159 = vunpack.c.l.b16 %v654
    %v2160 = vunpack.c.h.b16 %v654
    %v2161 = vunpack.c.l.b16 %v655
    %v2162 = vunpack.c.h.b16 %v655
    %v2163 = vunpack.c.l.b16 %v656
    %v2164 = vunpack.c.h.b16 %v656
    %v2165 = vunpack.c.l.b16 %v657
    %v2166 = vunpack.c.h.b16 %v657
    %v2167 = vunpack.c.l.b16 %v658
    %v2168 = vunpack.c.h.b16 %v658
    %v2169 = vunpack.c.l.b16 %v659
    %v2170 = vunpack.c.h.b16 %v659
    %v2171 = vunpack.c.l.b16 %v660
    %v2172 = vunpack.c.h.b16 %v660
    %v2173 = vunpack.c.l.b16 %v661
    %v2174 = vunpack.c.h.b16 %v661
    %v2175 = vunpack.c.l.b16 %v662
    %v2176 = vunpack.c.h.b16 %v662
    %v2177 = vunpack.c.l.b16 %v663
    %v2178 = vunpack.c.h.b16 %v663
    %v2179 = vunpack.c.l.b16 %v664
    %v2180 = vunpack.c.h.b16 %v664
    %v2181 = vunpack.c.l.b16 %v665
    %v2182 = vunpack.c.h.b16 %v665
    %v2183 = vunpack.c.l.b16 %v666
    %v2184 = vunpack.c.h.b16 %v666
    %v2185 = vunpack.c.l.b16 %v667
    %v2186 = vunpack.c.h.b16 %v667
    %v2187 = vunpack.c.l.b16 %v668
    %v2188 = vunpack.c.h.b16 %v668
    %v2189 = vunpack.c.l.b16 %v669
    %v2190 = vunpack.c.h.b16 %v669
    %v2191 = vunpack.c.l.b16 %v670
    %v2192 = vunpack.c.h.b16 %v670
    %v2193 = vunpack.c.l.b16 %v671
    %v2194 = vunpack.c.h.b16 %v671
    %v2195 = vunpack.c.l.b16 %v672
    %v2196 = vunpack.c.h.b16 %v672
    %v2197 = vunpack.c.l.b16 %v673
    %v2198 = vunpack.c.h.b16 %v673
    %v2199 = vunpack.c.l.b16 %v674
    %v2200 = vunpack.c.h.b16 %v674
    %v2201 = vunpack.c.l.b16 %v675
    %v2202 = vunpack.c.h.b16 %v675
    %v2203 = vunpack.c.l.b16 %v676
    %v2204 = vunpack.c.h.b16 %v676
    %v2205 = vunpack.c.l.b16 %v677
    %v2206 = vunpack.c.h.b16 %v677
    %v2207 = vunpack.c.l.b16 %v678
    %v2208 = vunpack.c.h.b16 %v678
    %v2209 = vunpack.c.l.b16 %v679
    %v2210 = vunpack.c.h.b16 %v679
    %v2211 = vunpack.c.l.b16 %v680
    %v2212 = vunpack.c.h.b16 %v680
    %v2213 = vunpack.c.l.b16 %v681
    %v2214 = vunpack.c.h.b16 %v681
    %v2215 = vunpack.c.l.b16 %v682
    %v2216 = vunpack.c.h.b16 %v682
    %v2217 = vunpack.c.l.b16 %v683
    %v2218 = vunpack.c.h.b16 %v683
    %v2219 = vunpack.c.l.b16 %v684
    %v2220 = vunpack.c.h.b16 %v684
    %v2221 = vunpack.c.l.b16 %v685
    %v2222 = vunpack.c.h.b16 %v685
    %v2223 = vunpack.c.l.b16 %v686
    %v2224 = vunpack.c.h.b16 %v686
    %v2225 = vunpack.c.l.b16 %v687
    %v2226 = vunpack.c.h.b16 %v687
    %v2227 = vunpack.c.l.b16 %v688
    %v2228 = vunpack.c.h.b16 %v688
    %v2229 = vunpack.c.l.b16 %v689
    %v2230 = vunpack.c.h.b16 %v689
    %v2231 = vunpack.c.l.b16 %v690
    %v2232 = vunpack.c.h.b16 %v690
    %v2233 = vunpack.c.l.b16 %v691
    %v2234 = vunpack.c.h.b16 %v691
    %v2235 = vunpack.c.l.b16 %v692
    %v2236 = vunpack.c.h.b16 %v692
    %v2237 = vunpack.c.l.b16 %v693
    %v2238 = vunpack.c.h.b16 %v693
    %v2239 = vunpack.c.l.b16 %v694
    %v2240 = vunpack.c.h.b16 %v694
    %v2241 = vunpack.c.l.b16 %v695
    %v2242 = vunpack.c.h.b16 %v695
    %v2243 = vunpack.c.l.b16 %v696
    %v2244 = vunpack.c.h.b16 %v696
    %v2245 = vunpack.c.l.b16 %v697
    %v2246 = vunpack.c.h.b16 %v697
    %v2247 = vunpack.c.l.b16 %v698
    %v2248 = vunpack.c.h.b16 %v698
    %v2249 = vunpack.c.l.b16 %v699
    %v2250 = vunpack.c.h.b16 %v699
    %v2251 = vunpack.c.l.b16 %v700
    %v2252 = vunpack.c.h.b16 %v700
    %v2253 = vunpack.c.l.b16 %v701
    %v2254 = vunpack.c.h.b16 %v701
    %v2255 = vunpack.c.l.b16 %v702
    %v2256 = vunpack.c.h.b16 %v702
    %v2257 = vunpack.c.l.b16 %v703
    %v2258 = vunpack.c.h.b16 %v703
    %v2259 = vunpack.c.l.b16 %v704
    %v2260 = vunpack.c.h.b16 %v704
    %v2261 = vunpack.c.l.b16 %v705
    %v2262 = vunpack.c.h.b16 %v705
    %v2263 = vunpack.c.l.b16 %v706
    %v2264 = vunpack.c.h.b16 %v706
    %v2265 = vunpack.c.l.b16 %v707
    %v2266 = vunpack.c.h.b16 %v707
    %v2267 = vunpack.c.l.b16 %v708
    %v2268 = vunpack.c.h.b16 %v708
    %v2269 = vunpack.c.l.b16 %v709
    %v2270 = vunpack.c.h.b16 %v709
    %v2271 = vunpack.c.l.b16 %v710
    %v2272 = vunpack.c.h.b16 %v710
    %v2273 = vunpack.c.l.b16 %v711
    %v2274 = vunpack.c.h.b16 %v711
    %v2275 = vunpack.c.l.b16 %v712
    %v2276 = vunpack.c.h.b16 %v712
    %v2277 = vunpack.c.l.b16 %v713
    %v2278 = vunpack.c.h.b16 %v713
    %v2279 = vunpack.c.l.b16 %v714
    %v2280 = vunpack.c.h.b16 %v714
    %v2281 = vunpack.c.l.b16 %v715
    %v2282 = vunpack.c.h.b16 %v715
    %v2283 = vunpack.c.l.b16 %v716
    %v2284 = vunpack.c.h.b16 %v716
    %v2285 = vunpack.c.l.b16 %v717
    %v2286 = vunpack.c.h.b16 %v717
    %v2287 = vunpack.c.l.b16 %v718
    %v2288 = vunpack.c.h.b16 %v718
    %v2289 = vunpack.c.l.b16 %v719
    %v2290 = vunpack.c.h.b16 %v719
    %v2291 = vunpack.c.l.b16 %v720
    %v2292 = vunpack.c.h.b16 %v720
    %v2293 = vunpack.c.l.b16 %v721
    %v2294 = vunpack.c.h.b16 %v721
    %v2295 = vunpack.c.l.b16 %v722
    %v2296 = vunpack.c.h.b16 %v722
    %v2297 = vunpack.c.l.b16 %v723
    %v2298 = vunpack.c.h.b16 %v723
    %v2299 = vunpack.c.l.b16 %v724
    %v2300 = vunpack.c.h.b16 %v724
    %v2301 = vunpack.c.l.b16 %v725
    %v2302 = vunpack.c.h.b16 %v725
    %v2303 = vunpack.c.l.b16 %v726
    %v2304 = vunpack.c.h.b16 %v726
    %v2305 = vunpack.c.l.b16 %v727
    %v2306 = vunpack.c.h.b16 %v727
    %v2307 = vunpack.c.l.b16 %v728
    %v2308 = vunpack.c.h.b16 %v728
    %v2309 = vunpack.c.l.b16 %v729
    %v2310 = vunpack.c.h.b16 %v729
    %v2311 = vunpack.c.l.b16 %v730
    %v2312 = vunpack.c.h.b16 %v730
    %v2313 = vunpack.c.l.b16 %v731
    %v2314 = vunpack.c.h.b16 %v731
    %v2315 = vunpack.c.l.b16 %v732
    %v2316 = vunpack.c.h.b16 %v732
    %v2317 = vunpack.c.l.b16 %v733
    %v2318 = vunpack.c.h.b16 %v733
    %v2319 = vunpack.c.l.b16 %v734
    %v2320 = vunpack.c.h.b16 %v734
    %v2321 = vunpack.c.l.b16 %v735
    %v2322 = vunpack.c.h.b16 %v735
    %v2323 = vunpack.c.l.b16 %v736
    %v2324 = vunpack.c.h.b16 %v736
    %v2325 = vunpack.c.l.b16 %v737
    %v2326 = vunpack.c.h.b16 %v737
    %v2327 = vunpack.c.l.b16 %v738
    %v2328 = vunpack.c.h.b16 %v738
    %v2329 = vunpack.c.l.b16 %v739
    %v2330 = vunpack.c.h.b16 %v739
    %v2331 = vunpack.c.l.b16 %v740
    %v2332 = vunpack.c.h.b16 %v740
    %v2333 = vunpack.c.l.b16 %v741
    %v2334 = vunpack.c.h.b16 %v741
    %v2335 = vunpack.c.l.b16 %v742
    %v2336 = vunpack.c.h.b16 %v742
    %v2337 = vunpack.c.l.b16 %v743
    %v2338 = vunpack.c.h.b16 %v743
    %v2339 = vunpack.c.l.b16 %v744
    %v2340 = vunpack.c.h.b16 %v744
    %v2341 = vunpack.c.l.b16 %v745
    %v2342 = vunpack.c.h.b16 %v745
    %v2343 = vunpack.c.l.b16 %v746
    %v2344 = vunpack.c.h.b16 %v746
    %v2345 = vunpack.c.l.b16 %v747
    %v2346 = vunpack.c.h.b16 %v747
    %v2347 = vunpack.c.l.b16 %v748
    %v2348 = vunpack.c.h.b16 %v748
    %v2349 = vunpack.c.l.b16 %v749
    %v2350 = vunpack.c.h.b16 %v749
    %v2351 = vunpack.c.l.b16 %v750
    %v2352 = vunpack.c.h.b16 %v750
    %v2353 = vunpack.c.l.b16 %v751
    %v2354 = vunpack.c.h.b16 %v751
    %v2355 = vunpack.c.l.b16 %v752
    %v2356 = vunpack.c.h.b16 %v752
    %v2357 = vunpack.c.l.b16 %v753
    %v2358 = vunpack.c.h.b16 %v753
    %v2359 = vunpack.c.l.b16 %v754
    %v2360 = vunpack.c.h.b16 %v754
    %v2361 = vpack.c.b16 %v1345, %v1337
    %v2362 = vpack.c.b16 %v1346, %v1338
    %v2363 = vpack.c.b16 %v1347, %v1339
    %v2364 = vpack.c.b16 %v1348, %v1340
    %v2365 = vpack.c.b16 %v1349, %v1341
    %v2366 = vpack.c.b16 %v1350, %v1342
    %v2367 = vpack.c.b16 %v1351, %v1343
    %v2368 = vpack.c.b16 %v1352, %v1344
    %v2369 = vpack.c.b16 %v1361, %v1353
    %v2370 = vpack.c.b16 %v1362, %v1354
    %v2371 = vpack.c.b16 %v1363, %v1355
    %v2372 = vpack.c.b16 %v1364, %v1356
    %v2373 = vpack.c.b16 %v1365, %v1357
    %v2374 = vpack.c.b16 %v1366, %v1358
    %v2375 = vpack.c.b16 %v1367, %v1359
    %v2376 = vpack.c.b16 %v1368, %v1360
    %v2377 = vpack.c.b16 %v1377, %v1369
    %v2378 = vpack.c.b16 %v1378, %v1370
    %v2379 = vpack.c.b16 %v1379, %v1371
    %v2380 = vpack.c.b16 %v1380, %v1372
    %v2381 = vpack.c.b16 %v1381, %v1373
    %v2382 = vpack.c.b16 %v1382, %v1374
    %v2383 = vpack.c.b16 %v1383, %v1375
    %v2384 = vpack.c.b16 %v1384, %v1376
    %v2385 = vpack.c.b16 %v1393, %v1385
    %v2386 = vpack.c.b16 %v1394, %v1386
    %v2387 = vpack.c.b16 %v1395, %v1387
    %v2388 = vpack.c.b16 %v1396, %v1388
    %v2389 = vpack.c.b16 %v1397, %v1389
    %v2390 = vpack.c.b16 %v1398, %v1390
    %v2391 = vpack.c.b16 %v1399, %v1391
    %v2392 = vpack.c.b16 %v1400, %v1392
    %v2393 = vpack.c.b16 %v1409, %v1401
    %v2394 = vpack.c.b16 %v1410, %v1402
    %v2395 = vpack.c.b16 %v1411, %v1403
    %v2396 = vpack.c.b16 %v1412, %v1404
    %v2397 = vpack.c.b16 %v1413, %v1405
    %v2398 = vpack.c.b16 %v1414, %v1406
    %v2399 = vpack.c.b16 %v1415, %v1407
    %v2400 = vpack.c.b16 %v1416, %v1408
    %v2401 = vpack.c.b16 %v1425, %v1417
    %v2402 = vpack.c.b16 %v1426, %v1418
    %v2403 = vpack.c.b16 %v1427, %v1419
    %v2404 = vpack.c.b16 %v1428, %v1420
    %v2405 = vpack.c.b16 %v1429, %v1421
    %v2406 = vpack.c.b16 %v1430, %v1422
    %v2407 = vpack.c.b16 %v1431, %v1423
    %v2408 = vpack.c.b16 %v1432, %v1424
    %v2409 = vpack.c.b16 %v1441, %v1433
    %v2410 = vpack.c.b16 %v1442, %v1434
    %v2411 = vpack.c.b16 %v1443, %v1435
    %v2412 = vpack.c.b16 %v1444, %v1436
    %v2413 = vpack.c.b16 %v1445, %v1437
    %v2414 = vpack.c.b16 %v1446, %v1438
    %v2415 = vpack.c.b16 %v1447, %v1439
    %v2416 = vpack.c.b16 %v1448, %v1440
    %v2417 = vpack.c.b16 %v1457, %v1449
    %v2418 = vpack.c.b16 %v1458, %v1450
    %v2419 = vpack.c.b16 %v1459, %v1451
    %v2420 = vpack.c.b16 %v1460, %v1452
    %v2421 = vpack.c.b16 %v1461, %v1453
    %v2422 = vpack.c.b16 %v1462, %v1454
    %v2423 = vpack.c.b16 %v1463, %v1455
    %v2424 = vpack.c.b16 %v1464, %v1456
    %v2425 = vpack.c.b16 %v1473, %v1465
    %v2426 = vpack.c.b16 %v1474, %v1466
    %v2427 = vpack.c.b16 %v1475, %v1467
    %v2428 = vpack.c.b16 %v1476, %v1468
    %v2429 = vpack.c.b16 %v1477, %v1469
    %v2430 = vpack.c.b16 %v1478, %v1470
    %v2431 = vpack.c.b16 %v1479, %v1471
    %v2432 = vpack.c.b16 %v1480, %v1472
    %v2433 = vpack.c.b16 %v1489, %v1481
    %v2434 = vpack.c.b16 %v1490, %v1482
    %v2435 = vpack.c.b16 %v1491, %v1483
    %v2436 = vpack.c.b16 %v1492, %v1484
    %v2437 = vpack.c.b16 %v1493, %v1485
    %v2438 = vpack.c.b16 %v1494, %v1486
    %v2439 = vpack.c.b16 %v1495, %v1487
    %v2440 = vpack.c.b16 %v1496, %v1488
    %v2441 = vpack.c.b16 %v1505, %v1497
    %v2442 = vpack.c.b16 %v1506, %v1498
    %v2443 = vpack.c.b16 %v1507, %v1499
    %v2444 = vpack.c.b16 %v1508, %v1500
    %v2445 = vpack.c.b16 %v1509, %v1501
    %v2446 = vpack.c.b16 %v1510, %v1502
    %v2447 = vpack.c.b16 %v1511, %v1503
    %v2448 = vpack.c.b16 %v1512, %v1504
    %v2449 = vpack.c.b16 %v1521, %v1513
    %v2450 = vpack.c.b16 %v1522, %v1514
    %v2451 = vpack.c.b16 %v1523, %v1515
    %v2452 = vpack.c.b16 %v1524, %v1516
    %v2453 = vpack.c.b16 %v1525, %v1517
    %v2454 = vpack.c.b16 %v1526, %v1518
    %v2455 = vpack.c.b16 %v1527, %v1519
    %v2456 = vpack.c.b16 %v1528, %v1520
    %v2457 = vpack.c.b16 %v1537, %v1529
    %v2458 = vpack.c.b16 %v1538, %v1530
    %v2459 = vpack.c.b16 %v1539, %v1531
    %v2460 = vpack.c.b16 %v1540, %v1532
    %v2461 = vpack.c.b16 %v1541, %v1533
    %v2462 = vpack.c.b16 %v1542, %v1534
    %v2463 = vpack.c.b16 %v1543, %v1535
    %v2464 = vpack.c.b16 %v1544, %v1536
    %v2465 = vpack.c.b16 %v1553, %v1545
    %v2466 = vpack.c.b16 %v1554, %v1546
    %v2467 = vpack.c.b16 %v1555, %v1547
    %v2468 = vpack.c.b16 %v1556, %v1548
    %v2469 = vpack.c.b16 %v1557, %v1549
    %v2470 = vpack.c.b16 %v1558, %v1550
    %v2471 = vpack.c.b16 %v1559, %v1551
    %v2472 = vpack.c.b16 %v1560, %v1552
    %v2473 = vpack.c.b16 %v1569, %v1561
    %v2474 = vpack.c.b16 %v1570, %v1562
    %v2475 = vpack.c.b16 %v1571, %v1563
    %v2476 = vpack.c.b16 %v1572, %v1564
    %v2477 = vpack.c.b16 %v1573, %v1565
    %v2478 = vpack.c.b16 %v1574, %v1566
    %v2479 = vpack.c.b16 %v1575, %v1567
    %v2480 = vpack.c.b16 %v1576, %v1568
    %v2481 = vpack.c.b16 %v1585, %v1577
    %v2482 = vpack.c.b16 %v1586, %v1578
    %v2483 = vpack.c.b16 %v1587, %v1579
    %v2484 = vpack.c.b16 %v1588, %v1580
    %v2485 = vpack.c.b16 %v1589, %v1581
    %v2486 = vpack.c.b16 %v1590, %v1582
    %v2487 = vpack.c.b16 %v1591, %v1583
    %v2488 = vpack.c.b16 %v1592, %v1584
    %v2489 = vpack.c.b16 %v1601, %v1593
    %v2490 = vpack.c.b16 %v1602, %v1594
    %v2491 = vpack.c.b16 %v1603, %v1595
    %v2492 = vpack.c.b16 %v1604, %v1596
    %v2493 = vpack.c.b16 %v1605, %v1597
    %v2494 = vpack.c.b16 %v1606, %v1598
    %v2495 = vpack.c.b16 %v1607, %v1599
    %v2496 = vpack.c.b16 %v1608, %v1600
    %v2497 = vpack.c.b16 %v1617, %v1609
    %v2498 = vpack.c.b16 %v1618, %v1610
    %v2499 = vpack.c.b16 %v1619, %v1611
    %v2500 = vpack.c.b16 %v1620, %v1612
    %v2501 = vpack.c.b16 %v1621, %v1613
    %v2502 = vpack.c.b16 %v1622, %v1614
    %v2503 = vpack.c.b16 %v1623, %v1615
    %v2504 = vpack.c.b16 %v1624, %v1616
    %v2505 = vpack.c.b16 %v1633, %v1625
    %v2506 = vpack.c.b16 %v1634, %v1626
    %v2507 = vpack.c.b16 %v1635, %v1627
    %v2508 = vpack.c.b16 %v1636, %v1628
    %v2509 = vpack.c.b16 %v1637, %v1629
    %v2510 = vpack.c.b16 %v1638, %v1630
    %v2511 = vpack.c.b16 %v1639, %v1631
    %v2512 = vpack.c.b16 %v1640, %v1632
    %v2513 = vpack.c.b16 %v1649, %v1641
    %v2514 = vpack.c.b16 %v1650, %v1642
    %v2515 = vpack.c.b16 %v1651, %v1643
    %v2516 = vpack.c.b16 %v1652, %v1644
    %v2517 = vpack.c.b16 %v1653, %v1645
    %v2518 = vpack.c.b16 %v1654, %v1646
    %v2519 = vpack.c.b16 %v1655, %v1647
    %v2520 = vpack.c.b16 %v1656, %v1648
    %v2521 = vpack.c.b16 %v1665, %v1657
    %v2522 = vpack.c.b16 %v1666, %v1658
    %v2523 = vpack.c.b16 %v1667, %v1659
    %v2524 = vpack.c.b16 %v1668, %v1660
    %v2525 = vpack.c.b16 %v1669, %v1661
    %v2526 = vpack.c.b16 %v1670, %v1662
    %v2527 = vpack.c.b16 %v1671, %v1663
    %v2528 = vpack.c.b16 %v1672, %v1664
    %v2529 = vpack.c.b16 %v1681, %v1673
    %v2530 = vpack.c.b16 %v1682, %v1674
    %v2531 = vpack.c.b16 %v1683, %v1675
    %v2532 = vpack.c.b16 %v1684, %v1676
    %v2533 = vpack.c.b16 %v1685, %v1677
    %v2534 = vpack.c.b16 %v1686, %v1678
    %v2535 = vpack.c.b16 %v1687, %v1679
    %v2536 = vpack.c.b16 %v1688, %v1680
    %v2537 = vpack.c.b16 %v1697, %v1689
    %v2538 = vpack.c.b16 %v1698, %v1690
    %v2539 = vpack.c.b16 %v1699, %v1691
    %v2540 = vpack.c.b16 %v1700, %v1692
    %v2541 = vpack.c.b16 %v1701, %v1693
    %v2542 = vpack.c.b16 %v1702, %v1694
    %v2543 = vpack.c.b16 %v1703, %v1695
    %v2544 = vpack.c.b16 %v1704, %v1696
    %v2545 = vpack.c.b16 %v1713, %v1705
    %v2546 = vpack.c.b16 %v1714, %v1706
    %v2547 = vpack.c.b16 %v1715, %v1707
    %v2548 = vpack.c.b16 %v1716, %v1708
    %v2549 = vpack.c.b16 %v1717, %v1709
    %v2550 = vpack.c.b16 %v1718, %v1710
    %v2551 = vpack.c.b16 %v1719, %v1711
    %v2552 = vpack.c.b16 %v1720, %v1712
    %v2553 = vpack.c.b16 %v1729, %v1721
    %v2554 = vpack.c.b16 %v1730, %v1722
    %v2555 = vpack.c.b16 %v1731, %v1723
    %v2556 = vpack.c.b16 %v1732, %v1724
    %v2557 = vpack.c.b16 %v1733, %v1725
    %v2558 = vpack.c.b16 %v1734, %v1726
    %v2559 = vpack.c.b16 %v1735, %v1727
    %v2560 = vpack.c.b16 %v1736, %v1728
    %v2561 = vpack.c.b16 %v1745, %v1737
    %v2562 = vpack.c.b16 %v1746, %v1738
    %v2563 = vpack.c.b16 %v1747, %v1739
    %v2564 = vpack.c.b16 %v1748, %v1740
    %v2565 = vpack.c.b16 %v1749, %v1741
    %v2566 = vpack.c.b16 %v1750, %v1742
    %v2567 = vpack.c.b16 %v1751, %v1743
    %v2568 = vpack.c.b16 %v1752, %v1744
    %v2569 = vpack.c.b16 %v1761, %v1753
    %v2570 = vpack.c.b16 %v1762, %v1754
    %v2571 = vpack.c.b16 %v1763, %v1755
    %v2572 = vpack.c.b16 %v1764, %v1756
    %v2573 = vpack.c.b16 %v1765, %v1757
    %v2574 = vpack.c.b16 %v1766, %v1758
    %v2575 = vpack.c.b16 %v1767, %v1759
    %v2576 = vpack.c.b16 %v1768, %v1760
    %v2577 = vpack.c.b16 %v1777, %v1769
    %v2578 = vpack.c.b16 %v1778, %v1770
    %v2579 = vpack.c.b16 %v1779, %v1771
    %v2580 = vpack.c.b16 %v1780, %v1772
    %v2581 = vpack.c.b16 %v1781, %v1773
    %v2582 = vpack.c.b16 %v1782, %v1774
    %v2583 = vpack.c.b16 %v1783, %v1775
    %v2584 = vpack.c.b16 %v1784, %v1776
    %v2585 = vpack.c.b16 %v1793, %v1785
    %v2586 = vpack.c.b16 %v1794, %v1786
    %v2587 = vpack.c.b16 %v1795, %v1787
    %v2588 = vpack.c.b16 %v1796, %v1788
    %v2589 = vpack.c.b16 %v1797, %v1789
    %v2590 = vpack.c.b16 %v1798, %v1790
    %v2591 = vpack.c.b16 %v1799, %v1791
    %v2592 = vpack.c.b16 %v1800, %v1792
    %v2593 = vpack.c.b16 %v1809, %v1801
    %v2594 = vpack.c.b16 %v1810, %v1802
    %v2595 = vpack.c.b16 %v1811, %v1803
    %v2596 = vpack.c.b16 %v1812, %v1804
    %v2597 = vpack.c.b16 %v1813, %v1805
    %v2598 = vpack.c.b16 %v1814, %v1806
    %v2599 = vpack.c.b16 %v1815, %v1807
    %v2600 = vpack.c.b16 %v1816, %v1808
    %v2601 = vpack.c.b16 %v1825, %v1817
    %v2602 = vpack.c.b16 %v1826, %v1818
    %v2603 = vpack.c.b16 %v1827, %v1819
    %v2604 = vpack.c.b16 %v1828, %v1820
    %v2605 = vpack.c.b16 %v1829, %v1821
    %v2606 = vpack.c.b16 %v1830, %v1822
    %v2607 = vpack.c.b16 %v1831, %v1823
    %v2608 = vpack.c.b16 %v1832, %v1824
    %v2609 = vpack.c.b16 %v1841, %v1833
    %v2610 = vpack.c.b16 %v1842, %v1834
    %v2611 = vpack.c.b16 %v1843, %v1835
    %v2612 = vpack.c.b16 %v1844, %v1836
    %v2613 = vpack.c.b16 %v1845, %v1837
    %v2614 = vpack.c.b16 %v1846, %v1838
    %v2615 = vpack.c.b16 %v1847, %v1839
    %v2616 = vpack.c.b16 %v1848, %v1840
    %v2617 = vpack.c.b16 %v1857, %v1849
    %v2618 = vpack.c.b16 %v1858, %v1850
    %v2619 = vpack.c.b16 %v1859, %v1851
    %v2620 = vpack.c.b16 %v1860, %v1852
    %v2621 = vpack.c.b16 %v1861, %v1853
    %v2622 = vpack.c.b16 %v1862, %v1854
    %v2623 = vpack.c.b16 %v1863, %v1855
    %v2624 = vpack.c.b16 %v1864, %v1856
    %v2625 = vpack.c.b16 %v1873, %v1865
    %v2626 = vpack.c.b16 %v1874, %v1866
    %v2627 = vpack.c.b16 %v1875, %v1867
    %v2628 = vpack.c.b16 %v1876, %v1868
    %v2629 = vpack.c.b16 %v1877, %v1869
    %v2630 = vpack.c.b16 %v1878, %v1870
    %v2631 = vpack.c.b16 %v1879, %v1871
    %v2632 = vpack.c.b16 %v1880, %v1872
    %v2633 = vpack.c.b16 %v1889, %v1881
    %v2634 = vpack.c.b16 %v1890, %v1882
    %v2635 = vpack.c.b16 %v1891, %v1883
    %v2636 = vpack.c.b16 %v1892, %v1884
    %v2637 = vpack.c.b16 %v1893, %v1885
    %v2638 = vpack.c.b16 %v1894, %v1886
    %v2639 = vpack.c.b16 %v1895, %v1887
    %v2640 = vpack.c.b16 %v1896, %v1888
    %v2641 = vpack.c.b16 %v1905, %v1897
    %v2642 = vpack.c.b16 %v1906, %v1898
    %v2643 = vpack.c.b16 %v1907, %v1899
    %v2644 = vpack.c.b16 %v1908, %v1900
    %v2645 = vpack.c.b16 %v1909, %v1901
    %v2646 = vpack.c.b16 %v1910, %v1902
    %v2647 = vpack.c.b16 %v1911, %v1903
    %v2648 = vpack.c.b16 %v1912, %v1904
    %v2649 = vpack.c.b16 %v1921, %v1913
    %v2650 = vpack.c.b16 %v1922, %v1914
    %v2651 = vpack.c.b16 %v1923, %v1915
    %v2652 = vpack.c.b16 %v1924, %v1916
    %v2653 = vpack.c.b16 %v1925, %v1917
    %v2654 = vpack.c.b16 %v1926, %v1918
    %v2655 = vpack.c.b16 %v1927, %v1919
    %v2656 = vpack.c.b16 %v1928, %v1920
    %v2657 = vpack.c.b16 %v1937, %v1929
    %v2658 = vpack.c.b16 %v1938, %v1930
    %v2659 = vpack.c.b16 %v1939, %v1931
    %v2660 = vpack.c.b16 %v1940, %v1932
    %v2661 = vpack.c.b16 %v1941, %v1933
    %v2662 = vpack.c.b16 %v1942, %v1934
    %v2663 = vpack.c.b16 %v1943, %v1935
    %v2664 = vpack.c.b16 %v1944, %v1936
    %v2665 = vpack.c.b16 %v1953, %v1945
    %v2666 = vpack.c.b16 %v1954, %v1946
    %v2667 = vpack.c.b16 %v1955, %v1947
    %v2668 = vpack.c.b16 %v1956, %v1948
    %v2669 = vpack.c.b16 %v1957, %v1949
    %v2670 = vpack.c.b16 %v1958, %v1950
    %v2671 = vpack.c.b16 %v1959, %v1951
    %v2672 = vpack.c.b16 %v1960, %v1952
    %v2673 = vpack.c.b16 %v1969, %v1961
    %v2674 = vpack.c.b16 %v1970, %v1962
    %v2675 = vpack.c.b16 %v1971, %v1963
    %v2676 = vpack.c.b16 %v1972, %v1964
    %v2677 = vpack.c.b16 %v1973, %v1965
    %v2678 = vpack.c.b16 %v1974, %v1966
    %v2679 = vpack.c.b16 %v1975, %v1967
    %v2680 = vpack.c.b16 %v1976, %v1968
    %v2681 = vpack.c.b16 %v1985, %v1977
    %v2682 = vpack.c.b16 %v1986, %v1978
    %v2683 = vpack.c.b16 %v1987, %v1979
    %v2684 = vpack.c.b16 %v1988, %v1980
    %v2685 = vpack.c.b16 %v1989, %v1981
    %v2686 = vpack.c.b16 %v1990, %v1982
    %v2687 = vpack.c.b16 %v1991, %v1983
    %v2688 = vpack.c.b16 %v1992, %v1984
    %v2689 = vpack.c.b16 %v2001, %v1993
    %v2690 = vpack.c.b16 %v2002, %v1994
    %v2691 = vpack.c.b16 %v2003, %v1995
    %v2692 = vpack.c.b16 %v2004, %v1996
    %v2693 = vpack.c.b16 %v2005, %v1997
    %v2694 = vpack.c.b16 %v2006, %v1998
    %v2695 = vpack.c.b16 %v2007, %v1999
    %v2696 = vpack.c.b16 %v2008, %v2000
    %v2697 = vpack.c.b16 %v2017, %v2009
    %v2698 = vpack.c.b16 %v2018, %v2010
    %v2699 = vpack.c.b16 %v2019, %v2011
    %v2700 = vpack.c.b16 %v2020, %v2012
    %v2701 = vpack.c.b16 %v2021, %v2013
    %v2702 = vpack.c.b16 %v2022, %v2014
    %v2703 = vpack.c.b16 %v2023, %v2015
    %v2704 = vpack.c.b16 %v2024, %v2016
    %v2705 = vpack.c.b16 %v2033, %v2025
    %v2706 = vpack.c.b16 %v2034, %v2026
    %v2707 = vpack.c.b16 %v2035, %v2027
    %v2708 = vpack.c.b16 %v2036, %v2028
    %v2709 = vpack.c.b16 %v2037, %v2029
    %v2710 = vpack.c.b16 %v2038, %v2030
    %v2711 = vpack.c.b16 %v2039, %v2031
    %v2712 = vpack.c.b16 %v2040, %v2032
    %v2713 = vpack.c.b16 %v2049, %v2041
    %v2714 = vpack.c.b16 %v2050, %v2042
    %v2715 = vpack.c.b16 %v2051, %v2043
    %v2716 = vpack.c.b16 %v2052, %v2044
    %v2717 = vpack.c.b16 %v2053, %v2045
    %v2718 = vpack.c.b16 %v2054, %v2046
    %v2719 = vpack.c.b16 %v2055, %v2047
    %v2720 = vpack.c.b16 %v2056, %v2048
    %v2721 = vpack.c.b16 %v2065, %v2057
    %v2722 = vpack.c.b16 %v2066, %v2058
    %v2723 = vpack.c.b16 %v2067, %v2059
    %v2724 = vpack.c.b16 %v2068, %v2060
    %v2725 = vpack.c.b16 %v2069, %v2061
    %v2726 = vpack.c.b16 %v2070, %v2062
    %v2727 = vpack.c.b16 %v2071, %v2063
    %v2728 = vpack.c.b16 %v2072, %v2064
    %v2729 = vpack.c.b16 %v2081, %v2073
    %v2730 = vpack.c.b16 %v2082, %v2074
    %v2731 = vpack.c.b16 %v2083, %v2075
    %v2732 = vpack.c.b16 %v2084, %v2076
    %v2733 = vpack.c.b16 %v2085, %v2077
    %v2734 = vpack.c.b16 %v2086, %v2078
    %v2735 = vpack.c.b16 %v2087, %v2079
    %v2736 = vpack.c.b16 %v2088, %v2080
    %v2737 = vpack.c.b16 %v2097, %v2089
    %v2738 = vpack.c.b16 %v2098, %v2090
    %v2739 = vpack.c.b16 %v2099, %v2091
    %v2740 = vpack.c.b16 %v2100, %v2092
    %v2741 = vpack.c.b16 %v2101, %v2093
    %v2742 = vpack.c.b16 %v2102, %v2094
    %v2743 = vpack.c.b16 %v2103, %v2095
    %v2744 = vpack.c.b16 %v2104, %v2096
    %v2745 = vpack.c.b16 %v2113, %v2105
    %v2746 = vpack.c.b16 %v2114, %v2106
    %v2747 = vpack.c.b16 %v2115, %v2107
    %v2748 = vpack.c.b16 %v2116, %v2108
    %v2749 = vpack.c.b16 %v2117, %v2109
    %v2750 = vpack.c.b16 %v2118, %v2110
    %v2751 = vpack.c.b16 %v2119, %v2111
    %v2752 = vpack.c.b16 %v2120, %v2112
    %v2753 = vpack.c.b16 %v2129, %v2121
    %v2754 = vpack.c.b16 %v2130, %v2122
    %v2755 = vpack.c.b16 %v2131, %v2123
    %v2756 = vpack.c.b16 %v2132, %v2124
    %v2757 = vpack.c.b16 %v2133, %v2125
    %v2758 = vpack.c.b16 %v2134, %v2126
    %v2759 = vpack.c.b16 %v2135, %v2127
    %v2760 = vpack.c.b16 %v2136, %v2128
    %v2761 = vpack.c.b16 %v2145, %v2137
    %v2762 = vpack.c.b16 %v2146, %v2138
    %v2763 = vpack.c.b16 %v2147, %v2139
    %v2764 = vpack.c.b16 %v2148, %v2140
    %v2765 = vpack.c.b16 %v2149, %v2141
    %v2766 = vpack.c.b16 %v2150, %v2142
    %v2767 = vpack.c.b16 %v2151, %v2143
    %v2768 = vpack.c.b16 %v2152, %v2144
    %v2769 = vpack.c.b16 %v2161, %v2153
    %v2770 = vpack.c.b16 %v2162, %v2154
    %v2771 = vpack.c.b16 %v2163, %v2155
    %v2772 = vpack.c.b16 %v2164, %v2156
    %v2773 = vpack.c.b16 %v2165, %v2157
    %v2774 = vpack.c.b16 %v2166, %v2158
    %v2775 = vpack.c.b16 %v2167, %v2159
    %v2776 = vpack.c.b16 %v2168, %v2160
    %v2777 = vpack.c.b16 %v2177, %v2169
    %v2778 = vpack.c.b16 %v2178, %v2170
    %v2779 = vpack.c.b16 %v2179, %v2171
    %v2780 = vpack.c.b16 %v2180, %v2172
    %v2781 = vpack.c.b16 %v2181, %v2173
    %v2782 = vpack.c.b16 %v2182, %v2174
    %v2783 = vpack.c.b16 %v2183, %v2175
    %v2784 = vpack.c.b16 %v2184, %v2176
    %v2785 = vpack.c.b16 %v2193, %v2185
    %v2786 = vpack.c.b16 %v2194, %v2186
    %v2787 = vpack.c.b16 %v2195, %v2187
    %v2788 = vpack.c.b16 %v2196, %v2188
    %v2789 = vpack.c.b16 %v2197, %v2189
    %v2790 = vpack.c.b16 %v2198, %v2190
    %v2791 = vpack.c.b16 %v2199, %v2191
    %v2792 = vpack.c.b16 %v2200, %v2192
    %v2793 = vpack.c.b16 %v2209, %v2201
    %v2794 = vpack.c.b16 %v2210, %v2202
    %v2795 = vpack.c.b16 %v2211, %v2203
    %v2796 = vpack.c.b16 %v2212, %v2204
    %v2797 = vpack.c.b16 %v2213, %v2205
    %v2798 = vpack.c.b16 %v2214, %v2206
    %v2799 = vpack.c.b16 %v2215, %v2207
    %v2800 = vpack.c.b16 %v2216, %v2208
    %v2801 = vpack.c.b16 %v2225, %v2217
    %v2802 = vpack.c.b16 %v2226, %v2218
    %v2803 = vpack.c.b16 %v2227, %v2219
    %v2804 = vpack.c.b16 %v2228, %v2220
    %v2805 = vpack.c.b16 %v2229, %v2221
    %v2806 = vpack.c.b16 %v2230, %v2222
    %v2807 = vpack.c.b16 %v2231, %v2223
    %v2808 = vpack.c.b16 %v2232, %v2224
    %v2809 = vpack.c.b16 %v2241, %v2233
    %v2810 = vpack.c.b16 %v2242, %v2234
    %v2811 = vpack.c.b16 %v2243, %v2235
    %v2812 = vpack.c.b16 %v2244, %v2236
    %v2813 = vpack.c.b16 %v2245, %v2237
    %v2814 = vpack.c.b16 %v2246, %v2238
    %v2815 = vpack.c.b16 %v2247, %v2239
    %v2816 = vpack.c.b16 %v2248, %v2240
    %v2817 = vpack.c.b16 %v2257, %v2249
    %v2818 = vpack.c.b16 %v2258, %v2250
    %v2819 = vpack.c.b16 %v2259, %v2251
    %v2820 = vpack.c.b16 %v2260, %v2252
    %v2821 = vpack.c.b16 %v2261, %v2253
    %v2822 = vpack.c.b16 %v2262, %v2254
    %v2823 = vpack.c.b16 %v2263, %v2255
    %v2824 = vpack.c.b16 %v2264, %v2256
    %v2825 = vpack.c.b16 %v2273, %v2265
    %v2826 = vpack.c.b16 %v2274, %v2266
    %v2827 = vpack.c.b16 %v2275, %v2267
    %v2828 = vpack.c.b16 %v2276, %v2268
    %v2829 = vpack.c.b16 %v2277, %v2269
    %v2830 = vpack.c.b16 %v2278, %v2270
    %v2831 = vpack.c.b16 %v2279, %v2271
    %v2832 = vpack.c.b16 %v2280, %v2272
    %v2833 = vpack.c.b16 %v2289, %v2281
    %v2834 = vpack.c.b16 %v2290, %v2282
    %v2835 = vpack.c.b16 %v2291, %v2283
    %v2836 = vpack.c.b16 %v2292, %v2284
    %v2837 = vpack.c.b16 %v2293, %v2285
    %v2838 = vpack.c.b16 %v2294, %v2286
    %v2839 = vpack.c.b16 %v2295, %v2287
    %v2840 = vpack.c.b16 %v2296, %v2288
    %v2841 = vpack.c.b16 %v2305, %v2297
    %v2842 = vpack.c.b16 %v2306, %v2298
    %v2843 = vpack.c.b16 %v2307, %v2299
    %v2844 = vpack.c.b16 %v2308, %v2300
    %v2845 = vpack.c.b16 %v2309, %v2301
    %v2846 = vpack.c.b16 %v2310, %v2302
    %v2847 = vpack.c.b16 %v2311, %v2303
    %v2848 = vpack.c.b16 %v2312, %v2304
    %v2849 = vpack.c.b16 %v2321, %v2313
    %v2850 = vpack.c.b16 %v2322, %v2314
    %v2851 = vpack.c.b16 %v2323, %v2315
    %v2852 = vpack.c.b16 %v2324, %v2316
    %v2853 = vpack.c.b16 %v2325, %v2317
    %v2854 = vpack.c.b16 %v2326, %v2318
    %v2855 = vpack.c.b16 %v2327, %v2319
    %v2856 = vpack.c.b16 %v2328, %v2320
    %v2857 = vpack.c.b16 %v2337, %v2329
    %v2858 = vpack.c.b16 %v2338, %v2330
    %v2859 = vpack.c.b16 %v2339, %v2331
    %v2860 = vpack.c.b16 %v2340, %v2332
    %v2861 = vpack.c.b16 %v2341, %v2333
    %v2862 = vpack.c.b16 %v2342, %v2334
    %v2863 = vpack.c.b16 %v2343, %v2335
    %v2864 = vpack.c.b16 %v2344, %v2336
    %v2865 = vpack.c.b16 %v2353, %v2345
    %v2866 = vpack.c.b16 %v2354, %v2346
    %v2867 = vpack.c.b16 %v2355, %v2347
    %v2868 = vpack.c.b16 %v2356, %v2348
    %v2869 = vpack.c.b16 %v2357, %v2349
    %v2870 = vpack.c.b16 %v2358, %v2350
    %v2871 = vpack.c.b16 %v2359, %v2351
    %v2872 = vpack.c.b16 %v2360, %v2352
    %3385 = vmatprep.subr.bf16.mxu0 %v2418
    %3386 = vmatpush1.bf16.msra.mxu0 %v2417
    %3387 = vmatprep.subr.bf16.mxu0 %v2410
    %3388 = vmatpush1.bf16.msra.mxu0 %v2409
    %3389 = vmatprep.subr.bf16.mxu0 %v2402
    %3390 = vmatpush1.bf16.msra.mxu0 %v2401
    %3391 = vmatprep.subr.bf16.mxu0 %v2394
    %3392 = vmatpush1.bf16.msra.mxu0 %v2393
    %3393 = vmatprep.subr.bf16.mxu0 %v2386
    %3394 = vmatpush1.bf16.msra.mxu0 %v2385
    %3395 = vmatprep.subr.bf16.mxu0 %v2378
    %3396 = vmatpush1.bf16.msra.mxu0 %v2377
    %3397 = vmatprep.subr.bf16.mxu0 %v2370
    %3398 = vmatpush1.bf16.msra.mxu0 %v2369
    %3399 = vmatprep.subr.bf16.mxu0 %v2362
    %3400 = vmatpush1.bf16.msra.mxu0 %v2361
    %3401 = vmatprep.subr.bf16.mxu0 %v2482
    %3402 = vmatpush2.bf16.msra.mxu0 %v2481
    %3403 = vmatprep.subr.bf16.mxu0 %v2474
    %3404 = vmatpush2.bf16.msra.mxu0 %v2473
    %3405 = vmatprep.subr.bf16.mxu0 %v2466
    %3406 = vmatpush2.bf16.msra.mxu0 %v2465
    %3407 = vmatprep.subr.bf16.mxu0 %v2458
    %3408 = vmatpush2.bf16.msra.mxu0 %v2457
    %3409 = vmatprep.subr.bf16.mxu0 %v2450
    %3410 = vmatpush2.bf16.msra.mxu0 %v2449
    %3411 = vmatprep.subr.bf16.mxu0 %v2442
    %3412 = vmatpush2.bf16.msra.mxu0 %v2441
    %3413 = vmatprep.subr.bf16.mxu0 %v2434
    %3414 = vmatpush2.bf16.msra.mxu0 %v2433
    %3415 = vmatprep.subr.bf16.mxu0 %v2426
    %3416 = vmatpush2.bf16.msra.mxu0 %v2425
    %3417 = vmatprep.mubr.bf16.mxu0 %v810
    %3418 = vmatmul.mubr.bf16.gmra.mxu0 %v809
    %v3419 = vpop.f32.mrf.mxu0
    %v3420 = vadd.f32 %v760, %v3419
    %v3421 = vpop.f32.mrf.mxu0
    %v3422 = vadd.f32 %v764, %v3421
    %v3423 = vpop.f32.mrf.mxu0
    %v3424 = vpop.f32.mrf.mxu0
    %3425 = vdwg.mxu0
    %3426 = vmatprep.subr.bf16.mxu0 %v2546
    %3427 = vmatpush1.bf16.msra.mxu0 %v2545
    %3428 = vmatprep.subr.bf16.mxu0 %v2538
    %3429 = vmatpush1.bf16.msra.mxu0 %v2537
    %3430 = vmatprep.subr.bf16.mxu0 %v2530
    %3431 = vmatpush1.bf16.msra.mxu0 %v2529
    %3432 = vmatprep.subr.bf16.mxu0 %v2522
    %3433 = vmatpush1.bf16.msra.mxu0 %v2521
    %3434 = vmatprep.subr.bf16.mxu0 %v2514
    %3435 = vmatpush1.bf16.msra.mxu0 %v2513
    %3436 = vmatprep.subr.bf16.mxu0 %v2506
    %3437 = vmatpush1.bf16.msra.mxu0 %v2505
    %3438 = vmatprep.subr.bf16.mxu0 %v2498
    %3439 = vmatpush1.bf16.msra.mxu0 %v2497
    %3440 = vmatprep.subr.bf16.mxu0 %v2490
    %3441 = vmatpush1.bf16.msra.mxu0 %v2489
    %3442 = vmatprep.subr.bf16.mxu0 %v2610
    %3443 = vmatpush2.bf16.msra.mxu0 %v2609
    %3444 = vmatprep.subr.bf16.mxu0 %v2602
    %3445 = vmatpush2.bf16.msra.mxu0 %v2601
    %3446 = vmatprep.subr.bf16.mxu0 %v2594
    %3447 = vmatpush2.bf16.msra.mxu0 %v2593
    %3448 = vmatprep.subr.bf16.mxu0 %v2586
    %3449 = vmatpush2.bf16.msra.mxu0 %v2585
    %3450 = vmatprep.subr.bf16.mxu0 %v2578
    %3451 = vmatpush2.bf16.msra.mxu0 %v2577
    %3452 = vmatprep.subr.bf16.mxu0 %v2570
    %3453 = vmatpush2.bf16.msra.mxu0 %v2569
    %3454 = vmatprep.subr.bf16.mxu0 %v2562
    %3455 = vmatpush2.bf16.msra.mxu0 %v2561
    %3456 = vmatprep.subr.bf16.mxu0 %v2554
    %3457 = vmatpush2.bf16.msra.mxu0 %v2553
    %3458 = vmatprep.mubr.bf16.mxu0 %v812
    %3459 = vmatmul.mubr.bf16.gmra.mxu0 %v811
    %v3460 = vpop.f32.mrf.mxu0
    %v3461 = vadd.f32 %v3420, %v3460
    %v3462 = vpop.f32.mrf.mxu0
    %v3463 = vadd.f32 %v3422, %v3462
    %v3464 = vpop.f32.mrf.mxu0
    %v3465 = vpop.f32.mrf.mxu0
    %3466 = vdwg.mxu0
    %3467 = vmatprep.subr.bf16.mxu0 %v2674
    %3468 = vmatpush1.bf16.msra.mxu0 %v2673
    %3469 = vmatprep.subr.bf16.mxu0 %v2666
    %3470 = vmatpush1.bf16.msra.mxu0 %v2665
    %3471 = vmatprep.subr.bf16.mxu0 %v2658
    %3472 = vmatpush1.bf16.msra.mxu0 %v2657
    %3473 = vmatprep.subr.bf16.mxu0 %v2650
    %3474 = vmatpush1.bf16.msra.mxu0 %v2649
    %3475 = vmatprep.subr.bf16.mxu0 %v2642
    %3476 = vmatpush1.bf16.msra.mxu0 %v2641
    %3477 = vmatprep.subr.bf16.mxu0 %v2634
    %3478 = vmatpush1.bf16.msra.mxu0 %v2633
    %3479 = vmatprep.subr.bf16.mxu0 %v2626
    %3480 = vmatpush1.bf16.msra.mxu0 %v2625
    %3481 = vmatprep.subr.bf16.mxu0 %v2618
    %3482 = vmatpush1.bf16.msra.mxu0 %v2617
    %3483 = vmatprep.subr.bf16.mxu0 %v2738
    %3484 = vmatpush2.bf16.msra.mxu0 %v2737
    %3485 = vmatprep.subr.bf16.mxu0 %v2730
    %3486 = vmatpush2.bf16.msra.mxu0 %v2729
    %3487 = vmatprep.subr.bf16.mxu0 %v2722
    %3488 = vmatpush2.bf16.msra.mxu0 %v2721
    %3489 = vmatprep.subr.bf16.mxu0 %v2714
    %3490 = vmatpush2.bf16.msra.mxu0 %v2713
    %3491 = vmatprep.subr.bf16.mxu0 %v2706
    %3492 = vmatpush2.bf16.msra.mxu0 %v2705
    %3493 = vmatprep.subr.bf16.mxu0 %v2698
    %3494 = vmatpush2.bf16.msra.mxu0 %v2697
    %3495 = vmatprep.subr.bf16.mxu0 %v2690
    %3496 = vmatpush2.bf16.msra.mxu0 %v2689
    %3497 = vmatprep.subr.bf16.mxu0 %v2682
    %3498 = vmatpush2.bf16.msra.mxu0 %v2681
    %3499 = vmatprep.mubr.bf16.mxu0 %v814
    %3500 = vmatmul.mubr.bf16.gmra.mxu0 %v813
    %v3501 = vpop.f32.mrf.mxu0
    %v3502 = vadd.f32 %v3461, %v3501
    %v3503 = vpop.f32.mrf.mxu0
    %v3504 = vadd.f32 %v3463, %v3503
    %v3505 = vpop.f32.mrf.mxu0
    %v3506 = vpop.f32.mrf.mxu0
    %3507 = vdwg.mxu0
    %3508 = vmatprep.subr.bf16.mxu0 %v2802
    %3509 = vmatpush1.bf16.msra.mxu0 %v2801
    %3510 = vmatprep.subr.bf16.mxu0 %v2794
    %3511 = vmatpush1.bf16.msra.mxu0 %v2793
    %3512 = vmatprep.subr.bf16.mxu0 %v2786
    %3513 = vmatpush1.bf16.msra.mxu0 %v2785
    %3514 = vmatprep.subr.bf16.mxu0 %v2778
    %3515 = vmatpush1.bf16.msra.mxu0 %v2777
    %3516 = vmatprep.subr.bf16.mxu0 %v2770
    %3517 = vmatpush1.bf16.msra.mxu0 %v2769
    %3518 = vmatprep.subr.bf16.mxu0 %v2762
    %3519 = vmatpush1.bf16.msra.mxu0 %v2761
    %3520 = vmatprep.subr.bf16.mxu0 %v2754
    %3521 = vmatpush1.bf16.msra.mxu0 %v2753
    %3522 = vmatprep.subr.bf16.mxu0 %v2746
    %3523 = vmatpush1.bf16.msra.mxu0 %v2745
    %3524 = vmatprep.subr.bf16.mxu0 %v2866
    %3525 = vmatpush2.bf16.msra.mxu0 %v2865
    %3526 = vmatprep.subr.bf16.mxu0 %v2858
    %3527 = vmatpush2.bf16.msra.mxu0 %v2857
    %3528 = vmatprep.subr.bf16.mxu0 %v2850
    %3529 = vmatpush2.bf16.msra.mxu0 %v2849
    %3530 = vmatprep.subr.bf16.mxu0 %v2842
    %3531 = vmatpush2.bf16.msra.mxu0 %v2841
    %3532 = vmatprep.subr.bf16.mxu0 %v2834
    %3533 = vmatpush2.bf16.msra.mxu0 %v2833
    %3534 = vmatprep.subr.bf16.mxu0 %v2826
    %3535 = vmatpush2.bf16.msra.mxu0 %v2825
    %3536 = vmatprep.subr.bf16.mxu0 %v2818
    %3537 = vmatpush2.bf16.msra.mxu0 %v2817
    %3538 = vmatprep.subr.bf16.mxu0 %v2810
    %3539 = vmatpush2.bf16.msra.mxu0 %v2809
    %3540 = vmatprep.mubr.bf16.mxu0 %v816
    %3541 = vmatmul.mubr.bf16.gmra.mxu0 %v815
    %v3542 = vpop.f32.mrf.mxu0
    %v3543 = vadd.f32 %v3502, %v3542
    %v3544 = vpop.f32.mrf.mxu0
    %v3545 = vadd.f32 %v3504, %v3544
    %v3546 = vpop.f32.mrf.mxu0
    %v3547 = vpop.f32.mrf.mxu0
    %3548 = vdwg.mxu0
    %3549 = vmatprep.subr.bf16.mxu0 %v2420
    %3550 = vmatpush1.bf16.msra.mxu0 %v2419
    %3551 = vmatprep.subr.bf16.mxu0 %v2412
    %3552 = vmatpush1.bf16.msra.mxu0 %v2411
    %3553 = vmatprep.subr.bf16.mxu0 %v2404
    %3554 = vmatpush1.bf16.msra.mxu0 %v2403
    %3555 = vmatprep.subr.bf16.mxu0 %v2396
    %3556 = vmatpush1.bf16.msra.mxu0 %v2395
    %3557 = vmatprep.subr.bf16.mxu0 %v2388
    %3558 = vmatpush1.bf16.msra.mxu0 %v2387
    %3559 = vmatprep.subr.bf16.mxu0 %v2380
    %3560 = vmatpush1.bf16.msra.mxu0 %v2379
    %3561 = vmatprep.subr.bf16.mxu0 %v2372
    %3562 = vmatpush1.bf16.msra.mxu0 %v2371
    %3563 = vmatprep.subr.bf16.mxu0 %v2364
    %3564 = vmatpush1.bf16.msra.mxu0 %v2363
    %3565 = vmatprep.subr.bf16.mxu0 %v2484
    %3566 = vmatpush2.bf16.msra.mxu0 %v2483
    %3567 = vmatprep.subr.bf16.mxu0 %v2476
    %3568 = vmatpush2.bf16.msra.mxu0 %v2475
    %3569 = vmatprep.subr.bf16.mxu0 %v2468
    %3570 = vmatpush2.bf16.msra.mxu0 %v2467
    %3571 = vmatprep.subr.bf16.mxu0 %v2460
    %3572 = vmatpush2.bf16.msra.mxu0 %v2459
    %3573 = vmatprep.subr.bf16.mxu0 %v2452
    %3574 = vmatpush2.bf16.msra.mxu0 %v2451
    %3575 = vmatprep.subr.bf16.mxu0 %v2444
    %3576 = vmatpush2.bf16.msra.mxu0 %v2443
    %3577 = vmatprep.subr.bf16.mxu0 %v2436
    %3578 = vmatpush2.bf16.msra.mxu0 %v2435
    %3579 = vmatprep.subr.bf16.mxu0 %v2428
    %3580 = vmatpush2.bf16.msra.mxu0 %v2427
    %3581 = vmatprep.mubr.bf16.mxu0 %v810
    %3582 = vmatmul.mubr.bf16.gmra.mxu0 %v809
    %v3583 = vpop.f32.mrf.mxu0
    %v3584 = vadd.f32 %v768, %v3583
    %v3585 = vpop.f32.mrf.mxu0
    %v3586 = vadd.f32 %v772, %v3585
    %v3587 = vpop.f32.mrf.mxu0
    %v3588 = vpop.f32.mrf.mxu0
    %3589 = vdwg.mxu0
    %3590 = vmatprep.subr.bf16.mxu0 %v2548
    %3591 = vmatpush1.bf16.msra.mxu0 %v2547
    %3592 = vmatprep.subr.bf16.mxu0 %v2540
    %3593 = vmatpush1.bf16.msra.mxu0 %v2539
    %3594 = vmatprep.subr.bf16.mxu0 %v2532
    %3595 = vmatpush1.bf16.msra.mxu0 %v2531
    %3596 = vmatprep.subr.bf16.mxu0 %v2524
    %3597 = vmatpush1.bf16.msra.mxu0 %v2523
    %3598 = vmatprep.subr.bf16.mxu0 %v2516
    %3599 = vmatpush1.bf16.msra.mxu0 %v2515
    %3600 = vmatprep.subr.bf16.mxu0 %v2508
    %3601 = vmatpush1.bf16.msra.mxu0 %v2507
    %3602 = vmatprep.subr.bf16.mxu0 %v2500
    %3603 = vmatpush1.bf16.msra.mxu0 %v2499
    %3604 = vmatprep.subr.bf16.mxu0 %v2492
    %3605 = vmatpush1.bf16.msra.mxu0 %v2491
    %3606 = vmatprep.subr.bf16.mxu0 %v2612
    %3607 = vmatpush2.bf16.msra.mxu0 %v2611
    %3608 = vmatprep.subr.bf16.mxu0 %v2604
    %3609 = vmatpush2.bf16.msra.mxu0 %v2603
    %3610 = vmatprep.subr.bf16.mxu0 %v2596
    %3611 = vmatpush2.bf16.msra.mxu0 %v2595
    %3612 = vmatprep.subr.bf16.mxu0 %v2588
    %3613 = vmatpush2.bf16.msra.mxu0 %v2587
    %3614 = vmatprep.subr.bf16.mxu0 %v2580
    %3615 = vmatpush2.bf16.msra.mxu0 %v2579
    %3616 = vmatprep.subr.bf16.mxu0 %v2572
    %3617 = vmatpush2.bf16.msra.mxu0 %v2571
    %3618 = vmatprep.subr.bf16.mxu0 %v2564
    %3619 = vmatpush2.bf16.msra.mxu0 %v2563
    %3620 = vmatprep.subr.bf16.mxu0 %v2556
    %3621 = vmatpush2.bf16.msra.mxu0 %v2555
    %3622 = vmatprep.mubr.bf16.mxu0 %v812
    %3623 = vmatmul.mubr.bf16.gmra.mxu0 %v811
    %v3624 = vpop.f32.mrf.mxu0
    %v3625 = vadd.f32 %v3584, %v3624
    %v3626 = vpop.f32.mrf.mxu0
    %v3627 = vadd.f32 %v3586, %v3626
    %v3628 = vpop.f32.mrf.mxu0
    %v3629 = vpop.f32.mrf.mxu0
    %3630 = vdwg.mxu0
    %3631 = vmatprep.subr.bf16.mxu0 %v2676
    %3632 = vmatpush1.bf16.msra.mxu0 %v2675
    %3633 = vmatprep.subr.bf16.mxu0 %v2668
    %3634 = vmatpush1.bf16.msra.mxu0 %v2667
    %3635 = vmatprep.subr.bf16.mxu0 %v2660
    %3636 = vmatpush1.bf16.msra.mxu0 %v2659
    %3637 = vmatprep.subr.bf16.mxu0 %v2652
    %3638 = vmatpush1.bf16.msra.mxu0 %v2651
    %3639 = vmatprep.subr.bf16.mxu0 %v2644
    %3640 = vmatpush1.bf16.msra.mxu0 %v2643
    %3641 = vmatprep.subr.bf16.mxu0 %v2636
    %3642 = vmatpush1.bf16.msra.mxu0 %v2635
    %3643 = vmatprep.subr.bf16.mxu0 %v2628
    %3644 = vmatpush1.bf16.msra.mxu0 %v2627
    %3645 = vmatprep.subr.bf16.mxu0 %v2620
    %3646 = vmatpush1.bf16.msra.mxu0 %v2619
    %3647 = vmatprep.subr.bf16.mxu0 %v2740
    %3648 = vmatpush2.bf16.msra.mxu0 %v2739
    %3649 = vmatprep.subr.bf16.mxu0 %v2732
    %3650 = vmatpush2.bf16.msra.mxu0 %v2731
    %3651 = vmatprep.subr.bf16.mxu0 %v2724
    %3652 = vmatpush2.bf16.msra.mxu0 %v2723
    %3653 = vmatprep.subr.bf16.mxu0 %v2716
    %3654 = vmatpush2.bf16.msra.mxu0 %v2715
    %3655 = vmatprep.subr.bf16.mxu0 %v2708
    %3656 = vmatpush2.bf16.msra.mxu0 %v2707
    %3657 = vmatprep.subr.bf16.mxu0 %v2700
    %3658 = vmatpush2.bf16.msra.mxu0 %v2699
    %3659 = vmatprep.subr.bf16.mxu0 %v2692
    %3660 = vmatpush2.bf16.msra.mxu0 %v2691
    %3661 = vmatprep.subr.bf16.mxu0 %v2684
    %3662 = vmatpush2.bf16.msra.mxu0 %v2683
    %3663 = vmatprep.mubr.bf16.mxu0 %v814
    %3664 = vmatmul.mubr.bf16.gmra.mxu0 %v813
    %v3665 = vpop.f32.mrf.mxu0
    %v3666 = vadd.f32 %v3625, %v3665
    %v3667 = vpop.f32.mrf.mxu0
    %v3668 = vadd.f32 %v3627, %v3667
    %v3669 = vpop.f32.mrf.mxu0
    %v3670 = vpop.f32.mrf.mxu0
    %3671 = vdwg.mxu0
    %3672 = vmatprep.subr.bf16.mxu0 %v2804
    %3673 = vmatpush1.bf16.msra.mxu0 %v2803
    %3674 = vmatprep.subr.bf16.mxu0 %v2796
    %3675 = vmatpush1.bf16.msra.mxu0 %v2795
    %3676 = vmatprep.subr.bf16.mxu0 %v2788
    %3677 = vmatpush1.bf16.msra.mxu0 %v2787
    %3678 = vmatprep.subr.bf16.mxu0 %v2780
    %3679 = vmatpush1.bf16.msra.mxu0 %v2779
    %3680 = vmatprep.subr.bf16.mxu0 %v2772
    %3681 = vmatpush1.bf16.msra.mxu0 %v2771
    %3682 = vmatprep.subr.bf16.mxu0 %v2764
    %3683 = vmatpush1.bf16.msra.mxu0 %v2763
    %3684 = vmatprep.subr.bf16.mxu0 %v2756
    %3685 = vmatpush1.bf16.msra.mxu0 %v2755
    %3686 = vmatprep.subr.bf16.mxu0 %v2748
    %3687 = vmatpush1.bf16.msra.mxu0 %v2747
    %3688 = vmatprep.subr.bf16.mxu0 %v2868
    %3689 = vmatpush2.bf16.msra.mxu0 %v2867
    %3690 = vmatprep.subr.bf16.mxu0 %v2860
    %3691 = vmatpush2.bf16.msra.mxu0 %v2859
    %3692 = vmatprep.subr.bf16.mxu0 %v2852
    %3693 = vmatpush2.bf16.msra.mxu0 %v2851
    %3694 = vmatprep.subr.bf16.mxu0 %v2844
    %3695 = vmatpush2.bf16.msra.mxu0 %v2843
    %3696 = vmatprep.subr.bf16.mxu0 %v2836
    %3697 = vmatpush2.bf16.msra.mxu0 %v2835
    %3698 = vmatprep.subr.bf16.mxu0 %v2828
    %3699 = vmatpush2.bf16.msra.mxu0 %v2827
    %3700 = vmatprep.subr.bf16.mxu0 %v2820
    %3701 = vmatpush2.bf16.msra.mxu0 %v2819
    %3702 = vmatprep.subr.bf16.mxu0 %v2812
    %3703 = vmatpush2.bf16.msra.mxu0 %v2811
    %3704 = vmatprep.mubr.bf16.mxu0 %v816
    %3705 = vmatmul.mubr.bf16.gmra.mxu0 %v815
    %v3706 = vpop.f32.mrf.mxu0
    %v3707 = vadd.f32 %v3666, %v3706
    %v3708 = vpop.f32.mrf.mxu0
    %v3709 = vadd.f32 %v3668, %v3708
    %v3710 = vpop.f32.mrf.mxu0
    %v3711 = vpop.f32.mrf.mxu0
    %3712 = vdwg.mxu0
    %3713 = vmatprep.subr.bf16.mxu0 %v2422
    %3714 = vmatpush1.bf16.msra.mxu0 %v2421
    %3715 = vmatprep.subr.bf16.mxu0 %v2414
    %3716 = vmatpush1.bf16.msra.mxu0 %v2413
    %3717 = vmatprep.subr.bf16.mxu0 %v2406
    %3718 = vmatpush1.bf16.msra.mxu0 %v2405
    %3719 = vmatprep.subr.bf16.mxu0 %v2398
    %3720 = vmatpush1.bf16.msra.mxu0 %v2397
    %3721 = vmatprep.subr.bf16.mxu0 %v2390
    %3722 = vmatpush1.bf16.msra.mxu0 %v2389
    %3723 = vmatprep.subr.bf16.mxu0 %v2382
    %3724 = vmatpush1.bf16.msra.mxu0 %v2381
    %3725 = vmatprep.subr.bf16.mxu0 %v2374
    %3726 = vmatpush1.bf16.msra.mxu0 %v2373
    %3727 = vmatprep.subr.bf16.mxu0 %v2366
    %3728 = vmatpush1.bf16.msra.mxu0 %v2365
    %3729 = vmatprep.subr.bf16.mxu0 %v2486
    %3730 = vmatpush2.bf16.msra.mxu0 %v2485
    %3731 = vmatprep.subr.bf16.mxu0 %v2478
    %3732 = vmatpush2.bf16.msra.mxu0 %v2477
    %3733 = vmatprep.subr.bf16.mxu0 %v2470
    %3734 = vmatpush2.bf16.msra.mxu0 %v2469
    %3735 = vmatprep.subr.bf16.mxu0 %v2462
    %3736 = vmatpush2.bf16.msra.mxu0 %v2461
    %3737 = vmatprep.subr.bf16.mxu0 %v2454
    %3738 = vmatpush2.bf16.msra.mxu0 %v2453
    %3739 = vmatprep.subr.bf16.mxu0 %v2446
    %3740 = vmatpush2.bf16.msra.mxu0 %v2445
    %3741 = vmatprep.subr.bf16.mxu0 %v2438
    %3742 = vmatpush2.bf16.msra.mxu0 %v2437
    %3743 = vmatprep.subr.bf16.mxu0 %v2430
    %3744 = vmatpush2.bf16.msra.mxu0 %v2429
    %3745 = vmatprep.mubr.bf16.mxu0 %v810
    %3746 = vmatmul.mubr.bf16.gmra.mxu0 %v809
    %v3747 = vpop.f32.mrf.mxu0
    %v3748 = vadd.f32 %v776, %v3747
    %v3749 = vpop.f32.mrf.mxu0
    %v3750 = vadd.f32 %v780, %v3749
    %v3751 = vpop.f32.mrf.mxu0
    %v3752 = vpop.f32.mrf.mxu0
    %3753 = vdwg.mxu0
    %3754 = vmatprep.subr.bf16.mxu0 %v2550
    %3755 = vmatpush1.bf16.msra.mxu0 %v2549
    %3756 = vmatprep.subr.bf16.mxu0 %v2542
    %3757 = vmatpush1.bf16.msra.mxu0 %v2541
    %3758 = vmatprep.subr.bf16.mxu0 %v2534
    %3759 = vmatpush1.bf16.msra.mxu0 %v2533
    %3760 = vmatprep.subr.bf16.mxu0 %v2526
    %3761 = vmatpush1.bf16.msra.mxu0 %v2525
    %3762 = vmatprep.subr.bf16.mxu0 %v2518
    %3763 = vmatpush1.bf16.msra.mxu0 %v2517
    %3764 = vmatprep.subr.bf16.mxu0 %v2510
    %3765 = vmatpush1.bf16.msra.mxu0 %v2509
    %3766 = vmatprep.subr.bf16.mxu0 %v2502
    %3767 = vmatpush1.bf16.msra.mxu0 %v2501
    %3768 = vmatprep.subr.bf16.mxu0 %v2494
    %3769 = vmatpush1.bf16.msra.mxu0 %v2493
    %3770 = vmatprep.subr.bf16.mxu0 %v2614
    %3771 = vmatpush2.bf16.msra.mxu0 %v2613
    %3772 = vmatprep.subr.bf16.mxu0 %v2606
    %3773 = vmatpush2.bf16.msra.mxu0 %v2605
    %3774 = vmatprep.subr.bf16.mxu0 %v2598
    %3775 = vmatpush2.bf16.msra.mxu0 %v2597
    %3776 = vmatprep.subr.bf16.mxu0 %v2590
    %3777 = vmatpush2.bf16.msra.mxu0 %v2589
    %3778 = vmatprep.subr.bf16.mxu0 %v2582
    %3779 = vmatpush2.bf16.msra.mxu0 %v2581
    %3780 = vmatprep.subr.bf16.mxu0 %v2574
    %3781 = vmatpush2.bf16.msra.mxu0 %v2573
    %3782 = vmatprep.subr.bf16.mxu0 %v2566
    %3783 = vmatpush2.bf16.msra.mxu0 %v2565
    %3784 = vmatprep.subr.bf16.mxu0 %v2558
    %3785 = vmatpush2.bf16.msra.mxu0 %v2557
    %3786 = vmatprep.mubr.bf16.mxu0 %v812
    %3787 = vmatmul.mubr.bf16.gmra.mxu0 %v811
    %v3788 = vpop.f32.mrf.mxu0
    %v3789 = vadd.f32 %v3748, %v3788
    %v3790 = vpop.f32.mrf.mxu0
    %v3791 = vadd.f32 %v3750, %v3790
    %v3792 = vpop.f32.mrf.mxu0
    %v3793 = vpop.f32.mrf.mxu0
    %3794 = vdwg.mxu0
    %3795 = vmatprep.subr.bf16.mxu0 %v2678
    %3796 = vmatpush1.bf16.msra.mxu0 %v2677
    %3797 = vmatprep.subr.bf16.mxu0 %v2670
    %3798 = vmatpush1.bf16.msra.mxu0 %v2669
    %3799 = vmatprep.subr.bf16.mxu0 %v2662
    %3800 = vmatpush1.bf16.msra.mxu0 %v2661
    %3801 = vmatprep.subr.bf16.mxu0 %v2654
    %3802 = vmatpush1.bf16.msra.mxu0 %v2653
    %3803 = vmatprep.subr.bf16.mxu0 %v2646
    %3804 = vmatpush1.bf16.msra.mxu0 %v2645
    %3805 = vmatprep.subr.bf16.mxu0 %v2638
    %3806 = vmatpush1.bf16.msra.mxu0 %v2637
    %3807 = vmatprep.subr.bf16.mxu0 %v2630
    %3808 = vmatpush1.bf16.msra.mxu0 %v2629
    %3809 = vmatprep.subr.bf16.mxu0 %v2622
    %3810 = vmatpush1.bf16.msra.mxu0 %v2621
    %3811 = vmatprep.subr.bf16.mxu0 %v2742
    %3812 = vmatpush2.bf16.msra.mxu0 %v2741
    %3813 = vmatprep.subr.bf16.mxu0 %v2734
    %3814 = vmatpush2.bf16.msra.mxu0 %v2733
    %3815 = vmatprep.subr.bf16.mxu0 %v2726
    %3816 = vmatpush2.bf16.msra.mxu0 %v2725
    %3817 = vmatprep.subr.bf16.mxu0 %v2718
    %3818 = vmatpush2.bf16.msra.mxu0 %v2717
    %3819 = vmatprep.subr.bf16.mxu0 %v2710
    %3820 = vmatpush2.bf16.msra.mxu0 %v2709
    %3821 = vmatprep.subr.bf16.mxu0 %v2702
    %3822 = vmatpush2.bf16.msra.mxu0 %v2701
    %3823 = vmatprep.subr.bf16.mxu0 %v2694
    %3824 = vmatpush2.bf16.msra.mxu0 %v2693
    %3825 = vmatprep.subr.bf16.mxu0 %v2686
    %3826 = vmatpush2.bf16.msra.mxu0 %v2685
    %3827 = vmatprep.mubr.bf16.mxu0 %v814
    %3828 = vmatmul.mubr.bf16.gmra.mxu0 %v813
    %v3829 = vpop.f32.mrf.mxu0
    %v3830 = vadd.f32 %v3789, %v3829
    %v3831 = vpop.f32.mrf.mxu0
    %v3832 = vadd.f32 %v3791, %v3831
    %v3833 = vpop.f32.mrf.mxu0
    %v3834 = vpop.f32.mrf.mxu0
    %3835 = vdwg.mxu0
    %3836 = vmatprep.subr.bf16.mxu0 %v2806
    %3837 = vmatpush1.bf16.msra.mxu0 %v2805
    %3838 = vmatprep.subr.bf16.mxu0 %v2798
    %3839 = vmatpush1.bf16.msra.mxu0 %v2797
    %3840 = vmatprep.subr.bf16.mxu0 %v2790
    %3841 = vmatpush1.bf16.msra.mxu0 %v2789
    %3842 = vmatprep.subr.bf16.mxu0 %v2782
    %3843 = vmatpush1.bf16.msra.mxu0 %v2781
    %3844 = vmatprep.subr.bf16.mxu0 %v2774
    %3845 = vmatpush1.bf16.msra.mxu0 %v2773
    %3846 = vmatprep.subr.bf16.mxu0 %v2766
    %3847 = vmatpush1.bf16.msra.mxu0 %v2765
    %3848 = vmatprep.subr.bf16.mxu0 %v2758
    %3849 = vmatpush1.bf16.msra.mxu0 %v2757
    %3850 = vmatprep.subr.bf16.mxu0 %v2750
    %3851 = vmatpush1.bf16.msra.mxu0 %v2749
    %3852 = vmatprep.subr.bf16.mxu0 %v2870
    %3853 = vmatpush2.bf16.msra.mxu0 %v2869
    %3854 = vmatprep.subr.bf16.mxu0 %v2862
    %3855 = vmatpush2.bf16.msra.mxu0 %v2861
    %3856 = vmatprep.subr.bf16.mxu0 %v2854
    %3857 = vmatpush2.bf16.msra.mxu0 %v2853
    %3858 = vmatprep.subr.bf16.mxu0 %v2846
    %3859 = vmatpush2.bf16.msra.mxu0 %v2845
    %3860 = vmatprep.subr.bf16.mxu0 %v2838
    %3861 = vmatpush2.bf16.msra.mxu0 %v2837
    %3862 = vmatprep.subr.bf16.mxu0 %v2830
    %3863 = vmatpush2.bf16.msra.mxu0 %v2829
    %3864 = vmatprep.subr.bf16.mxu0 %v2822
    %3865 = vmatpush2.bf16.msra.mxu0 %v2821
    %3866 = vmatprep.subr.bf16.mxu0 %v2814
    %3867 = vmatpush2.bf16.msra.mxu0 %v2813
    %3868 = vmatprep.mubr.bf16.mxu0 %v816
    %3869 = vmatmul.mubr.bf16.gmra.mxu0 %v815
    %v3870 = vpop.f32.mrf.mxu0
    %v3871 = vadd.f32 %v3830, %v3870
    %v3872 = vpop.f32.mrf.mxu0
    %v3873 = vadd.f32 %v3832, %v3872
    %v3874 = vpop.f32.mrf.mxu0
    %v3875 = vpop.f32.mrf.mxu0
    %3876 = vdwg.mxu0
    %3877 = vmatprep.subr.bf16.mxu0 %v2424
    %3878 = vmatpush1.bf16.msra.mxu0 %v2423
    %3879 = vmatprep.subr.bf16.mxu0 %v2416
    %3880 = vmatpush1.bf16.msra.mxu0 %v2415
    %3881 = vmatprep.subr.bf16.mxu0 %v2408
    %3882 = vmatpush1.bf16.msra.mxu0 %v2407
    %3883 = vmatprep.subr.bf16.mxu0 %v2400
    %3884 = vmatpush1.bf16.msra.mxu0 %v2399
    %3885 = vmatprep.subr.bf16.mxu0 %v2392
    %3886 = vmatpush1.bf16.msra.mxu0 %v2391
    %3887 = vmatprep.subr.bf16.mxu0 %v2384
    %3888 = vmatpush1.bf16.msra.mxu0 %v2383
    %3889 = vmatprep.subr.bf16.mxu0 %v2376
    %3890 = vmatpush1.bf16.msra.mxu0 %v2375
    %3891 = vmatprep.subr.bf16.mxu0 %v2368
    %3892 = vmatpush1.bf16.msra.mxu0 %v2367
    %3893 = vmatprep.subr.bf16.mxu0 %v2488
    %3894 = vmatpush2.bf16.msra.mxu0 %v2487
    %3895 = vmatprep.subr.bf16.mxu0 %v2480
    %3896 = vmatpush2.bf16.msra.mxu0 %v2479
    %3897 = vmatprep.subr.bf16.mxu0 %v2472
    %3898 = vmatpush2.bf16.msra.mxu0 %v2471
    %3899 = vmatprep.subr.bf16.mxu0 %v2464
    %3900 = vmatpush2.bf16.msra.mxu0 %v2463
    %3901 = vmatprep.subr.bf16.mxu0 %v2456
    %3902 = vmatpush2.bf16.msra.mxu0 %v2455
    %3903 = vmatprep.subr.bf16.mxu0 %v2448
    %3904 = vmatpush2.bf16.msra.mxu0 %v2447
    %3905 = vmatprep.subr.bf16.mxu0 %v2440
    %3906 = vmatpush2.bf16.msra.mxu0 %v2439
    %3907 = vmatprep.subr.bf16.mxu0 %v2432
    %3908 = vmatpush2.bf16.msra.mxu0 %v2431
    %3909 = vmatprep.mubr.bf16.mxu0 %v810
    %3910 = vmatmul.mubr.bf16.gmra.mxu0 %v809
    %v3911 = vpop.f32.mrf.mxu0
    %v3912 = vadd.f32 %v784, %v3911
    %v3913 = vpop.f32.mrf.mxu0
    %v3914 = vadd.f32 %v788, %v3913
    %v3915 = vpop.f32.mrf.mxu0
    %v3916 = vpop.f32.mrf.mxu0
    %3917 = vdwg.mxu0
    %3918 = vmatprep.subr.bf16.mxu0 %v2552
    %3919 = vmatpush1.bf16.msra.mxu0 %v2551
    %3920 = vmatprep.subr.bf16.mxu0 %v2544
    %3921 = vmatpush1.bf16.msra.mxu0 %v2543
    %3922 = vmatprep.subr.bf16.mxu0 %v2536
    %3923 = vmatpush1.bf16.msra.mxu0 %v2535
    %3924 = vmatprep.subr.bf16.mxu0 %v2528
    %3925 = vmatpush1.bf16.msra.mxu0 %v2527
    %3926 = vmatprep.subr.bf16.mxu0 %v2520
    %3927 = vmatpush1.bf16.msra.mxu0 %v2519
    %3928 = vmatprep.subr.bf16.mxu0 %v2512
    %3929 = vmatpush1.bf16.msra.mxu0 %v2511
    %3930 = vmatprep.subr.bf16.mxu0 %v2504
    %3931 = vmatpush1.bf16.msra.mxu0 %v2503
    %3932 = vmatprep.subr.bf16.mxu0 %v2496
    %3933 = vmatpush1.bf16.msra.mxu0 %v2495
    %3934 = vmatprep.subr.bf16.mxu0 %v2616
    %3935 = vmatpush2.bf16.msra.mxu0 %v2615
    %3936 = vmatprep.subr.bf16.mxu0 %v2608
    %3937 = vmatpush2.bf16.msra.mxu0 %v2607
    %3938 = vmatprep.subr.bf16.mxu0 %v2600
    %3939 = vmatpush2.bf16.msra.mxu0 %v2599
    %3940 = vmatprep.subr.bf16.mxu0 %v2592
    %3941 = vmatpush2.bf16.msra.mxu0 %v2591
    %3942 = vmatprep.subr.bf16.mxu0 %v2584
    %3943 = vmatpush2.bf16.msra.mxu0 %v2583
    %3944 = vmatprep.subr.bf16.mxu0 %v2576
    %3945 = vmatpush2.bf16.msra.mxu0 %v2575
    %3946 = vmatprep.subr.bf16.mxu0 %v2568
    %3947 = vmatpush2.bf16.msra.mxu0 %v2567
    %3948 = vmatprep.subr.bf16.mxu0 %v2560
    %3949 = vmatpush2.bf16.msra.mxu0 %v2559
    %3950 = vmatprep.mubr.bf16.mxu0 %v812
    %3951 = vmatmul.mubr.bf16.gmra.mxu0 %v811
    %v3952 = vpop.f32.mrf.mxu0
    %v3953 = vadd.f32 %v3912, %v3952
    %v3954 = vpop.f32.mrf.mxu0
    %v3955 = vadd.f32 %v3914, %v3954
    %v3956 = vpop.f32.mrf.mxu0
    %v3957 = vpop.f32.mrf.mxu0
    %3958 = vdwg.mxu0
    %3959 = vmatprep.subr.bf16.mxu0 %v2680
    %3960 = vmatpush1.bf16.msra.mxu0 %v2679
    %3961 = vmatprep.subr.bf16.mxu0 %v2672
    %3962 = vmatpush1.bf16.msra.mxu0 %v2671
    %3963 = vmatprep.subr.bf16.mxu0 %v2664
    %3964 = vmatpush1.bf16.msra.mxu0 %v2663
    %3965 = vmatprep.subr.bf16.mxu0 %v2656
    %3966 = vmatpush1.bf16.msra.mxu0 %v2655
    %3967 = vmatprep.subr.bf16.mxu0 %v2648
    %3968 = vmatpush1.bf16.msra.mxu0 %v2647
    %3969 = vmatprep.subr.bf16.mxu0 %v2640
    %3970 = vmatpush1.bf16.msra.mxu0 %v2639
    %3971 = vmatprep.subr.bf16.mxu0 %v2632
    %3972 = vmatpush1.bf16.msra.mxu0 %v2631
    %3973 = vmatprep.subr.bf16.mxu0 %v2624
    %3974 = vmatpush1.bf16.msra.mxu0 %v2623
    %3975 = vmatprep.subr.bf16.mxu0 %v2744
    %3976 = vmatpush2.bf16.msra.mxu0 %v2743
    %3977 = vmatprep.subr.bf16.mxu0 %v2736
    %3978 = vmatpush2.bf16.msra.mxu0 %v2735
    %3979 = vmatprep.subr.bf16.mxu0 %v2728
    %3980 = vmatpush2.bf16.msra.mxu0 %v2727
    %3981 = vmatprep.subr.bf16.mxu0 %v2720
    %3982 = vmatpush2.bf16.msra.mxu0 %v2719
    %3983 = vmatprep.subr.bf16.mxu0 %v2712
    %3984 = vmatpush2.bf16.msra.mxu0 %v2711
    %3985 = vmatprep.subr.bf16.mxu0 %v2704
    %3986 = vmatpush2.bf16.msra.mxu0 %v2703
    %3987 = vmatprep.subr.bf16.mxu0 %v2696
    %3988 = vmatpush2.bf16.msra.mxu0 %v2695
    %3989 = vmatprep.subr.bf16.mxu0 %v2688
    %3990 = vmatpush2.bf16.msra.mxu0 %v2687
    %3991 = vmatprep.mubr.bf16.mxu0 %v814
    %3992 = vmatmul.mubr.bf16.gmra.mxu0 %v813
    %v3993 = vpop.f32.mrf.mxu0
    %v3994 = vadd.f32 %v3953, %v3993
    %v3995 = vpop.f32.mrf.mxu0
    %v3996 = vadd.f32 %v3955, %v3995
    %v3997 = vpop.f32.mrf.mxu0
    %v3998 = vpop.f32.mrf.mxu0
    %3999 = vdwg.mxu0
    %4000 = vmatprep.subr.bf16.mxu0 %v2808
    %4001 = vmatpush1.bf16.msra.mxu0 %v2807
    %4002 = vmatprep.subr.bf16.mxu0 %v2800
    %4003 = vmatpush1.bf16.msra.mxu0 %v2799
    %4004 = vmatprep.subr.bf16.mxu0 %v2792
    %4005 = vmatpush1.bf16.msra.mxu0 %v2791
    %4006 = vmatprep.subr.bf16.mxu0 %v2784
    %4007 = vmatpush1.bf16.msra.mxu0 %v2783
    %4008 = vmatprep.subr.bf16.mxu0 %v2776
    %4009 = vmatpush1.bf16.msra.mxu0 %v2775
    %4010 = vmatprep.subr.bf16.mxu0 %v2768
    %4011 = vmatpush1.bf16.msra.mxu0 %v2767
    %4012 = vmatprep.subr.bf16.mxu0 %v2760
    %4013 = vmatpush1.bf16.msra.mxu0 %v2759
    %4014 = vmatprep.subr.bf16.mxu0 %v2752
    %4015 = vmatpush1.bf16.msra.mxu0 %v2751
    %4016 = vmatprep.subr.bf16.mxu0 %v2872
    %4017 = vmatpush2.bf16.msra.mxu0 %v2871
    %4018 = vmatprep.subr.bf16.mxu0 %v2864
    %4019 = vmatpush2.bf16.msra.mxu0 %v2863
    %4020 = vmatprep.subr.bf16.mxu0 %v2856
    %4021 = vmatpush2.bf16.msra.mxu0 %v2855
    %4022 = vmatprep.subr.bf16.mxu0 %v2848
    %4023 = vmatpush2.bf16.msra.mxu0 %v2847
    %4024 = vmatprep.subr.bf16.mxu0 %v2840
    %4025 = vmatpush2.bf16.msra.mxu0 %v2839
    %4026 = vmatprep.subr.bf16.mxu0 %v2832
    %4027 = vmatpush2.bf16.msra.mxu0 %v2831
    %4028 = vmatprep.subr.bf16.mxu0 %v2824
    %4029 = vmatpush2.bf16.msra.mxu0 %v2823
    %4030 = vmatprep.subr.bf16.mxu0 %v2816
    %4031 = vmatpush2.bf16.msra.mxu0 %v2815
    %4032 = vmatprep.mubr.bf16.mxu0 %v816
    %4033 = vmatmul.mubr.bf16.gmra.mxu0 %v815
    %v4034 = vpop.f32.mrf.mxu0
    %v4035 = vadd.f32 %v3994, %v4034
    %v4036 = vpop.f32.mrf.mxu0
    %v4037 = vadd.f32 %v3996, %v4036
    %v4038 = vpop.f32.mrf.mxu0
    %v4039 = vpop.f32.mrf.mxu0
    %4040 = vdwg.mxu0
    %v4041 = vmax.f32 %v3543, 0.0
    %v4042 = vmax.f32 %v3545, 0.0
    %v4043 = vmax.f32 %v3707, 0.0
    %v4044 = vmax.f32 %v3709, 0.0
    %v4045 = vmax.f32 %v3871, 0.0
    %v4046 = vmax.f32 %v3873, 0.0
    %v4047 = vmax.f32 %v4035, 0.0
    %v4048 = vmax.f32 %v4037, 0.0
    %v4049 = vpack.c.bf16 %v4041, %v4041
    %v4050 = vpack.c.bf16 %v4042, %v4042
    %v4051 = vpack.c.bf16 %v4043, %v4043
    %v4052 = vpack.c.bf16 %v4044, %v4044
    %v4053 = vpack.c.bf16 %v4045, %v4045
    %v4054 = vpack.c.bf16 %v4046, %v4046
    %v4055 = vpack.c.bf16 %v4047, %v4047
    %v4056 = vpack.c.bf16 %v4048, %v4048
    %v4057 = vld [vmem:[#allocation8] sm:$0xff]
    %v4058 = vld [vmem:[#allocation8 + $0x8] sm:$0xff]
    %v4059 = vld [vmem:[#allocation8 + $0x10] sm:$0xff]
    %v4060 = vld [vmem:[#allocation8 + $0x18] sm:$0xff]
    %v4061 = vld [vmem:[#allocation8 + $0x20] sm:$0xff]
    %v4062 = vld [vmem:[#allocation8 + $0x28] sm:$0xff]
    %v4063 = vld [vmem:[#allocation8 + $0x30] sm:$0xff]
    %v4064 = vld [vmem:[#allocation8 + $0x38] sm:$0xff]
    %v4065 = vld [vmem:[#allocation8 + $0x40] sm:$0xff]
    %v4066 = vld [vmem:[#allocation8 + $0x48] sm:$0xff]
    %v4067 = vld [vmem:[#allocation8 + $0x50] sm:$0xff]
    %v4068 = vld [vmem:[#allocation8 + $0x58] sm:$0xff]
    %v4069 = vld [vmem:[#allocation8 + $0x60] sm:$0xff]
    %v4070 = vld [vmem:[#allocation8 + $0x68] sm:$0xff]
    %v4071 = vld [vmem:[#allocation8 + $0x70] sm:$0xff]
    %v4072 = vld [vmem:[#allocation8 + $0x78] sm:$0xff]
    %v4073 = vld [vmem:[#allocation8 + $0x80] sm:$0xff]
    %v4074 = vld [vmem:[#allocation8 + $0x88] sm:$0xff]
    %v4075 = vld [vmem:[#allocation8 + $0x90] sm:$0xff]
    %v4076 = vld [vmem:[#allocation8 + $0x98] sm:$0xff]
    %v4077 = vld [vmem:[#allocation8 + $0xa0] sm:$0xff]
    %v4078 = vld [vmem:[#allocation8 + $0xa8] sm:$0xff]
    %v4079 = vld [vmem:[#allocation8 + $0xb0] sm:$0xff]
    %v4080 = vld [vmem:[#allocation8 + $0xb8] sm:$0xff]
    %v4081 = vld [vmem:[#allocation8 + $0xc0] sm:$0xff]
    %v4082 = vld [vmem:[#allocation8 + $0xc8] sm:$0xff]
    %v4083 = vld [vmem:[#allocation8 + $0xd0] sm:$0xff]
    %v4084 = vld [vmem:[#allocation8 + $0xd8] sm:$0xff]
    %v4085 = vld [vmem:[#allocation8 + $0xe0] sm:$0xff]
    %v4086 = vld [vmem:[#allocation8 + $0xe8] sm:$0xff]
    %v4087 = vld [vmem:[#allocation8 + $0xf0] sm:$0xff]
    %v4088 = vld [vmem:[#allocation8 + $0xf8] sm:$0xff]
    %v4089 = vld [vmem:[#allocation8 + $0x100] sm:$0xff]
    %v4090 = vld [vmem:[#allocation8 + $0x108] sm:$0xff]
    %v4091 = vld [vmem:[#allocation8 + $0x110] sm:$0xff]
    %v4092 = vld [vmem:[#allocation8 + $0x118] sm:$0xff]
    %v4093 = vld [vmem:[#allocation8 + $0x120] sm:$0xff]
    %v4094 = vld [vmem:[#allocation8 + $0x128] sm:$0xff]
    %v4095 = vld [vmem:[#allocation8 + $0x130] sm:$0xff]
    %v4096 = vld [vmem:[#allocation8 + $0x138] sm:$0xff]
    %v4097 = vld [vmem:[#allocation8 + $0x140] sm:$0xff]
    %v4098 = vld [vmem:[#allocation8 + $0x148] sm:$0xff]
    %v4099 = vld [vmem:[#allocation8 + $0x150] sm:$0xff]
    %v4100 = vld [vmem:[#allocation8 + $0x158] sm:$0xff]
    %v4101 = vld [vmem:[#allocation8 + $0x160] sm:$0xff]
    %v4102 = vld [vmem:[#allocation8 + $0x168] sm:$0xff]
    %v4103 = vld [vmem:[#allocation8 + $0x170] sm:$0xff]
    %v4104 = vld [vmem:[#allocation8 + $0x178] sm:$0xff]
    %v4105 = vld [vmem:[#allocation8 + $0x180] sm:$0xff]
    %v4106 = vld [vmem:[#allocation8 + $0x188] sm:$0xff]
    %v4107 = vld [vmem:[#allocation8 + $0x190] sm:$0xff]
    %v4108 = vld [vmem:[#allocation8 + $0x198] sm:$0xff]
    %v4109 = vld [vmem:[#allocation8 + $0x1a0] sm:$0xff]
    %v4110 = vld [vmem:[#allocation8 + $0x1a8] sm:$0xff]
    %v4111 = vld [vmem:[#allocation8 + $0x1b0] sm:$0xff]
    %v4112 = vld [vmem:[#allocation8 + $0x1b8] sm:$0xff]
    %v4113 = vld [vmem:[#allocation8 + $0x1c0] sm:$0xff]
    %v4114 = vld [vmem:[#allocation8 + $0x1c8] sm:$0xff]
    %v4115 = vld [vmem:[#allocation8 + $0x1d0] sm:$0xff]
    %v4116 = vld [vmem:[#allocation8 + $0x1d8] sm:$0xff]
    %v4117 = vld [vmem:[#allocation8 + $0x1e0] sm:$0xff]
    %v4118 = vld [vmem:[#allocation8 + $0x1e8] sm:$0xff]
    %v4119 = vld [vmem:[#allocation8 + $0x1f0] sm:$0xff]
    %v4120 = vld [vmem:[#allocation8 + $0x1f8] sm:$0xff]
    %v4121 = vld [vmem:[#allocation8 + $0x200] sm:$0xff]
    %v4122 = vld [vmem:[#allocation8 + $0x208] sm:$0xff]
    %v4123 = vld [vmem:[#allocation8 + $0x210] sm:$0xff]
    %v4124 = vld [vmem:[#allocation8 + $0x218] sm:$0xff]
    %v4125 = vld [vmem:[#allocation8 + $0x220] sm:$0xff]
    %v4126 = vld [vmem:[#allocation8 + $0x228] sm:$0xff]
    %v4127 = vld [vmem:[#allocation8 + $0x230] sm:$0xff]
    %v4128 = vld [vmem:[#allocation8 + $0x238] sm:$0xff]
    %v4129 = vld [vmem:[#allocation8 + $0x240] sm:$0xff]
    %v4130 = vld [vmem:[#allocation8 + $0x248] sm:$0xff]
    %v4131 = vld [vmem:[#allocation8 + $0x250] sm:$0xff]
    %v4132 = vld [vmem:[#allocation8 + $0x258] sm:$0xff]
    %v4133 = vld [vmem:[#allocation8 + $0x260] sm:$0xff]
    %v4134 = vld [vmem:[#allocation8 + $0x268] sm:$0xff]
    %v4135 = vld [vmem:[#allocation8 + $0x270] sm:$0xff]
    %v4136 = vld [vmem:[#allocation8 + $0x278] sm:$0xff]
    %v4137 = vld [vmem:[#allocation8 + $0x280] sm:$0xff]
    %v4138 = vld [vmem:[#allocation8 + $0x288] sm:$0xff]
    %v4139 = vld [vmem:[#allocation8 + $0x290] sm:$0xff]
    %v4140 = vld [vmem:[#allocation8 + $0x298] sm:$0xff]
    %v4141 = vld [vmem:[#allocation8 + $0x2a0] sm:$0xff]
    %v4142 = vld [vmem:[#allocation8 + $0x2a8] sm:$0xff]
    %v4143 = vld [vmem:[#allocation8 + $0x2b0] sm:$0xff]
    %v4144 = vld [vmem:[#allocation8 + $0x2b8] sm:$0xff]
    %v4145 = vld [vmem:[#allocation8 + $0x2c0] sm:$0xff]
    %v4146 = vld [vmem:[#allocation8 + $0x2c8] sm:$0xff]
    %v4147 = vld [vmem:[#allocation8 + $0x2d0] sm:$0xff]
    %v4148 = vld [vmem:[#allocation8 + $0x2d8] sm:$0xff]
    %v4149 = vld [vmem:[#allocation8 + $0x2e0] sm:$0xff]
    %v4150 = vld [vmem:[#allocation8 + $0x2e8] sm:$0xff]
    %v4151 = vld [vmem:[#allocation8 + $0x2f0] sm:$0xff]
    %v4152 = vld [vmem:[#allocation8 + $0x2f8] sm:$0xff]
    %v4153 = vld [vmem:[#allocation8 + $0x300] sm:$0xff]
    %v4154 = vld [vmem:[#allocation8 + $0x308] sm:$0xff]
    %v4155 = vld [vmem:[#allocation8 + $0x310] sm:$0xff]
    %v4156 = vld [vmem:[#allocation8 + $0x318] sm:$0xff]
    %v4157 = vld [vmem:[#allocation8 + $0x320] sm:$0xff]
    %v4158 = vld [vmem:[#allocation8 + $0x328] sm:$0xff]
    %v4159 = vld [vmem:[#allocation8 + $0x330] sm:$0xff]
    %v4160 = vld [vmem:[#allocation8 + $0x338] sm:$0xff]
    %v4161 = vld [vmem:[#allocation8 + $0x340] sm:$0xff]
    %v4162 = vld [vmem:[#allocation8 + $0x348] sm:$0xff]
    %v4163 = vld [vmem:[#allocation8 + $0x350] sm:$0xff]
    %v4164 = vld [vmem:[#allocation8 + $0x358] sm:$0xff]
    %v4165 = vld [vmem:[#allocation8 + $0x360] sm:$0xff]
    %v4166 = vld [vmem:[#allocation8 + $0x368] sm:$0xff]
    %v4167 = vld [vmem:[#allocation8 + $0x370] sm:$0xff]
    %v4168 = vld [vmem:[#allocation8 + $0x378] sm:$0xff]
    %v4169 = vld [vmem:[#allocation8 + $0x380] sm:$0xff]
    %v4170 = vld [vmem:[#allocation8 + $0x388] sm:$0xff]
    %v4171 = vld [vmem:[#allocation8 + $0x390] sm:$0xff]
    %v4172 = vld [vmem:[#allocation8 + $0x398] sm:$0xff]
    %v4173 = vld [vmem:[#allocation8 + $0x3a0] sm:$0xff]
    %v4174 = vld [vmem:[#allocation8 + $0x3a8] sm:$0xff]
    %v4175 = vld [vmem:[#allocation8 + $0x3b0] sm:$0xff]
    %v4176 = vld [vmem:[#allocation8 + $0x3b8] sm:$0xff]
    %v4177 = vld [vmem:[#allocation8 + $0x3c0] sm:$0xff]
    %v4178 = vld [vmem:[#allocation8 + $0x3c8] sm:$0xff]
    %v4179 = vld [vmem:[#allocation8 + $0x3d0] sm:$0xff]
    %v4180 = vld [vmem:[#allocation8 + $0x3d8] sm:$0xff]
    %v4181 = vld [vmem:[#allocation8 + $0x3e0] sm:$0xff]
    %v4182 = vld [vmem:[#allocation8 + $0x3e8] sm:$0xff]
    %v4183 = vld [vmem:[#allocation8 + $0x3f0] sm:$0xff]
    %v4184 = vld [vmem:[#allocation8 + $0x3f8] sm:$0xff]
    %v4185 = vld [vmem:[#allocation8 + $0x400] sm:$0xff]
    %v4186 = vld [vmem:[#allocation8 + $0x408] sm:$0xff]
    %v4187 = vld [vmem:[#allocation8 + $0x410] sm:$0xff]
    %v4188 = vld [vmem:[#allocation8 + $0x418] sm:$0xff]
    %v4189 = vld [vmem:[#allocation8 + $0x420] sm:$0xff]
    %v4190 = vld [vmem:[#allocation8 + $0x428] sm:$0xff]
    %v4191 = vld [vmem:[#allocation8 + $0x430] sm:$0xff]
    %v4192 = vld [vmem:[#allocation8 + $0x438] sm:$0xff]
    %v4193 = vld [vmem:[#allocation8 + $0x440] sm:$0xff]
    %v4194 = vld [vmem:[#allocation8 + $0x448] sm:$0xff]
    %v4195 = vld [vmem:[#allocation8 + $0x450] sm:$0xff]
    %v4196 = vld [vmem:[#allocation8 + $0x458] sm:$0xff]
    %v4197 = vld [vmem:[#allocation8 + $0x460] sm:$0xff]
    %v4198 = vld [vmem:[#allocation8 + $0x468] sm:$0xff]
    %v4199 = vld [vmem:[#allocation8 + $0x470] sm:$0xff]
    %v4200 = vld [vmem:[#allocation8 + $0x478] sm:$0xff]
    %v4201 = vld [vmem:[#allocation8 + $0x480] sm:$0xff]
    %v4202 = vld [vmem:[#allocation8 + $0x488] sm:$0xff]
    %v4203 = vld [vmem:[#allocation8 + $0x490] sm:$0xff]
    %v4204 = vld [vmem:[#allocation8 + $0x498] sm:$0xff]
    %v4205 = vld [vmem:[#allocation8 + $0x4a0] sm:$0xff]
    %v4206 = vld [vmem:[#allocation8 + $0x4a8] sm:$0xff]
    %v4207 = vld [vmem:[#allocation8 + $0x4b0] sm:$0xff]
    %v4208 = vld [vmem:[#allocation8 + $0x4b8] sm:$0xff]
    %v4209 = vld [vmem:[#allocation8 + $0x4c0] sm:$0xff]
    %v4210 = vld [vmem:[#allocation8 + $0x4c8] sm:$0xff]
    %v4211 = vld [vmem:[#allocation8 + $0x4d0] sm:$0xff]
    %v4212 = vld [vmem:[#allocation8 + $0x4d8] sm:$0xff]
    %v4213 = vld [vmem:[#allocation8 + $0x4e0] sm:$0xff]
    %v4214 = vld [vmem:[#allocation8 + $0x4e8] sm:$0xff]
    %v4215 = vld [vmem:[#allocation8 + $0x4f0] sm:$0xff]
    %v4216 = vld [vmem:[#allocation8 + $0x4f8] sm:$0xff]
    %v4217 = vld [vmem:[#allocation8 + $0x500] sm:$0xff]
    %v4218 = vld [vmem:[#allocation8 + $0x508] sm:$0xff]
    %v4219 = vld [vmem:[#allocation8 + $0x510] sm:$0xff]
    %v4220 = vld [vmem:[#allocation8 + $0x518] sm:$0xff]
    %v4221 = vld [vmem:[#allocation8 + $0x520] sm:$0xff]
    %v4222 = vld [vmem:[#allocation8 + $0x528] sm:$0xff]
    %v4223 = vld [vmem:[#allocation8 + $0x530] sm:$0xff]
    %v4224 = vld [vmem:[#allocation8 + $0x538] sm:$0xff]
    %v4225 = vld [vmem:[#allocation8 + $0x540] sm:$0xff]
    %v4226 = vld [vmem:[#allocation8 + $0x548] sm:$0xff]
    %v4227 = vld [vmem:[#allocation8 + $0x550] sm:$0xff]
    %v4228 = vld [vmem:[#allocation8 + $0x558] sm:$0xff]
    %v4229 = vld [vmem:[#allocation8 + $0x560] sm:$0xff]
    %v4230 = vld [vmem:[#allocation8 + $0x568] sm:$0xff]
    %v4231 = vld [vmem:[#allocation8 + $0x570] sm:$0xff]
    %v4232 = vld [vmem:[#allocation8 + $0x578] sm:$0xff]
    %v4233 = vld [vmem:[#allocation8 + $0x580] sm:$0xff]
    %v4234 = vld [vmem:[#allocation8 + $0x588] sm:$0xff]
    %v4235 = vld [vmem:[#allocation8 + $0x590] sm:$0xff]
    %v4236 = vld [vmem:[#allocation8 + $0x598] sm:$0xff]
    %v4237 = vld [vmem:[#allocation8 + $0x5a0] sm:$0xff]
    %v4238 = vld [vmem:[#allocation8 + $0x5a8] sm:$0xff]
    %v4239 = vld [vmem:[#allocation8 + $0x5b0] sm:$0xff]
    %v4240 = vld [vmem:[#allocation8 + $0x5b8] sm:$0xff]
    %v4241 = vld [vmem:[#allocation8 + $0x5c0] sm:$0xff]
    %v4242 = vld [vmem:[#allocation8 + $0x5c8] sm:$0xff]
    %v4243 = vld [vmem:[#allocation8 + $0x5d0] sm:$0xff]
    %v4244 = vld [vmem:[#allocation8 + $0x5d8] sm:$0xff]
    %v4245 = vld [vmem:[#allocation8 + $0x5e0] sm:$0xff]
    %v4246 = vld [vmem:[#allocation8 + $0x5e8] sm:$0xff]
    %v4247 = vld [vmem:[#allocation8 + $0x5f0] sm:$0xff]
    %v4248 = vld [vmem:[#allocation8 + $0x5f8] sm:$0xff]
    %v4249 = vld [vmem:[#allocation8 + $0x600] sm:$0xff]
    %v4250 = vld [vmem:[#allocation8 + $0x608] sm:$0xff]
    %v4251 = vld [vmem:[#allocation8 + $0x610] sm:$0xff]
    %v4252 = vld [vmem:[#allocation8 + $0x618] sm:$0xff]
    %v4253 = vld [vmem:[#allocation8 + $0x620] sm:$0xff]
    %v4254 = vld [vmem:[#allocation8 + $0x628] sm:$0xff]
    %v4255 = vld [vmem:[#allocation8 + $0x630] sm:$0xff]
    %v4256 = vld [vmem:[#allocation8 + $0x638] sm:$0xff]
    %v4257 = vld [vmem:[#allocation8 + $0x640] sm:$0xff]
    %v4258 = vld [vmem:[#allocation8 + $0x648] sm:$0xff]
    %v4259 = vld [vmem:[#allocation8 + $0x650] sm:$0xff]
    %v4260 = vld [vmem:[#allocation8 + $0x658] sm:$0xff]
    %v4261 = vld [vmem:[#allocation8 + $0x660] sm:$0xff]
    %v4262 = vld [vmem:[#allocation8 + $0x668] sm:$0xff]
    %v4263 = vld [vmem:[#allocation8 + $0x670] sm:$0xff]
    %v4264 = vld [vmem:[#allocation8 + $0x678] sm:$0xff]
    %v4265 = vld [vmem:[#allocation8 + $0x680] sm:$0xff]
    %v4266 = vld [vmem:[#allocation8 + $0x688] sm:$0xff]
    %v4267 = vld [vmem:[#allocation8 + $0x690] sm:$0xff]
    %v4268 = vld [vmem:[#allocation8 + $0x698] sm:$0xff]
    %v4269 = vld [vmem:[#allocation8 + $0x6a0] sm:$0xff]
    %v4270 = vld [vmem:[#allocation8 + $0x6a8] sm:$0xff]
    %v4271 = vld [vmem:[#allocation8 + $0x6b0] sm:$0xff]
    %v4272 = vld [vmem:[#allocation8 + $0x6b8] sm:$0xff]
    %v4273 = vld [vmem:[#allocation8 + $0x6c0] sm:$0xff]
    %v4274 = vld [vmem:[#allocation8 + $0x6c8] sm:$0xff]
    %v4275 = vld [vmem:[#allocation8 + $0x6d0] sm:$0xff]
    %v4276 = vld [vmem:[#allocation8 + $0x6d8] sm:$0xff]
    %v4277 = vld [vmem:[#allocation8 + $0x6e0] sm:$0xff]
    %v4278 = vld [vmem:[#allocation8 + $0x6e8] sm:$0xff]
    %v4279 = vld [vmem:[#allocation8 + $0x6f0] sm:$0xff]
    %v4280 = vld [vmem:[#allocation8 + $0x6f8] sm:$0xff]
    %v4281 = vld [vmem:[#allocation8 + $0x700] sm:$0xff]
    %v4282 = vld [vmem:[#allocation8 + $0x708] sm:$0xff]
    %v4283 = vld [vmem:[#allocation8 + $0x710] sm:$0xff]
    %v4284 = vld [vmem:[#allocation8 + $0x718] sm:$0xff]
    %v4285 = vld [vmem:[#allocation8 + $0x720] sm:$0xff]
    %v4286 = vld [vmem:[#allocation8 + $0x728] sm:$0xff]
    %v4287 = vld [vmem:[#allocation8 + $0x730] sm:$0xff]
    %v4288 = vld [vmem:[#allocation8 + $0x738] sm:$0xff]
    %v4289 = vld [vmem:[#allocation8 + $0x740] sm:$0xff]
    %v4290 = vld [vmem:[#allocation8 + $0x748] sm:$0xff]
    %v4291 = vld [vmem:[#allocation8 + $0x750] sm:$0xff]
    %v4292 = vld [vmem:[#allocation8 + $0x758] sm:$0xff]
    %v4293 = vld [vmem:[#allocation8 + $0x760] sm:$0xff]
    %v4294 = vld [vmem:[#allocation8 + $0x768] sm:$0xff]
    %v4295 = vld [vmem:[#allocation8 + $0x770] sm:$0xff]
    %v4296 = vld [vmem:[#allocation8 + $0x778] sm:$0xff]
    %v4297 = vld [vmem:[#allocation8 + $0x780] sm:$0xff]
    %v4298 = vld [vmem:[#allocation8 + $0x788] sm:$0xff]
    %v4299 = vld [vmem:[#allocation8 + $0x790] sm:$0xff]
    %v4300 = vld [vmem:[#allocation8 + $0x798] sm:$0xff]
    %v4301 = vld [vmem:[#allocation8 + $0x7a0] sm:$0xff]
    %v4302 = vld [vmem:[#allocation8 + $0x7a8] sm:$0xff]
    %v4303 = vld [vmem:[#allocation8 + $0x7b0] sm:$0xff]
    %v4304 = vld [vmem:[#allocation8 + $0x7b8] sm:$0xff]
    %v4305 = vld [vmem:[#allocation8 + $0x7c0] sm:$0xff]
    %v4306 = vld [vmem:[#allocation8 + $0x7c8] sm:$0xff]
    %v4307 = vld [vmem:[#allocation8 + $0x7d0] sm:$0xff]
    %v4308 = vld [vmem:[#allocation8 + $0x7d8] sm:$0xff]
    %v4309 = vld [vmem:[#allocation8 + $0x7e0] sm:$0xff]
    %v4310 = vld [vmem:[#allocation8 + $0x7e8] sm:$0xff]
    %v4311 = vld [vmem:[#allocation8 + $0x7f0] sm:$0xff]
    %v4312 = vld [vmem:[#allocation8 + $0x7f8] sm:$0xff]
    %v4313 = vld [vmem:[#allocation10] sm:$0xf]
    %v4315 = vlaneseq
    %v4316 = vshrl.u32 %v4315, 7
    %v4317 = vsub.s32 0, %v4316
    %v4318 = vrot.slane %v4313, %v4317
    %v4319 = vlaneseq
    %v4320 = vshrl.u32 %v4319, 7
    %v4321 = vsub.s32 1, %v4320
    %v4322 = vrot.slane %v4313, %v4321
    %v4323 = vlaneseq
    %v4324 = vshrl.u32 %v4323, 7
    %v4325 = vsub.s32 2, %v4324
    %v4326 = vrot.slane %v4313, %v4325
    %v4327 = vlaneseq
    %v4328 = vshrl.u32 %v4327, 7
    %v4329 = vsub.s32 3, %v4328
    %v4330 = vrot.slane %v4313, %v4329
    %v4591 = vunpack.c.l.b16 %v4057
    %v4592 = vunpack.c.h.b16 %v4057
    %v4593 = vunpack.c.l.b16 %v4058
    %v4594 = vunpack.c.h.b16 %v4058
    %v4595 = vunpack.c.l.b16 %v4059
    %v4596 = vunpack.c.h.b16 %v4059
    %v4597 = vunpack.c.l.b16 %v4060
    %v4598 = vunpack.c.h.b16 %v4060
    %v4599 = vunpack.c.l.b16 %v4061
    %v4600 = vunpack.c.h.b16 %v4061
    %v4601 = vunpack.c.l.b16 %v4062
    %v4602 = vunpack.c.h.b16 %v4062
    %v4603 = vunpack.c.l.b16 %v4063
    %v4604 = vunpack.c.h.b16 %v4063
    %v4605 = vunpack.c.l.b16 %v4064
    %v4606 = vunpack.c.h.b16 %v4064
    %v4607 = vunpack.c.l.b16 %v4065
    %v4608 = vunpack.c.h.b16 %v4065
    %v4609 = vunpack.c.l.b16 %v4066
    %v4610 = vunpack.c.h.b16 %v4066
    %v4611 = vunpack.c.l.b16 %v4067
    %v4612 = vunpack.c.h.b16 %v4067
    %v4613 = vunpack.c.l.b16 %v4068
    %v4614 = vunpack.c.h.b16 %v4068
    %v4615 = vunpack.c.l.b16 %v4069
    %v4616 = vunpack.c.h.b16 %v4069
    %v4617 = vunpack.c.l.b16 %v4070
    %v4618 = vunpack.c.h.b16 %v4070
    %v4619 = vunpack.c.l.b16 %v4071
    %v4620 = vunpack.c.h.b16 %v4071
    %v4621 = vunpack.c.l.b16 %v4072
    %v4622 = vunpack.c.h.b16 %v4072
    %v4623 = vunpack.c.l.b16 %v4073
    %v4624 = vunpack.c.h.b16 %v4073
    %v4625 = vunpack.c.l.b16 %v4074
    %v4626 = vunpack.c.h.b16 %v4074
    %v4627 = vunpack.c.l.b16 %v4075
    %v4628 = vunpack.c.h.b16 %v4075
    %v4629 = vunpack.c.l.b16 %v4076
    %v4630 = vunpack.c.h.b16 %v4076
    %v4631 = vunpack.c.l.b16 %v4077
    %v4632 = vunpack.c.h.b16 %v4077
    %v4633 = vunpack.c.l.b16 %v4078
    %v4634 = vunpack.c.h.b16 %v4078
    %v4635 = vunpack.c.l.b16 %v4079
    %v4636 = vunpack.c.h.b16 %v4079
    %v4637 = vunpack.c.l.b16 %v4080
    %v4638 = vunpack.c.h.b16 %v4080
    %v4639 = vunpack.c.l.b16 %v4081
    %v4640 = vunpack.c.h.b16 %v4081
    %v4641 = vunpack.c.l.b16 %v4082
    %v4642 = vunpack.c.h.b16 %v4082
    %v4643 = vunpack.c.l.b16 %v4083
    %v4644 = vunpack.c.h.b16 %v4083
    %v4645 = vunpack.c.l.b16 %v4084
    %v4646 = vunpack.c.h.b16 %v4084
    %v4647 = vunpack.c.l.b16 %v4085
    %v4648 = vunpack.c.h.b16 %v4085
    %v4649 = vunpack.c.l.b16 %v4086
    %v4650 = vunpack.c.h.b16 %v4086
    %v4651 = vunpack.c.l.b16 %v4087
    %v4652 = vunpack.c.h.b16 %v4087
    %v4653 = vunpack.c.l.b16 %v4088
    %v4654 = vunpack.c.h.b16 %v4088
    %v4655 = vunpack.c.l.b16 %v4089
    %v4656 = vunpack.c.h.b16 %v4089
    %v4657 = vunpack.c.l.b16 %v4090
    %v4658 = vunpack.c.h.b16 %v4090
    %v4659 = vunpack.c.l.b16 %v4091
    %v4660 = vunpack.c.h.b16 %v4091
    %v4661 = vunpack.c.l.b16 %v4092
    %v4662 = vunpack.c.h.b16 %v4092
    %v4663 = vunpack.c.l.b16 %v4093
    %v4664 = vunpack.c.h.b16 %v4093
    %v4665 = vunpack.c.l.b16 %v4094
    %v4666 = vunpack.c.h.b16 %v4094
    %v4667 = vunpack.c.l.b16 %v4095
    %v4668 = vunpack.c.h.b16 %v4095
    %v4669 = vunpack.c.l.b16 %v4096
    %v4670 = vunpack.c.h.b16 %v4096
    %v4671 = vunpack.c.l.b16 %v4097
    %v4672 = vunpack.c.h.b16 %v4097
    %v4673 = vunpack.c.l.b16 %v4098
    %v4674 = vunpack.c.h.b16 %v4098
    %v4675 = vunpack.c.l.b16 %v4099
    %v4676 = vunpack.c.h.b16 %v4099
    %v4677 = vunpack.c.l.b16 %v4100
    %v4678 = vunpack.c.h.b16 %v4100
    %v4679 = vunpack.c.l.b16 %v4101
    %v4680 = vunpack.c.h.b16 %v4101
    %v4681 = vunpack.c.l.b16 %v4102
    %v4682 = vunpack.c.h.b16 %v4102
    %v4683 = vunpack.c.l.b16 %v4103
    %v4684 = vunpack.c.h.b16 %v4103
    %v4685 = vunpack.c.l.b16 %v4104
    %v4686 = vunpack.c.h.b16 %v4104
    %v4687 = vunpack.c.l.b16 %v4105
    %v4688 = vunpack.c.h.b16 %v4105
    %v4689 = vunpack.c.l.b16 %v4106
    %v4690 = vunpack.c.h.b16 %v4106
    %v4691 = vunpack.c.l.b16 %v4107
    %v4692 = vunpack.c.h.b16 %v4107
    %v4693 = vunpack.c.l.b16 %v4108
    %v4694 = vunpack.c.h.b16 %v4108
    %v4695 = vunpack.c.l.b16 %v4109
    %v4696 = vunpack.c.h.b16 %v4109
    %v4697 = vunpack.c.l.b16 %v4110
    %v4698 = vunpack.c.h.b16 %v4110
    %v4699 = vunpack.c.l.b16 %v4111
    %v4700 = vunpack.c.h.b16 %v4111
    %v4701 = vunpack.c.l.b16 %v4112
    %v4702 = vunpack.c.h.b16 %v4112
    %v4703 = vunpack.c.l.b16 %v4113
    %v4704 = vunpack.c.h.b16 %v4113
    %v4705 = vunpack.c.l.b16 %v4114
    %v4706 = vunpack.c.h.b16 %v4114
    %v4707 = vunpack.c.l.b16 %v4115
    %v4708 = vunpack.c.h.b16 %v4115
    %v4709 = vunpack.c.l.b16 %v4116
    %v4710 = vunpack.c.h.b16 %v4116
    %v4711 = vunpack.c.l.b16 %v4117
    %v4712 = vunpack.c.h.b16 %v4117
    %v4713 = vunpack.c.l.b16 %v4118
    %v4714 = vunpack.c.h.b16 %v4118
    %v4715 = vunpack.c.l.b16 %v4119
    %v4716 = vunpack.c.h.b16 %v4119
    %v4717 = vunpack.c.l.b16 %v4120
    %v4718 = vunpack.c.h.b16 %v4120
    %v4719 = vunpack.c.l.b16 %v4121
    %v4720 = vunpack.c.h.b16 %v4121
    %v4721 = vunpack.c.l.b16 %v4122
    %v4722 = vunpack.c.h.b16 %v4122
    %v4723 = vunpack.c.l.b16 %v4123
    %v4724 = vunpack.c.h.b16 %v4123
    %v4725 = vunpack.c.l.b16 %v4124
    %v4726 = vunpack.c.h.b16 %v4124
    %v4727 = vunpack.c.l.b16 %v4125
    %v4728 = vunpack.c.h.b16 %v4125
    %v4729 = vunpack.c.l.b16 %v4126
    %v4730 = vunpack.c.h.b16 %v4126
    %v4731 = vunpack.c.l.b16 %v4127
    %v4732 = vunpack.c.h.b16 %v4127
    %v4733 = vunpack.c.l.b16 %v4128
    %v4734 = vunpack.c.h.b16 %v4128
    %v4735 = vunpack.c.l.b16 %v4129
    %v4736 = vunpack.c.h.b16 %v4129
    %v4737 = vunpack.c.l.b16 %v4130
    %v4738 = vunpack.c.h.b16 %v4130
    %v4739 = vunpack.c.l.b16 %v4131
    %v4740 = vunpack.c.h.b16 %v4131
    %v4741 = vunpack.c.l.b16 %v4132
    %v4742 = vunpack.c.h.b16 %v4132
    %v4743 = vunpack.c.l.b16 %v4133
    %v4744 = vunpack.c.h.b16 %v4133
    %v4745 = vunpack.c.l.b16 %v4134
    %v4746 = vunpack.c.h.b16 %v4134
    %v4747 = vunpack.c.l.b16 %v4135
    %v4748 = vunpack.c.h.b16 %v4135
    %v4749 = vunpack.c.l.b16 %v4136
    %v4750 = vunpack.c.h.b16 %v4136
    %v4751 = vunpack.c.l.b16 %v4137
    %v4752 = vunpack.c.h.b16 %v4137
    %v4753 = vunpack.c.l.b16 %v4138
    %v4754 = vunpack.c.h.b16 %v4138
    %v4755 = vunpack.c.l.b16 %v4139
    %v4756 = vunpack.c.h.b16 %v4139
    %v4757 = vunpack.c.l.b16 %v4140
    %v4758 = vunpack.c.h.b16 %v4140
    %v4759 = vunpack.c.l.b16 %v4141
    %v4760 = vunpack.c.h.b16 %v4141
    %v4761 = vunpack.c.l.b16 %v4142
    %v4762 = vunpack.c.h.b16 %v4142
    %v4763 = vunpack.c.l.b16 %v4143
    %v4764 = vunpack.c.h.b16 %v4143
    %v4765 = vunpack.c.l.b16 %v4144
    %v4766 = vunpack.c.h.b16 %v4144
    %v4767 = vunpack.c.l.b16 %v4145
    %v4768 = vunpack.c.h.b16 %v4145
    %v4769 = vunpack.c.l.b16 %v4146
    %v4770 = vunpack.c.h.b16 %v4146
    %v4771 = vunpack.c.l.b16 %v4147
    %v4772 = vunpack.c.h.b16 %v4147
    %v4773 = vunpack.c.l.b16 %v4148
    %v4774 = vunpack.c.h.b16 %v4148
    %v4775 = vunpack.c.l.b16 %v4149
    %v4776 = vunpack.c.h.b16 %v4149
    %v4777 = vunpack.c.l.b16 %v4150
    %v4778 = vunpack.c.h.b16 %v4150
    %v4779 = vunpack.c.l.b16 %v4151
    %v4780 = vunpack.c.h.b16 %v4151
    %v4781 = vunpack.c.l.b16 %v4152
    %v4782 = vunpack.c.h.b16 %v4152
    %v4783 = vunpack.c.l.b16 %v4153
    %v4784 = vunpack.c.h.b16 %v4153
    %v4785 = vunpack.c.l.b16 %v4154
    %v4786 = vunpack.c.h.b16 %v4154
    %v4787 = vunpack.c.l.b16 %v4155
    %v4788 = vunpack.c.h.b16 %v4155
    %v4789 = vunpack.c.l.b16 %v4156
    %v4790 = vunpack.c.h.b16 %v4156
    %v4791 = vunpack.c.l.b16 %v4157
    %v4792 = vunpack.c.h.b16 %v4157
    %v4793 = vunpack.c.l.b16 %v4158
    %v4794 = vunpack.c.h.b16 %v4158
    %v4795 = vunpack.c.l.b16 %v4159
    %v4796 = vunpack.c.h.b16 %v4159
    %v4797 = vunpack.c.l.b16 %v4160
    %v4798 = vunpack.c.h.b16 %v4160
    %v4799 = vunpack.c.l.b16 %v4161
    %v4800 = vunpack.c.h.b16 %v4161
    %v4801 = vunpack.c.l.b16 %v4162
    %v4802 = vunpack.c.h.b16 %v4162
    %v4803 = vunpack.c.l.b16 %v4163
    %v4804 = vunpack.c.h.b16 %v4163
    %v4805 = vunpack.c.l.b16 %v4164
    %v4806 = vunpack.c.h.b16 %v4164
    %v4807 = vunpack.c.l.b16 %v4165
    %v4808 = vunpack.c.h.b16 %v4165
    %v4809 = vunpack.c.l.b16 %v4166
    %v4810 = vunpack.c.h.b16 %v4166
    %v4811 = vunpack.c.l.b16 %v4167
    %v4812 = vunpack.c.h.b16 %v4167
    %v4813 = vunpack.c.l.b16 %v4168
    %v4814 = vunpack.c.h.b16 %v4168
    %v4815 = vunpack.c.l.b16 %v4169
    %v4816 = vunpack.c.h.b16 %v4169
    %v4817 = vunpack.c.l.b16 %v4170
    %v4818 = vunpack.c.h.b16 %v4170
    %v4819 = vunpack.c.l.b16 %v4171
    %v4820 = vunpack.c.h.b16 %v4171
    %v4821 = vunpack.c.l.b16 %v4172
    %v4822 = vunpack.c.h.b16 %v4172
    %v4823 = vunpack.c.l.b16 %v4173
    %v4824 = vunpack.c.h.b16 %v4173
    %v4825 = vunpack.c.l.b16 %v4174
    %v4826 = vunpack.c.h.b16 %v4174
    %v4827 = vunpack.c.l.b16 %v4175
    %v4828 = vunpack.c.h.b16 %v4175
    %v4829 = vunpack.c.l.b16 %v4176
    %v4830 = vunpack.c.h.b16 %v4176
    %v4831 = vunpack.c.l.b16 %v4177
    %v4832 = vunpack.c.h.b16 %v4177
    %v4833 = vunpack.c.l.b16 %v4178
    %v4834 = vunpack.c.h.b16 %v4178
    %v4835 = vunpack.c.l.b16 %v4179
    %v4836 = vunpack.c.h.b16 %v4179
    %v4837 = vunpack.c.l.b16 %v4180
    %v4838 = vunpack.c.h.b16 %v4180
    %v4839 = vunpack.c.l.b16 %v4181
    %v4840 = vunpack.c.h.b16 %v4181
    %v4841 = vunpack.c.l.b16 %v4182
    %v4842 = vunpack.c.h.b16 %v4182
    %v4843 = vunpack.c.l.b16 %v4183
    %v4844 = vunpack.c.h.b16 %v4183
    %v4845 = vunpack.c.l.b16 %v4184
    %v4846 = vunpack.c.h.b16 %v4184
    %v4847 = vunpack.c.l.b16 %v4185
    %v4848 = vunpack.c.h.b16 %v4185
    %v4849 = vunpack.c.l.b16 %v4186
    %v4850 = vunpack.c.h.b16 %v4186
    %v4851 = vunpack.c.l.b16 %v4187
    %v4852 = vunpack.c.h.b16 %v4187
    %v4853 = vunpack.c.l.b16 %v4188
    %v4854 = vunpack.c.h.b16 %v4188
    %v4855 = vunpack.c.l.b16 %v4189
    %v4856 = vunpack.c.h.b16 %v4189
    %v4857 = vunpack.c.l.b16 %v4190
    %v4858 = vunpack.c.h.b16 %v4190
    %v4859 = vunpack.c.l.b16 %v4191
    %v4860 = vunpack.c.h.b16 %v4191
    %v4861 = vunpack.c.l.b16 %v4192
    %v4862 = vunpack.c.h.b16 %v4192
    %v4863 = vunpack.c.l.b16 %v4193
    %v4864 = vunpack.c.h.b16 %v4193
    %v4865 = vunpack.c.l.b16 %v4194
    %v4866 = vunpack.c.h.b16 %v4194
    %v4867 = vunpack.c.l.b16 %v4195
    %v4868 = vunpack.c.h.b16 %v4195
    %v4869 = vunpack.c.l.b16 %v4196
    %v4870 = vunpack.c.h.b16 %v4196
    %v4871 = vunpack.c.l.b16 %v4197
    %v4872 = vunpack.c.h.b16 %v4197
    %v4873 = vunpack.c.l.b16 %v4198
    %v4874 = vunpack.c.h.b16 %v4198
    %v4875 = vunpack.c.l.b16 %v4199
    %v4876 = vunpack.c.h.b16 %v4199
    %v4877 = vunpack.c.l.b16 %v4200
    %v4878 = vunpack.c.h.b16 %v4200
    %v4879 = vunpack.c.l.b16 %v4201
    %v4880 = vunpack.c.h.b16 %v4201
    %v4881 = vunpack.c.l.b16 %v4202
    %v4882 = vunpack.c.h.b16 %v4202
    %v4883 = vunpack.c.l.b16 %v4203
    %v4884 = vunpack.c.h.b16 %v4203
    %v4885 = vunpack.c.l.b16 %v4204
    %v4886 = vunpack.c.h.b16 %v4204
    %v4887 = vunpack.c.l.b16 %v4205
    %v4888 = vunpack.c.h.b16 %v4205
    %v4889 = vunpack.c.l.b16 %v4206
    %v4890 = vunpack.c.h.b16 %v4206
    %v4891 = vunpack.c.l.b16 %v4207
    %v4892 = vunpack.c.h.b16 %v4207
    %v4893 = vunpack.c.l.b16 %v4208
    %v4894 = vunpack.c.h.b16 %v4208
    %v4895 = vunpack.c.l.b16 %v4209
    %v4896 = vunpack.c.h.b16 %v4209
    %v4897 = vunpack.c.l.b16 %v4210
    %v4898 = vunpack.c.h.b16 %v4210
    %v4899 = vunpack.c.l.b16 %v4211
    %v4900 = vunpack.c.h.b16 %v4211
    %v4901 = vunpack.c.l.b16 %v4212
    %v4902 = vunpack.c.h.b16 %v4212
    %v4903 = vunpack.c.l.b16 %v4213
    %v4904 = vunpack.c.h.b16 %v4213
    %v4905 = vunpack.c.l.b16 %v4214
    %v4906 = vunpack.c.h.b16 %v4214
    %v4907 = vunpack.c.l.b16 %v4215
    %v4908 = vunpack.c.h.b16 %v4215
    %v4909 = vunpack.c.l.b16 %v4216
    %v4910 = vunpack.c.h.b16 %v4216
    %v4911 = vunpack.c.l.b16 %v4217
    %v4912 = vunpack.c.h.b16 %v4217
    %v4913 = vunpack.c.l.b16 %v4218
    %v4914 = vunpack.c.h.b16 %v4218
    %v4915 = vunpack.c.l.b16 %v4219
    %v4916 = vunpack.c.h.b16 %v4219
    %v4917 = vunpack.c.l.b16 %v4220
    %v4918 = vunpack.c.h.b16 %v4220
    %v4919 = vunpack.c.l.b16 %v4221
    %v4920 = vunpack.c.h.b16 %v4221
    %v4921 = vunpack.c.l.b16 %v4222
    %v4922 = vunpack.c.h.b16 %v4222
    %v4923 = vunpack.c.l.b16 %v4223
    %v4924 = vunpack.c.h.b16 %v4223
    %v4925 = vunpack.c.l.b16 %v4224
    %v4926 = vunpack.c.h.b16 %v4224
    %v4927 = vunpack.c.l.b16 %v4225
    %v4928 = vunpack.c.h.b16 %v4225
    %v4929 = vunpack.c.l.b16 %v4226
    %v4930 = vunpack.c.h.b16 %v4226
    %v4931 = vunpack.c.l.b16 %v4227
    %v4932 = vunpack.c.h.b16 %v4227
    %v4933 = vunpack.c.l.b16 %v4228
    %v4934 = vunpack.c.h.b16 %v4228
    %v4935 = vunpack.c.l.b16 %v4229
    %v4936 = vunpack.c.h.b16 %v4229
    %v4937 = vunpack.c.l.b16 %v4230
    %v4938 = vunpack.c.h.b16 %v4230
    %v4939 = vunpack.c.l.b16 %v4231
    %v4940 = vunpack.c.h.b16 %v4231
    %v4941 = vunpack.c.l.b16 %v4232
    %v4942 = vunpack.c.h.b16 %v4232
    %v4943 = vunpack.c.l.b16 %v4233
    %v4944 = vunpack.c.h.b16 %v4233
    %v4945 = vunpack.c.l.b16 %v4234
    %v4946 = vunpack.c.h.b16 %v4234
    %v4947 = vunpack.c.l.b16 %v4235
    %v4948 = vunpack.c.h.b16 %v4235
    %v4949 = vunpack.c.l.b16 %v4236
    %v4950 = vunpack.c.h.b16 %v4236
    %v4951 = vunpack.c.l.b16 %v4237
    %v4952 = vunpack.c.h.b16 %v4237
    %v4953 = vunpack.c.l.b16 %v4238
    %v4954 = vunpack.c.h.b16 %v4238
    %v4955 = vunpack.c.l.b16 %v4239
    %v4956 = vunpack.c.h.b16 %v4239
    %v4957 = vunpack.c.l.b16 %v4240
    %v4958 = vunpack.c.h.b16 %v4240
    %v4959 = vunpack.c.l.b16 %v4241
    %v4960 = vunpack.c.h.b16 %v4241
    %v4961 = vunpack.c.l.b16 %v4242
    %v4962 = vunpack.c.h.b16 %v4242
    %v4963 = vunpack.c.l.b16 %v4243
    %v4964 = vunpack.c.h.b16 %v4243
    %v4965 = vunpack.c.l.b16 %v4244
    %v4966 = vunpack.c.h.b16 %v4244
    %v4967 = vunpack.c.l.b16 %v4245
    %v4968 = vunpack.c.h.b16 %v4245
    %v4969 = vunpack.c.l.b16 %v4246
    %v4970 = vunpack.c.h.b16 %v4246
    %v4971 = vunpack.c.l.b16 %v4247
    %v4972 = vunpack.c.h.b16 %v4247
    %v4973 = vunpack.c.l.b16 %v4248
    %v4974 = vunpack.c.h.b16 %v4248
    %v4975 = vunpack.c.l.b16 %v4249
    %v4976 = vunpack.c.h.b16 %v4249
    %v4977 = vunpack.c.l.b16 %v4250
    %v4978 = vunpack.c.h.b16 %v4250
    %v4979 = vunpack.c.l.b16 %v4251
    %v4980 = vunpack.c.h.b16 %v4251
    %v4981 = vunpack.c.l.b16 %v4252
    %v4982 = vunpack.c.h.b16 %v4252
    %v4983 = vunpack.c.l.b16 %v4253
    %v4984 = vunpack.c.h.b16 %v4253
    %v4985 = vunpack.c.l.b16 %v4254
    %v4986 = vunpack.c.h.b16 %v4254
    %v4987 = vunpack.c.l.b16 %v4255
    %v4988 = vunpack.c.h.b16 %v4255
    %v4989 = vunpack.c.l.b16 %v4256
    %v4990 = vunpack.c.h.b16 %v4256
    %v4991 = vunpack.c.l.b16 %v4257
    %v4992 = vunpack.c.h.b16 %v4257
    %v4993 = vunpack.c.l.b16 %v4258
    %v4994 = vunpack.c.h.b16 %v4258
    %v4995 = vunpack.c.l.b16 %v4259
    %v4996 = vunpack.c.h.b16 %v4259
    %v4997 = vunpack.c.l.b16 %v4260
    %v4998 = vunpack.c.h.b16 %v4260
    %v4999 = vunpack.c.l.b16 %v4261
    %v5000 = vunpack.c.h.b16 %v4261
    %v5001 = vunpack.c.l.b16 %v4262
    %v5002 = vunpack.c.h.b16 %v4262
    %v5003 = vunpack.c.l.b16 %v4263
    %v5004 = vunpack.c.h.b16 %v4263
    %v5005 = vunpack.c.l.b16 %v4264
    %v5006 = vunpack.c.h.b16 %v4264
    %v5007 = vunpack.c.l.b16 %v4265
    %v5008 = vunpack.c.h.b16 %v4265
    %v5009 = vunpack.c.l.b16 %v4266
    %v5010 = vunpack.c.h.b16 %v4266
    %v5011 = vunpack.c.l.b16 %v4267
    %v5012 = vunpack.c.h.b16 %v4267
    %v5013 = vunpack.c.l.b16 %v4268
    %v5014 = vunpack.c.h.b16 %v4268
    %v5015 = vunpack.c.l.b16 %v4269
    %v5016 = vunpack.c.h.b16 %v4269
    %v5017 = vunpack.c.l.b16 %v4270
    %v5018 = vunpack.c.h.b16 %v4270
    %v5019 = vunpack.c.l.b16 %v4271
    %v5020 = vunpack.c.h.b16 %v4271
    %v5021 = vunpack.c.l.b16 %v4272
    %v5022 = vunpack.c.h.b16 %v4272
    %v5023 = vunpack.c.l.b16 %v4273
    %v5024 = vunpack.c.h.b16 %v4273
    %v5025 = vunpack.c.l.b16 %v4274
    %v5026 = vunpack.c.h.b16 %v4274
    %v5027 = vunpack.c.l.b16 %v4275
    %v5028 = vunpack.c.h.b16 %v4275
    %v5029 = vunpack.c.l.b16 %v4276
    %v5030 = vunpack.c.h.b16 %v4276
    %v5031 = vunpack.c.l.b16 %v4277
    %v5032 = vunpack.c.h.b16 %v4277
    %v5033 = vunpack.c.l.b16 %v4278
    %v5034 = vunpack.c.h.b16 %v4278
    %v5035 = vunpack.c.l.b16 %v4279
    %v5036 = vunpack.c.h.b16 %v4279
    %v5037 = vunpack.c.l.b16 %v4280
    %v5038 = vunpack.c.h.b16 %v4280
    %v5039 = vunpack.c.l.b16 %v4281
    %v5040 = vunpack.c.h.b16 %v4281
    %v5041 = vunpack.c.l.b16 %v4282
    %v5042 = vunpack.c.h.b16 %v4282
    %v5043 = vunpack.c.l.b16 %v4283
    %v5044 = vunpack.c.h.b16 %v4283
    %v5045 = vunpack.c.l.b16 %v4284
    %v5046 = vunpack.c.h.b16 %v4284
    %v5047 = vunpack.c.l.b16 %v4285
    %v5048 = vunpack.c.h.b16 %v4285
    %v5049 = vunpack.c.l.b16 %v4286
    %v5050 = vunpack.c.h.b16 %v4286
    %v5051 = vunpack.c.l.b16 %v4287
    %v5052 = vunpack.c.h.b16 %v4287
    %v5053 = vunpack.c.l.b16 %v4288
    %v5054 = vunpack.c.h.b16 %v4288
    %v5055 = vunpack.c.l.b16 %v4289
    %v5056 = vunpack.c.h.b16 %v4289
    %v5057 = vunpack.c.l.b16 %v4290
    %v5058 = vunpack.c.h.b16 %v4290
    %v5059 = vunpack.c.l.b16 %v4291
    %v5060 = vunpack.c.h.b16 %v4291
    %v5061 = vunpack.c.l.b16 %v4292
    %v5062 = vunpack.c.h.b16 %v4292
    %v5063 = vunpack.c.l.b16 %v4293
    %v5064 = vunpack.c.h.b16 %v4293
    %v5065 = vunpack.c.l.b16 %v4294
    %v5066 = vunpack.c.h.b16 %v4294
    %v5067 = vunpack.c.l.b16 %v4295
    %v5068 = vunpack.c.h.b16 %v4295
    %v5069 = vunpack.c.l.b16 %v4296
    %v5070 = vunpack.c.h.b16 %v4296
    %v5071 = vunpack.c.l.b16 %v4297
    %v5072 = vunpack.c.h.b16 %v4297
    %v5073 = vunpack.c.l.b16 %v4298
    %v5074 = vunpack.c.h.b16 %v4298
    %v5075 = vunpack.c.l.b16 %v4299
    %v5076 = vunpack.c.h.b16 %v4299
    %v5077 = vunpack.c.l.b16 %v4300
    %v5078 = vunpack.c.h.b16 %v4300
    %v5079 = vunpack.c.l.b16 %v4301
    %v5080 = vunpack.c.h.b16 %v4301
    %v5081 = vunpack.c.l.b16 %v4302
    %v5082 = vunpack.c.h.b16 %v4302
    %v5083 = vunpack.c.l.b16 %v4303
    %v5084 = vunpack.c.h.b16 %v4303
    %v5085 = vunpack.c.l.b16 %v4304
    %v5086 = vunpack.c.h.b16 %v4304
    %v5087 = vunpack.c.l.b16 %v4305
    %v5088 = vunpack.c.h.b16 %v4305
    %v5089 = vunpack.c.l.b16 %v4306
    %v5090 = vunpack.c.h.b16 %v4306
    %v5091 = vunpack.c.l.b16 %v4307
    %v5092 = vunpack.c.h.b16 %v4307
    %v5093 = vunpack.c.l.b16 %v4308
    %v5094 = vunpack.c.h.b16 %v4308
    %v5095 = vunpack.c.l.b16 %v4309
    %v5096 = vunpack.c.h.b16 %v4309
    %v5097 = vunpack.c.l.b16 %v4310
    %v5098 = vunpack.c.h.b16 %v4310
    %v5099 = vunpack.c.l.b16 %v4311
    %v5100 = vunpack.c.h.b16 %v4311
    %v5101 = vunpack.c.l.b16 %v4312
    %v5102 = vunpack.c.h.b16 %v4312
    %v5103 = vpack.c.b16 %v4595, %v4591
    %v5104 = vpack.c.b16 %v4596, %v4592
    %v5105 = vpack.c.b16 %v4597, %v4593
    %v5106 = vpack.c.b16 %v4598, %v4594
    %v5107 = vpack.c.b16 %v4603, %v4599
    %v5108 = vpack.c.b16 %v4604, %v4600
    %v5109 = vpack.c.b16 %v4605, %v4601
    %v5110 = vpack.c.b16 %v4606, %v4602
    %v5111 = vpack.c.b16 %v4611, %v4607
    %v5112 = vpack.c.b16 %v4612, %v4608
    %v5113 = vpack.c.b16 %v4613, %v4609
    %v5114 = vpack.c.b16 %v4614, %v4610
    %v5115 = vpack.c.b16 %v4619, %v4615
    %v5116 = vpack.c.b16 %v4620, %v4616
    %v5117 = vpack.c.b16 %v4621, %v4617
    %v5118 = vpack.c.b16 %v4622, %v4618
    %v5119 = vpack.c.b16 %v4627, %v4623
    %v5120 = vpack.c.b16 %v4628, %v4624
    %v5121 = vpack.c.b16 %v4629, %v4625
    %v5122 = vpack.c.b16 %v4630, %v4626
    %v5123 = vpack.c.b16 %v4635, %v4631
    %v5124 = vpack.c.b16 %v4636, %v4632
    %v5125 = vpack.c.b16 %v4637, %v4633
    %v5126 = vpack.c.b16 %v4638, %v4634
    %v5127 = vpack.c.b16 %v4643, %v4639
    %v5128 = vpack.c.b16 %v4644, %v4640
    %v5129 = vpack.c.b16 %v4645, %v4641
    %v5130 = vpack.c.b16 %v4646, %v4642
    %v5131 = vpack.c.b16 %v4651, %v4647
    %v5132 = vpack.c.b16 %v4652, %v4648
    %v5133 = vpack.c.b16 %v4653, %v4649
    %v5134 = vpack.c.b16 %v4654, %v4650
    %v5135 = vpack.c.b16 %v4659, %v4655
    %v5136 = vpack.c.b16 %v4660, %v4656
    %v5137 = vpack.c.b16 %v4661, %v4657
    %v5138 = vpack.c.b16 %v4662, %v4658
    %v5139 = vpack.c.b16 %v4667, %v4663
    %v5140 = vpack.c.b16 %v4668, %v4664
    %v5141 = vpack.c.b16 %v4669, %v4665
    %v5142 = vpack.c.b16 %v4670, %v4666
    %v5143 = vpack.c.b16 %v4675, %v4671
    %v5144 = vpack.c.b16 %v4676, %v4672
    %v5145 = vpack.c.b16 %v4677, %v4673
    %v5146 = vpack.c.b16 %v4678, %v4674
    %v5147 = vpack.c.b16 %v4683, %v4679
    %v5148 = vpack.c.b16 %v4684, %v4680
    %v5149 = vpack.c.b16 %v4685, %v4681
    %v5150 = vpack.c.b16 %v4686, %v4682
    %v5151 = vpack.c.b16 %v4691, %v4687
    %v5152 = vpack.c.b16 %v4692, %v4688
    %v5153 = vpack.c.b16 %v4693, %v4689
    %v5154 = vpack.c.b16 %v4694, %v4690
    %v5155 = vpack.c.b16 %v4699, %v4695
    %v5156 = vpack.c.b16 %v4700, %v4696
    %v5157 = vpack.c.b16 %v4701, %v4697
    %v5158 = vpack.c.b16 %v4702, %v4698
    %v5159 = vpack.c.b16 %v4707, %v4703
    %v5160 = vpack.c.b16 %v4708, %v4704
    %v5161 = vpack.c.b16 %v4709, %v4705
    %v5162 = vpack.c.b16 %v4710, %v4706
    %v5163 = vpack.c.b16 %v4715, %v4711
    %v5164 = vpack.c.b16 %v4716, %v4712
    %v5165 = vpack.c.b16 %v4717, %v4713
    %v5166 = vpack.c.b16 %v4718, %v4714
    %v5167 = vpack.c.b16 %v4723, %v4719
    %v5168 = vpack.c.b16 %v4724, %v4720
    %v5169 = vpack.c.b16 %v4725, %v4721
    %v5170 = vpack.c.b16 %v4726, %v4722
    %v5171 = vpack.c.b16 %v4731, %v4727
    %v5172 = vpack.c.b16 %v4732, %v4728
    %v5173 = vpack.c.b16 %v4733, %v4729
    %v5174 = vpack.c.b16 %v4734, %v4730
    %v5175 = vpack.c.b16 %v4739, %v4735
    %v5176 = vpack.c.b16 %v4740, %v4736
    %v5177 = vpack.c.b16 %v4741, %v4737
    %v5178 = vpack.c.b16 %v4742, %v4738
    %v5179 = vpack.c.b16 %v4747, %v4743
    %v5180 = vpack.c.b16 %v4748, %v4744
    %v5181 = vpack.c.b16 %v4749, %v4745
    %v5182 = vpack.c.b16 %v4750, %v4746
    %v5183 = vpack.c.b16 %v4755, %v4751
    %v5184 = vpack.c.b16 %v4756, %v4752
    %v5185 = vpack.c.b16 %v4757, %v4753
    %v5186 = vpack.c.b16 %v4758, %v4754
    %v5187 = vpack.c.b16 %v4763, %v4759
    %v5188 = vpack.c.b16 %v4764, %v4760
    %v5189 = vpack.c.b16 %v4765, %v4761
    %v5190 = vpack.c.b16 %v4766, %v4762
    %v5191 = vpack.c.b16 %v4771, %v4767
    %v5192 = vpack.c.b16 %v4772, %v4768
    %v5193 = vpack.c.b16 %v4773, %v4769
    %v5194 = vpack.c.b16 %v4774, %v4770
    %v5195 = vpack.c.b16 %v4779, %v4775
    %v5196 = vpack.c.b16 %v4780, %v4776
    %v5197 = vpack.c.b16 %v4781, %v4777
    %v5198 = vpack.c.b16 %v4782, %v4778
    %v5199 = vpack.c.b16 %v4787, %v4783
    %v5200 = vpack.c.b16 %v4788, %v4784
    %v5201 = vpack.c.b16 %v4789, %v4785
    %v5202 = vpack.c.b16 %v4790, %v4786
    %v5203 = vpack.c.b16 %v4795, %v4791
    %v5204 = vpack.c.b16 %v4796, %v4792
    %v5205 = vpack.c.b16 %v4797, %v4793
    %v5206 = vpack.c.b16 %v4798, %v4794
    %v5207 = vpack.c.b16 %v4803, %v4799
    %v5208 = vpack.c.b16 %v4804, %v4800
    %v5209 = vpack.c.b16 %v4805, %v4801
    %v5210 = vpack.c.b16 %v4806, %v4802
    %v5211 = vpack.c.b16 %v4811, %v4807
    %v5212 = vpack.c.b16 %v4812, %v4808
    %v5213 = vpack.c.b16 %v4813, %v4809
    %v5214 = vpack.c.b16 %v4814, %v4810
    %v5215 = vpack.c.b16 %v4819, %v4815
    %v5216 = vpack.c.b16 %v4820, %v4816
    %v5217 = vpack.c.b16 %v4821, %v4817
    %v5218 = vpack.c.b16 %v4822, %v4818
    %v5219 = vpack.c.b16 %v4827, %v4823
    %v5220 = vpack.c.b16 %v4828, %v4824
    %v5221 = vpack.c.b16 %v4829, %v4825
    %v5222 = vpack.c.b16 %v4830, %v4826
    %v5223 = vpack.c.b16 %v4835, %v4831
    %v5224 = vpack.c.b16 %v4836, %v4832
    %v5225 = vpack.c.b16 %v4837, %v4833
    %v5226 = vpack.c.b16 %v4838, %v4834
    %v5227 = vpack.c.b16 %v4843, %v4839
    %v5228 = vpack.c.b16 %v4844, %v4840
    %v5229 = vpack.c.b16 %v4845, %v4841
    %v5230 = vpack.c.b16 %v4846, %v4842
    %v5231 = vpack.c.b16 %v4851, %v4847
    %v5232 = vpack.c.b16 %v4852, %v4848
    %v5233 = vpack.c.b16 %v4853, %v4849
    %v5234 = vpack.c.b16 %v4854, %v4850
    %v5235 = vpack.c.b16 %v4859, %v4855
    %v5236 = vpack.c.b16 %v4860, %v4856
    %v5237 = vpack.c.b16 %v4861, %v4857
    %v5238 = vpack.c.b16 %v4862, %v4858
    %v5239 = vpack.c.b16 %v4867, %v4863
    %v5240 = vpack.c.b16 %v4868, %v4864
    %v5241 = vpack.c.b16 %v4869, %v4865
    %v5242 = vpack.c.b16 %v4870, %v4866
    %v5243 = vpack.c.b16 %v4875, %v4871
    %v5244 = vpack.c.b16 %v4876, %v4872
    %v5245 = vpack.c.b16 %v4877, %v4873
    %v5246 = vpack.c.b16 %v4878, %v4874
    %v5247 = vpack.c.b16 %v4883, %v4879
    %v5248 = vpack.c.b16 %v4884, %v4880
    %v5249 = vpack.c.b16 %v4885, %v4881
    %v5250 = vpack.c.b16 %v4886, %v4882
    %v5251 = vpack.c.b16 %v4891, %v4887
    %v5252 = vpack.c.b16 %v4892, %v4888
    %v5253 = vpack.c.b16 %v4893, %v4889
    %v5254 = vpack.c.b16 %v4894, %v4890
    %v5255 = vpack.c.b16 %v4899, %v4895
    %v5256 = vpack.c.b16 %v4900, %v4896
    %v5257 = vpack.c.b16 %v4901, %v4897
    %v5258 = vpack.c.b16 %v4902, %v4898
    %v5259 = vpack.c.b16 %v4907, %v4903
    %v5260 = vpack.c.b16 %v4908, %v4904
    %v5261 = vpack.c.b16 %v4909, %v4905
    %v5262 = vpack.c.b16 %v4910, %v4906
    %v5263 = vpack.c.b16 %v4915, %v4911
    %v5264 = vpack.c.b16 %v4916, %v4912
    %v5265 = vpack.c.b16 %v4917, %v4913
    %v5266 = vpack.c.b16 %v4918, %v4914
    %v5267 = vpack.c.b16 %v4923, %v4919
    %v5268 = vpack.c.b16 %v4924, %v4920
    %v5269 = vpack.c.b16 %v4925, %v4921
    %v5270 = vpack.c.b16 %v4926, %v4922
    %v5271 = vpack.c.b16 %v4931, %v4927
    %v5272 = vpack.c.b16 %v4932, %v4928
    %v5273 = vpack.c.b16 %v4933, %v4929
    %v5274 = vpack.c.b16 %v4934, %v4930
    %v5275 = vpack.c.b16 %v4939, %v4935
    %v5276 = vpack.c.b16 %v4940, %v4936
    %v5277 = vpack.c.b16 %v4941, %v4937
    %v5278 = vpack.c.b16 %v4942, %v4938
    %v5279 = vpack.c.b16 %v4947, %v4943
    %v5280 = vpack.c.b16 %v4948, %v4944
    %v5281 = vpack.c.b16 %v4949, %v4945
    %v5282 = vpack.c.b16 %v4950, %v4946
    %v5283 = vpack.c.b16 %v4955, %v4951
    %v5284 = vpack.c.b16 %v4956, %v4952
    %v5285 = vpack.c.b16 %v4957, %v4953
    %v5286 = vpack.c.b16 %v4958, %v4954
    %v5287 = vpack.c.b16 %v4963, %v4959
    %v5288 = vpack.c.b16 %v4964, %v4960
    %v5289 = vpack.c.b16 %v4965, %v4961
    %v5290 = vpack.c.b16 %v4966, %v4962
    %v5291 = vpack.c.b16 %v4971, %v4967
    %v5292 = vpack.c.b16 %v4972, %v4968
    %v5293 = vpack.c.b16 %v4973, %v4969
    %v5294 = vpack.c.b16 %v4974, %v4970
    %v5295 = vpack.c.b16 %v4979, %v4975
    %v5296 = vpack.c.b16 %v4980, %v4976
    %v5297 = vpack.c.b16 %v4981, %v4977
    %v5298 = vpack.c.b16 %v4982, %v4978
    %v5299 = vpack.c.b16 %v4987, %v4983
    %v5300 = vpack.c.b16 %v4988, %v4984
    %v5301 = vpack.c.b16 %v4989, %v4985
    %v5302 = vpack.c.b16 %v4990, %v4986
    %v5303 = vpack.c.b16 %v4995, %v4991
    %v5304 = vpack.c.b16 %v4996, %v4992
    %v5305 = vpack.c.b16 %v4997, %v4993
    %v5306 = vpack.c.b16 %v4998, %v4994
    %v5307 = vpack.c.b16 %v5003, %v4999
    %v5308 = vpack.c.b16 %v5004, %v5000
    %v5309 = vpack.c.b16 %v5005, %v5001
    %v5310 = vpack.c.b16 %v5006, %v5002
    %v5311 = vpack.c.b16 %v5011, %v5007
    %v5312 = vpack.c.b16 %v5012, %v5008
    %v5313 = vpack.c.b16 %v5013, %v5009
    %v5314 = vpack.c.b16 %v5014, %v5010
    %v5315 = vpack.c.b16 %v5019, %v5015
    %v5316 = vpack.c.b16 %v5020, %v5016
    %v5317 = vpack.c.b16 %v5021, %v5017
    %v5318 = vpack.c.b16 %v5022, %v5018
    %v5319 = vpack.c.b16 %v5027, %v5023
    %v5320 = vpack.c.b16 %v5028, %v5024
    %v5321 = vpack.c.b16 %v5029, %v5025
    %v5322 = vpack.c.b16 %v5030, %v5026
    %v5323 = vpack.c.b16 %v5035, %v5031
    %v5324 = vpack.c.b16 %v5036, %v5032
    %v5325 = vpack.c.b16 %v5037, %v5033
    %v5326 = vpack.c.b16 %v5038, %v5034
    %v5327 = vpack.c.b16 %v5043, %v5039
    %v5328 = vpack.c.b16 %v5044, %v5040
    %v5329 = vpack.c.b16 %v5045, %v5041
    %v5330 = vpack.c.b16 %v5046, %v5042
    %v5331 = vpack.c.b16 %v5051, %v5047
    %v5332 = vpack.c.b16 %v5052, %v5048
    %v5333 = vpack.c.b16 %v5053, %v5049
    %v5334 = vpack.c.b16 %v5054, %v5050
    %v5335 = vpack.c.b16 %v5059, %v5055
    %v5336 = vpack.c.b16 %v5060, %v5056
    %v5337 = vpack.c.b16 %v5061, %v5057
    %v5338 = vpack.c.b16 %v5062, %v5058
    %v5339 = vpack.c.b16 %v5067, %v5063
    %v5340 = vpack.c.b16 %v5068, %v5064
    %v5341 = vpack.c.b16 %v5069, %v5065
    %v5342 = vpack.c.b16 %v5070, %v5066
    %v5343 = vpack.c.b16 %v5075, %v5071
    %v5344 = vpack.c.b16 %v5076, %v5072
    %v5345 = vpack.c.b16 %v5077, %v5073
    %v5346 = vpack.c.b16 %v5078, %v5074
    %v5347 = vpack.c.b16 %v5083, %v5079
    %v5348 = vpack.c.b16 %v5084, %v5080
    %v5349 = vpack.c.b16 %v5085, %v5081
    %v5350 = vpack.c.b16 %v5086, %v5082
    %v5351 = vpack.c.b16 %v5091, %v5087
    %v5352 = vpack.c.b16 %v5092, %v5088
    %v5353 = vpack.c.b16 %v5093, %v5089
    %v5354 = vpack.c.b16 %v5094, %v5090
    %v5355 = vpack.c.b16 %v5099, %v5095
    %v5356 = vpack.c.b16 %v5100, %v5096
    %v5357 = vpack.c.b16 %v5101, %v5097
    %v5358 = vpack.c.b16 %v5102, %v5098
    %5615 = vmatprep.subr.bf16.mxu0 %v5132
    %5616 = vmatpush1.bf16.msra.mxu0 %v5131
    %5617 = vmatprep.subr.bf16.mxu0 %v5128
    %5618 = vmatpush1.bf16.msra.mxu0 %v5127
    %5619 = vmatprep.subr.bf16.mxu0 %v5124
    %5620 = vmatpush1.bf16.msra.mxu0 %v5123
    %5621 = vmatprep.subr.bf16.mxu0 %v5120
    %5622 = vmatpush1.bf16.msra.mxu0 %v5119
    %5623 = vmatprep.subr.bf16.mxu0 %v5116
    %5624 = vmatpush1.bf16.msra.mxu0 %v5115
    %5625 = vmatprep.subr.bf16.mxu0 %v5112
    %5626 = vmatpush1.bf16.msra.mxu0 %v5111
    %5627 = vmatprep.subr.bf16.mxu0 %v5108
    %5628 = vmatpush1.bf16.msra.mxu0 %v5107
    %5629 = vmatprep.subr.bf16.mxu0 %v5104
    %5630 = vmatpush1.bf16.msra.mxu0 %v5103
    %5631 = vmatprep.subr.bf16.mxu0 %v5164
    %5632 = vmatpush2.bf16.msra.mxu0 %v5163
    %5633 = vmatprep.subr.bf16.mxu0 %v5160
    %5634 = vmatpush2.bf16.msra.mxu0 %v5159
    %5635 = vmatprep.subr.bf16.mxu0 %v5156
    %5636 = vmatpush2.bf16.msra.mxu0 %v5155
    %5637 = vmatprep.subr.bf16.mxu0 %v5152
    %5638 = vmatpush2.bf16.msra.mxu0 %v5151
    %5639 = vmatprep.subr.bf16.mxu0 %v5148
    %5640 = vmatpush2.bf16.msra.mxu0 %v5147
    %5641 = vmatprep.subr.bf16.mxu0 %v5144
    %5642 = vmatpush2.bf16.msra.mxu0 %v5143
    %5643 = vmatprep.subr.bf16.mxu0 %v5140
    %5644 = vmatpush2.bf16.msra.mxu0 %v5139
    %5645 = vmatprep.subr.bf16.mxu0 %v5136
    %5646 = vmatpush2.bf16.msra.mxu0 %v5135
    %5647 = vmatprep.mubr.bf16.mxu0 %v4050
    %5648 = vmatmul.mubr.bf16.gmra.mxu0 %v4049
    %v5649 = vpop.f32.mrf.mxu0
    %v5650 = vadd.f32 %v4318, %v5649
    %v5651 = vpop.f32.mrf.mxu0
    %v5652 = vadd.f32 %v4322, %v5651
    %v5653 = vpop.f32.mrf.mxu0
    %v5654 = vpop.f32.mrf.mxu0
    %5655 = vdwg.mxu0
    %5656 = vmatprep.subr.bf16.mxu0 %v5196
    %5657 = vmatpush1.bf16.msra.mxu0 %v5195
    %5658 = vmatprep.subr.bf16.mxu0 %v5192
    %5659 = vmatpush1.bf16.msra.mxu0 %v5191
    %5660 = vmatprep.subr.bf16.mxu0 %v5188
    %5661 = vmatpush1.bf16.msra.mxu0 %v5187
    %5662 = vmatprep.subr.bf16.mxu0 %v5184
    %5663 = vmatpush1.bf16.msra.mxu0 %v5183
    %5664 = vmatprep.subr.bf16.mxu0 %v5180
    %5665 = vmatpush1.bf16.msra.mxu0 %v5179
    %5666 = vmatprep.subr.bf16.mxu0 %v5176
    %5667 = vmatpush1.bf16.msra.mxu0 %v5175
    %5668 = vmatprep.subr.bf16.mxu0 %v5172
    %5669 = vmatpush1.bf16.msra.mxu0 %v5171
    %5670 = vmatprep.subr.bf16.mxu0 %v5168
    %5671 = vmatpush1.bf16.msra.mxu0 %v5167
    %5672 = vmatprep.subr.bf16.mxu0 %v5228
    %5673 = vmatpush2.bf16.msra.mxu0 %v5227
    %5674 = vmatprep.subr.bf16.mxu0 %v5224
    %5675 = vmatpush2.bf16.msra.mxu0 %v5223
    %5676 = vmatprep.subr.bf16.mxu0 %v5220
    %5677 = vmatpush2.bf16.msra.mxu0 %v5219
    %5678 = vmatprep.subr.bf16.mxu0 %v5216
    %5679 = vmatpush2.bf16.msra.mxu0 %v5215
    %5680 = vmatprep.subr.bf16.mxu0 %v5212
    %5681 = vmatpush2.bf16.msra.mxu0 %v5211
    %5682 = vmatprep.subr.bf16.mxu0 %v5208
    %5683 = vmatpush2.bf16.msra.mxu0 %v5207
    %5684 = vmatprep.subr.bf16.mxu0 %v5204
    %5685 = vmatpush2.bf16.msra.mxu0 %v5203
    %5686 = vmatprep.subr.bf16.mxu0 %v5200
    %5687 = vmatpush2.bf16.msra.mxu0 %v5199
    %5688 = vmatprep.mubr.bf16.mxu0 %v4052
    %5689 = vmatmul.mubr.bf16.gmra.mxu0 %v4051
    %v5690 = vpop.f32.mrf.mxu0
    %v5691 = vadd.f32 %v5650, %v5690
    %v5692 = vpop.f32.mrf.mxu0
    %v5693 = vadd.f32 %v5652, %v5692
    %v5694 = vpop.f32.mrf.mxu0
    %v5695 = vpop.f32.mrf.mxu0
    %5696 = vdwg.mxu0
    %5697 = vmatprep.subr.bf16.mxu0 %v5260
    %5698 = vmatpush1.bf16.msra.mxu0 %v5259
    %5699 = vmatprep.subr.bf16.mxu0 %v5256
    %5700 = vmatpush1.bf16.msra.mxu0 %v5255
    %5701 = vmatprep.subr.bf16.mxu0 %v5252
    %5702 = vmatpush1.bf16.msra.mxu0 %v5251
    %5703 = vmatprep.subr.bf16.mxu0 %v5248
    %5704 = vmatpush1.bf16.msra.mxu0 %v5247
    %5705 = vmatprep.subr.bf16.mxu0 %v5244
    %5706 = vmatpush1.bf16.msra.mxu0 %v5243
    %5707 = vmatprep.subr.bf16.mxu0 %v5240
    %5708 = vmatpush1.bf16.msra.mxu0 %v5239
    %5709 = vmatprep.subr.bf16.mxu0 %v5236
    %5710 = vmatpush1.bf16.msra.mxu0 %v5235
    %5711 = vmatprep.subr.bf16.mxu0 %v5232
    %5712 = vmatpush1.bf16.msra.mxu0 %v5231
    %5713 = vmatprep.subr.bf16.mxu0 %v5292
    %5714 = vmatpush2.bf16.msra.mxu0 %v5291
    %5715 = vmatprep.subr.bf16.mxu0 %v5288
    %5716 = vmatpush2.bf16.msra.mxu0 %v5287
    %5717 = vmatprep.subr.bf16.mxu0 %v5284
    %5718 = vmatpush2.bf16.msra.mxu0 %v5283
    %5719 = vmatprep.subr.bf16.mxu0 %v5280
    %5720 = vmatpush2.bf16.msra.mxu0 %v5279
    %5721 = vmatprep.subr.bf16.mxu0 %v5276
    %5722 = vmatpush2.bf16.msra.mxu0 %v5275
    %5723 = vmatprep.subr.bf16.mxu0 %v5272
    %5724 = vmatpush2.bf16.msra.mxu0 %v5271
    %5725 = vmatprep.subr.bf16.mxu0 %v5268
    %5726 = vmatpush2.bf16.msra.mxu0 %v5267
    %5727 = vmatprep.subr.bf16.mxu0 %v5264
    %5728 = vmatpush2.bf16.msra.mxu0 %v5263
    %5729 = vmatprep.mubr.bf16.mxu0 %v4054
    %5730 = vmatmul.mubr.bf16.gmra.mxu0 %v4053
    %v5731 = vpop.f32.mrf.mxu0
    %v5732 = vadd.f32 %v5691, %v5731
    %v5733 = vpop.f32.mrf.mxu0
    %v5734 = vadd.f32 %v5693, %v5733
    %v5735 = vpop.f32.mrf.mxu0
    %v5736 = vpop.f32.mrf.mxu0
    %5737 = vdwg.mxu0
    %5738 = vmatprep.subr.bf16.mxu0 %v5324
    %5739 = vmatpush1.bf16.msra.mxu0 %v5323
    %5740 = vmatprep.subr.bf16.mxu0 %v5320
    %5741 = vmatpush1.bf16.msra.mxu0 %v5319
    %5742 = vmatprep.subr.bf16.mxu0 %v5316
    %5743 = vmatpush1.bf16.msra.mxu0 %v5315
    %5744 = vmatprep.subr.bf16.mxu0 %v5312
    %5745 = vmatpush1.bf16.msra.mxu0 %v5311
    %5746 = vmatprep.subr.bf16.mxu0 %v5308
    %5747 = vmatpush1.bf16.msra.mxu0 %v5307
    %5748 = vmatprep.subr.bf16.mxu0 %v5304
    %5749 = vmatpush1.bf16.msra.mxu0 %v5303
    %5750 = vmatprep.subr.bf16.mxu0 %v5300
    %5751 = vmatpush1.bf16.msra.mxu0 %v5299
    %5752 = vmatprep.subr.bf16.mxu0 %v5296
    %5753 = vmatpush1.bf16.msra.mxu0 %v5295
    %5754 = vmatprep.subr.bf16.mxu0 %v5356
    %5755 = vmatpush2.bf16.msra.mxu0 %v5355
    %5756 = vmatprep.subr.bf16.mxu0 %v5352
    %5757 = vmatpush2.bf16.msra.mxu0 %v5351
    %5758 = vmatprep.subr.bf16.mxu0 %v5348
    %5759 = vmatpush2.bf16.msra.mxu0 %v5347
    %5760 = vmatprep.subr.bf16.mxu0 %v5344
    %5761 = vmatpush2.bf16.msra.mxu0 %v5343
    %5762 = vmatprep.subr.bf16.mxu0 %v5340
    %5763 = vmatpush2.bf16.msra.mxu0 %v5339
    %5764 = vmatprep.subr.bf16.mxu0 %v5336
    %5765 = vmatpush2.bf16.msra.mxu0 %v5335
    %5766 = vmatprep.subr.bf16.mxu0 %v5332
    %5767 = vmatpush2.bf16.msra.mxu0 %v5331
    %5768 = vmatprep.subr.bf16.mxu0 %v5328
    %5769 = vmatpush2.bf16.msra.mxu0 %v5327
    %5770 = vmatprep.mubr.bf16.mxu0 %v4056
    %5771 = vmatmul.mubr.bf16.gmra.mxu0 %v4055
    %v5772 = vpop.f32.mrf.mxu0
    %v5773 = vadd.f32 %v5732, %v5772
    %v5774 = vpop.f32.mrf.mxu0
    %v5775 = vadd.f32 %v5734, %v5774
    %v5776 = vpop.f32.mrf.mxu0
    %v5777 = vpop.f32.mrf.mxu0
    %5778 = vdwg.mxu0
    %5779 = vmatprep.subr.bf16.mxu0 %v5134
    %5780 = vmatpush1.bf16.msra.mxu0 %v5133
    %5781 = vmatprep.subr.bf16.mxu0 %v5130
    %5782 = vmatpush1.bf16.msra.mxu0 %v5129
    %5783 = vmatprep.subr.bf16.mxu0 %v5126
    %5784 = vmatpush1.bf16.msra.mxu0 %v5125
    %5785 = vmatprep.subr.bf16.mxu0 %v5122
    %5786 = vmatpush1.bf16.msra.mxu0 %v5121
    %5787 = vmatprep.subr.bf16.mxu0 %v5118
    %5788 = vmatpush1.bf16.msra.mxu0 %v5117
    %5789 = vmatprep.subr.bf16.mxu0 %v5114
    %5790 = vmatpush1.bf16.msra.mxu0 %v5113
    %5791 = vmatprep.subr.bf16.mxu0 %v5110
    %5792 = vmatpush1.bf16.msra.mxu0 %v5109
    %5793 = vmatprep.subr.bf16.mxu0 %v5106
    %5794 = vmatpush1.bf16.msra.mxu0 %v5105
    %5795 = vmatprep.subr.bf16.mxu0 %v5166
    %5796 = vmatpush2.bf16.msra.mxu0 %v5165
    %5797 = vmatprep.subr.bf16.mxu0 %v5162
    %5798 = vmatpush2.bf16.msra.mxu0 %v5161
    %5799 = vmatprep.subr.bf16.mxu0 %v5158
    %5800 = vmatpush2.bf16.msra.mxu0 %v5157
    %5801 = vmatprep.subr.bf16.mxu0 %v5154
    %5802 = vmatpush2.bf16.msra.mxu0 %v5153
    %5803 = vmatprep.subr.bf16.mxu0 %v5150
    %5804 = vmatpush2.bf16.msra.mxu0 %v5149
    %5805 = vmatprep.subr.bf16.mxu0 %v5146
    %5806 = vmatpush2.bf16.msra.mxu0 %v5145
    %5807 = vmatprep.subr.bf16.mxu0 %v5142
    %5808 = vmatpush2.bf16.msra.mxu0 %v5141
    %5809 = vmatprep.subr.bf16.mxu0 %v5138
    %5810 = vmatpush2.bf16.msra.mxu0 %v5137
    %5811 = vmatprep.mubr.bf16.mxu0 %v4050
    %5812 = vmatmul.mubr.bf16.gmra.mxu0 %v4049
    %v5813 = vpop.f32.mrf.mxu0
    %v5814 = vadd.f32 %v4326, %v5813
    %v5815 = vpop.f32.mrf.mxu0
    %v5816 = vadd.f32 %v4330, %v5815
    %v5817 = vpop.f32.mrf.mxu0
    %v5818 = vpop.f32.mrf.mxu0
    %5819 = vdwg.mxu0
    %5820 = vmatprep.subr.bf16.mxu0 %v5198
    %5821 = vmatpush1.bf16.msra.mxu0 %v5197
    %5822 = vmatprep.subr.bf16.mxu0 %v5194
    %5823 = vmatpush1.bf16.msra.mxu0 %v5193
    %5824 = vmatprep.subr.bf16.mxu0 %v5190
    %5825 = vmatpush1.bf16.msra.mxu0 %v5189
    %5826 = vmatprep.subr.bf16.mxu0 %v5186
    %5827 = vmatpush1.bf16.msra.mxu0 %v5185
    %5828 = vmatprep.subr.bf16.mxu0 %v5182
    %5829 = vmatpush1.bf16.msra.mxu0 %v5181
    %5830 = vmatprep.subr.bf16.mxu0 %v5178
    %5831 = vmatpush1.bf16.msra.mxu0 %v5177
    %5832 = vmatprep.subr.bf16.mxu0 %v5174
    %5833 = vmatpush1.bf16.msra.mxu0 %v5173
    %5834 = vmatprep.subr.bf16.mxu0 %v5170
    %5835 = vmatpush1.bf16.msra.mxu0 %v5169
    %5836 = vmatprep.subr.bf16.mxu0 %v5230
    %5837 = vmatpush2.bf16.msra.mxu0 %v5229
    %5838 = vmatprep.subr.bf16.mxu0 %v5226
    %5839 = vmatpush2.bf16.msra.mxu0 %v5225
    %5840 = vmatprep.subr.bf16.mxu0 %v5222
    %5841 = vmatpush2.bf16.msra.mxu0 %v5221
    %5842 = vmatprep.subr.bf16.mxu0 %v5218
    %5843 = vmatpush2.bf16.msra.mxu0 %v5217
    %5844 = vmatprep.subr.bf16.mxu0 %v5214
    %5845 = vmatpush2.bf16.msra.mxu0 %v5213
    %5846 = vmatprep.subr.bf16.mxu0 %v5210
    %5847 = vmatpush2.bf16.msra.mxu0 %v5209
    %5848 = vmatprep.subr.bf16.mxu0 %v5206
    %5849 = vmatpush2.bf16.msra.mxu0 %v5205
    %5850 = vmatprep.subr.bf16.mxu0 %v5202
    %5851 = vmatpush2.bf16.msra.mxu0 %v5201
    %5852 = vmatprep.mubr.bf16.mxu0 %v4052
    %5853 = vmatmul.mubr.bf16.gmra.mxu0 %v4051
    %v5854 = vpop.f32.mrf.mxu0
    %v5855 = vadd.f32 %v5814, %v5854
    %v5856 = vpop.f32.mrf.mxu0
    %v5857 = vadd.f32 %v5816, %v5856
    %v5858 = vpop.f32.mrf.mxu0
    %v5859 = vpop.f32.mrf.mxu0
    %5860 = vdwg.mxu0
    %5861 = vmatprep.subr.bf16.mxu0 %v5262
    %5862 = vmatpush1.bf16.msra.mxu0 %v5261
    %5863 = vmatprep.subr.bf16.mxu0 %v5258
    %5864 = vmatpush1.bf16.msra.mxu0 %v5257
    %5865 = vmatprep.subr.bf16.mxu0 %v5254
    %5866 = vmatpush1.bf16.msra.mxu0 %v5253
    %5867 = vmatprep.subr.bf16.mxu0 %v5250
    %5868 = vmatpush1.bf16.msra.mxu0 %v5249
    %5869 = vmatprep.subr.bf16.mxu0 %v5246
    %5870 = vmatpush1.bf16.msra.mxu0 %v5245
    %5871 = vmatprep.subr.bf16.mxu0 %v5242
    %5872 = vmatpush1.bf16.msra.mxu0 %v5241
    %5873 = vmatprep.subr.bf16.mxu0 %v5238
    %5874 = vmatpush1.bf16.msra.mxu0 %v5237
    %5875 = vmatprep.subr.bf16.mxu0 %v5234
    %5876 = vmatpush1.bf16.msra.mxu0 %v5233
    %5877 = vmatprep.subr.bf16.mxu0 %v5294
    %5878 = vmatpush2.bf16.msra.mxu0 %v5293
    %5879 = vmatprep.subr.bf16.mxu0 %v5290
    %5880 = vmatpush2.bf16.msra.mxu0 %v5289
    %5881 = vmatprep.subr.bf16.mxu0 %v5286
    %5882 = vmatpush2.bf16.msra.mxu0 %v5285
    %5883 = vmatprep.subr.bf16.mxu0 %v5282
    %5884 = vmatpush2.bf16.msra.mxu0 %v5281
    %5885 = vmatprep.subr.bf16.mxu0 %v5278
    %5886 = vmatpush2.bf16.msra.mxu0 %v5277
    %5887 = vmatprep.subr.bf16.mxu0 %v5274
    %5888 = vmatpush2.bf16.msra.mxu0 %v5273
    %5889 = vmatprep.subr.bf16.mxu0 %v5270
    %5890 = vmatpush2.bf16.msra.mxu0 %v5269
    %5891 = vmatprep.subr.bf16.mxu0 %v5266
    %5892 = vmatpush2.bf16.msra.mxu0 %v5265
    %5893 = vmatprep.mubr.bf16.mxu0 %v4054
    %5894 = vmatmul.mubr.bf16.gmra.mxu0 %v4053
    %v5895 = vpop.f32.mrf.mxu0
    %v5896 = vadd.f32 %v5855, %v5895
    %v5897 = vpop.f32.mrf.mxu0
    %v5898 = vadd.f32 %v5857, %v5897
    %v5899 = vpop.f32.mrf.mxu0
    %v5900 = vpop.f32.mrf.mxu0
    %5901 = vdwg.mxu0
    %5902 = vmatprep.subr.bf16.mxu0 %v5326
    %5903 = vmatpush1.bf16.msra.mxu0 %v5325
    %5904 = vmatprep.subr.bf16.mxu0 %v5322
    %5905 = vmatpush1.bf16.msra.mxu0 %v5321
    %5906 = vmatprep.subr.bf16.mxu0 %v5318
    %5907 = vmatpush1.bf16.msra.mxu0 %v5317
    %5908 = vmatprep.subr.bf16.mxu0 %v5314
    %5909 = vmatpush1.bf16.msra.mxu0 %v5313
    %5910 = vmatprep.subr.bf16.mxu0 %v5310
    %5911 = vmatpush1.bf16.msra.mxu0 %v5309
    %5912 = vmatprep.subr.bf16.mxu0 %v5306
    %5913 = vmatpush1.bf16.msra.mxu0 %v5305
    %5914 = vmatprep.subr.bf16.mxu0 %v5302
    %5915 = vmatpush1.bf16.msra.mxu0 %v5301
    %5916 = vmatprep.subr.bf16.mxu0 %v5298
    %5917 = vmatpush1.bf16.msra.mxu0 %v5297
    %5918 = vmatprep.subr.bf16.mxu0 %v5358
    %5919 = vmatpush2.bf16.msra.mxu0 %v5357
    %5920 = vmatprep.subr.bf16.mxu0 %v5354
    %5921 = vmatpush2.bf16.msra.mxu0 %v5353
    %5922 = vmatprep.subr.bf16.mxu0 %v5350
    %5923 = vmatpush2.bf16.msra.mxu0 %v5349
    %5924 = vmatprep.subr.bf16.mxu0 %v5346
    %5925 = vmatpush2.bf16.msra.mxu0 %v5345
    %5926 = vmatprep.subr.bf16.mxu0 %v5342
    %5927 = vmatpush2.bf16.msra.mxu0 %v5341
    %5928 = vmatprep.subr.bf16.mxu0 %v5338
    %5929 = vmatpush2.bf16.msra.mxu0 %v5337
    %5930 = vmatprep.subr.bf16.mxu0 %v5334
    %5931 = vmatpush2.bf16.msra.mxu0 %v5333
    %5932 = vmatprep.subr.bf16.mxu0 %v5330
    %5933 = vmatpush2.bf16.msra.mxu0 %v5329
    %5934 = vmatprep.mubr.bf16.mxu0 %v4056
    %5935 = vmatmul.mubr.bf16.gmra.mxu0 %v4055
    %v5936 = vpop.f32.mrf.mxu0
    %v5937 = vadd.f32 %v5896, %v5936
    %v5938 = vpop.f32.mrf.mxu0
    %v5939 = vadd.f32 %v5898, %v5938
    %v5940 = vpop.f32.mrf.mxu0
    %v5941 = vpop.f32.mrf.mxu0
    %5942 = vdwg.mxu0
    %v5943 = vmax.f32 %v5773, 0.0
    %v5944 = vmax.f32 %v5775, 0.0
    %v5945 = vmax.f32 %v5937, 0.0
    %v5946 = vmax.f32 %v5939, 0.0
    %v5947 = vpack.c.bf16 %v5943, %v5943
    %v5948 = vpack.c.bf16 %v5944, %v5944
    %v5949 = vpack.c.bf16 %v5945, %v5945
    %v5950 = vpack.c.bf16 %v5946, %v5946
    %v5951 = vld [vmem:[#allocation11] sm:$0xff]
    %v5952 = vld [vmem:[#allocation11 + $0x8] sm:$0xff]
    %v5953 = vld [vmem:[#allocation11 + $0x10] sm:$0xff]
    %v5954 = vld [vmem:[#allocation11 + $0x18] sm:$0xff]
    %v5955 = vld [vmem:[#allocation11 + $0x20] sm:$0xff]
    %v5956 = vld [vmem:[#allocation11 + $0x28] sm:$0xff]
    %v5957 = vld [vmem:[#allocation11 + $0x30] sm:$0xff]
    %v5958 = vld [vmem:[#allocation11 + $0x38] sm:$0xff]
    %v5959 = vld [vmem:[#allocation11 + $0x40] sm:$0xff]
    %v5960 = vld [vmem:[#allocation11 + $0x48] sm:$0xff]
    %v5961 = vld [vmem:[#allocation11 + $0x50] sm:$0xff]
    %v5962 = vld [vmem:[#allocation11 + $0x58] sm:$0xff]
    %v5963 = vld [vmem:[#allocation11 + $0x60] sm:$0xff]
    %v5964 = vld [vmem:[#allocation11 + $0x68] sm:$0xff]
    %v5965 = vld [vmem:[#allocation11 + $0x70] sm:$0xff]
    %v5966 = vld [vmem:[#allocation11 + $0x78] sm:$0xff]
    %v5967 = vld [vmem:[#allocation11 + $0x80] sm:$0xff]
    %v5968 = vld [vmem:[#allocation11 + $0x88] sm:$0xff]
    %v5969 = vld [vmem:[#allocation11 + $0x90] sm:$0xff]
    %v5970 = vld [vmem:[#allocation11 + $0x98] sm:$0xff]
    %v5971 = vld [vmem:[#allocation11 + $0xa0] sm:$0xff]
    %v5972 = vld [vmem:[#allocation11 + $0xa8] sm:$0xff]
    %v5973 = vld [vmem:[#allocation11 + $0xb0] sm:$0xff]
    %v5974 = vld [vmem:[#allocation11 + $0xb8] sm:$0xff]
    %v5975 = vld [vmem:[#allocation11 + $0xc0] sm:$0xff]
    %v5976 = vld [vmem:[#allocation11 + $0xc8] sm:$0xff]
    %v5977 = vld [vmem:[#allocation11 + $0xd0] sm:$0xff]
    %v5978 = vld [vmem:[#allocation11 + $0xd8] sm:$0xff]
    %v5979 = vld [vmem:[#allocation11 + $0xe0] sm:$0xff]
    %v5980 = vld [vmem:[#allocation11 + $0xe8] sm:$0xff]
    %v5981 = vld [vmem:[#allocation11 + $0xf0] sm:$0xff]
    %v5982 = vld [vmem:[#allocation11 + $0xf8] sm:$0xff]
    %v5983 = vld [vmem:[#allocation11 + $0x100] sm:$0xff]
    %v5984 = vld [vmem:[#allocation11 + $0x108] sm:$0xff]
    %v5985 = vld [vmem:[#allocation11 + $0x110] sm:$0xff]
    %v5986 = vld [vmem:[#allocation11 + $0x118] sm:$0xff]
    %v5987 = vld [vmem:[#allocation11 + $0x120] sm:$0xff]
    %v5988 = vld [vmem:[#allocation11 + $0x128] sm:$0xff]
    %v5989 = vld [vmem:[#allocation11 + $0x130] sm:$0xff]
    %v5990 = vld [vmem:[#allocation11 + $0x138] sm:$0xff]
    %v5991 = vld [vmem:[#allocation11 + $0x140] sm:$0xff]
    %v5992 = vld [vmem:[#allocation11 + $0x148] sm:$0xff]
    %v5993 = vld [vmem:[#allocation11 + $0x150] sm:$0xff]
    %v5994 = vld [vmem:[#allocation11 + $0x158] sm:$0xff]
    %v5995 = vld [vmem:[#allocation11 + $0x160] sm:$0xff]
    %v5996 = vld [vmem:[#allocation11 + $0x168] sm:$0xff]
    %v5997 = vld [vmem:[#allocation11 + $0x170] sm:$0xff]
    %v5998 = vld [vmem:[#allocation11 + $0x178] sm:$0xff]
    %v5999 = vld [vmem:[#allocation11 + $0x180] sm:$0xff]
    %v6000 = vld [vmem:[#allocation11 + $0x188] sm:$0xff]
    %v6001 = vld [vmem:[#allocation11 + $0x190] sm:$0xff]
    %v6002 = vld [vmem:[#allocation11 + $0x198] sm:$0xff]
    %v6003 = vld [vmem:[#allocation11 + $0x1a0] sm:$0xff]
    %v6004 = vld [vmem:[#allocation11 + $0x1a8] sm:$0xff]
    %v6005 = vld [vmem:[#allocation11 + $0x1b0] sm:$0xff]
    %v6006 = vld [vmem:[#allocation11 + $0x1b8] sm:$0xff]
    %v6007 = vld [vmem:[#allocation11 + $0x1c0] sm:$0xff]
    %v6008 = vld [vmem:[#allocation11 + $0x1c8] sm:$0xff]
    %v6009 = vld [vmem:[#allocation11 + $0x1d0] sm:$0xff]
    %v6010 = vld [vmem:[#allocation11 + $0x1d8] sm:$0xff]
    %v6011 = vld [vmem:[#allocation11 + $0x1e0] sm:$0xff]
    %v6012 = vld [vmem:[#allocation11 + $0x1e8] sm:$0xff]
    %v6013 = vld [vmem:[#allocation11 + $0x1f0] sm:$0xff]
    %v6014 = vld [vmem:[#allocation11 + $0x1f8] sm:$0xff]
    %v6015 = vld [vmem:[#allocation11 + $0x200] sm:$0xff]
    %v6016 = vld [vmem:[#allocation11 + $0x208] sm:$0xff]
    %v6017 = vld [vmem:[#allocation11 + $0x210] sm:$0xff]
    %v6018 = vld [vmem:[#allocation11 + $0x218] sm:$0xff]
    %v6019 = vld [vmem:[#allocation11 + $0x220] sm:$0xff]
    %v6020 = vld [vmem:[#allocation11 + $0x228] sm:$0xff]
    %v6021 = vld [vmem:[#allocation11 + $0x230] sm:$0xff]
    %v6022 = vld [vmem:[#allocation11 + $0x238] sm:$0xff]
    %v6023 = vld [vmem:[#allocation11 + $0x240] sm:$0xff]
    %v6024 = vld [vmem:[#allocation11 + $0x248] sm:$0xff]
    %v6025 = vld [vmem:[#allocation11 + $0x250] sm:$0xff]
    %v6026 = vld [vmem:[#allocation11 + $0x258] sm:$0xff]
    %v6027 = vld [vmem:[#allocation11 + $0x260] sm:$0xff]
    %v6028 = vld [vmem:[#allocation11 + $0x268] sm:$0xff]
    %v6029 = vld [vmem:[#allocation11 + $0x270] sm:$0xff]
    %v6030 = vld [vmem:[#allocation11 + $0x278] sm:$0xff]
    %v6031 = vld [vmem:[#allocation11 + $0x280] sm:$0xff]
    %v6032 = vld [vmem:[#allocation11 + $0x288] sm:$0xff]
    %v6033 = vld [vmem:[#allocation11 + $0x290] sm:$0xff]
    %v6034 = vld [vmem:[#allocation11 + $0x298] sm:$0xff]
    %v6035 = vld [vmem:[#allocation11 + $0x2a0] sm:$0xff]
    %v6036 = vld [vmem:[#allocation11 + $0x2a8] sm:$0xff]
    %v6037 = vld [vmem:[#allocation11 + $0x2b0] sm:$0xff]
    %v6038 = vld [vmem:[#allocation11 + $0x2b8] sm:$0xff]
    %v6039 = vld [vmem:[#allocation11 + $0x2c0] sm:$0xff]
    %v6040 = vld [vmem:[#allocation11 + $0x2c8] sm:$0xff]
    %v6041 = vld [vmem:[#allocation11 + $0x2d0] sm:$0xff]
    %v6042 = vld [vmem:[#allocation11 + $0x2d8] sm:$0xff]
    %v6043 = vld [vmem:[#allocation11 + $0x2e0] sm:$0xff]
    %v6044 = vld [vmem:[#allocation11 + $0x2e8] sm:$0xff]
    %v6045 = vld [vmem:[#allocation11 + $0x2f0] sm:$0xff]
    %v6046 = vld [vmem:[#allocation11 + $0x2f8] sm:$0xff]
    %v6047 = vld [vmem:[#allocation11 + $0x300] sm:$0xff]
    %v6048 = vld [vmem:[#allocation11 + $0x308] sm:$0xff]
    %v6049 = vld [vmem:[#allocation11 + $0x310] sm:$0xff]
    %v6050 = vld [vmem:[#allocation11 + $0x318] sm:$0xff]
    %v6051 = vld [vmem:[#allocation11 + $0x320] sm:$0xff]
    %v6052 = vld [vmem:[#allocation11 + $0x328] sm:$0xff]
    %v6053 = vld [vmem:[#allocation11 + $0x330] sm:$0xff]
    %v6054 = vld [vmem:[#allocation11 + $0x338] sm:$0xff]
    %v6055 = vld [vmem:[#allocation11 + $0x340] sm:$0xff]
    %v6056 = vld [vmem:[#allocation11 + $0x348] sm:$0xff]
    %v6057 = vld [vmem:[#allocation11 + $0x350] sm:$0xff]
    %v6058 = vld [vmem:[#allocation11 + $0x358] sm:$0xff]
    %v6059 = vld [vmem:[#allocation11 + $0x360] sm:$0xff]
    %v6060 = vld [vmem:[#allocation11 + $0x368] sm:$0xff]
    %v6061 = vld [vmem:[#allocation11 + $0x370] sm:$0xff]
    %v6062 = vld [vmem:[#allocation11 + $0x378] sm:$0xff]
    %v6063 = vld [vmem:[#allocation11 + $0x380] sm:$0xff]
    %v6064 = vld [vmem:[#allocation11 + $0x388] sm:$0xff]
    %v6065 = vld [vmem:[#allocation11 + $0x390] sm:$0xff]
    %v6066 = vld [vmem:[#allocation11 + $0x398] sm:$0xff]
    %v6067 = vld [vmem:[#allocation11 + $0x3a0] sm:$0xff]
    %v6068 = vld [vmem:[#allocation11 + $0x3a8] sm:$0xff]
    %v6069 = vld [vmem:[#allocation11 + $0x3b0] sm:$0xff]
    %v6070 = vld [vmem:[#allocation11 + $0x3b8] sm:$0xff]
    %v6071 = vld [vmem:[#allocation11 + $0x3c0] sm:$0xff]
    %v6072 = vld [vmem:[#allocation11 + $0x3c8] sm:$0xff]
    %v6073 = vld [vmem:[#allocation11 + $0x3d0] sm:$0xff]
    %v6074 = vld [vmem:[#allocation11 + $0x3d8] sm:$0xff]
    %v6075 = vld [vmem:[#allocation11 + $0x3e0] sm:$0xff]
    %v6076 = vld [vmem:[#allocation11 + $0x3e8] sm:$0xff]
    %v6077 = vld [vmem:[#allocation11 + $0x3f0] sm:$0xff]
    %v6078 = vld [vmem:[#allocation11 + $0x3f8] sm:$0xff]
    %v6079 = vld [vmem:[#allocation13] sm:$0xf]
    %v6081 = vlaneseq
    %v6082 = vshrl.u32 %v6081, 7
    %v6083 = vsub.s32 0, %v6082
    %v6084 = vrot.slane %v6079, %v6083
    %v6085 = vlaneseq
    %v6086 = vshrl.u32 %v6085, 7
    %v6087 = vsub.s32 1, %v6086
    %v6088 = vrot.slane %v6079, %v6087
    %v6089 = vlaneseq
    %v6090 = vshrl.u32 %v6089, 7
    %v6091 = vsub.s32 2, %v6090
    %v6092 = vrot.slane %v6079, %v6091
    %v6093 = vlaneseq
    %v6094 = vshrl.u32 %v6093, 7
    %v6095 = vsub.s32 3, %v6094
    %v6096 = vrot.slane %v6079, %v6095
    %v6229 = vunpack.c.l.b16 %v5951
    %v6230 = vunpack.c.h.b16 %v5951
    %v6231 = vunpack.c.l.b16 %v5952
    %v6232 = vunpack.c.h.b16 %v5952
    %v6233 = vunpack.c.l.b16 %v5953
    %v6234 = vunpack.c.h.b16 %v5953
    %v6235 = vunpack.c.l.b16 %v5954
    %v6236 = vunpack.c.h.b16 %v5954
    %v6237 = vunpack.c.l.b16 %v5955
    %v6238 = vunpack.c.h.b16 %v5955
    %v6239 = vunpack.c.l.b16 %v5956
    %v6240 = vunpack.c.h.b16 %v5956
    %v6241 = vunpack.c.l.b16 %v5957
    %v6242 = vunpack.c.h.b16 %v5957
    %v6243 = vunpack.c.l.b16 %v5958
    %v6244 = vunpack.c.h.b16 %v5958
    %v6245 = vunpack.c.l.b16 %v5959
    %v6246 = vunpack.c.h.b16 %v5959
    %v6247 = vunpack.c.l.b16 %v5960
    %v6248 = vunpack.c.h.b16 %v5960
    %v6249 = vunpack.c.l.b16 %v5961
    %v6250 = vunpack.c.h.b16 %v5961
    %v6251 = vunpack.c.l.b16 %v5962
    %v6252 = vunpack.c.h.b16 %v5962
    %v6253 = vunpack.c.l.b16 %v5963
    %v6254 = vunpack.c.h.b16 %v5963
    %v6255 = vunpack.c.l.b16 %v5964
    %v6256 = vunpack.c.h.b16 %v5964
    %v6257 = vunpack.c.l.b16 %v5965
    %v6258 = vunpack.c.h.b16 %v5965
    %v6259 = vunpack.c.l.b16 %v5966
    %v6260 = vunpack.c.h.b16 %v5966
    %v6261 = vunpack.c.l.b16 %v5967
    %v6262 = vunpack.c.h.b16 %v5967
    %v6263 = vunpack.c.l.b16 %v5968
    %v6264 = vunpack.c.h.b16 %v5968
    %v6265 = vunpack.c.l.b16 %v5969
    %v6266 = vunpack.c.h.b16 %v5969
    %v6267 = vunpack.c.l.b16 %v5970
    %v6268 = vunpack.c.h.b16 %v5970
    %v6269 = vunpack.c.l.b16 %v5971
    %v6270 = vunpack.c.h.b16 %v5971
    %v6271 = vunpack.c.l.b16 %v5972
    %v6272 = vunpack.c.h.b16 %v5972
    %v6273 = vunpack.c.l.b16 %v5973
    %v6274 = vunpack.c.h.b16 %v5973
    %v6275 = vunpack.c.l.b16 %v5974
    %v6276 = vunpack.c.h.b16 %v5974
    %v6277 = vunpack.c.l.b16 %v5975
    %v6278 = vunpack.c.h.b16 %v5975
    %v6279 = vunpack.c.l.b16 %v5976
    %v6280 = vunpack.c.h.b16 %v5976
    %v6281 = vunpack.c.l.b16 %v5977
    %v6282 = vunpack.c.h.b16 %v5977
    %v6283 = vunpack.c.l.b16 %v5978
    %v6284 = vunpack.c.h.b16 %v5978
    %v6285 = vunpack.c.l.b16 %v5979
    %v6286 = vunpack.c.h.b16 %v5979
    %v6287 = vunpack.c.l.b16 %v5980
    %v6288 = vunpack.c.h.b16 %v5980
    %v6289 = vunpack.c.l.b16 %v5981
    %v6290 = vunpack.c.h.b16 %v5981
    %v6291 = vunpack.c.l.b16 %v5982
    %v6292 = vunpack.c.h.b16 %v5982
    %v6293 = vunpack.c.l.b16 %v5983
    %v6294 = vunpack.c.h.b16 %v5983
    %v6295 = vunpack.c.l.b16 %v5984
    %v6296 = vunpack.c.h.b16 %v5984
    %v6297 = vunpack.c.l.b16 %v5985
    %v6298 = vunpack.c.h.b16 %v5985
    %v6299 = vunpack.c.l.b16 %v5986
    %v6300 = vunpack.c.h.b16 %v5986
    %v6301 = vunpack.c.l.b16 %v5987
    %v6302 = vunpack.c.h.b16 %v5987
    %v6303 = vunpack.c.l.b16 %v5988
    %v6304 = vunpack.c.h.b16 %v5988
    %v6305 = vunpack.c.l.b16 %v5989
    %v6306 = vunpack.c.h.b16 %v5989
    %v6307 = vunpack.c.l.b16 %v5990
    %v6308 = vunpack.c.h.b16 %v5990
    %v6309 = vunpack.c.l.b16 %v5991
    %v6310 = vunpack.c.h.b16 %v5991
    %v6311 = vunpack.c.l.b16 %v5992
    %v6312 = vunpack.c.h.b16 %v5992
    %v6313 = vunpack.c.l.b16 %v5993
    %v6314 = vunpack.c.h.b16 %v5993
    %v6315 = vunpack.c.l.b16 %v5994
    %v6316 = vunpack.c.h.b16 %v5994
    %v6317 = vunpack.c.l.b16 %v5995
    %v6318 = vunpack.c.h.b16 %v5995
    %v6319 = vunpack.c.l.b16 %v5996
    %v6320 = vunpack.c.h.b16 %v5996
    %v6321 = vunpack.c.l.b16 %v5997
    %v6322 = vunpack.c.h.b16 %v5997
    %v6323 = vunpack.c.l.b16 %v5998
    %v6324 = vunpack.c.h.b16 %v5998
    %v6325 = vunpack.c.l.b16 %v5999
    %v6326 = vunpack.c.h.b16 %v5999
    %v6327 = vunpack.c.l.b16 %v6000
    %v6328 = vunpack.c.h.b16 %v6000
    %v6329 = vunpack.c.l.b16 %v6001
    %v6330 = vunpack.c.h.b16 %v6001
    %v6331 = vunpack.c.l.b16 %v6002
    %v6332 = vunpack.c.h.b16 %v6002
    %v6333 = vunpack.c.l.b16 %v6003
    %v6334 = vunpack.c.h.b16 %v6003
    %v6335 = vunpack.c.l.b16 %v6004
    %v6336 = vunpack.c.h.b16 %v6004
    %v6337 = vunpack.c.l.b16 %v6005
    %v6338 = vunpack.c.h.b16 %v6005
    %v6339 = vunpack.c.l.b16 %v6006
    %v6340 = vunpack.c.h.b16 %v6006
    %v6341 = vunpack.c.l.b16 %v6007
    %v6342 = vunpack.c.h.b16 %v6007
    %v6343 = vunpack.c.l.b16 %v6008
    %v6344 = vunpack.c.h.b16 %v6008
    %v6345 = vunpack.c.l.b16 %v6009
    %v6346 = vunpack.c.h.b16 %v6009
    %v6347 = vunpack.c.l.b16 %v6010
    %v6348 = vunpack.c.h.b16 %v6010
    %v6349 = vunpack.c.l.b16 %v6011
    %v6350 = vunpack.c.h.b16 %v6011
    %v6351 = vunpack.c.l.b16 %v6012
    %v6352 = vunpack.c.h.b16 %v6012
    %v6353 = vunpack.c.l.b16 %v6013
    %v6354 = vunpack.c.h.b16 %v6013
    %v6355 = vunpack.c.l.b16 %v6014
    %v6356 = vunpack.c.h.b16 %v6014
    %v6357 = vunpack.c.l.b16 %v6015
    %v6358 = vunpack.c.h.b16 %v6015
    %v6359 = vunpack.c.l.b16 %v6016
    %v6360 = vunpack.c.h.b16 %v6016
    %v6361 = vunpack.c.l.b16 %v6017
    %v6362 = vunpack.c.h.b16 %v6017
    %v6363 = vunpack.c.l.b16 %v6018
    %v6364 = vunpack.c.h.b16 %v6018
    %v6365 = vunpack.c.l.b16 %v6019
    %v6366 = vunpack.c.h.b16 %v6019
    %v6367 = vunpack.c.l.b16 %v6020
    %v6368 = vunpack.c.h.b16 %v6020
    %v6369 = vunpack.c.l.b16 %v6021
    %v6370 = vunpack.c.h.b16 %v6021
    %v6371 = vunpack.c.l.b16 %v6022
    %v6372 = vunpack.c.h.b16 %v6022
    %v6373 = vunpack.c.l.b16 %v6023
    %v6374 = vunpack.c.h.b16 %v6023
    %v6375 = vunpack.c.l.b16 %v6024
    %v6376 = vunpack.c.h.b16 %v6024
    %v6377 = vunpack.c.l.b16 %v6025
    %v6378 = vunpack.c.h.b16 %v6025
    %v6379 = vunpack.c.l.b16 %v6026
    %v6380 = vunpack.c.h.b16 %v6026
    %v6381 = vunpack.c.l.b16 %v6027
    %v6382 = vunpack.c.h.b16 %v6027
    %v6383 = vunpack.c.l.b16 %v6028
    %v6384 = vunpack.c.h.b16 %v6028
    %v6385 = vunpack.c.l.b16 %v6029
    %v6386 = vunpack.c.h.b16 %v6029
    %v6387 = vunpack.c.l.b16 %v6030
    %v6388 = vunpack.c.h.b16 %v6030
    %v6389 = vunpack.c.l.b16 %v6031
    %v6390 = vunpack.c.h.b16 %v6031
    %v6391 = vunpack.c.l.b16 %v6032
    %v6392 = vunpack.c.h.b16 %v6032
    %v6393 = vunpack.c.l.b16 %v6033
    %v6394 = vunpack.c.h.b16 %v6033
    %v6395 = vunpack.c.l.b16 %v6034
    %v6396 = vunpack.c.h.b16 %v6034
    %v6397 = vunpack.c.l.b16 %v6035
    %v6398 = vunpack.c.h.b16 %v6035
    %v6399 = vunpack.c.l.b16 %v6036
    %v6400 = vunpack.c.h.b16 %v6036
    %v6401 = vunpack.c.l.b16 %v6037
    %v6402 = vunpack.c.h.b16 %v6037
    %v6403 = vunpack.c.l.b16 %v6038
    %v6404 = vunpack.c.h.b16 %v6038
    %v6405 = vunpack.c.l.b16 %v6039
    %v6406 = vunpack.c.h.b16 %v6039
    %v6407 = vunpack.c.l.b16 %v6040
    %v6408 = vunpack.c.h.b16 %v6040
    %v6409 = vunpack.c.l.b16 %v6041
    %v6410 = vunpack.c.h.b16 %v6041
    %v6411 = vunpack.c.l.b16 %v6042
    %v6412 = vunpack.c.h.b16 %v6042
    %v6413 = vunpack.c.l.b16 %v6043
    %v6414 = vunpack.c.h.b16 %v6043
    %v6415 = vunpack.c.l.b16 %v6044
    %v6416 = vunpack.c.h.b16 %v6044
    %v6417 = vunpack.c.l.b16 %v6045
    %v6418 = vunpack.c.h.b16 %v6045
    %v6419 = vunpack.c.l.b16 %v6046
    %v6420 = vunpack.c.h.b16 %v6046
    %v6421 = vunpack.c.l.b16 %v6047
    %v6422 = vunpack.c.h.b16 %v6047
    %v6423 = vunpack.c.l.b16 %v6048
    %v6424 = vunpack.c.h.b16 %v6048
    %v6425 = vunpack.c.l.b16 %v6049
    %v6426 = vunpack.c.h.b16 %v6049
    %v6427 = vunpack.c.l.b16 %v6050
    %v6428 = vunpack.c.h.b16 %v6050
    %v6429 = vunpack.c.l.b16 %v6051
    %v6430 = vunpack.c.h.b16 %v6051
    %v6431 = vunpack.c.l.b16 %v6052
    %v6432 = vunpack.c.h.b16 %v6052
    %v6433 = vunpack.c.l.b16 %v6053
    %v6434 = vunpack.c.h.b16 %v6053
    %v6435 = vunpack.c.l.b16 %v6054
    %v6436 = vunpack.c.h.b16 %v6054
    %v6437 = vunpack.c.l.b16 %v6055
    %v6438 = vunpack.c.h.b16 %v6055
    %v6439 = vunpack.c.l.b16 %v6056
    %v6440 = vunpack.c.h.b16 %v6056
    %v6441 = vunpack.c.l.b16 %v6057
    %v6442 = vunpack.c.h.b16 %v6057
    %v6443 = vunpack.c.l.b16 %v6058
    %v6444 = vunpack.c.h.b16 %v6058
    %v6445 = vunpack.c.l.b16 %v6059
    %v6446 = vunpack.c.h.b16 %v6059
    %v6447 = vunpack.c.l.b16 %v6060
    %v6448 = vunpack.c.h.b16 %v6060
    %v6449 = vunpack.c.l.b16 %v6061
    %v6450 = vunpack.c.h.b16 %v6061
    %v6451 = vunpack.c.l.b16 %v6062
    %v6452 = vunpack.c.h.b16 %v6062
    %v6453 = vunpack.c.l.b16 %v6063
    %v6454 = vunpack.c.h.b16 %v6063
    %v6455 = vunpack.c.l.b16 %v6064
    %v6456 = vunpack.c.h.b16 %v6064
    %v6457 = vunpack.c.l.b16 %v6065
    %v6458 = vunpack.c.h.b16 %v6065
    %v6459 = vunpack.c.l.b16 %v6066
    %v6460 = vunpack.c.h.b16 %v6066
    %v6461 = vunpack.c.l.b16 %v6067
    %v6462 = vunpack.c.h.b16 %v6067
    %v6463 = vunpack.c.l.b16 %v6068
    %v6464 = vunpack.c.h.b16 %v6068
    %v6465 = vunpack.c.l.b16 %v6069
    %v6466 = vunpack.c.h.b16 %v6069
    %v6467 = vunpack.c.l.b16 %v6070
    %v6468 = vunpack.c.h.b16 %v6070
    %v6469 = vunpack.c.l.b16 %v6071
    %v6470 = vunpack.c.h.b16 %v6071
    %v6471 = vunpack.c.l.b16 %v6072
    %v6472 = vunpack.c.h.b16 %v6072
    %v6473 = vunpack.c.l.b16 %v6073
    %v6474 = vunpack.c.h.b16 %v6073
    %v6475 = vunpack.c.l.b16 %v6074
    %v6476 = vunpack.c.h.b16 %v6074
    %v6477 = vunpack.c.l.b16 %v6075
    %v6478 = vunpack.c.h.b16 %v6075
    %v6479 = vunpack.c.l.b16 %v6076
    %v6480 = vunpack.c.h.b16 %v6076
    %v6481 = vunpack.c.l.b16 %v6077
    %v6482 = vunpack.c.h.b16 %v6077
    %v6483 = vunpack.c.l.b16 %v6078
    %v6484 = vunpack.c.h.b16 %v6078
    %v6485 = vpack.c.b16 %v6233, %v6229
    %v6486 = vpack.c.b16 %v6234, %v6230
    %v6487 = vpack.c.b16 %v6235, %v6231
    %v6488 = vpack.c.b16 %v6236, %v6232
    %v6489 = vpack.c.b16 %v6241, %v6237
    %v6490 = vpack.c.b16 %v6242, %v6238
    %v6491 = vpack.c.b16 %v6243, %v6239
    %v6492 = vpack.c.b16 %v6244, %v6240
    %v6493 = vpack.c.b16 %v6249, %v6245
    %v6494 = vpack.c.b16 %v6250, %v6246
    %v6495 = vpack.c.b16 %v6251, %v6247
    %v6496 = vpack.c.b16 %v6252, %v6248
    %v6497 = vpack.c.b16 %v6257, %v6253
    %v6498 = vpack.c.b16 %v6258, %v6254
    %v6499 = vpack.c.b16 %v6259, %v6255
    %v6500 = vpack.c.b16 %v6260, %v6256
    %v6501 = vpack.c.b16 %v6265, %v6261
    %v6502 = vpack.c.b16 %v6266, %v6262
    %v6503 = vpack.c.b16 %v6267, %v6263
    %v6504 = vpack.c.b16 %v6268, %v6264
    %v6505 = vpack.c.b16 %v6273, %v6269
    %v6506 = vpack.c.b16 %v6274, %v6270
    %v6507 = vpack.c.b16 %v6275, %v6271
    %v6508 = vpack.c.b16 %v6276, %v6272
    %v6509 = vpack.c.b16 %v6281, %v6277
    %v6510 = vpack.c.b16 %v6282, %v6278
    %v6511 = vpack.c.b16 %v6283, %v6279
    %v6512 = vpack.c.b16 %v6284, %v6280
    %v6513 = vpack.c.b16 %v6289, %v6285
    %v6514 = vpack.c.b16 %v6290, %v6286
    %v6515 = vpack.c.b16 %v6291, %v6287
    %v6516 = vpack.c.b16 %v6292, %v6288
    %v6517 = vpack.c.b16 %v6297, %v6293
    %v6518 = vpack.c.b16 %v6298, %v6294
    %v6519 = vpack.c.b16 %v6299, %v6295
    %v6520 = vpack.c.b16 %v6300, %v6296
    %v6521 = vpack.c.b16 %v6305, %v6301
    %v6522 = vpack.c.b16 %v6306, %v6302
    %v6523 = vpack.c.b16 %v6307, %v6303
    %v6524 = vpack.c.b16 %v6308, %v6304
    %v6525 = vpack.c.b16 %v6313, %v6309
    %v6526 = vpack.c.b16 %v6314, %v6310
    %v6527 = vpack.c.b16 %v6315, %v6311
    %v6528 = vpack.c.b16 %v6316, %v6312
    %v6529 = vpack.c.b16 %v6321, %v6317
    %v6530 = vpack.c.b16 %v6322, %v6318
    %v6531 = vpack.c.b16 %v6323, %v6319
    %v6532 = vpack.c.b16 %v6324, %v6320
    %v6533 = vpack.c.b16 %v6329, %v6325
    %v6534 = vpack.c.b16 %v6330, %v6326
    %v6535 = vpack.c.b16 %v6331, %v6327
    %v6536 = vpack.c.b16 %v6332, %v6328
    %v6537 = vpack.c.b16 %v6337, %v6333
    %v6538 = vpack.c.b16 %v6338, %v6334
    %v6539 = vpack.c.b16 %v6339, %v6335
    %v6540 = vpack.c.b16 %v6340, %v6336
    %v6541 = vpack.c.b16 %v6345, %v6341
    %v6542 = vpack.c.b16 %v6346, %v6342
    %v6543 = vpack.c.b16 %v6347, %v6343
    %v6544 = vpack.c.b16 %v6348, %v6344
    %v6545 = vpack.c.b16 %v6353, %v6349
    %v6546 = vpack.c.b16 %v6354, %v6350
    %v6547 = vpack.c.b16 %v6355, %v6351
    %v6548 = vpack.c.b16 %v6356, %v6352
    %v6549 = vpack.c.b16 %v6361, %v6357
    %v6550 = vpack.c.b16 %v6362, %v6358
    %v6551 = vpack.c.b16 %v6363, %v6359
    %v6552 = vpack.c.b16 %v6364, %v6360
    %v6553 = vpack.c.b16 %v6369, %v6365
    %v6554 = vpack.c.b16 %v6370, %v6366
    %v6555 = vpack.c.b16 %v6371, %v6367
    %v6556 = vpack.c.b16 %v6372, %v6368
    %v6557 = vpack.c.b16 %v6377, %v6373
    %v6558 = vpack.c.b16 %v6378, %v6374
    %v6559 = vpack.c.b16 %v6379, %v6375
    %v6560 = vpack.c.b16 %v6380, %v6376
    %v6561 = vpack.c.b16 %v6385, %v6381
    %v6562 = vpack.c.b16 %v6386, %v6382
    %v6563 = vpack.c.b16 %v6387, %v6383
    %v6564 = vpack.c.b16 %v6388, %v6384
    %v6565 = vpack.c.b16 %v6393, %v6389
    %v6566 = vpack.c.b16 %v6394, %v6390
    %v6567 = vpack.c.b16 %v6395, %v6391
    %v6568 = vpack.c.b16 %v6396, %v6392
    %v6569 = vpack.c.b16 %v6401, %v6397
    %v6570 = vpack.c.b16 %v6402, %v6398
    %v6571 = vpack.c.b16 %v6403, %v6399
    %v6572 = vpack.c.b16 %v6404, %v6400
    %v6573 = vpack.c.b16 %v6409, %v6405
    %v6574 = vpack.c.b16 %v6410, %v6406
    %v6575 = vpack.c.b16 %v6411, %v6407
    %v6576 = vpack.c.b16 %v6412, %v6408
    %v6577 = vpack.c.b16 %v6417, %v6413
    %v6578 = vpack.c.b16 %v6418, %v6414
    %v6579 = vpack.c.b16 %v6419, %v6415
    %v6580 = vpack.c.b16 %v6420, %v6416
    %v6581 = vpack.c.b16 %v6425, %v6421
    %v6582 = vpack.c.b16 %v6426, %v6422
    %v6583 = vpack.c.b16 %v6427, %v6423
    %v6584 = vpack.c.b16 %v6428, %v6424
    %v6585 = vpack.c.b16 %v6433, %v6429
    %v6586 = vpack.c.b16 %v6434, %v6430
    %v6587 = vpack.c.b16 %v6435, %v6431
    %v6588 = vpack.c.b16 %v6436, %v6432
    %v6589 = vpack.c.b16 %v6441, %v6437
    %v6590 = vpack.c.b16 %v6442, %v6438
    %v6591 = vpack.c.b16 %v6443, %v6439
    %v6592 = vpack.c.b16 %v6444, %v6440
    %v6593 = vpack.c.b16 %v6449, %v6445
    %v6594 = vpack.c.b16 %v6450, %v6446
    %v6595 = vpack.c.b16 %v6451, %v6447
    %v6596 = vpack.c.b16 %v6452, %v6448
    %v6597 = vpack.c.b16 %v6457, %v6453
    %v6598 = vpack.c.b16 %v6458, %v6454
    %v6599 = vpack.c.b16 %v6459, %v6455
    %v6600 = vpack.c.b16 %v6460, %v6456
    %v6601 = vpack.c.b16 %v6465, %v6461
    %v6602 = vpack.c.b16 %v6466, %v6462
    %v6603 = vpack.c.b16 %v6467, %v6463
    %v6604 = vpack.c.b16 %v6468, %v6464
    %v6605 = vpack.c.b16 %v6473, %v6469
    %v6606 = vpack.c.b16 %v6474, %v6470
    %v6607 = vpack.c.b16 %v6475, %v6471
    %v6608 = vpack.c.b16 %v6476, %v6472
    %v6609 = vpack.c.b16 %v6481, %v6477
    %v6610 = vpack.c.b16 %v6482, %v6478
    %v6611 = vpack.c.b16 %v6483, %v6479
    %v6612 = vpack.c.b16 %v6484, %v6480
    %6741 = vmatprep.subr.bf16.mxu0 %v6514
    %6742 = vmatpush1.bf16.msra.mxu0 %v6513
    %6743 = vmatprep.subr.bf16.mxu0 %v6510
    %6744 = vmatpush1.bf16.msra.mxu0 %v6509
    %6745 = vmatprep.subr.bf16.mxu0 %v6506
    %6746 = vmatpush1.bf16.msra.mxu0 %v6505
    %6747 = vmatprep.subr.bf16.mxu0 %v6502
    %6748 = vmatpush1.bf16.msra.mxu0 %v6501
    %6749 = vmatprep.subr.bf16.mxu0 %v6498
    %6750 = vmatpush1.bf16.msra.mxu0 %v6497
    %6751 = vmatprep.subr.bf16.mxu0 %v6494
    %6752 = vmatpush1.bf16.msra.mxu0 %v6493
    %6753 = vmatprep.subr.bf16.mxu0 %v6490
    %6754 = vmatpush1.bf16.msra.mxu0 %v6489
    %6755 = vmatprep.subr.bf16.mxu0 %v6486
    %6756 = vmatpush1.bf16.msra.mxu0 %v6485
    %6757 = vmatprep.subr.bf16.mxu0 %v6546
    %6758 = vmatpush2.bf16.msra.mxu0 %v6545
    %6759 = vmatprep.subr.bf16.mxu0 %v6542
    %6760 = vmatpush2.bf16.msra.mxu0 %v6541
    %6761 = vmatprep.subr.bf16.mxu0 %v6538
    %6762 = vmatpush2.bf16.msra.mxu0 %v6537
    %6763 = vmatprep.subr.bf16.mxu0 %v6534
    %6764 = vmatpush2.bf16.msra.mxu0 %v6533
    %6765 = vmatprep.subr.bf16.mxu0 %v6530
    %6766 = vmatpush2.bf16.msra.mxu0 %v6529
    %6767 = vmatprep.subr.bf16.mxu0 %v6526
    %6768 = vmatpush2.bf16.msra.mxu0 %v6525
    %6769 = vmatprep.subr.bf16.mxu0 %v6522
    %6770 = vmatpush2.bf16.msra.mxu0 %v6521
    %6771 = vmatprep.subr.bf16.mxu0 %v6518
    %6772 = vmatpush2.bf16.msra.mxu0 %v6517
    %6773 = vmatprep.mubr.bf16.mxu0 %v5948
    %6774 = vmatmul.mubr.bf16.gmra.mxu0 %v5947
    %v6775 = vpop.f32.mrf.mxu0
    %v6776 = vadd.f32 %v6084, %v6775
    %v6777 = vpop.f32.mrf.mxu0
    %v6778 = vadd.f32 %v6088, %v6777
    %v6779 = vpop.f32.mrf.mxu0
    %v6780 = vpop.f32.mrf.mxu0
    %6781 = vdwg.mxu0
    %6782 = vmatprep.subr.bf16.mxu0 %v6578
    %6783 = vmatpush1.bf16.msra.mxu0 %v6577
    %6784 = vmatprep.subr.bf16.mxu0 %v6574
    %6785 = vmatpush1.bf16.msra.mxu0 %v6573
    %6786 = vmatprep.subr.bf16.mxu0 %v6570
    %6787 = vmatpush1.bf16.msra.mxu0 %v6569
    %6788 = vmatprep.subr.bf16.mxu0 %v6566
    %6789 = vmatpush1.bf16.msra.mxu0 %v6565
    %6790 = vmatprep.subr.bf16.mxu0 %v6562
    %6791 = vmatpush1.bf16.msra.mxu0 %v6561
    %6792 = vmatprep.subr.bf16.mxu0 %v6558
    %6793 = vmatpush1.bf16.msra.mxu0 %v6557
    %6794 = vmatprep.subr.bf16.mxu0 %v6554
    %6795 = vmatpush1.bf16.msra.mxu0 %v6553
    %6796 = vmatprep.subr.bf16.mxu0 %v6550
    %6797 = vmatpush1.bf16.msra.mxu0 %v6549
    %6798 = vmatprep.subr.bf16.mxu0 %v6610
    %6799 = vmatpush2.bf16.msra.mxu0 %v6609
    %6800 = vmatprep.subr.bf16.mxu0 %v6606
    %6801 = vmatpush2.bf16.msra.mxu0 %v6605
    %6802 = vmatprep.subr.bf16.mxu0 %v6602
    %6803 = vmatpush2.bf16.msra.mxu0 %v6601
    %6804 = vmatprep.subr.bf16.mxu0 %v6598
    %6805 = vmatpush2.bf16.msra.mxu0 %v6597
    %6806 = vmatprep.subr.bf16.mxu0 %v6594
    %6807 = vmatpush2.bf16.msra.mxu0 %v6593
    %6808 = vmatprep.subr.bf16.mxu0 %v6590
    %6809 = vmatpush2.bf16.msra.mxu0 %v6589
    %6810 = vmatprep.subr.bf16.mxu0 %v6586
    %6811 = vmatpush2.bf16.msra.mxu0 %v6585
    %6812 = vmatprep.subr.bf16.mxu0 %v6582
    %6813 = vmatpush2.bf16.msra.mxu0 %v6581
    %6814 = vmatprep.mubr.bf16.mxu0 %v5950
    %6815 = vmatmul.mubr.bf16.gmra.mxu0 %v5949
    %v6816 = vpop.f32.mrf.mxu0
    %v6817 = vadd.f32 %v6776, %v6816
    %v6818 = vpop.f32.mrf.mxu0
    %v6819 = vadd.f32 %v6778, %v6818
    %v6820 = vpop.f32.mrf.mxu0
    %v6821 = vpop.f32.mrf.mxu0
    %6822 = vdwg.mxu0
    %6823 = vmatprep.subr.bf16.mxu0 %v6516
    %6824 = vmatpush1.bf16.msra.mxu0 %v6515
    %6825 = vmatprep.subr.bf16.mxu0 %v6512
    %6826 = vmatpush1.bf16.msra.mxu0 %v6511
    %6827 = vmatprep.subr.bf16.mxu0 %v6508
    %6828 = vmatpush1.bf16.msra.mxu0 %v6507
    %6829 = vmatprep.subr.bf16.mxu0 %v6504
    %6830 = vmatpush1.bf16.msra.mxu0 %v6503
    %6831 = vmatprep.subr.bf16.mxu0 %v6500
    %6832 = vmatpush1.bf16.msra.mxu0 %v6499
    %6833 = vmatprep.subr.bf16.mxu0 %v6496
    %6834 = vmatpush1.bf16.msra.mxu0 %v6495
    %6835 = vmatprep.subr.bf16.mxu0 %v6492
    %6836 = vmatpush1.bf16.msra.mxu0 %v6491
    %6837 = vmatprep.subr.bf16.mxu0 %v6488
    %6838 = vmatpush1.bf16.msra.mxu0 %v6487
    %6839 = vmatprep.subr.bf16.mxu0 %v6548
    %6840 = vmatpush2.bf16.msra.mxu0 %v6547
    %6841 = vmatprep.subr.bf16.mxu0 %v6544
    %6842 = vmatpush2.bf16.msra.mxu0 %v6543
    %6843 = vmatprep.subr.bf16.mxu0 %v6540
    %6844 = vmatpush2.bf16.msra.mxu0 %v6539
    %6845 = vmatprep.subr.bf16.mxu0 %v6536
    %6846 = vmatpush2.bf16.msra.mxu0 %v6535
    %6847 = vmatprep.subr.bf16.mxu0 %v6532
    %6848 = vmatpush2.bf16.msra.mxu0 %v6531
    %6849 = vmatprep.subr.bf16.mxu0 %v6528
    %6850 = vmatpush2.bf16.msra.mxu0 %v6527
    %6851 = vmatprep.subr.bf16.mxu0 %v6524
    %6852 = vmatpush2.bf16.msra.mxu0 %v6523
    %6853 = vmatprep.subr.bf16.mxu0 %v6520
    %6854 = vmatpush2.bf16.msra.mxu0 %v6519
    %6855 = vmatprep.mubr.bf16.mxu0 %v5948
    %6856 = vmatmul.mubr.bf16.gmra.mxu0 %v5947
    %v6857 = vpop.f32.mrf.mxu0
    %v6858 = vadd.f32 %v6092, %v6857
    %v6859 = vpop.f32.mrf.mxu0
    %v6860 = vadd.f32 %v6096, %v6859
    %v6861 = vpop.f32.mrf.mxu0
    %v6862 = vpop.f32.mrf.mxu0
    %6863 = vdwg.mxu0
    %6864 = vmatprep.subr.bf16.mxu0 %v6580
    %6865 = vmatpush1.bf16.msra.mxu0 %v6579
    %6866 = vmatprep.subr.bf16.mxu0 %v6576
    %6867 = vmatpush1.bf16.msra.mxu0 %v6575
    %6868 = vmatprep.subr.bf16.mxu0 %v6572
    %6869 = vmatpush1.bf16.msra.mxu0 %v6571
    %6870 = vmatprep.subr.bf16.mxu0 %v6568
    %6871 = vmatpush1.bf16.msra.mxu0 %v6567
    %6872 = vmatprep.subr.bf16.mxu0 %v6564
    %6873 = vmatpush1.bf16.msra.mxu0 %v6563
    %6874 = vmatprep.subr.bf16.mxu0 %v6560
    %6875 = vmatpush1.bf16.msra.mxu0 %v6559
    %6876 = vmatprep.subr.bf16.mxu0 %v6556
    %6877 = vmatpush1.bf16.msra.mxu0 %v6555
    %6878 = vmatprep.subr.bf16.mxu0 %v6552
    %6879 = vmatpush1.bf16.msra.mxu0 %v6551
    %6880 = vmatprep.subr.bf16.mxu0 %v6612
    %6881 = vmatpush2.bf16.msra.mxu0 %v6611
    %6882 = vmatprep.subr.bf16.mxu0 %v6608
    %6883 = vmatpush2.bf16.msra.mxu0 %v6607
    %6884 = vmatprep.subr.bf16.mxu0 %v6604
    %6885 = vmatpush2.bf16.msra.mxu0 %v6603
    %6886 = vmatprep.subr.bf16.mxu0 %v6600
    %6887 = vmatpush2.bf16.msra.mxu0 %v6599
    %6888 = vmatprep.subr.bf16.mxu0 %v6596
    %6889 = vmatpush2.bf16.msra.mxu0 %v6595
    %6890 = vmatprep.subr.bf16.mxu0 %v6592
    %6891 = vmatpush2.bf16.msra.mxu0 %v6591
    %6892 = vmatprep.subr.bf16.mxu0 %v6588
    %6893 = vmatpush2.bf16.msra.mxu0 %v6587
    %6894 = vmatprep.subr.bf16.mxu0 %v6584
    %6895 = vmatpush2.bf16.msra.mxu0 %v6583
    %6896 = vmatprep.mubr.bf16.mxu0 %v5950
    %6897 = vmatmul.mubr.bf16.gmra.mxu0 %v5949
    %v6898 = vpop.f32.mrf.mxu0
    %v6899 = vadd.f32 %v6858, %v6898
    %v6900 = vpop.f32.mrf.mxu0
    %v6901 = vadd.f32 %v6860, %v6900
    %v6902 = vpop.f32.mrf.mxu0
    %v6903 = vpop.f32.mrf.mxu0
    %6904 = vdwg.mxu0
    %v6905 = vmax.f32 %v6817, 0.0
    %v6906 = vmax.f32 %v6819, 0.0
    %v6907 = vmax.f32 %v6899, 0.0
    %v6908 = vmax.f32 %v6901, 0.0
    %v6909 = vpack.c.bf16 %v6905, %v6905
    %v6910 = vpack.c.bf16 %v6906, %v6906
    %v6911 = vpack.c.bf16 %v6907, %v6907
    %v6912 = vpack.c.bf16 %v6908, %v6908
    %v6913 = vld [vmem:[#allocation14] sm:$0xff]
    %v6914 = vld [vmem:[#allocation14 + $0x8] sm:$0xff]
    %v6915 = vld [vmem:[#allocation14 + $0x10] sm:$0xff]
    %v6916 = vld [vmem:[#allocation14 + $0x18] sm:$0xff]
    %v6917 = vld [vmem:[#allocation14 + $0x20] sm:$0xff]
    %v6918 = vld [vmem:[#allocation14 + $0x28] sm:$0xff]
    %v6919 = vld [vmem:[#allocation14 + $0x30] sm:$0xff]
    %v6920 = vld [vmem:[#allocation14 + $0x38] sm:$0xff]
    %v6921 = vld [vmem:[#allocation14 + $0x40] sm:$0xff]
    %v6922 = vld [vmem:[#allocation14 + $0x48] sm:$0xff]
    %v6923 = vld [vmem:[#allocation14 + $0x50] sm:$0xff]
    %v6924 = vld [vmem:[#allocation14 + $0x58] sm:$0xff]
    %v6925 = vld [vmem:[#allocation14 + $0x60] sm:$0xff]
    %v6926 = vld [vmem:[#allocation14 + $0x68] sm:$0xff]
    %v6927 = vld [vmem:[#allocation14 + $0x70] sm:$0xff]
    %v6928 = vld [vmem:[#allocation14 + $0x78] sm:$0xff]
    %v6929 = vld [vmem:[#allocation14 + $0x80] sm:$0xff]
    %v6930 = vld [vmem:[#allocation14 + $0x88] sm:$0xff]
    %v6931 = vld [vmem:[#allocation14 + $0x90] sm:$0xff]
    %v6932 = vld [vmem:[#allocation14 + $0x98] sm:$0xff]
    %v6933 = vld [vmem:[#allocation14 + $0xa0] sm:$0xff]
    %v6934 = vld [vmem:[#allocation14 + $0xa8] sm:$0xff]
    %v6935 = vld [vmem:[#allocation14 + $0xb0] sm:$0xff]
    %v6936 = vld [vmem:[#allocation14 + $0xb8] sm:$0xff]
    %v6937 = vld [vmem:[#allocation14 + $0xc0] sm:$0xff]
    %v6938 = vld [vmem:[#allocation14 + $0xc8] sm:$0xff]
    %v6939 = vld [vmem:[#allocation14 + $0xd0] sm:$0xff]
    %v6940 = vld [vmem:[#allocation14 + $0xd8] sm:$0xff]
    %v6941 = vld [vmem:[#allocation14 + $0xe0] sm:$0xff]
    %v6942 = vld [vmem:[#allocation14 + $0xe8] sm:$0xff]
    %v6943 = vld [vmem:[#allocation14 + $0xf0] sm:$0xff]
    %v6944 = vld [vmem:[#allocation14 + $0xf8] sm:$0xff]
    %v6945 = vld [vmem:[#allocation14 + $0x100] sm:$0xff]
    %v6946 = vld [vmem:[#allocation14 + $0x108] sm:$0xff]
    %v6947 = vld [vmem:[#allocation14 + $0x110] sm:$0xff]
    %v6948 = vld [vmem:[#allocation14 + $0x118] sm:$0xff]
    %v6949 = vld [vmem:[#allocation14 + $0x120] sm:$0xff]
    %v6950 = vld [vmem:[#allocation14 + $0x128] sm:$0xff]
    %v6951 = vld [vmem:[#allocation14 + $0x130] sm:$0xff]
    %v6952 = vld [vmem:[#allocation14 + $0x138] sm:$0xff]
    %v6953 = vld [vmem:[#allocation14 + $0x140] sm:$0xff]
    %v6954 = vld [vmem:[#allocation14 + $0x148] sm:$0xff]
    %v6955 = vld [vmem:[#allocation14 + $0x150] sm:$0xff]
    %v6956 = vld [vmem:[#allocation14 + $0x158] sm:$0xff]
    %v6957 = vld [vmem:[#allocation14 + $0x160] sm:$0xff]
    %v6958 = vld [vmem:[#allocation14 + $0x168] sm:$0xff]
    %v6959 = vld [vmem:[#allocation14 + $0x170] sm:$0xff]
    %v6960 = vld [vmem:[#allocation14 + $0x178] sm:$0xff]
    %v6961 = vld [vmem:[#allocation14 + $0x180] sm:$0xff]
    %v6962 = vld [vmem:[#allocation14 + $0x188] sm:$0xff]
    %v6963 = vld [vmem:[#allocation14 + $0x190] sm:$0xff]
    %v6964 = vld [vmem:[#allocation14 + $0x198] sm:$0xff]
    %v6965 = vld [vmem:[#allocation14 + $0x1a0] sm:$0xff]
    %v6966 = vld [vmem:[#allocation14 + $0x1a8] sm:$0xff]
    %v6967 = vld [vmem:[#allocation14 + $0x1b0] sm:$0xff]
    %v6968 = vld [vmem:[#allocation14 + $0x1b8] sm:$0xff]
    %v6969 = vld [vmem:[#allocation14 + $0x1c0] sm:$0xff]
    %v6970 = vld [vmem:[#allocation14 + $0x1c8] sm:$0xff]
    %v6971 = vld [vmem:[#allocation14 + $0x1d0] sm:$0xff]
    %v6972 = vld [vmem:[#allocation14 + $0x1d8] sm:$0xff]
    %v6973 = vld [vmem:[#allocation14 + $0x1e0] sm:$0xff]
    %v6974 = vld [vmem:[#allocation14 + $0x1e8] sm:$0xff]
    %v6975 = vld [vmem:[#allocation14 + $0x1f0] sm:$0xff]
    %v6976 = vld [vmem:[#allocation14 + $0x1f8] sm:$0xff]
    %v6977 = vld [vmem:[#allocation14 + $0x200] sm:$0xff]
    %v6978 = vld [vmem:[#allocation14 + $0x208] sm:$0xff]
    %v6979 = vld [vmem:[#allocation14 + $0x210] sm:$0xff]
    %v6980 = vld [vmem:[#allocation14 + $0x218] sm:$0xff]
    %v6981 = vld [vmem:[#allocation14 + $0x220] sm:$0xff]
    %v6982 = vld [vmem:[#allocation14 + $0x228] sm:$0xff]
    %v6983 = vld [vmem:[#allocation14 + $0x230] sm:$0xff]
    %v6984 = vld [vmem:[#allocation14 + $0x238] sm:$0xff]
    %v6985 = vld [vmem:[#allocation14 + $0x240] sm:$0xff]
    %v6986 = vld [vmem:[#allocation14 + $0x248] sm:$0xff]
    %v6987 = vld [vmem:[#allocation14 + $0x250] sm:$0xff]
    %v6988 = vld [vmem:[#allocation14 + $0x258] sm:$0xff]
    %v6989 = vld [vmem:[#allocation14 + $0x260] sm:$0xff]
    %v6990 = vld [vmem:[#allocation14 + $0x268] sm:$0xff]
    %v6991 = vld [vmem:[#allocation14 + $0x270] sm:$0xff]
    %v6992 = vld [vmem:[#allocation14 + $0x278] sm:$0xff]
    %v6993 = vld [vmem:[#allocation14 + $0x280] sm:$0xff]
    %v6994 = vld [vmem:[#allocation14 + $0x288] sm:$0xff]
    %v6995 = vld [vmem:[#allocation14 + $0x290] sm:$0xff]
    %v6996 = vld [vmem:[#allocation14 + $0x298] sm:$0xff]
    %v6997 = vld [vmem:[#allocation14 + $0x2a0] sm:$0xff]
    %v6998 = vld [vmem:[#allocation14 + $0x2a8] sm:$0xff]
    %v6999 = vld [vmem:[#allocation14 + $0x2b0] sm:$0xff]
    %v7000 = vld [vmem:[#allocation14 + $0x2b8] sm:$0xff]
    %v7001 = vld [vmem:[#allocation14 + $0x2c0] sm:$0xff]
    %v7002 = vld [vmem:[#allocation14 + $0x2c8] sm:$0xff]
    %v7003 = vld [vmem:[#allocation14 + $0x2d0] sm:$0xff]
    %v7004 = vld [vmem:[#allocation14 + $0x2d8] sm:$0xff]
    %v7005 = vld [vmem:[#allocation14 + $0x2e0] sm:$0xff]
    %v7006 = vld [vmem:[#allocation14 + $0x2e8] sm:$0xff]
    %v7007 = vld [vmem:[#allocation14 + $0x2f0] sm:$0xff]
    %v7008 = vld [vmem:[#allocation14 + $0x2f8] sm:$0xff]
    %v7009 = vld [vmem:[#allocation14 + $0x300] sm:$0xff]
    %v7010 = vld [vmem:[#allocation14 + $0x308] sm:$0xff]
    %v7011 = vld [vmem:[#allocation14 + $0x310] sm:$0xff]
    %v7012 = vld [vmem:[#allocation14 + $0x318] sm:$0xff]
    %v7013 = vld [vmem:[#allocation14 + $0x320] sm:$0xff]
    %v7014 = vld [vmem:[#allocation14 + $0x328] sm:$0xff]
    %v7015 = vld [vmem:[#allocation14 + $0x330] sm:$0xff]
    %v7016 = vld [vmem:[#allocation14 + $0x338] sm:$0xff]
    %v7017 = vld [vmem:[#allocation14 + $0x340] sm:$0xff]
    %v7018 = vld [vmem:[#allocation14 + $0x348] sm:$0xff]
    %v7019 = vld [vmem:[#allocation14 + $0x350] sm:$0xff]
    %v7020 = vld [vmem:[#allocation14 + $0x358] sm:$0xff]
    %v7021 = vld [vmem:[#allocation14 + $0x360] sm:$0xff]
    %v7022 = vld [vmem:[#allocation14 + $0x368] sm:$0xff]
    %v7023 = vld [vmem:[#allocation14 + $0x370] sm:$0xff]
    %v7024 = vld [vmem:[#allocation14 + $0x378] sm:$0xff]
    %v7025 = vld [vmem:[#allocation14 + $0x380] sm:$0xff]
    %v7026 = vld [vmem:[#allocation14 + $0x388] sm:$0xff]
    %v7027 = vld [vmem:[#allocation14 + $0x390] sm:$0xff]
    %v7028 = vld [vmem:[#allocation14 + $0x398] sm:$0xff]
    %v7029 = vld [vmem:[#allocation14 + $0x3a0] sm:$0xff]
    %v7030 = vld [vmem:[#allocation14 + $0x3a8] sm:$0xff]
    %v7031 = vld [vmem:[#allocation14 + $0x3b0] sm:$0xff]
    %v7032 = vld [vmem:[#allocation14 + $0x3b8] sm:$0xff]
    %v7033 = vld [vmem:[#allocation14 + $0x3c0] sm:$0xff]
    %v7034 = vld [vmem:[#allocation14 + $0x3c8] sm:$0xff]
    %v7035 = vld [vmem:[#allocation14 + $0x3d0] sm:$0xff]
    %v7036 = vld [vmem:[#allocation14 + $0x3d8] sm:$0xff]
    %v7037 = vld [vmem:[#allocation14 + $0x3e0] sm:$0xff]
    %v7038 = vld [vmem:[#allocation14 + $0x3e8] sm:$0xff]
    %v7039 = vld [vmem:[#allocation14 + $0x3f0] sm:$0xff]
    %v7040 = vld [vmem:[#allocation14 + $0x3f8] sm:$0xff]
    %v7041 = vld [vmem:[#allocation16] sm:$0xf]
    %v7043 = vlaneseq
    %v7044 = vshrl.u32 %v7043, 7
    %v7045 = vsub.s32 0, %v7044
    %v7046 = vrot.slane %v7041, %v7045
    %v7047 = vlaneseq
    %v7048 = vshrl.u32 %v7047, 7
    %v7049 = vsub.s32 1, %v7048
    %v7050 = vrot.slane %v7041, %v7049
    %v7051 = vlaneseq
    %v7052 = vshrl.u32 %v7051, 7
    %v7053 = vsub.s32 2, %v7052
    %v7054 = vrot.slane %v7041, %v7053
    %v7055 = vlaneseq
    %v7056 = vshrl.u32 %v7055, 7
    %v7057 = vsub.s32 3, %v7056
    %v7058 = vrot.slane %v7041, %v7057
    %v7191 = vunpack.c.l.b16 %v6913
    %v7192 = vunpack.c.h.b16 %v6913
    %v7193 = vunpack.c.l.b16 %v6914
    %v7194 = vunpack.c.h.b16 %v6914
    %v7195 = vunpack.c.l.b16 %v6915
    %v7196 = vunpack.c.h.b16 %v6915
    %v7197 = vunpack.c.l.b16 %v6916
    %v7198 = vunpack.c.h.b16 %v6916
    %v7199 = vunpack.c.l.b16 %v6917
    %v7200 = vunpack.c.h.b16 %v6917
    %v7201 = vunpack.c.l.b16 %v6918
    %v7202 = vunpack.c.h.b16 %v6918
    %v7203 = vunpack.c.l.b16 %v6919
    %v7204 = vunpack.c.h.b16 %v6919
    %v7205 = vunpack.c.l.b16 %v6920
    %v7206 = vunpack.c.h.b16 %v6920
    %v7207 = vunpack.c.l.b16 %v6921
    %v7208 = vunpack.c.h.b16 %v6921
    %v7209 = vunpack.c.l.b16 %v6922
    %v7210 = vunpack.c.h.b16 %v6922
    %v7211 = vunpack.c.l.b16 %v6923
    %v7212 = vunpack.c.h.b16 %v6923
    %v7213 = vunpack.c.l.b16 %v6924
    %v7214 = vunpack.c.h.b16 %v6924
    %v7215 = vunpack.c.l.b16 %v6925
    %v7216 = vunpack.c.h.b16 %v6925
    %v7217 = vunpack.c.l.b16 %v6926
    %v7218 = vunpack.c.h.b16 %v6926
    %v7219 = vunpack.c.l.b16 %v6927
    %v7220 = vunpack.c.h.b16 %v6927
    %v7221 = vunpack.c.l.b16 %v6928
    %v7222 = vunpack.c.h.b16 %v6928
    %v7223 = vunpack.c.l.b16 %v6929
    %v7224 = vunpack.c.h.b16 %v6929
    %v7225 = vunpack.c.l.b16 %v6930
    %v7226 = vunpack.c.h.b16 %v6930
    %v7227 = vunpack.c.l.b16 %v6931
    %v7228 = vunpack.c.h.b16 %v6931
    %v7229 = vunpack.c.l.b16 %v6932
    %v7230 = vunpack.c.h.b16 %v6932
    %v7231 = vunpack.c.l.b16 %v6933
    %v7232 = vunpack.c.h.b16 %v6933
    %v7233 = vunpack.c.l.b16 %v6934
    %v7234 = vunpack.c.h.b16 %v6934
    %v7235 = vunpack.c.l.b16 %v6935
    %v7236 = vunpack.c.h.b16 %v6935
    %v7237 = vunpack.c.l.b16 %v6936
    %v7238 = vunpack.c.h.b16 %v6936
    %v7239 = vunpack.c.l.b16 %v6937
    %v7240 = vunpack.c.h.b16 %v6937
    %v7241 = vunpack.c.l.b16 %v6938
    %v7242 = vunpack.c.h.b16 %v6938
    %v7243 = vunpack.c.l.b16 %v6939
    %v7244 = vunpack.c.h.b16 %v6939
    %v7245 = vunpack.c.l.b16 %v6940
    %v7246 = vunpack.c.h.b16 %v6940
    %v7247 = vunpack.c.l.b16 %v6941
    %v7248 = vunpack.c.h.b16 %v6941
    %v7249 = vunpack.c.l.b16 %v6942
    %v7250 = vunpack.c.h.b16 %v6942
    %v7251 = vunpack.c.l.b16 %v6943
    %v7252 = vunpack.c.h.b16 %v6943
    %v7253 = vunpack.c.l.b16 %v6944
    %v7254 = vunpack.c.h.b16 %v6944
    %v7255 = vunpack.c.l.b16 %v6945
    %v7256 = vunpack.c.h.b16 %v6945
    %v7257 = vunpack.c.l.b16 %v6946
    %v7258 = vunpack.c.h.b16 %v6946
    %v7259 = vunpack.c.l.b16 %v6947
    %v7260 = vunpack.c.h.b16 %v6947
    %v7261 = vunpack.c.l.b16 %v6948
    %v7262 = vunpack.c.h.b16 %v6948
    %v7263 = vunpack.c.l.b16 %v6949
    %v7264 = vunpack.c.h.b16 %v6949
    %v7265 = vunpack.c.l.b16 %v6950
    %v7266 = vunpack.c.h.b16 %v6950
    %v7267 = vunpack.c.l.b16 %v6951
    %v7268 = vunpack.c.h.b16 %v6951
    %v7269 = vunpack.c.l.b16 %v6952
    %v7270 = vunpack.c.h.b16 %v6952
    %v7271 = vunpack.c.l.b16 %v6953
    %v7272 = vunpack.c.h.b16 %v6953
    %v7273 = vunpack.c.l.b16 %v6954
    %v7274 = vunpack.c.h.b16 %v6954
    %v7275 = vunpack.c.l.b16 %v6955
    %v7276 = vunpack.c.h.b16 %v6955
    %v7277 = vunpack.c.l.b16 %v6956
    %v7278 = vunpack.c.h.b16 %v6956
    %v7279 = vunpack.c.l.b16 %v6957
    %v7280 = vunpack.c.h.b16 %v6957
    %v7281 = vunpack.c.l.b16 %v6958
    %v7282 = vunpack.c.h.b16 %v6958
    %v7283 = vunpack.c.l.b16 %v6959
    %v7284 = vunpack.c.h.b16 %v6959
    %v7285 = vunpack.c.l.b16 %v6960
    %v7286 = vunpack.c.h.b16 %v6960
    %v7287 = vunpack.c.l.b16 %v6961
    %v7288 = vunpack.c.h.b16 %v6961
    %v7289 = vunpack.c.l.b16 %v6962
    %v7290 = vunpack.c.h.b16 %v6962
    %v7291 = vunpack.c.l.b16 %v6963
    %v7292 = vunpack.c.h.b16 %v6963
    %v7293 = vunpack.c.l.b16 %v6964
    %v7294 = vunpack.c.h.b16 %v6964
    %v7295 = vunpack.c.l.b16 %v6965
    %v7296 = vunpack.c.h.b16 %v6965
    %v7297 = vunpack.c.l.b16 %v6966
    %v7298 = vunpack.c.h.b16 %v6966
    %v7299 = vunpack.c.l.b16 %v6967
    %v7300 = vunpack.c.h.b16 %v6967
    %v7301 = vunpack.c.l.b16 %v6968
    %v7302 = vunpack.c.h.b16 %v6968
    %v7303 = vunpack.c.l.b16 %v6969
    %v7304 = vunpack.c.h.b16 %v6969
    %v7305 = vunpack.c.l.b16 %v6970
    %v7306 = vunpack.c.h.b16 %v6970
    %v7307 = vunpack.c.l.b16 %v6971
    %v7308 = vunpack.c.h.b16 %v6971
    %v7309 = vunpack.c.l.b16 %v6972
    %v7310 = vunpack.c.h.b16 %v6972
    %v7311 = vunpack.c.l.b16 %v6973
    %v7312 = vunpack.c.h.b16 %v6973
    %v7313 = vunpack.c.l.b16 %v6974
    %v7314 = vunpack.c.h.b16 %v6974
    %v7315 = vunpack.c.l.b16 %v6975
    %v7316 = vunpack.c.h.b16 %v6975
    %v7317 = vunpack.c.l.b16 %v6976
    %v7318 = vunpack.c.h.b16 %v6976
    %v7319 = vunpack.c.l.b16 %v6977
    %v7320 = vunpack.c.h.b16 %v6977
    %v7321 = vunpack.c.l.b16 %v6978
    %v7322 = vunpack.c.h.b16 %v6978
    %v7323 = vunpack.c.l.b16 %v6979
    %v7324 = vunpack.c.h.b16 %v6979
    %v7325 = vunpack.c.l.b16 %v6980
    %v7326 = vunpack.c.h.b16 %v6980
    %v7327 = vunpack.c.l.b16 %v6981
    %v7328 = vunpack.c.h.b16 %v6981
    %v7329 = vunpack.c.l.b16 %v6982
    %v7330 = vunpack.c.h.b16 %v6982
    %v7331 = vunpack.c.l.b16 %v6983
    %v7332 = vunpack.c.h.b16 %v6983
    %v7333 = vunpack.c.l.b16 %v6984
    %v7334 = vunpack.c.h.b16 %v6984
    %v7335 = vunpack.c.l.b16 %v6985
    %v7336 = vunpack.c.h.b16 %v6985
    %v7337 = vunpack.c.l.b16 %v6986
    %v7338 = vunpack.c.h.b16 %v6986
    %v7339 = vunpack.c.l.b16 %v6987
    %v7340 = vunpack.c.h.b16 %v6987
    %v7341 = vunpack.c.l.b16 %v6988
    %v7342 = vunpack.c.h.b16 %v6988
    %v7343 = vunpack.c.l.b16 %v6989
    %v7344 = vunpack.c.h.b16 %v6989
    %v7345 = vunpack.c.l.b16 %v6990
    %v7346 = vunpack.c.h.b16 %v6990
    %v7347 = vunpack.c.l.b16 %v6991
    %v7348 = vunpack.c.h.b16 %v6991
    %v7349 = vunpack.c.l.b16 %v6992
    %v7350 = vunpack.c.h.b16 %v6992
    %v7351 = vunpack.c.l.b16 %v6993
    %v7352 = vunpack.c.h.b16 %v6993
    %v7353 = vunpack.c.l.b16 %v6994
    %v7354 = vunpack.c.h.b16 %v6994
    %v7355 = vunpack.c.l.b16 %v6995
    %v7356 = vunpack.c.h.b16 %v6995
    %v7357 = vunpack.c.l.b16 %v6996
    %v7358 = vunpack.c.h.b16 %v6996
    %v7359 = vunpack.c.l.b16 %v6997
    %v7360 = vunpack.c.h.b16 %v6997
    %v7361 = vunpack.c.l.b16 %v6998
    %v7362 = vunpack.c.h.b16 %v6998
    %v7363 = vunpack.c.l.b16 %v6999
    %v7364 = vunpack.c.h.b16 %v6999
    %v7365 = vunpack.c.l.b16 %v7000
    %v7366 = vunpack.c.h.b16 %v7000
    %v7367 = vunpack.c.l.b16 %v7001
    %v7368 = vunpack.c.h.b16 %v7001
    %v7369 = vunpack.c.l.b16 %v7002
    %v7370 = vunpack.c.h.b16 %v7002
    %v7371 = vunpack.c.l.b16 %v7003
    %v7372 = vunpack.c.h.b16 %v7003
    %v7373 = vunpack.c.l.b16 %v7004
    %v7374 = vunpack.c.h.b16 %v7004
    %v7375 = vunpack.c.l.b16 %v7005
    %v7376 = vunpack.c.h.b16 %v7005
    %v7377 = vunpack.c.l.b16 %v7006
    %v7378 = vunpack.c.h.b16 %v7006
    %v7379 = vunpack.c.l.b16 %v7007
    %v7380 = vunpack.c.h.b16 %v7007
    %v7381 = vunpack.c.l.b16 %v7008
    %v7382 = vunpack.c.h.b16 %v7008
    %v7383 = vunpack.c.l.b16 %v7009
    %v7384 = vunpack.c.h.b16 %v7009
    %v7385 = vunpack.c.l.b16 %v7010
    %v7386 = vunpack.c.h.b16 %v7010
    %v7387 = vunpack.c.l.b16 %v7011
    %v7388 = vunpack.c.h.b16 %v7011
    %v7389 = vunpack.c.l.b16 %v7012
    %v7390 = vunpack.c.h.b16 %v7012
    %v7391 = vunpack.c.l.b16 %v7013
    %v7392 = vunpack.c.h.b16 %v7013
    %v7393 = vunpack.c.l.b16 %v7014
    %v7394 = vunpack.c.h.b16 %v7014
    %v7395 = vunpack.c.l.b16 %v7015
    %v7396 = vunpack.c.h.b16 %v7015
    %v7397 = vunpack.c.l.b16 %v7016
    %v7398 = vunpack.c.h.b16 %v7016
    %v7399 = vunpack.c.l.b16 %v7017
    %v7400 = vunpack.c.h.b16 %v7017
    %v7401 = vunpack.c.l.b16 %v7018
    %v7402 = vunpack.c.h.b16 %v7018
    %v7403 = vunpack.c.l.b16 %v7019
    %v7404 = vunpack.c.h.b16 %v7019
    %v7405 = vunpack.c.l.b16 %v7020
    %v7406 = vunpack.c.h.b16 %v7020
    %v7407 = vunpack.c.l.b16 %v7021
    %v7408 = vunpack.c.h.b16 %v7021
    %v7409 = vunpack.c.l.b16 %v7022
    %v7410 = vunpack.c.h.b16 %v7022
    %v7411 = vunpack.c.l.b16 %v7023
    %v7412 = vunpack.c.h.b16 %v7023
    %v7413 = vunpack.c.l.b16 %v7024
    %v7414 = vunpack.c.h.b16 %v7024
    %v7415 = vunpack.c.l.b16 %v7025
    %v7416 = vunpack.c.h.b16 %v7025
    %v7417 = vunpack.c.l.b16 %v7026
    %v7418 = vunpack.c.h.b16 %v7026
    %v7419 = vunpack.c.l.b16 %v7027
    %v7420 = vunpack.c.h.b16 %v7027
    %v7421 = vunpack.c.l.b16 %v7028
    %v7422 = vunpack.c.h.b16 %v7028
    %v7423 = vunpack.c.l.b16 %v7029
    %v7424 = vunpack.c.h.b16 %v7029
    %v7425 = vunpack.c.l.b16 %v7030
    %v7426 = vunpack.c.h.b16 %v7030
    %v7427 = vunpack.c.l.b16 %v7031
    %v7428 = vunpack.c.h.b16 %v7031
    %v7429 = vunpack.c.l.b16 %v7032
    %v7430 = vunpack.c.h.b16 %v7032
    %v7431 = vunpack.c.l.b16 %v7033
    %v7432 = vunpack.c.h.b16 %v7033
    %v7433 = vunpack.c.l.b16 %v7034
    %v7434 = vunpack.c.h.b16 %v7034
    %v7435 = vunpack.c.l.b16 %v7035
    %v7436 = vunpack.c.h.b16 %v7035
    %v7437 = vunpack.c.l.b16 %v7036
    %v7438 = vunpack.c.h.b16 %v7036
    %v7439 = vunpack.c.l.b16 %v7037
    %v7440 = vunpack.c.h.b16 %v7037
    %v7441 = vunpack.c.l.b16 %v7038
    %v7442 = vunpack.c.h.b16 %v7038
    %v7443 = vunpack.c.l.b16 %v7039
    %v7444 = vunpack.c.h.b16 %v7039
    %v7445 = vunpack.c.l.b16 %v7040
    %v7446 = vunpack.c.h.b16 %v7040
    %v7447 = vpack.c.b16 %v7195, %v7191
    %v7448 = vpack.c.b16 %v7196, %v7192
    %v7449 = vpack.c.b16 %v7197, %v7193
    %v7450 = vpack.c.b16 %v7198, %v7194
    %v7451 = vpack.c.b16 %v7203, %v7199
    %v7452 = vpack.c.b16 %v7204, %v7200
    %v7453 = vpack.c.b16 %v7205, %v7201
    %v7454 = vpack.c.b16 %v7206, %v7202
    %v7455 = vpack.c.b16 %v7211, %v7207
    %v7456 = vpack.c.b16 %v7212, %v7208
    %v7457 = vpack.c.b16 %v7213, %v7209
    %v7458 = vpack.c.b16 %v7214, %v7210
    %v7459 = vpack.c.b16 %v7219, %v7215
    %v7460 = vpack.c.b16 %v7220, %v7216
    %v7461 = vpack.c.b16 %v7221, %v7217
    %v7462 = vpack.c.b16 %v7222, %v7218
    %v7463 = vpack.c.b16 %v7227, %v7223
    %v7464 = vpack.c.b16 %v7228, %v7224
    %v7465 = vpack.c.b16 %v7229, %v7225
    %v7466 = vpack.c.b16 %v7230, %v7226
    %v7467 = vpack.c.b16 %v7235, %v7231
    %v7468 = vpack.c.b16 %v7236, %v7232
    %v7469 = vpack.c.b16 %v7237, %v7233
    %v7470 = vpack.c.b16 %v7238, %v7234
    %v7471 = vpack.c.b16 %v7243, %v7239
    %v7472 = vpack.c.b16 %v7244, %v7240
    %v7473 = vpack.c.b16 %v7245, %v7241
    %v7474 = vpack.c.b16 %v7246, %v7242
    %v7475 = vpack.c.b16 %v7251, %v7247
    %v7476 = vpack.c.b16 %v7252, %v7248
    %v7477 = vpack.c.b16 %v7253, %v7249
    %v7478 = vpack.c.b16 %v7254, %v7250
    %v7479 = vpack.c.b16 %v7259, %v7255
    %v7480 = vpack.c.b16 %v7260, %v7256
    %v7481 = vpack.c.b16 %v7261, %v7257
    %v7482 = vpack.c.b16 %v7262, %v7258
    %v7483 = vpack.c.b16 %v7267, %v7263
    %v7484 = vpack.c.b16 %v7268, %v7264
    %v7485 = vpack.c.b16 %v7269, %v7265
    %v7486 = vpack.c.b16 %v7270, %v7266
    %v7487 = vpack.c.b16 %v7275, %v7271
    %v7488 = vpack.c.b16 %v7276, %v7272
    %v7489 = vpack.c.b16 %v7277, %v7273
    %v7490 = vpack.c.b16 %v7278, %v7274
    %v7491 = vpack.c.b16 %v7283, %v7279
    %v7492 = vpack.c.b16 %v7284, %v7280
    %v7493 = vpack.c.b16 %v7285, %v7281
    %v7494 = vpack.c.b16 %v7286, %v7282
    %v7495 = vpack.c.b16 %v7291, %v7287
    %v7496 = vpack.c.b16 %v7292, %v7288
    %v7497 = vpack.c.b16 %v7293, %v7289
    %v7498 = vpack.c.b16 %v7294, %v7290
    %v7499 = vpack.c.b16 %v7299, %v7295
    %v7500 = vpack.c.b16 %v7300, %v7296
    %v7501 = vpack.c.b16 %v7301, %v7297
    %v7502 = vpack.c.b16 %v7302, %v7298
    %v7503 = vpack.c.b16 %v7307, %v7303
    %v7504 = vpack.c.b16 %v7308, %v7304
    %v7505 = vpack.c.b16 %v7309, %v7305
    %v7506 = vpack.c.b16 %v7310, %v7306
    %v7507 = vpack.c.b16 %v7315, %v7311
    %v7508 = vpack.c.b16 %v7316, %v7312
    %v7509 = vpack.c.b16 %v7317, %v7313
    %v7510 = vpack.c.b16 %v7318, %v7314
    %v7511 = vpack.c.b16 %v7323, %v7319
    %v7512 = vpack.c.b16 %v7324, %v7320
    %v7513 = vpack.c.b16 %v7325, %v7321
    %v7514 = vpack.c.b16 %v7326, %v7322
    %v7515 = vpack.c.b16 %v7331, %v7327
    %v7516 = vpack.c.b16 %v7332, %v7328
    %v7517 = vpack.c.b16 %v7333, %v7329
    %v7518 = vpack.c.b16 %v7334, %v7330
    %v7519 = vpack.c.b16 %v7339, %v7335
    %v7520 = vpack.c.b16 %v7340, %v7336
    %v7521 = vpack.c.b16 %v7341, %v7337
    %v7522 = vpack.c.b16 %v7342, %v7338
    %v7523 = vpack.c.b16 %v7347, %v7343
    %v7524 = vpack.c.b16 %v7348, %v7344
    %v7525 = vpack.c.b16 %v7349, %v7345
    %v7526 = vpack.c.b16 %v7350, %v7346
    %v7527 = vpack.c.b16 %v7355, %v7351
    %v7528 = vpack.c.b16 %v7356, %v7352
    %v7529 = vpack.c.b16 %v7357, %v7353
    %v7530 = vpack.c.b16 %v7358, %v7354
    %v7531 = vpack.c.b16 %v7363, %v7359
    %v7532 = vpack.c.b16 %v7364, %v7360
    %v7533 = vpack.c.b16 %v7365, %v7361
    %v7534 = vpack.c.b16 %v7366, %v7362
    %v7535 = vpack.c.b16 %v7371, %v7367
    %v7536 = vpack.c.b16 %v7372, %v7368
    %v7537 = vpack.c.b16 %v7373, %v7369
    %v7538 = vpack.c.b16 %v7374, %v7370
    %v7539 = vpack.c.b16 %v7379, %v7375
    %v7540 = vpack.c.b16 %v7380, %v7376
    %v7541 = vpack.c.b16 %v7381, %v7377
    %v7542 = vpack.c.b16 %v7382, %v7378
    %v7543 = vpack.c.b16 %v7387, %v7383
    %v7544 = vpack.c.b16 %v7388, %v7384
    %v7545 = vpack.c.b16 %v7389, %v7385
    %v7546 = vpack.c.b16 %v7390, %v7386
    %v7547 = vpack.c.b16 %v7395, %v7391
    %v7548 = vpack.c.b16 %v7396, %v7392
    %v7549 = vpack.c.b16 %v7397, %v7393
    %v7550 = vpack.c.b16 %v7398, %v7394
    %v7551 = vpack.c.b16 %v7403, %v7399
    %v7552 = vpack.c.b16 %v7404, %v7400
    %v7553 = vpack.c.b16 %v7405, %v7401
    %v7554 = vpack.c.b16 %v7406, %v7402
    %v7555 = vpack.c.b16 %v7411, %v7407
    %v7556 = vpack.c.b16 %v7412, %v7408
    %v7557 = vpack.c.b16 %v7413, %v7409
    %v7558 = vpack.c.b16 %v7414, %v7410
    %v7559 = vpack.c.b16 %v7419, %v7415
    %v7560 = vpack.c.b16 %v7420, %v7416
    %v7561 = vpack.c.b16 %v7421, %v7417
    %v7562 = vpack.c.b16 %v7422, %v7418
    %v7563 = vpack.c.b16 %v7427, %v7423
    %v7564 = vpack.c.b16 %v7428, %v7424
    %v7565 = vpack.c.b16 %v7429, %v7425
    %v7566 = vpack.c.b16 %v7430, %v7426
    %v7567 = vpack.c.b16 %v7435, %v7431
    %v7568 = vpack.c.b16 %v7436, %v7432
    %v7569 = vpack.c.b16 %v7437, %v7433
    %v7570 = vpack.c.b16 %v7438, %v7434
    %v7571 = vpack.c.b16 %v7443, %v7439
    %v7572 = vpack.c.b16 %v7444, %v7440
    %v7573 = vpack.c.b16 %v7445, %v7441
    %v7574 = vpack.c.b16 %v7446, %v7442
    %7703 = vmatprep.subr.bf16.mxu0 %v7476
    %7704 = vmatpush1.bf16.msra.mxu0 %v7475
    %7705 = vmatprep.subr.bf16.mxu0 %v7472
    %7706 = vmatpush1.bf16.msra.mxu0 %v7471
    %7707 = vmatprep.subr.bf16.mxu0 %v7468
    %7708 = vmatpush1.bf16.msra.mxu0 %v7467
    %7709 = vmatprep.subr.bf16.mxu0 %v7464
    %7710 = vmatpush1.bf16.msra.mxu0 %v7463
    %7711 = vmatprep.subr.bf16.mxu0 %v7460
    %7712 = vmatpush1.bf16.msra.mxu0 %v7459
    %7713 = vmatprep.subr.bf16.mxu0 %v7456
    %7714 = vmatpush1.bf16.msra.mxu0 %v7455
    %7715 = vmatprep.subr.bf16.mxu0 %v7452
    %7716 = vmatpush1.bf16.msra.mxu0 %v7451
    %7717 = vmatprep.subr.bf16.mxu0 %v7448
    %7718 = vmatpush1.bf16.msra.mxu0 %v7447
    %7719 = vmatprep.subr.bf16.mxu0 %v7508
    %7720 = vmatpush2.bf16.msra.mxu0 %v7507
    %7721 = vmatprep.subr.bf16.mxu0 %v7504
    %7722 = vmatpush2.bf16.msra.mxu0 %v7503
    %7723 = vmatprep.subr.bf16.mxu0 %v7500
    %7724 = vmatpush2.bf16.msra.mxu0 %v7499
    %7725 = vmatprep.subr.bf16.mxu0 %v7496
    %7726 = vmatpush2.bf16.msra.mxu0 %v7495
    %7727 = vmatprep.subr.bf16.mxu0 %v7492
    %7728 = vmatpush2.bf16.msra.mxu0 %v7491
    %7729 = vmatprep.subr.bf16.mxu0 %v7488
    %7730 = vmatpush2.bf16.msra.mxu0 %v7487
    %7731 = vmatprep.subr.bf16.mxu0 %v7484
    %7732 = vmatpush2.bf16.msra.mxu0 %v7483
    %7733 = vmatprep.subr.bf16.mxu0 %v7480
    %7734 = vmatpush2.bf16.msra.mxu0 %v7479
    %7735 = vmatprep.mubr.bf16.mxu0 %v6910
    %7736 = vmatmul.mubr.bf16.gmra.mxu0 %v6909
    %v7737 = vpop.f32.mrf.mxu0
    %v7738 = vadd.f32 %v7046, %v7737
    %v7739 = vpop.f32.mrf.mxu0
    %v7740 = vadd.f32 %v7050, %v7739
    %v7741 = vpop.f32.mrf.mxu0
    %v7742 = vpop.f32.mrf.mxu0
    %7743 = vdwg.mxu0
    %7744 = vmatprep.subr.bf16.mxu0 %v7540
    %7745 = vmatpush1.bf16.msra.mxu0 %v7539
    %7746 = vmatprep.subr.bf16.mxu0 %v7536
    %7747 = vmatpush1.bf16.msra.mxu0 %v7535
    %7748 = vmatprep.subr.bf16.mxu0 %v7532
    %7749 = vmatpush1.bf16.msra.mxu0 %v7531
    %7750 = vmatprep.subr.bf16.mxu0 %v7528
    %7751 = vmatpush1.bf16.msra.mxu0 %v7527
    %7752 = vmatprep.subr.bf16.mxu0 %v7524
    %7753 = vmatpush1.bf16.msra.mxu0 %v7523
    %7754 = vmatprep.subr.bf16.mxu0 %v7520
    %7755 = vmatpush1.bf16.msra.mxu0 %v7519
    %7756 = vmatprep.subr.bf16.mxu0 %v7516
    %7757 = vmatpush1.bf16.msra.mxu0 %v7515
    %7758 = vmatprep.subr.bf16.mxu0 %v7512
    %7759 = vmatpush1.bf16.msra.mxu0 %v7511
    %7760 = vmatprep.subr.bf16.mxu0 %v7572
    %7761 = vmatpush2.bf16.msra.mxu0 %v7571
    %7762 = vmatprep.subr.bf16.mxu0 %v7568
    %7763 = vmatpush2.bf16.msra.mxu0 %v7567
    %7764 = vmatprep.subr.bf16.mxu0 %v7564
    %7765 = vmatpush2.bf16.msra.mxu0 %v7563
    %7766 = vmatprep.subr.bf16.mxu0 %v7560
    %7767 = vmatpush2.bf16.msra.mxu0 %v7559
    %7768 = vmatprep.subr.bf16.mxu0 %v7556
    %7769 = vmatpush2.bf16.msra.mxu0 %v7555
    %7770 = vmatprep.subr.bf16.mxu0 %v7552
    %7771 = vmatpush2.bf16.msra.mxu0 %v7551
    %7772 = vmatprep.subr.bf16.mxu0 %v7548
    %7773 = vmatpush2.bf16.msra.mxu0 %v7547
    %7774 = vmatprep.subr.bf16.mxu0 %v7544
    %7775 = vmatpush2.bf16.msra.mxu0 %v7543
    %7776 = vmatprep.mubr.bf16.mxu0 %v6912
    %7777 = vmatmul.mubr.bf16.gmra.mxu0 %v6911
    %v7778 = vpop.f32.mrf.mxu0
    %v7779 = vadd.f32 %v7738, %v7778
    %v7780 = vpop.f32.mrf.mxu0
    %v7781 = vadd.f32 %v7740, %v7780
    %v7782 = vpop.f32.mrf.mxu0
    %v7783 = vpop.f32.mrf.mxu0
    %7784 = vdwg.mxu0
    %7785 = vmatprep.subr.bf16.mxu0 %v7478
    %7786 = vmatpush1.bf16.msra.mxu0 %v7477
    %7787 = vmatprep.subr.bf16.mxu0 %v7474
    %7788 = vmatpush1.bf16.msra.mxu0 %v7473
    %7789 = vmatprep.subr.bf16.mxu0 %v7470
    %7790 = vmatpush1.bf16.msra.mxu0 %v7469
    %7791 = vmatprep.subr.bf16.mxu0 %v7466
    %7792 = vmatpush1.bf16.msra.mxu0 %v7465
    %7793 = vmatprep.subr.bf16.mxu0 %v7462
    %7794 = vmatpush1.bf16.msra.mxu0 %v7461
    %7795 = vmatprep.subr.bf16.mxu0 %v7458
    %7796 = vmatpush1.bf16.msra.mxu0 %v7457
    %7797 = vmatprep.subr.bf16.mxu0 %v7454
    %7798 = vmatpush1.bf16.msra.mxu0 %v7453
    %7799 = vmatprep.subr.bf16.mxu0 %v7450
    %7800 = vmatpush1.bf16.msra.mxu0 %v7449
    %7801 = vmatprep.subr.bf16.mxu0 %v7510
    %7802 = vmatpush2.bf16.msra.mxu0 %v7509
    %7803 = vmatprep.subr.bf16.mxu0 %v7506
    %7804 = vmatpush2.bf16.msra.mxu0 %v7505
    %7805 = vmatprep.subr.bf16.mxu0 %v7502
    %7806 = vmatpush2.bf16.msra.mxu0 %v7501
    %7807 = vmatprep.subr.bf16.mxu0 %v7498
    %7808 = vmatpush2.bf16.msra.mxu0 %v7497
    %7809 = vmatprep.subr.bf16.mxu0 %v7494
    %7810 = vmatpush2.bf16.msra.mxu0 %v7493
    %7811 = vmatprep.subr.bf16.mxu0 %v7490
    %7812 = vmatpush2.bf16.msra.mxu0 %v7489
    %7813 = vmatprep.subr.bf16.mxu0 %v7486
    %7814 = vmatpush2.bf16.msra.mxu0 %v7485
    %7815 = vmatprep.subr.bf16.mxu0 %v7482
    %7816 = vmatpush2.bf16.msra.mxu0 %v7481
    %7817 = vmatprep.mubr.bf16.mxu0 %v6910
    %7818 = vmatmul.mubr.bf16.gmra.mxu0 %v6909
    %v7819 = vpop.f32.mrf.mxu0
    %v7820 = vadd.f32 %v7054, %v7819
    %v7821 = vpop.f32.mrf.mxu0
    %v7822 = vadd.f32 %v7058, %v7821
    %v7823 = vpop.f32.mrf.mxu0
    %v7824 = vpop.f32.mrf.mxu0
    %7825 = vdwg.mxu0
    %7826 = vmatprep.subr.bf16.mxu0 %v7542
    %7827 = vmatpush1.bf16.msra.mxu0 %v7541
    %7828 = vmatprep.subr.bf16.mxu0 %v7538
    %7829 = vmatpush1.bf16.msra.mxu0 %v7537
    %7830 = vmatprep.subr.bf16.mxu0 %v7534
    %7831 = vmatpush1.bf16.msra.mxu0 %v7533
    %7832 = vmatprep.subr.bf16.mxu0 %v7530
    %7833 = vmatpush1.bf16.msra.mxu0 %v7529
    %7834 = vmatprep.subr.bf16.mxu0 %v7526
    %7835 = vmatpush1.bf16.msra.mxu0 %v7525
    %7836 = vmatprep.subr.bf16.mxu0 %v7522
    %7837 = vmatpush1.bf16.msra.mxu0 %v7521
    %7838 = vmatprep.subr.bf16.mxu0 %v7518
    %7839 = vmatpush1.bf16.msra.mxu0 %v7517
    %7840 = vmatprep.subr.bf16.mxu0 %v7514
    %7841 = vmatpush1.bf16.msra.mxu0 %v7513
    %7842 = vmatprep.subr.bf16.mxu0 %v7574
    %7843 = vmatpush2.bf16.msra.mxu0 %v7573
    %7844 = vmatprep.subr.bf16.mxu0 %v7570
    %7845 = vmatpush2.bf16.msra.mxu0 %v7569
    %7846 = vmatprep.subr.bf16.mxu0 %v7566
    %7847 = vmatpush2.bf16.msra.mxu0 %v7565
    %7848 = vmatprep.subr.bf16.mxu0 %v7562
    %7849 = vmatpush2.bf16.msra.mxu0 %v7561
    %7850 = vmatprep.subr.bf16.mxu0 %v7558
    %7851 = vmatpush2.bf16.msra.mxu0 %v7557
    %7852 = vmatprep.subr.bf16.mxu0 %v7554
    %7853 = vmatpush2.bf16.msra.mxu0 %v7553
    %7854 = vmatprep.subr.bf16.mxu0 %v7550
    %7855 = vmatpush2.bf16.msra.mxu0 %v7549
    %7856 = vmatprep.subr.bf16.mxu0 %v7546
    %7857 = vmatpush2.bf16.msra.mxu0 %v7545
    %7858 = vmatprep.mubr.bf16.mxu0 %v6912
    %7859 = vmatmul.mubr.bf16.gmra.mxu0 %v6911
    %v7860 = vpop.f32.mrf.mxu0
    %v7861 = vadd.f32 %v7820, %v7860
    %v7862 = vpop.f32.mrf.mxu0
    %v7863 = vadd.f32 %v7822, %v7862
    %v7864 = vpop.f32.mrf.mxu0
    %v7865 = vpop.f32.mrf.mxu0
    %7866 = vdwg.mxu0
    %v7867 = vmax.f32 %v7779, 0.0
    %v7868 = vmax.f32 %v7781, 0.0
    %v7869 = vmax.f32 %v7861, 0.0
    %v7870 = vmax.f32 %v7863, 0.0
    %v7871 = vpack.c.bf16 %v7867, %v7867
    %v7872 = vpack.c.bf16 %v7868, %v7868
    %v7873 = vpack.c.bf16 %v7869, %v7869
    %v7874 = vpack.c.bf16 %v7870, %v7870
    %v7875 = vld [vmem:[#allocation17] sm:$0xff]
    %v7876 = vld [vmem:[#allocation17 + $0x8] sm:$0xff]
    %v7877 = vld [vmem:[#allocation17 + $0x10] sm:$0xff]
    %v7878 = vld [vmem:[#allocation17 + $0x18] sm:$0xff]
    %v7879 = vld [vmem:[#allocation17 + $0x20] sm:$0xff]
    %v7880 = vld [vmem:[#allocation17 + $0x28] sm:$0xff]
    %v7881 = vld [vmem:[#allocation17 + $0x30] sm:$0xff]
    %v7882 = vld [vmem:[#allocation17 + $0x38] sm:$0xff]
    %v7883 = vld [vmem:[#allocation17 + $0x40] sm:$0xff]
    %v7884 = vld [vmem:[#allocation17 + $0x48] sm:$0xff]
    %v7885 = vld [vmem:[#allocation17 + $0x50] sm:$0xff]
    %v7886 = vld [vmem:[#allocation17 + $0x58] sm:$0xff]
    %v7887 = vld [vmem:[#allocation17 + $0x60] sm:$0xff]
    %v7888 = vld [vmem:[#allocation17 + $0x68] sm:$0xff]
    %v7889 = vld [vmem:[#allocation17 + $0x70] sm:$0xff]
    %v7890 = vld [vmem:[#allocation17 + $0x78] sm:$0xff]
    %v7891 = vld [vmem:[#allocation17 + $0x80] sm:$0xff]
    %v7892 = vld [vmem:[#allocation17 + $0x88] sm:$0xff]
    %v7893 = vld [vmem:[#allocation17 + $0x90] sm:$0xff]
    %v7894 = vld [vmem:[#allocation17 + $0x98] sm:$0xff]
    %v7895 = vld [vmem:[#allocation17 + $0xa0] sm:$0xff]
    %v7896 = vld [vmem:[#allocation17 + $0xa8] sm:$0xff]
    %v7897 = vld [vmem:[#allocation17 + $0xb0] sm:$0xff]
    %v7898 = vld [vmem:[#allocation17 + $0xb8] sm:$0xff]
    %v7899 = vld [vmem:[#allocation17 + $0xc0] sm:$0xff]
    %v7900 = vld [vmem:[#allocation17 + $0xc8] sm:$0xff]
    %v7901 = vld [vmem:[#allocation17 + $0xd0] sm:$0xff]
    %v7902 = vld [vmem:[#allocation17 + $0xd8] sm:$0xff]
    %v7903 = vld [vmem:[#allocation17 + $0xe0] sm:$0xff]
    %v7904 = vld [vmem:[#allocation17 + $0xe8] sm:$0xff]
    %v7905 = vld [vmem:[#allocation17 + $0xf0] sm:$0xff]
    %v7906 = vld [vmem:[#allocation17 + $0xf8] sm:$0xff]
    %v7907 = vld [vmem:[#allocation17 + $0x100] sm:$0xff]
    %v7908 = vld [vmem:[#allocation17 + $0x108] sm:$0xff]
    %v7909 = vld [vmem:[#allocation17 + $0x110] sm:$0xff]
    %v7910 = vld [vmem:[#allocation17 + $0x118] sm:$0xff]
    %v7911 = vld [vmem:[#allocation17 + $0x120] sm:$0xff]
    %v7912 = vld [vmem:[#allocation17 + $0x128] sm:$0xff]
    %v7913 = vld [vmem:[#allocation17 + $0x130] sm:$0xff]
    %v7914 = vld [vmem:[#allocation17 + $0x138] sm:$0xff]
    %v7915 = vld [vmem:[#allocation17 + $0x140] sm:$0xff]
    %v7916 = vld [vmem:[#allocation17 + $0x148] sm:$0xff]
    %v7917 = vld [vmem:[#allocation17 + $0x150] sm:$0xff]
    %v7918 = vld [vmem:[#allocation17 + $0x158] sm:$0xff]
    %v7919 = vld [vmem:[#allocation17 + $0x160] sm:$0xff]
    %v7920 = vld [vmem:[#allocation17 + $0x168] sm:$0xff]
    %v7921 = vld [vmem:[#allocation17 + $0x170] sm:$0xff]
    %v7922 = vld [vmem:[#allocation17 + $0x178] sm:$0xff]
    %v7923 = vld [vmem:[#allocation17 + $0x180] sm:$0xff]
    %v7924 = vld [vmem:[#allocation17 + $0x188] sm:$0xff]
    %v7925 = vld [vmem:[#allocation17 + $0x190] sm:$0xff]
    %v7926 = vld [vmem:[#allocation17 + $0x198] sm:$0xff]
    %v7927 = vld [vmem:[#allocation17 + $0x1a0] sm:$0xff]
    %v7928 = vld [vmem:[#allocation17 + $0x1a8] sm:$0xff]
    %v7929 = vld [vmem:[#allocation17 + $0x1b0] sm:$0xff]
    %v7930 = vld [vmem:[#allocation17 + $0x1b8] sm:$0xff]
    %v7931 = vld [vmem:[#allocation17 + $0x1c0] sm:$0xff]
    %v7932 = vld [vmem:[#allocation17 + $0x1c8] sm:$0xff]
    %v7933 = vld [vmem:[#allocation17 + $0x1d0] sm:$0xff]
    %v7934 = vld [vmem:[#allocation17 + $0x1d8] sm:$0xff]
    %v7935 = vld [vmem:[#allocation17 + $0x1e0] sm:$0xff]
    %v7936 = vld [vmem:[#allocation17 + $0x1e8] sm:$0xff]
    %v7937 = vld [vmem:[#allocation17 + $0x1f0] sm:$0xff]
    %v7938 = vld [vmem:[#allocation17 + $0x1f8] sm:$0xff]
    %v7939 = vld [vmem:[#allocation19] sm:$0x3]
    %v7941 = vlaneseq
    %v7942 = vshrl.u32 %v7941, 7
    %v7943 = vsub.s32 0, %v7942
    %v7944 = vrot.slane %v7939, %v7943
    %v7945 = vlaneseq
    %v7946 = vshrl.u32 %v7945, 7
    %v7947 = vsub.s32 1, %v7946
    %v7948 = vrot.slane %v7939, %v7947
    %v8015 = vunpack.c.l.b16 %v7875
    %v8016 = vunpack.c.h.b16 %v7875
    %v8017 = vunpack.c.l.b16 %v7876
    %v8018 = vunpack.c.h.b16 %v7876
    %v8019 = vunpack.c.l.b16 %v7877
    %v8020 = vunpack.c.h.b16 %v7877
    %v8021 = vunpack.c.l.b16 %v7878
    %v8022 = vunpack.c.h.b16 %v7878
    %v8023 = vunpack.c.l.b16 %v7879
    %v8024 = vunpack.c.h.b16 %v7879
    %v8025 = vunpack.c.l.b16 %v7880
    %v8026 = vunpack.c.h.b16 %v7880
    %v8027 = vunpack.c.l.b16 %v7881
    %v8028 = vunpack.c.h.b16 %v7881
    %v8029 = vunpack.c.l.b16 %v7882
    %v8030 = vunpack.c.h.b16 %v7882
    %v8031 = vunpack.c.l.b16 %v7883
    %v8032 = vunpack.c.h.b16 %v7883
    %v8033 = vunpack.c.l.b16 %v7884
    %v8034 = vunpack.c.h.b16 %v7884
    %v8035 = vunpack.c.l.b16 %v7885
    %v8036 = vunpack.c.h.b16 %v7885
    %v8037 = vunpack.c.l.b16 %v7886
    %v8038 = vunpack.c.h.b16 %v7886
    %v8039 = vunpack.c.l.b16 %v7887
    %v8040 = vunpack.c.h.b16 %v7887
    %v8041 = vunpack.c.l.b16 %v7888
    %v8042 = vunpack.c.h.b16 %v7888
    %v8043 = vunpack.c.l.b16 %v7889
    %v8044 = vunpack.c.h.b16 %v7889
    %v8045 = vunpack.c.l.b16 %v7890
    %v8046 = vunpack.c.h.b16 %v7890
    %v8047 = vunpack.c.l.b16 %v7891
    %v8048 = vunpack.c.h.b16 %v7891
    %v8049 = vunpack.c.l.b16 %v7892
    %v8050 = vunpack.c.h.b16 %v7892
    %v8051 = vunpack.c.l.b16 %v7893
    %v8052 = vunpack.c.h.b16 %v7893
    %v8053 = vunpack.c.l.b16 %v7894
    %v8054 = vunpack.c.h.b16 %v7894
    %v8055 = vunpack.c.l.b16 %v7895
    %v8056 = vunpack.c.h.b16 %v7895
    %v8057 = vunpack.c.l.b16 %v7896
    %v8058 = vunpack.c.h.b16 %v7896
    %v8059 = vunpack.c.l.b16 %v7897
    %v8060 = vunpack.c.h.b16 %v7897
    %v8061 = vunpack.c.l.b16 %v7898
    %v8062 = vunpack.c.h.b16 %v7898
    %v8063 = vunpack.c.l.b16 %v7899
    %v8064 = vunpack.c.h.b16 %v7899
    %v8065 = vunpack.c.l.b16 %v7900
    %v8066 = vunpack.c.h.b16 %v7900
    %v8067 = vunpack.c.l.b16 %v7901
    %v8068 = vunpack.c.h.b16 %v7901
    %v8069 = vunpack.c.l.b16 %v7902
    %v8070 = vunpack.c.h.b16 %v7902
    %v8071 = vunpack.c.l.b16 %v7903
    %v8072 = vunpack.c.h.b16 %v7903
    %v8073 = vunpack.c.l.b16 %v7904
    %v8074 = vunpack.c.h.b16 %v7904
    %v8075 = vunpack.c.l.b16 %v7905
    %v8076 = vunpack.c.h.b16 %v7905
    %v8077 = vunpack.c.l.b16 %v7906
    %v8078 = vunpack.c.h.b16 %v7906
    %v8079 = vunpack.c.l.b16 %v7907
    %v8080 = vunpack.c.h.b16 %v7907
    %v8081 = vunpack.c.l.b16 %v7908
    %v8082 = vunpack.c.h.b16 %v7908
    %v8083 = vunpack.c.l.b16 %v7909
    %v8084 = vunpack.c.h.b16 %v7909
    %v8085 = vunpack.c.l.b16 %v7910
    %v8086 = vunpack.c.h.b16 %v7910
    %v8087 = vunpack.c.l.b16 %v7911
    %v8088 = vunpack.c.h.b16 %v7911
    %v8089 = vunpack.c.l.b16 %v7912
    %v8090 = vunpack.c.h.b16 %v7912
    %v8091 = vunpack.c.l.b16 %v7913
    %v8092 = vunpack.c.h.b16 %v7913
    %v8093 = vunpack.c.l.b16 %v7914
    %v8094 = vunpack.c.h.b16 %v7914
    %v8095 = vunpack.c.l.b16 %v7915
    %v8096 = vunpack.c.h.b16 %v7915
    %v8097 = vunpack.c.l.b16 %v7916
    %v8098 = vunpack.c.h.b16 %v7916
    %v8099 = vunpack.c.l.b16 %v7917
    %v8100 = vunpack.c.h.b16 %v7917
    %v8101 = vunpack.c.l.b16 %v7918
    %v8102 = vunpack.c.h.b16 %v7918
    %v8103 = vunpack.c.l.b16 %v7919
    %v8104 = vunpack.c.h.b16 %v7919
    %v8105 = vunpack.c.l.b16 %v7920
    %v8106 = vunpack.c.h.b16 %v7920
    %v8107 = vunpack.c.l.b16 %v7921
    %v8108 = vunpack.c.h.b16 %v7921
    %v8109 = vunpack.c.l.b16 %v7922
    %v8110 = vunpack.c.h.b16 %v7922
    %v8111 = vunpack.c.l.b16 %v7923
    %v8112 = vunpack.c.h.b16 %v7923
    %v8113 = vunpack.c.l.b16 %v7924
    %v8114 = vunpack.c.h.b16 %v7924
    %v8115 = vunpack.c.l.b16 %v7925
    %v8116 = vunpack.c.h.b16 %v7925
    %v8117 = vunpack.c.l.b16 %v7926
    %v8118 = vunpack.c.h.b16 %v7926
    %v8119 = vunpack.c.l.b16 %v7927
    %v8120 = vunpack.c.h.b16 %v7927
    %v8121 = vunpack.c.l.b16 %v7928
    %v8122 = vunpack.c.h.b16 %v7928
    %v8123 = vunpack.c.l.b16 %v7929
    %v8124 = vunpack.c.h.b16 %v7929
    %v8125 = vunpack.c.l.b16 %v7930
    %v8126 = vunpack.c.h.b16 %v7930
    %v8127 = vunpack.c.l.b16 %v7931
    %v8128 = vunpack.c.h.b16 %v7931
    %v8129 = vunpack.c.l.b16 %v7932
    %v8130 = vunpack.c.h.b16 %v7932
    %v8131 = vunpack.c.l.b16 %v7933
    %v8132 = vunpack.c.h.b16 %v7933
    %v8133 = vunpack.c.l.b16 %v7934
    %v8134 = vunpack.c.h.b16 %v7934
    %v8135 = vunpack.c.l.b16 %v7935
    %v8136 = vunpack.c.h.b16 %v7935
    %v8137 = vunpack.c.l.b16 %v7936
    %v8138 = vunpack.c.h.b16 %v7936
    %v8139 = vunpack.c.l.b16 %v7937
    %v8140 = vunpack.c.h.b16 %v7937
    %v8141 = vunpack.c.l.b16 %v7938
    %v8142 = vunpack.c.h.b16 %v7938
    %v8143 = vpack.c.b16 %v8017, %v8015
    %v8144 = vpack.c.b16 %v8018, %v8016
    %v8145 = vpack.c.b16 %v8021, %v8019
    %v8146 = vpack.c.b16 %v8022, %v8020
    %v8147 = vpack.c.b16 %v8025, %v8023
    %v8148 = vpack.c.b16 %v8026, %v8024
    %v8149 = vpack.c.b16 %v8029, %v8027
    %v8150 = vpack.c.b16 %v8030, %v8028
    %v8151 = vpack.c.b16 %v8033, %v8031
    %v8152 = vpack.c.b16 %v8034, %v8032
    %v8153 = vpack.c.b16 %v8037, %v8035
    %v8154 = vpack.c.b16 %v8038, %v8036
    %v8155 = vpack.c.b16 %v8041, %v8039
    %v8156 = vpack.c.b16 %v8042, %v8040
    %v8157 = vpack.c.b16 %v8045, %v8043
    %v8158 = vpack.c.b16 %v8046, %v8044
    %v8159 = vpack.c.b16 %v8049, %v8047
    %v8160 = vpack.c.b16 %v8050, %v8048
    %v8161 = vpack.c.b16 %v8053, %v8051
    %v8162 = vpack.c.b16 %v8054, %v8052
    %v8163 = vpack.c.b16 %v8057, %v8055
    %v8164 = vpack.c.b16 %v8058, %v8056
    %v8165 = vpack.c.b16 %v8061, %v8059
    %v8166 = vpack.c.b16 %v8062, %v8060
    %v8167 = vpack.c.b16 %v8065, %v8063
    %v8168 = vpack.c.b16 %v8066, %v8064
    %v8169 = vpack.c.b16 %v8069, %v8067
    %v8170 = vpack.c.b16 %v8070, %v8068
    %v8171 = vpack.c.b16 %v8073, %v8071
    %v8172 = vpack.c.b16 %v8074, %v8072
    %v8173 = vpack.c.b16 %v8077, %v8075
    %v8174 = vpack.c.b16 %v8078, %v8076
    %v8175 = vpack.c.b16 %v8081, %v8079
    %v8176 = vpack.c.b16 %v8082, %v8080
    %v8177 = vpack.c.b16 %v8085, %v8083
    %v8178 = vpack.c.b16 %v8086, %v8084
    %v8179 = vpack.c.b16 %v8089, %v8087
    %v8180 = vpack.c.b16 %v8090, %v8088
    %v8181 = vpack.c.b16 %v8093, %v8091
    %v8182 = vpack.c.b16 %v8094, %v8092
    %v8183 = vpack.c.b16 %v8097, %v8095
    %v8184 = vpack.c.b16 %v8098, %v8096
    %v8185 = vpack.c.b16 %v8101, %v8099
    %v8186 = vpack.c.b16 %v8102, %v8100
    %v8187 = vpack.c.b16 %v8105, %v8103
    %v8188 = vpack.c.b16 %v8106, %v8104
    %v8189 = vpack.c.b16 %v8109, %v8107
    %v8190 = vpack.c.b16 %v8110, %v8108
    %v8191 = vpack.c.b16 %v8113, %v8111
    %v8192 = vpack.c.b16 %v8114, %v8112
    %v8193 = vpack.c.b16 %v8117, %v8115
    %v8194 = vpack.c.b16 %v8118, %v8116
    %v8195 = vpack.c.b16 %v8121, %v8119
    %v8196 = vpack.c.b16 %v8122, %v8120
    %v8197 = vpack.c.b16 %v8125, %v8123
    %v8198 = vpack.c.b16 %v8126, %v8124
    %v8199 = vpack.c.b16 %v8129, %v8127
    %v8200 = vpack.c.b16 %v8130, %v8128
    %v8201 = vpack.c.b16 %v8133, %v8131
    %v8202 = vpack.c.b16 %v8134, %v8132
    %v8203 = vpack.c.b16 %v8137, %v8135
    %v8204 = vpack.c.b16 %v8138, %v8136
    %v8205 = vpack.c.b16 %v8141, %v8139
    %v8206 = vpack.c.b16 %v8142, %v8140
    %8271 = vmatprep.subr.bf16.mxu0 %v8158
    %8272 = vmatpush1.bf16.msra.mxu0 %v8157
    %8273 = vmatprep.subr.bf16.mxu0 %v8156
    %8274 = vmatpush1.bf16.msra.mxu0 %v8155
    %8275 = vmatprep.subr.bf16.mxu0 %v8154
    %8276 = vmatpush1.bf16.msra.mxu0 %v8153
    %8277 = vmatprep.subr.bf16.mxu0 %v8152
    %8278 = vmatpush1.bf16.msra.mxu0 %v8151
    %8279 = vmatprep.subr.bf16.mxu0 %v8150
    %8280 = vmatpush1.bf16.msra.mxu0 %v8149
    %8281 = vmatprep.subr.bf16.mxu0 %v8148
    %8282 = vmatpush1.bf16.msra.mxu0 %v8147
    %8283 = vmatprep.subr.bf16.mxu0 %v8146
    %8284 = vmatpush1.bf16.msra.mxu0 %v8145
    %8285 = vmatprep.subr.bf16.mxu0 %v8144
    %8286 = vmatpush1.bf16.msra.mxu0 %v8143
    %8287 = vmatprep.subr.bf16.mxu0 %v8174
    %8288 = vmatpush2.bf16.msra.mxu0 %v8173
    %8289 = vmatprep.subr.bf16.mxu0 %v8172
    %8290 = vmatpush2.bf16.msra.mxu0 %v8171
    %8291 = vmatprep.subr.bf16.mxu0 %v8170
    %8292 = vmatpush2.bf16.msra.mxu0 %v8169
    %8293 = vmatprep.subr.bf16.mxu0 %v8168
    %8294 = vmatpush2.bf16.msra.mxu0 %v8167
    %8295 = vmatprep.subr.bf16.mxu0 %v8166
    %8296 = vmatpush2.bf16.msra.mxu0 %v8165
    %8297 = vmatprep.subr.bf16.mxu0 %v8164
    %8298 = vmatpush2.bf16.msra.mxu0 %v8163
    %8299 = vmatprep.subr.bf16.mxu0 %v8162
    %8300 = vmatpush2.bf16.msra.mxu0 %v8161
    %8301 = vmatprep.subr.bf16.mxu0 %v8160
    %8302 = vmatpush2.bf16.msra.mxu0 %v8159
    %8303 = vmatprep.mubr.bf16.mxu0 %v7872
    %8304 = vmatmul.mubr.bf16.gmra.mxu0 %v7871
    %v8305 = vpop.f32.mrf.mxu0
    %v8306 = vadd.f32 %v7944, %v8305
    %v8307 = vpop.f32.mrf.mxu0
    %v8308 = vadd.f32 %v7948, %v8307
    %v8309 = vpop.f32.mrf.mxu0
    %v8310 = vpop.f32.mrf.mxu0
    %8311 = vdwg.mxu0
    %8312 = vmatprep.subr.bf16.mxu0 %v8190
    %8313 = vmatpush1.bf16.msra.mxu0 %v8189
    %8314 = vmatprep.subr.bf16.mxu0 %v8188
    %8315 = vmatpush1.bf16.msra.mxu0 %v8187
    %8316 = vmatprep.subr.bf16.mxu0 %v8186
    %8317 = vmatpush1.bf16.msra.mxu0 %v8185
    %8318 = vmatprep.subr.bf16.mxu0 %v8184
    %8319 = vmatpush1.bf16.msra.mxu0 %v8183
    %8320 = vmatprep.subr.bf16.mxu0 %v8182
    %8321 = vmatpush1.bf16.msra.mxu0 %v8181
    %8322 = vmatprep.subr.bf16.mxu0 %v8180
    %8323 = vmatpush1.bf16.msra.mxu0 %v8179
    %8324 = vmatprep.subr.bf16.mxu0 %v8178
    %8325 = vmatpush1.bf16.msra.mxu0 %v8177
    %8326 = vmatprep.subr.bf16.mxu0 %v8176
    %8327 = vmatpush1.bf16.msra.mxu0 %v8175
    %8328 = vmatprep.subr.bf16.mxu0 %v8206
    %8329 = vmatpush2.bf16.msra.mxu0 %v8205
    %8330 = vmatprep.subr.bf16.mxu0 %v8204
    %8331 = vmatpush2.bf16.msra.mxu0 %v8203
    %8332 = vmatprep.subr.bf16.mxu0 %v8202
    %8333 = vmatpush2.bf16.msra.mxu0 %v8201
    %8334 = vmatprep.subr.bf16.mxu0 %v8200
    %8335 = vmatpush2.bf16.msra.mxu0 %v8199
    %8336 = vmatprep.subr.bf16.mxu0 %v8198
    %8337 = vmatpush2.bf16.msra.mxu0 %v8197
    %8338 = vmatprep.subr.bf16.mxu0 %v8196
    %8339 = vmatpush2.bf16.msra.mxu0 %v8195
    %8340 = vmatprep.subr.bf16.mxu0 %v8194
    %8341 = vmatpush2.bf16.msra.mxu0 %v8193
    %8342 = vmatprep.subr.bf16.mxu0 %v8192
    %8343 = vmatpush2.bf16.msra.mxu0 %v8191
    %8344 = vmatprep.mubr.bf16.mxu0 %v7874
    %8345 = vmatmul.mubr.bf16.gmra.mxu0 %v7873
    %v8346 = vpop.f32.mrf.mxu0
    %v8347 = vadd.f32 %v8306, %v8346
    %v8348 = vpop.f32.mrf.mxu0
    %v8349 = vadd.f32 %v8308, %v8348
    %v8350 = vpop.f32.mrf.mxu0
    %v8351 = vpop.f32.mrf.mxu0
    %8352 = vdwg.mxu0
    %v8353 = vmax.f32 %v8347, 0.0
    %v8354 = vmax.f32 %v8349, 0.0
    %v8355 = vpack.c.bf16 %v8353, %v8353
    %v8356 = vpack.c.bf16 %v8354, %v8354
    %v8357 = vld [vmem:[#allocation20] sm:$0xff]
    %v8358 = vld [vmem:[#allocation20 + $0x8] sm:$0xff]
    %v8359 = vld [vmem:[#allocation20 + $0x10] sm:$0xff]
    %v8360 = vld [vmem:[#allocation20 + $0x18] sm:$0xff]
    %v8361 = vld [vmem:[#allocation20 + $0x20] sm:$0xff]
    %v8362 = vld [vmem:[#allocation20 + $0x28] sm:$0xff]
    %v8363 = vld [vmem:[#allocation20 + $0x30] sm:$0xff]
    %v8364 = vld [vmem:[#allocation20 + $0x38] sm:$0xff]
    %v8365 = vld [vmem:[#allocation20 + $0x40] sm:$0xff]
    %v8366 = vld [vmem:[#allocation20 + $0x48] sm:$0xff]
    %v8367 = vld [vmem:[#allocation20 + $0x50] sm:$0xff]
    %v8368 = vld [vmem:[#allocation20 + $0x58] sm:$0xff]
    %v8369 = vld [vmem:[#allocation20 + $0x60] sm:$0xff]
    %v8370 = vld [vmem:[#allocation20 + $0x68] sm:$0xff]
    %v8371 = vld [vmem:[#allocation20 + $0x70] sm:$0xff]
    %v8372 = vld [vmem:[#allocation20 + $0x78] sm:$0xff]
    %v8373 = vld [vmem:[#allocation20 + $0x80] sm:$0xff]
    %v8374 = vld [vmem:[#allocation20 + $0x88] sm:$0xff]
    %v8375 = vld [vmem:[#allocation20 + $0x90] sm:$0xff]
    %v8376 = vld [vmem:[#allocation20 + $0x98] sm:$0xff]
    %v8377 = vld [vmem:[#allocation20 + $0xa0] sm:$0xff]
    %v8378 = vld [vmem:[#allocation20 + $0xa8] sm:$0xff]
    %v8379 = vld [vmem:[#allocation20 + $0xb0] sm:$0xff]
    %v8380 = vld [vmem:[#allocation20 + $0xb8] sm:$0xff]
    %v8381 = vld [vmem:[#allocation20 + $0xc0] sm:$0xff]
    %v8382 = vld [vmem:[#allocation20 + $0xc8] sm:$0xff]
    %v8383 = vld [vmem:[#allocation20 + $0xd0] sm:$0xff]
    %v8384 = vld [vmem:[#allocation20 + $0xd8] sm:$0xff]
    %v8385 = vld [vmem:[#allocation20 + $0xe0] sm:$0xff]
    %v8386 = vld [vmem:[#allocation20 + $0xe8] sm:$0xff]
    %v8387 = vld [vmem:[#allocation20 + $0xf0] sm:$0xff]
    %v8388 = vld [vmem:[#allocation20 + $0xf8] sm:$0xff]
    %v8389 = vld [vmem:[#allocation22] sm:$0x3]
    %v8391 = vlaneseq
    %v8392 = vshrl.u32 %v8391, 7
    %v8393 = vsub.s32 0, %v8392
    %v8394 = vrot.slane %v8389, %v8393
    %v8395 = vlaneseq
    %v8396 = vshrl.u32 %v8395, 7
    %v8397 = vsub.s32 1, %v8396
    %v8398 = vrot.slane %v8389, %v8397
    %v8433 = vunpack.c.l.b16 %v8357
    %v8434 = vunpack.c.h.b16 %v8357
    %v8435 = vunpack.c.l.b16 %v8358
    %v8436 = vunpack.c.h.b16 %v8358
    %v8437 = vunpack.c.l.b16 %v8359
    %v8438 = vunpack.c.h.b16 %v8359
    %v8439 = vunpack.c.l.b16 %v8360
    %v8440 = vunpack.c.h.b16 %v8360
    %v8441 = vunpack.c.l.b16 %v8361
    %v8442 = vunpack.c.h.b16 %v8361
    %v8443 = vunpack.c.l.b16 %v8362
    %v8444 = vunpack.c.h.b16 %v8362
    %v8445 = vunpack.c.l.b16 %v8363
    %v8446 = vunpack.c.h.b16 %v8363
    %v8447 = vunpack.c.l.b16 %v8364
    %v8448 = vunpack.c.h.b16 %v8364
    %v8449 = vunpack.c.l.b16 %v8365
    %v8450 = vunpack.c.h.b16 %v8365
    %v8451 = vunpack.c.l.b16 %v8366
    %v8452 = vunpack.c.h.b16 %v8366
    %v8453 = vunpack.c.l.b16 %v8367
    %v8454 = vunpack.c.h.b16 %v8367
    %v8455 = vunpack.c.l.b16 %v8368
    %v8456 = vunpack.c.h.b16 %v8368
    %v8457 = vunpack.c.l.b16 %v8369
    %v8458 = vunpack.c.h.b16 %v8369
    %v8459 = vunpack.c.l.b16 %v8370
    %v8460 = vunpack.c.h.b16 %v8370
    %v8461 = vunpack.c.l.b16 %v8371
    %v8462 = vunpack.c.h.b16 %v8371
    %v8463 = vunpack.c.l.b16 %v8372
    %v8464 = vunpack.c.h.b16 %v8372
    %v8465 = vunpack.c.l.b16 %v8373
    %v8466 = vunpack.c.h.b16 %v8373
    %v8467 = vunpack.c.l.b16 %v8374
    %v8468 = vunpack.c.h.b16 %v8374
    %v8469 = vunpack.c.l.b16 %v8375
    %v8470 = vunpack.c.h.b16 %v8375
    %v8471 = vunpack.c.l.b16 %v8376
    %v8472 = vunpack.c.h.b16 %v8376
    %v8473 = vunpack.c.l.b16 %v8377
    %v8474 = vunpack.c.h.b16 %v8377
    %v8475 = vunpack.c.l.b16 %v8378
    %v8476 = vunpack.c.h.b16 %v8378
    %v8477 = vunpack.c.l.b16 %v8379
    %v8478 = vunpack.c.h.b16 %v8379
    %v8479 = vunpack.c.l.b16 %v8380
    %v8480 = vunpack.c.h.b16 %v8380
    %v8481 = vunpack.c.l.b16 %v8381
    %v8482 = vunpack.c.h.b16 %v8381
    %v8483 = vunpack.c.l.b16 %v8382
    %v8484 = vunpack.c.h.b16 %v8382
    %v8485 = vunpack.c.l.b16 %v8383
    %v8486 = vunpack.c.h.b16 %v8383
    %v8487 = vunpack.c.l.b16 %v8384
    %v8488 = vunpack.c.h.b16 %v8384
    %v8489 = vunpack.c.l.b16 %v8385
    %v8490 = vunpack.c.h.b16 %v8385
    %v8491 = vunpack.c.l.b16 %v8386
    %v8492 = vunpack.c.h.b16 %v8386
    %v8493 = vunpack.c.l.b16 %v8387
    %v8494 = vunpack.c.h.b16 %v8387
    %v8495 = vunpack.c.l.b16 %v8388
    %v8496 = vunpack.c.h.b16 %v8388
    %v8497 = vpack.c.b16 %v8435, %v8433
    %v8498 = vpack.c.b16 %v8436, %v8434
    %v8499 = vpack.c.b16 %v8439, %v8437
    %v8500 = vpack.c.b16 %v8440, %v8438
    %v8501 = vpack.c.b16 %v8443, %v8441
    %v8502 = vpack.c.b16 %v8444, %v8442
    %v8503 = vpack.c.b16 %v8447, %v8445
    %v8504 = vpack.c.b16 %v8448, %v8446
    %v8505 = vpack.c.b16 %v8451, %v8449
    %v8506 = vpack.c.b16 %v8452, %v8450
    %v8507 = vpack.c.b16 %v8455, %v8453
    %v8508 = vpack.c.b16 %v8456, %v8454
    %v8509 = vpack.c.b16 %v8459, %v8457
    %v8510 = vpack.c.b16 %v8460, %v8458
    %v8511 = vpack.c.b16 %v8463, %v8461
    %v8512 = vpack.c.b16 %v8464, %v8462
    %v8513 = vpack.c.b16 %v8467, %v8465
    %v8514 = vpack.c.b16 %v8468, %v8466
    %v8515 = vpack.c.b16 %v8471, %v8469
    %v8516 = vpack.c.b16 %v8472, %v8470
    %v8517 = vpack.c.b16 %v8475, %v8473
    %v8518 = vpack.c.b16 %v8476, %v8474
    %v8519 = vpack.c.b16 %v8479, %v8477
    %v8520 = vpack.c.b16 %v8480, %v8478
    %v8521 = vpack.c.b16 %v8483, %v8481
    %v8522 = vpack.c.b16 %v8484, %v8482
    %v8523 = vpack.c.b16 %v8487, %v8485
    %v8524 = vpack.c.b16 %v8488, %v8486
    %v8525 = vpack.c.b16 %v8491, %v8489
    %v8526 = vpack.c.b16 %v8492, %v8490
    %v8527 = vpack.c.b16 %v8495, %v8493
    %v8528 = vpack.c.b16 %v8496, %v8494
    %8561 = vmatprep.subr.bf16.mxu0 %v8512
    %8562 = vmatpush1.bf16.msra.mxu0 %v8511
    %8563 = vmatprep.subr.bf16.mxu0 %v8510
    %8564 = vmatpush1.bf16.msra.mxu0 %v8509
    %8565 = vmatprep.subr.bf16.mxu0 %v8508
    %8566 = vmatpush1.bf16.msra.mxu0 %v8507
    %8567 = vmatprep.subr.bf16.mxu0 %v8506
    %8568 = vmatpush1.bf16.msra.mxu0 %v8505
    %8569 = vmatprep.subr.bf16.mxu0 %v8504
    %8570 = vmatpush1.bf16.msra.mxu0 %v8503
    %8571 = vmatprep.subr.bf16.mxu0 %v8502
    %8572 = vmatpush1.bf16.msra.mxu0 %v8501
    %8573 = vmatprep.subr.bf16.mxu0 %v8500
    %8574 = vmatpush1.bf16.msra.mxu0 %v8499
    %8575 = vmatprep.subr.bf16.mxu0 %v8498
    %8576 = vmatpush1.bf16.msra.mxu0 %v8497
    %8577 = vmatprep.subr.bf16.mxu0 %v8528
    %8578 = vmatpush2.bf16.msra.mxu0 %v8527
    %8579 = vmatprep.subr.bf16.mxu0 %v8526
    %8580 = vmatpush2.bf16.msra.mxu0 %v8525
    %8581 = vmatprep.subr.bf16.mxu0 %v8524
    %8582 = vmatpush2.bf16.msra.mxu0 %v8523
    %8583 = vmatprep.subr.bf16.mxu0 %v8522
    %8584 = vmatpush2.bf16.msra.mxu0 %v8521
    %8585 = vmatprep.subr.bf16.mxu0 %v8520
    %8586 = vmatpush2.bf16.msra.mxu0 %v8519
    %8587 = vmatprep.subr.bf16.mxu0 %v8518
    %8588 = vmatpush2.bf16.msra.mxu0 %v8517
    %8589 = vmatprep.subr.bf16.mxu0 %v8516
    %8590 = vmatpush2.bf16.msra.mxu0 %v8515
    %8591 = vmatprep.subr.bf16.mxu0 %v8514
    %8592 = vmatpush2.bf16.msra.mxu0 %v8513
    %8593 = vmatprep.mubr.bf16.mxu0 %v8356
    %8594 = vmatmul.mubr.bf16.gmra.mxu0 %v8355
    %v8595 = vpop.f32.mrf.mxu0
    %v8596 = vadd.f32 %v8394, %v8595
    %v8597 = vpop.f32.mrf.mxu0
    %v8598 = vadd.f32 %v8398, %v8597
    %v8599 = vpop.f32.mrf.mxu0
    %v8600 = vpop.f32.mrf.mxu0
    %8601 = vdwg.mxu0
    %v8602 = vmax.f32 %v8596, 0.0
    %v8603 = vmax.f32 %v8598, 0.0
    %v8604 = vpack.c.bf16 %v8602, %v8602
    %v8605 = vpack.c.bf16 %v8603, %v8603
    %v8606 = vld [vmem:[#allocation23] sm:$0xf]
    %v8607 = vld [vmem:[#allocation23 + $0x4] sm:$0xf]
    %v8608 = vld [vmem:[#allocation23 + $0x8] sm:$0xf]
    %v8609 = vld [vmem:[#allocation23 + $0xc] sm:$0xf]
    %v8610 = vld [vmem:[#allocation23 + $0x10] sm:$0xf]
    %v8611 = vld [vmem:[#allocation23 + $0x14] sm:$0xf]
    %v8612 = vld [vmem:[#allocation23 + $0x18] sm:$0xf]
    %v8613 = vld [vmem:[#allocation23 + $0x1c] sm:$0xf]
    %v8614 = vld [vmem:[#allocation23 + $0x20] sm:$0xf]
    %v8615 = vld [vmem:[#allocation23 + $0x24] sm:$0xf]
    %v8616 = vld [vmem:[#allocation23 + $0x28] sm:$0xf]
    %v8617 = vld [vmem:[#allocation23 + $0x2c] sm:$0xf]
    %v8618 = vld [vmem:[#allocation23 + $0x30] sm:$0xf]
    %v8619 = vld [vmem:[#allocation23 + $0x34] sm:$0xf]
    %v8620 = vld [vmem:[#allocation23 + $0x38] sm:$0xf]
    %v8621 = vld [vmem:[#allocation23 + $0x3c] sm:$0xf]
    %v8622 = vld [vmem:[#allocation23 + $0x40] sm:$0xf]
    %v8623 = vld [vmem:[#allocation23 + $0x44] sm:$0xf]
    %v8624 = vld [vmem:[#allocation23 + $0x48] sm:$0xf]
    %v8625 = vld [vmem:[#allocation23 + $0x4c] sm:$0xf]
    %v8626 = vld [vmem:[#allocation23 + $0x50] sm:$0xf]
    %v8627 = vld [vmem:[#allocation23 + $0x54] sm:$0xf]
    %v8628 = vld [vmem:[#allocation23 + $0x58] sm:$0xf]
    %v8629 = vld [vmem:[#allocation23 + $0x5c] sm:$0xf]
    %v8630 = vld [vmem:[#allocation23 + $0x60] sm:$0xf]
    %v8631 = vld [vmem:[#allocation23 + $0x64] sm:$0xf]
    %v8632 = vld [vmem:[#allocation23 + $0x68] sm:$0xf]
    %v8633 = vld [vmem:[#allocation23 + $0x6c] sm:$0xf]
    %v8634 = vld [vmem:[#allocation23 + $0x70] sm:$0xf]
    %v8635 = vld [vmem:[#allocation23 + $0x74] sm:$0xf]
    %v8636 = vld [vmem:[#allocation23 + $0x78] sm:$0xf]
    %v8637 = vld [vmem:[#allocation23 + $0x7c] sm:$0xf]
    %v8638 = vld [vmem:[#allocation25] sm:$0x1]
    %v8640 = vlaneseq
    %v8641 = vshrl.u32 %v8640, 7
    %v8642 = vsub.s32 0, %v8641
    %v8643 = vrot.slane %v8638, %v8642
    %v8677 = vunpack.c.l.b16 %v8606
    %v8678 = vunpack.c.l.b16 %v8607
    %v8679 = vunpack.c.l.b16 %v8608
    %v8680 = vunpack.c.l.b16 %v8609
    %v8681 = vunpack.c.l.b16 %v8610
    %v8682 = vunpack.c.l.b16 %v8611
    %v8683 = vunpack.c.l.b16 %v8612
    %v8684 = vunpack.c.l.b16 %v8613
    %v8685 = vunpack.c.l.b16 %v8614
    %v8686 = vunpack.c.l.b16 %v8615
    %v8687 = vunpack.c.l.b16 %v8616
    %v8688 = vunpack.c.l.b16 %v8617
    %v8689 = vunpack.c.l.b16 %v8618
    %v8690 = vunpack.c.l.b16 %v8619
    %v8691 = vunpack.c.l.b16 %v8620
    %v8692 = vunpack.c.l.b16 %v8621
    %v8693 = vunpack.c.l.b16 %v8622
    %v8694 = vunpack.c.l.b16 %v8623
    %v8695 = vunpack.c.l.b16 %v8624
    %v8696 = vunpack.c.l.b16 %v8625
    %v8697 = vunpack.c.l.b16 %v8626
    %v8698 = vunpack.c.l.b16 %v8627
    %v8699 = vunpack.c.l.b16 %v8628
    %v8700 = vunpack.c.l.b16 %v8629
    %v8701 = vunpack.c.l.b16 %v8630
    %v8702 = vunpack.c.l.b16 %v8631
    %v8703 = vunpack.c.l.b16 %v8632
    %v8704 = vunpack.c.l.b16 %v8633
    %v8705 = vunpack.c.l.b16 %v8634
    %v8706 = vunpack.c.l.b16 %v8635
    %v8707 = vunpack.c.l.b16 %v8636
    %v8708 = vunpack.c.l.b16 %v8637
    %v8709 = vpack.c.b16 %v8678, %v8677
    %v8710 = vpack.c.b16 %v8680, %v8679
    %v8711 = vpack.c.b16 %v8682, %v8681
    %v8712 = vpack.c.b16 %v8684, %v8683
    %v8713 = vpack.c.b16 %v8686, %v8685
    %v8714 = vpack.c.b16 %v8688, %v8687
    %v8715 = vpack.c.b16 %v8690, %v8689
    %v8716 = vpack.c.b16 %v8692, %v8691
    %v8717 = vpack.c.b16 %v8694, %v8693
    %v8718 = vpack.c.b16 %v8696, %v8695
    %v8719 = vpack.c.b16 %v8698, %v8697
    %v8720 = vpack.c.b16 %v8700, %v8699
    %v8721 = vpack.c.b16 %v8702, %v8701
    %v8722 = vpack.c.b16 %v8704, %v8703
    %v8723 = vpack.c.b16 %v8706, %v8705
    %v8724 = vpack.c.b16 %v8708, %v8707
    %8741 = vmatprep.subr.bf16.mxu0 0
    %8742 = vmatpush1.bf16.msra.mxu0 %v8716
    %8743 = vmatprep.subr.bf16.mxu0 0
    %8744 = vmatpush1.bf16.msra.mxu0 %v8715
    %8745 = vmatprep.subr.bf16.mxu0 0
    %8746 = vmatpush1.bf16.msra.mxu0 %v8714
    %8747 = vmatprep.subr.bf16.mxu0 0
    %8748 = vmatpush1.bf16.msra.mxu0 %v8713
    %8749 = vmatprep.subr.bf16.mxu0 0
    %8750 = vmatpush1.bf16.msra.mxu0 %v8712
    %8751 = vmatprep.subr.bf16.mxu0 0
    %8752 = vmatpush1.bf16.msra.mxu0 %v8711
    %8753 = vmatprep.subr.bf16.mxu0 0
    %8754 = vmatpush1.bf16.msra.mxu0 %v8710
    %8755 = vmatprep.subr.bf16.mxu0 0
    %8756 = vmatpush1.bf16.msra.mxu0 %v8709
    %8757 = vmatprep.subr.bf16.mxu0 0
    %8758 = vmatpush2.bf16.msra.mxu0 %v8724
    %8759 = vmatprep.subr.bf16.mxu0 0
    %8760 = vmatpush2.bf16.msra.mxu0 %v8723
    %8761 = vmatprep.subr.bf16.mxu0 0
    %8762 = vmatpush2.bf16.msra.mxu0 %v8722
    %8763 = vmatprep.subr.bf16.mxu0 0
    %8764 = vmatpush2.bf16.msra.mxu0 %v8721
    %8765 = vmatprep.subr.bf16.mxu0 0
    %8766 = vmatpush2.bf16.msra.mxu0 %v8720
    %8767 = vmatprep.subr.bf16.mxu0 0
    %8768 = vmatpush2.bf16.msra.mxu0 %v8719
    %8769 = vmatprep.subr.bf16.mxu0 0
    %8770 = vmatpush2.bf16.msra.mxu0 %v8718
    %8771 = vmatprep.subr.bf16.mxu0 0
    %8772 = vmatpush2.bf16.msra.mxu0 %v8717
    %8773 = vmatprep.mubr.bf16.mxu0 %v8605
    %8774 = vmatmul.mubr.bf16.gmra.mxu0 %v8604
    %v8775 = vpop.f32.mrf.mxu0
    %v8776 = vadd.f32 %v8643, %v8775
    %v8777 = vpop.f32.mrf.mxu0
    %v8778 = vpop.f32.mrf.mxu0
    %v8779 = vpop.f32.mrf.mxu0
    %8780 = vdwg.mxu0
    %8781 = vst [vmem:[#allocation26] sm:$0xff] %v8776
    // Predicated region
    $region122: #{tpu_custom_call.1} parent=1 // pred_check
      _
    $region123: #{tpu_custom_call.1} parent=1 // pred_check_branch
      %8783 = sbr.rel (0) target = $region125
    $region124: #{tpu_custom_call.1} parent=1 // pred_region
      %s8785 = ssub.s32 128, 128
      %8786 = vsyncadd [#allocation4], %s8785
      %s8788 = sshll.u32 [#allocation26], 4
      %s8789 = int_to_ptr.vmem [resolvable:$true] %s8788
      %8791 = dma.vmem_to_hbm [thread:$0]  %s8789, 128, %s15, [#allocation4]
    $region125: #{tpu_custom_call.1} parent=1 // pred_fallthru
      _
    // Predicated region
    $region126: #{tpu_custom_call.1} parent=1 // pred_check
      _
    $region127: #{tpu_custom_call.1} parent=1 // pred_check_branch
      %8793 = sbr.rel (0) target = $region129
    $region128: #{tpu_custom_call.1} parent=1 // pred_region
      %8794 = dma.done [#allocation4], 128
    $region129: #{tpu_custom_call.1} parent=1 // pred_fallthru
      _
    %8795 = vsyncpa [#allocation3], 1
    %8796 = vsyncpa [#allocation6], 1
    %8797 = vsyncpa [#allocation9], 1
    %8798 = vsyncpa [#allocation12], 1
    %8799 = vsyncpa [#allocation15], 1
    %8800 = vsyncpa [#allocation18], 1
    %8801 = vsyncpa [#allocation21], 1
    %8802 = vsyncpa [#allocation24], 1
    %8803 = vsyncpa [#allocation4], 1

</llo_original>
